<compile_context>
chip_gen: v7x
topology: tpu7x:2x2x1
jax: 0.10.0
libtpu: 0.0.40
codegen_flags: <defaults>
</compile_context>

<pallas_src>
import functools

import numpy as np
import jax
import jax.numpy as jnp
from jax.experimental import pallas as pl
from jax.experimental.pallas import tpu as pltpu

BN_EPS = 1e-5


# ----------------------------------------------------------------------------
# Pallas kernels
# ----------------------------------------------------------------------------
def _conv_bn_lrelu_kernel(cols_ref, w_ref, scale_ref, shift_ref, o_ref, *, slope):
    """Fused im2col-Conv1d + folded BatchNorm + LeakyReLU.

    One grid step == one (batch, L-tile) block.
      cols_ref:  (1, TL, K*Cin)  im2col slab (taps folded into the channel axis)
      w_ref:     (K*Cin, Cout)   conv weight, taps-major
      scale_ref: (1, Cout)       folded BN scale           (f32)
      shift_ref: (1, Cout)       folded BN shift (+ bias)  (f32)
      o_ref:     (1, TL, Cout)
    """
    acc = jnp.dot(cols_ref[0], w_ref[...], preferred_element_type=jnp.float32)
    y = acc * scale_ref[...] + shift_ref[...]
    y = jnp.where(y >= 0, y, slope * y)            # LeakyReLU
    o_ref[0] = y.astype(o_ref.dtype)


def _out_conv_tanh_kernel(xT_ref, w_ref, b_ref, o_ref):
    """Final 1x1 Conv (Cout=1) + Tanh with L on the lane axis (dense stores).

      xT_ref: (1, Cin, TL)   w_ref: (1, Cin)   b_ref: (1, 1)   o_ref: (1, 1, TL)
    """
    y = jnp.dot(w_ref[...], xT_ref[0], preferred_element_type=jnp.float32)  # (1, TL)
    y = jnp.tanh(y + b_ref[...])
    o_ref[0] = y.astype(o_ref.dtype)


# ----------------------------------------------------------------------------
# Wrappers (glue stays in JAX; XLA fuses pad/slice/concat into the im2col build)
# ----------------------------------------------------------------------------
def _choose_tile(L):
    """Largest L-tile <= 512 that divides L and is a multiple of 8 (else L)."""
    for t in range(512, 0, -8):
        if L % t == 0:
            return t
    return L


def _im2col_1d(x, K):
    """x: (B, L, C) -> (B, L, K*C) windows for a 'same' conv with odd K."""
    B, L, C = x.shape
    pad = (K - 1) // 2
    xp = jnp.pad(x, ((0, 0), (pad, pad), (0, 0)))
    cols = [xp[:, k:k + L, :] for k in range(K)]   # taps-major channel layout
    return jnp.concatenate(cols, axis=-1)


def conv1d_bn_lrelu(x, w, scale, shift, *, slope, compute_dtype=jnp.bfloat16):
    """x: (B, L, Cin), w: (K, Cin, Cout) -> (B, L, Cout) in compute_dtype."""
    B, L, Cin = x.shape
    K, _, Cout = w.shape
    cols = _im2col_1d(x.astype(compute_dtype), K)          # (B, L, K*Cin)
    Kc = K * Cin
    w2 = w.reshape(Kc, Cout).astype(compute_dtype)
    TL = _choose_tile(L)
    kernel = functools.partial(_conv_bn_lrelu_kernel, slope=slope)
    return pl.pallas_call(
        kernel,
        grid=(B, L // TL),
        in_specs=[
            pl.BlockSpec((1, TL, Kc), lambda b, l: (b, l, 0)),
            pl.BlockSpec((Kc, Cout), lambda b, l: (0, 0)),
            pl.BlockSpec((1, Cout), lambda b, l: (0, 0)),
            pl.BlockSpec((1, Cout), lambda b, l: (0, 0)),
        ],
        out_specs=pl.BlockSpec((1, TL, Cout), lambda b, l: (b, l, 0)),
        out_shape=jax.ShapeDtypeStruct((B, L, Cout), compute_dtype),
        compiler_params=pltpu.CompilerParams(
            dimension_semantics=("parallel", "parallel")),
    )(cols, w2, scale.reshape(1, Cout), shift.reshape(1, Cout))


def out_conv1x1_tanh(x, w, b, *, compute_dtype=jnp.bfloat16):
    """x: (B, L, Cin), w: (Cin,), b: (1,) -> (B, 1, L) float32 (lane axis = L)."""
    B, L, Cin = x.shape
    xT = jnp.transpose(x.astype(compute_dtype), (0, 2, 1))   # (B, Cin, L), tiny
    TL = _choose_tile(L)
    return pl.pallas_call(
        _out_conv_tanh_kernel,
        grid=(B, L // TL),
        in_specs=[
            pl.BlockSpec((1, Cin, TL), lambda bb, l: (bb, 0, l)),
            pl.BlockSpec((1, Cin), lambda bb, l: (0, 0)),
            pl.BlockSpec((1, 1), lambda bb, l: (0, 0)),
        ],
        out_specs=pl.BlockSpec((1, 1, TL), lambda bb, l: (bb, 0, l)),
        out_shape=jax.ShapeDtypeStruct((B, 1, L), jnp.float32),
        compiler_params=pltpu.CompilerParams(
            dimension_semantics=("parallel", "parallel")),
    )(xT, w.reshape(1, Cin).astype(compute_dtype),
      b.reshape(1, 1).astype(jnp.float32))


def maxpool1d_k2s2(x):
    """F.max_pool1d(kernel=2, stride=2) (floor).  Strided max in the wrapper:
    XLA fuses it into the consumer's im2col fusion (no extra launch/round trip)."""
    Lh = x.shape[1] // 2
    return jnp.maximum(x[:, 0:2 * Lh:2, :], x[:, 1:2 * Lh:2, :])


def upsample_linear_align_corners(x, out_len):
    """x: (B, Lin, C) -> (B, out_len, C).  Matches F.interpolate(mode='linear',
    align_corners=True) via a static-index gather + lerp — O(L*C), no dense W."""
    B, Lin, C = x.shape
    if out_len == Lin:
        return x
    if Lin == 1:
        return jnp.broadcast_to(x, (B, out_len, C))
    if out_len == 1:
        # TODO(synk): degenerate size-1 output is not exercised by this model.
        return x[:, :1, :]
    pos = np.arange(out_len, dtype=np.float64) * (Lin - 1) / (out_len - 1)
    lo = np.clip(np.floor(pos).astype(np.int64), 0, Lin - 2)
    frac = jnp.asarray((pos - lo).astype(np.float32))[None, :, None]
    x32 = x.astype(jnp.float32)
    y = x32[:, lo, :] * (1.0 - frac) + x32[:, lo + 1, :] * frac
    return y.astype(x.dtype)


# ----------------------------------------------------------------------------
# Parameter init (deterministic, PyTorch-default-like shapes; BN folded)
# ----------------------------------------------------------------------------
def init_conv_bn(key, cin, cout, ksize, with_bn=True):
    kw, kb, kg, kbe = jax.random.split(key, 4)
    fan_in = cin * ksize
    bound = 1.0 / jnp.sqrt(jnp.float32(fan_in))
    w = jax.random.uniform(kw, (ksize, cin, cout), jnp.float32, -bound, bound)
    b = jax.random.uniform(kb, (cout,), jnp.float32, -bound, bound)
    if with_bn:
        # BatchNorm1d in inference mode: running_mean=0, running_var=1.
        gamma = 1.0 + 0.1 * jax.random.normal(kg, (cout,), jnp.float32)
        beta = 0.1 * jax.random.normal(kbe, (cout,), jnp.float32)
        running_mean = jnp.zeros((cout,), jnp.float32)
        running_var = jnp.ones((cout,), jnp.float32)
        scale = gamma / jnp.sqrt(running_var + BN_EPS)
        shift = (b - running_mean) * scale + beta
    else:
        scale = jnp.ones((cout,), jnp.float32)
        shift = b
    return {"w": w, "scale": scale, "shift": shift}


def init_waveunet_params(key, n_layers, channels_interval):
    enc_in = [1] + [i * channels_interval for i in range(1, n_layers)]
    enc_out = [i * channels_interval for i in range(1, n_layers + 1)]
    dec_in = ([(2 * i + 1) * channels_interval for i in range(1, n_layers)] +
              [2 * n_layers * channels_interval])[::-1]
    dec_out = enc_out[::-1]

    keys = jax.random.split(key, 2 * n_layers + 2)
    params = {"encoder": [], "decoder": []}
    for i in range(n_layers):
        params["encoder"].append(init_conv_bn(keys[i], enc_in[i], enc_out[i], 9))
    params["bottleneck"] = init_conv_bn(keys[n_layers],
                                        n_layers * channels_interval,
                                        n_layers * channels_interval, 3)
    for i in range(n_layers):
        params["decoder"].append(
            init_conv_bn(keys[n_layers + 1 + i], dec_in[i], dec_out[i], 9))
    params["out"] = init_conv_bn(keys[-1], 1 + channels_interval, 1, 1,
                                 with_bn=False)
    return params


# ----------------------------------------------------------------------------
# Forward pass (mirrors WaveUNetPart.forward)
# ----------------------------------------------------------------------------
def waveunet_forward(params, x_ncl, *, n_layers, compute_dtype=jnp.bfloat16):
    # x_ncl: (B, 1, L) PyTorch layout -> channels-last (B, L, 1)
    x = jnp.transpose(x_ncl, (0, 2, 1)).astype(compute_dtype)
    tmp = []
    o = x
    for i in range(n_layers):
        p = params["encoder"][i]
        o = conv1d_bn_lrelu(o, p["w"], p["scale"], p["shift"], slope=0.2,
                            compute_dtype=compute_dtype)
        # TODO(synk): Dropout(p=0.3) and BatchNorm are inference-mode here
        # (dropout = identity, BN running stats folded into scale/shift).
        tmp.append(o)
        o = maxpool1d_k2s2(o)

    p = params["bottleneck"]
    o = conv1d_bn_lrelu(o, p["w"], p["scale"], p["shift"], slope=0.1,
                        compute_dtype=compute_dtype)

    for i in range(n_layers):
        skip = tmp[n_layers - i - 1]
        o = upsample_linear_align_corners(o, skip.shape[1])
        # Concat is wrapper glue; XLA fuses it into the next conv's im2col build.
        o = jnp.concatenate([o, skip], axis=-1)
        p = params["decoder"][i]
        o = conv1d_bn_lrelu(o, p["w"], p["scale"], p["shift"], slope=0.2,
                            compute_dtype=compute_dtype)

    o = jnp.concatenate([o, x], axis=-1)
    p = params["out"]
    w1 = p["w"].reshape(-1)            # (1, Cin, 1) -> (Cin,)
    # Final kernel writes (B, 1, L) directly — already PyTorch Conv1d layout.
    return out_conv1x1_tanh(o, w1, p["shift"], compute_dtype=compute_dtype)


# ----------------------------------------------------------------------------
if __name__ == "__main__":
    n_layers = 4            # small, consistent with the (configurable) module
    channels_interval = 16
    B, L = 2, 64            # L divisible by 2**n_layers

    key = jax.random.PRNGKey(0)
    pkey, xkey = jax.random.split(key)
    params = init_waveunet_params(pkey, n_layers, channels_interval)
    x = jax.random.normal(xkey, (B, 1, L), jnp.float32)

    fwd = jax.jit(functools.partial(waveunet_forward, n_layers=n_layers))
    y = fwd(params, x)
    jax.block_until_ready(y)
    assert y.shape == (B, 1, L), y.shape
    assert bool(jnp.all(jnp.isfinite(y)))
    assert bool(jnp.all(jnp.abs(y) <= 1.0 + 1e-5))   # tanh output range
    print("KERNEL_OK")
</pallas_src>

<mosaic_0001>
module attributes {stable_mosaic.version = 11 : i64} {
  func.func @_conv_bn_lrelu_kernel(%arg0: i32, %arg1: i32, %arg2: memref<1x64x9xbf16, #tpu.memory_space<vmem>>, %arg3: memref<9x16xbf16, #tpu.memory_space<vmem>>, %arg4: memref<1x16xf32, #tpu.memory_space<vmem>>, %arg5: memref<1x16xf32, #tpu.memory_space<vmem>>, %arg6: memref<1x64x16xbf16, #tpu.memory_space<vmem>>) attributes {dimension_semantics = [#tpu.dimension_semantics<parallel>, #tpu.dimension_semantics<parallel>], iteration_bounds = array<i64: 2, 1>, scalar_prefetch = 0 : i64, scratch_operands = 0 : i64, tpu.core_type = #tpu.core_type<tc>, window_params = [{transform_indices = @transform_0, window_bounds = array<i64: 1, 64, 9>}, {pipeline_mode = #tpu.pipeline_mode<synchronous>, transform_indices = @transform_1, window_bounds = array<i64: 9, 16>}, {pipeline_mode = #tpu.pipeline_mode<synchronous>, transform_indices = @transform_2, window_bounds = array<i64: 1, 16>}, {pipeline_mode = #tpu.pipeline_mode<synchronous>, transform_indices = @transform_3, window_bounds = array<i64: 1, 16>}, {transform_indices = @transform_4, window_bounds = array<i64: 1, 64, 16>}]} {
    %c0 = arith.constant 0 : index
    %c0_0 = arith.constant 0 : index
    %c0_1 = arith.constant 0 : index
    %0 = vector.load %arg2[%c0, %c0_0, %c0_1] : memref<1x64x9xbf16, #tpu.memory_space<vmem>>, vector<1x64x9xbf16>
    %1 = vector.shape_cast %0 : vector<1x64x9xbf16> to vector<64x9xbf16>
    %c0_2 = arith.constant 0 : index
    %c0_3 = arith.constant 0 : index
    %2 = vector.load %arg3[%c0_2, %c0_3] : memref<9x16xbf16, #tpu.memory_space<vmem>>, vector<9x16xbf16>
    %cst = arith.constant dense<0.000000e+00> : vector<64x16xf32>
    %3 = tpu.matmul %1, %2, %cst {dimension_numbers = #tpu.dot_dimension_numbers<[1], [0], [0], [1], [0, 0, 1, 1], [], []>} : vector<64x9xbf16>, vector<9x16xbf16>, vector<64x16xf32> -> vector<64x16xf32>
    %c0_4 = arith.constant 0 : index
    %c0_5 = arith.constant 0 : index
    %4 = vector.load %arg4[%c0_4, %c0_5] : memref<1x16xf32, #tpu.memory_space<vmem>>, vector<1x16xf32>
    %5 = vector.broadcast %4 : vector<1x16xf32> to vector<64x16xf32>
    %6 = arith.mulf %3, %5 : vector<64x16xf32>
    %c0_6 = arith.constant 0 : index
    %c0_7 = arith.constant 0 : index
    %7 = vector.load %arg5[%c0_6, %c0_7] : memref<1x16xf32, #tpu.memory_space<vmem>>, vector<1x16xf32>
    %8 = vector.broadcast %7 : vector<1x16xf32> to vector<64x16xf32>
    %9 = arith.addf %6, %8 : vector<64x16xf32>
    %cst_8 = arith.constant 0.000000e+00 : f32
    %10 = vector.broadcast %cst_8 : f32 to vector<64x16xf32>
    %11 = arith.cmpf oge, %9, %10 : vector<64x16xf32>
    %cst_9 = arith.constant 2.000000e-01 : f32
    %12 = vector.broadcast %cst_9 : f32 to vector<64x16xf32>
    %13 = arith.mulf %12, %9 : vector<64x16xf32>
    %14 = arith.select %11, %9, %13 : vector<64x16xi1>, vector<64x16xf32>
    %15 = arith.truncf %14 : vector<64x16xf32> to vector<64x16xbf16>
    %c0_10 = arith.constant 0 : index
    %c0_11 = arith.constant 0 : index
    %c0_12 = arith.constant 0 : index
    %16 = vector.load %arg6[%c0_10, %c0_11, %c0_12] : memref<1x64x16xbf16, #tpu.memory_space<vmem>>, vector<1x64x16xbf16>
    %17 = vector.shape_cast %16 : vector<1x64x16xbf16> to vector<64x16xbf16>
    %18 = vector.shape_cast %15 : vector<64x16xbf16> to vector<1x64x16xbf16>
    tpu.vector_store %arg6[%c0_10, %c0_11, %c0_12], %18 {strides = array<i32>} : memref<1x64x16xbf16, #tpu.memory_space<vmem>>, vector<1x64x16xbf16>,
    return
  }
  func.func @transform_0(%arg0: i32, %arg1: i32) -> (i32, i32, i32) {
    %c0_i32 = arith.constant 0 : i32
    %c0_i32_0 = arith.constant 0 : i32
    return %arg0, %arg1, %c0_i32 : i32, i32, i32
  }
  func.func @transform_1(%arg0: i32, %arg1: i32) -> (i32, i32) {
    %c0_i32 = arith.constant 0 : i32
    %c0_i32_0 = arith.constant 0 : i32
    %c0_i32_1 = arith.constant 0 : i32
    return %c0_i32, %c0_i32_0 : i32, i32
  }
  func.func @transform_2(%arg0: i32, %arg1: i32) -> (i32, i32) {
    %c0_i32 = arith.constant 0 : i32
    %c0_i32_0 = arith.constant 0 : i32
    %c0_i32_1 = arith.constant 0 : i32
    return %c0_i32, %c0_i32_0 : i32, i32
  }
  func.func @transform_3(%arg0: i32, %arg1: i32) -> (i32, i32) {
    %c0_i32 = arith.constant 0 : i32
    %c0_i32_0 = arith.constant 0 : i32
    %c0_i32_1 = arith.constant 0 : i32
    return %c0_i32, %c0_i32_0 : i32, i32
  }
  func.func @transform_4(%arg0: i32, %arg1: i32) -> (i32, i32, i32) {
    %c0_i32 = arith.constant 0 : i32
    %c0_i32_0 = arith.constant 0 : i32
    return %arg0, %arg1, %c0_i32 : i32, i32, i32
  }
}

module attributes {stable_mosaic.version = 11 : i64} {
  func.func @_conv_bn_lrelu_kernel(%arg0: i32, %arg1: i32, %arg2: memref<1x32x144xbf16, #tpu.memory_space<vmem>>, %arg3: memref<144x32xbf16, #tpu.memory_space<vmem>>, %arg4: memref<1x32xf32, #tpu.memory_space<vmem>>, %arg5: memref<1x32xf32, #tpu.memory_space<vmem>>, %arg6: memref<1x32x32xbf16, #tpu.memory_space<vmem>>) attributes {dimension_semantics = [#tpu.dimension_semantics<parallel>, #tpu.dimension_semantics<parallel>], iteration_bounds = array<i64: 2, 1>, scalar_prefetch = 0 : i64, scratch_operands = 0 : i64, tpu.core_type = #tpu.core_type<tc>, window_params = [{transform_indices = @transform_0, window_bounds = array<i64: 1, 32, 144>}, {pipeline_mode = #tpu.pipeline_mode<synchronous>, transform_indices = @transform_1, window_bounds = array<i64: 144, 32>}, {pipeline_mode = #tpu.pipeline_mode<synchronous>, transform_indices = @transform_2, window_bounds = array<i64: 1, 32>}, {pipeline_mode = #tpu.pipeline_mode<synchronous>, transform_indices = @transform_3, window_bounds = array<i64: 1, 32>}, {transform_indices = @transform_4, window_bounds = array<i64: 1, 32, 32>}]} {
    %c0 = arith.constant 0 : index
    %c0_0 = arith.constant 0 : index
    %c0_1 = arith.constant 0 : index
    %0 = vector.load %arg2[%c0, %c0_0, %c0_1] : memref<1x32x144xbf16, #tpu.memory_space<vmem>>, vector<1x32x144xbf16>
    %1 = vector.shape_cast %0 : vector<1x32x144xbf16> to vector<32x144xbf16>
    %c0_2 = arith.constant 0 : index
    %c0_3 = arith.constant 0 : index
    %2 = vector.load %arg3[%c0_2, %c0_3] : memref<144x32xbf16, #tpu.memory_space<vmem>>, vector<144x32xbf16>
    %cst = arith.constant dense<0.000000e+00> : vector<32x32xf32>
    %3 = tpu.matmul %1, %2, %cst {dimension_numbers = #tpu.dot_dimension_numbers<[1], [0], [0], [1], [0, 0, 1, 1], [], []>} : vector<32x144xbf16>, vector<144x32xbf16>, vector<32x32xf32> -> vector<32x32xf32>
    %c0_4 = arith.constant 0 : index
    %c0_5 = arith.constant 0 : index
    %4 = vector.load %arg4[%c0_4, %c0_5] : memref<1x32xf32, #tpu.memory_space<vmem>>, vector<1x32xf32>
    %5 = vector.broadcast %4 : vector<1x32xf32> to vector<32x32xf32>
    %6 = arith.mulf %3, %5 : vector<32x32xf32>
    %c0_6 = arith.constant 0 : index
    %c0_7 = arith.constant 0 : index
    %7 = vector.load %arg5[%c0_6, %c0_7] : memref<1x32xf32, #tpu.memory_space<vmem>>, vector<1x32xf32>
    %8 = vector.broadcast %7 : vector<1x32xf32> to vector<32x32xf32>
    %9 = arith.addf %6, %8 : vector<32x32xf32>
    %cst_8 = arith.constant 0.000000e+00 : f32
    %10 = vector.broadcast %cst_8 : f32 to vector<32x32xf32>
    %11 = arith.cmpf oge, %9, %10 : vector<32x32xf32>
    %cst_9 = arith.constant 2.000000e-01 : f32
    %12 = vector.broadcast %cst_9 : f32 to vector<32x32xf32>
    %13 = arith.mulf %12, %9 : vector<32x32xf32>
    %14 = arith.select %11, %9, %13 : vector<32x32xi1>, vector<32x32xf32>
    %15 = arith.truncf %14 : vector<32x32xf32> to vector<32x32xbf16>
    %c0_10 = arith.constant 0 : index
    %c0_11 = arith.constant 0 : index
    %c0_12 = arith.constant 0 : index
    %16 = vector.load %arg6[%c0_10, %c0_11, %c0_12] : memref<1x32x32xbf16, #tpu.memory_space<vmem>>, vector<1x32x32xbf16>
    %17 = vector.shape_cast %16 : vector<1x32x32xbf16> to vector<32x32xbf16>
    %18 = vector.shape_cast %15 : vector<32x32xbf16> to vector<1x32x32xbf16>
    tpu.vector_store %arg6[%c0_10, %c0_11, %c0_12], %18 {strides = array<i32>} : memref<1x32x32xbf16, #tpu.memory_space<vmem>>, vector<1x32x32xbf16>,
    return
  }
  func.func @transform_0(%arg0: i32, %arg1: i32) -> (i32, i32, i32) {
    %c0_i32 = arith.constant 0 : i32
    %c0_i32_0 = arith.constant 0 : i32
    return %arg0, %arg1, %c0_i32 : i32, i32, i32
  }
  func.func @transform_1(%arg0: i32, %arg1: i32) -> (i32, i32) {
    %c0_i32 = arith.constant 0 : i32
    %c0_i32_0 = arith.constant 0 : i32
    %c0_i32_1 = arith.constant 0 : i32
    return %c0_i32, %c0_i32_0 : i32, i32
  }
  func.func @transform_2(%arg0: i32, %arg1: i32) -> (i32, i32) {
    %c0_i32 = arith.constant 0 : i32
    %c0_i32_0 = arith.constant 0 : i32
    %c0_i32_1 = arith.constant 0 : i32
    return %c0_i32, %c0_i32_0 : i32, i32
  }
  func.func @transform_3(%arg0: i32, %arg1: i32) -> (i32, i32) {
    %c0_i32 = arith.constant 0 : i32
    %c0_i32_0 = arith.constant 0 : i32
    %c0_i32_1 = arith.constant 0 : i32
    return %c0_i32, %c0_i32_0 : i32, i32
  }
  func.func @transform_4(%arg0: i32, %arg1: i32) -> (i32, i32, i32) {
    %c0_i32 = arith.constant 0 : i32
    %c0_i32_0 = arith.constant 0 : i32
    return %arg0, %arg1, %c0_i32 : i32, i32, i32
  }
}

module attributes {stable_mosaic.version = 11 : i64} {
  func.func @_conv_bn_lrelu_kernel(%arg0: i32, %arg1: i32, %arg2: memref<1x16x288xbf16, #tpu.memory_space<vmem>>, %arg3: memref<288x48xbf16, #tpu.memory_space<vmem>>, %arg4: memref<1x48xf32, #tpu.memory_space<vmem>>, %arg5: memref<1x48xf32, #tpu.memory_space<vmem>>, %arg6: memref<1x16x48xbf16, #tpu.memory_space<vmem>>) attributes {dimension_semantics = [#tpu.dimension_semantics<parallel>, #tpu.dimension_semantics<parallel>], iteration_bounds = array<i64: 2, 1>, scalar_prefetch = 0 : i64, scratch_operands = 0 : i64, tpu.core_type = #tpu.core_type<tc>, window_params = [{transform_indices = @transform_0, window_bounds = array<i64: 1, 16, 288>}, {pipeline_mode = #tpu.pipeline_mode<synchronous>, transform_indices = @transform_1, window_bounds = array<i64: 288, 48>}, {pipeline_mode = #tpu.pipeline_mode<synchronous>, transform_indices = @transform_2, window_bounds = array<i64: 1, 48>}, {pipeline_mode = #tpu.pipeline_mode<synchronous>, transform_indices = @transform_3, window_bounds = array<i64: 1, 48>}, {transform_indices = @transform_4, window_bounds = array<i64: 1, 16, 48>}]} {
    %c0 = arith.constant 0 : index
    %c0_0 = arith.constant 0 : index
    %c0_1 = arith.constant 0 : index
    %0 = vector.load %arg2[%c0, %c0_0, %c0_1] : memref<1x16x288xbf16, #tpu.memory_space<vmem>>, vector<1x16x288xbf16>
    %1 = vector.shape_cast %0 : vector<1x16x288xbf16> to vector<16x288xbf16>
    %c0_2 = arith.constant 0 : index
    %c0_3 = arith.constant 0 : index
    %2 = vector.load %arg3[%c0_2, %c0_3] : memref<288x48xbf16, #tpu.memory_space<vmem>>, vector<288x48xbf16>
    %cst = arith.constant dense<0.000000e+00> : vector<16x48xf32>
    %3 = tpu.matmul %1, %2, %cst {dimension_numbers = #tpu.dot_dimension_numbers<[1], [0], [0], [1], [0, 0, 1, 1], [], []>} : vector<16x288xbf16>, vector<288x48xbf16>, vector<16x48xf32> -> vector<16x48xf32>
    %c0_4 = arith.constant 0 : index
    %c0_5 = arith.constant 0 : index
    %4 = vector.load %arg4[%c0_4, %c0_5] : memref<1x48xf32, #tpu.memory_space<vmem>>, vector<1x48xf32>
    %5 = vector.broadcast %4 : vector<1x48xf32> to vector<16x48xf32>
    %6 = arith.mulf %3, %5 : vector<16x48xf32>
    %c0_6 = arith.constant 0 : index
    %c0_7 = arith.constant 0 : index
    %7 = vector.load %arg5[%c0_6, %c0_7] : memref<1x48xf32, #tpu.memory_space<vmem>>, vector<1x48xf32>
    %8 = vector.broadcast %7 : vector<1x48xf32> to vector<16x48xf32>
    %9 = arith.addf %6, %8 : vector<16x48xf32>
    %cst_8 = arith.constant 0.000000e+00 : f32
    %10 = vector.broadcast %cst_8 : f32 to vector<16x48xf32>
    %11 = arith.cmpf oge, %9, %10 : vector<16x48xf32>
    %cst_9 = arith.constant 2.000000e-01 : f32
    %12 = vector.broadcast %cst_9 : f32 to vector<16x48xf32>
    %13 = arith.mulf %12, %9 : vector<16x48xf32>
    %14 = arith.select %11, %9, %13 : vector<16x48xi1>, vector<16x48xf32>
    %15 = arith.truncf %14 : vector<16x48xf32> to vector<16x48xbf16>
    %c0_10 = arith.constant 0 : index
    %c0_11 = arith.constant 0 : index
    %c0_12 = arith.constant 0 : index
    %16 = vector.load %arg6[%c0_10, %c0_11, %c0_12] : memref<1x16x48xbf16, #tpu.memory_space<vmem>>, vector<1x16x48xbf16>
    %17 = vector.shape_cast %16 : vector<1x16x48xbf16> to vector<16x48xbf16>
    %18 = vector.shape_cast %15 : vector<16x48xbf16> to vector<1x16x48xbf16>
    tpu.vector_store %arg6[%c0_10, %c0_11, %c0_12], %18 {strides = array<i32>} : memref<1x16x48xbf16, #tpu.memory_space<vmem>>, vector<1x16x48xbf16>,
    return
  }
  func.func @transform_0(%arg0: i32, %arg1: i32) -> (i32, i32, i32) {
    %c0_i32 = arith.constant 0 : i32
    %c0_i32_0 = arith.constant 0 : i32
    return %arg0, %arg1, %c0_i32 : i32, i32, i32
  }
  func.func @transform_1(%arg0: i32, %arg1: i32) -> (i32, i32) {
    %c0_i32 = arith.constant 0 : i32
    %c0_i32_0 = arith.constant 0 : i32
    %c0_i32_1 = arith.constant 0 : i32
    return %c0_i32, %c0_i32_0 : i32, i32
  }
  func.func @transform_2(%arg0: i32, %arg1: i32) -> (i32, i32) {
    %c0_i32 = arith.constant 0 : i32
    %c0_i32_0 = arith.constant 0 : i32
    %c0_i32_1 = arith.constant 0 : i32
    return %c0_i32, %c0_i32_0 : i32, i32
  }
  func.func @transform_3(%arg0: i32, %arg1: i32) -> (i32, i32) {
    %c0_i32 = arith.constant 0 : i32
    %c0_i32_0 = arith.constant 0 : i32
    %c0_i32_1 = arith.constant 0 : i32
    return %c0_i32, %c0_i32_0 : i32, i32
  }
  func.func @transform_4(%arg0: i32, %arg1: i32) -> (i32, i32, i32) {
    %c0_i32 = arith.constant 0 : i32
    %c0_i32_0 = arith.constant 0 : i32
    return %arg0, %arg1, %c0_i32 : i32, i32, i32
  }
}

module attributes {stable_mosaic.version = 11 : i64} {
  func.func @_conv_bn_lrelu_kernel(%arg0: i32, %arg1: i32, %arg2: memref<1x8x432xbf16, #tpu.memory_space<vmem>>, %arg3: memref<432x64xbf16, #tpu.memory_space<vmem>>, %arg4: memref<1x64xf32, #tpu.memory_space<vmem>>, %arg5: memref<1x64xf32, #tpu.memory_space<vmem>>, %arg6: memref<1x8x64xbf16, #tpu.memory_space<vmem>>) attributes {dimension_semantics = [#tpu.dimension_semantics<parallel>, #tpu.dimension_semantics<parallel>], iteration_bounds = array<i64: 2, 1>, scalar_prefetch = 0 : i64, scratch_operands = 0 : i64, tpu.core_type = #tpu.core_type<tc>, window_params = [{transform_indices = @transform_0, window_bounds = array<i64: 1, 8, 432>}, {pipeline_mode = #tpu.pipeline_mode<synchronous>, transform_indices = @transform_1, window_bounds = array<i64: 432, 64>}, {pipeline_mode = #tpu.pipeline_mode<synchronous>, transform_indices = @transform_2, window_bounds = array<i64: 1, 64>}, {pipeline_mode = #tpu.pipeline_mode<synchronous>, transform_indices = @transform_3, window_bounds = array<i64: 1, 64>}, {transform_indices = @transform_4, window_bounds = array<i64: 1, 8, 64>}]} {
    %c0 = arith.constant 0 : index
    %c0_0 = arith.constant 0 : index
    %c0_1 = arith.constant 0 : index
    %0 = vector.load %arg2[%c0, %c0_0, %c0_1] : memref<1x8x432xbf16, #tpu.memory_space<vmem>>, vector<1x8x432xbf16>
    %1 = vector.shape_cast %0 : vector<1x8x432xbf16> to vector<8x432xbf16>
    %c0_2 = arith.constant 0 : index
    %c0_3 = arith.constant 0 : index
    %2 = vector.load %arg3[%c0_2, %c0_3] : memref<432x64xbf16, #tpu.memory_space<vmem>>, vector<432x64xbf16>
    %cst = arith.constant dense<0.000000e+00> : vector<8x64xf32>
    %3 = tpu.matmul %1, %2, %cst {dimension_numbers = #tpu.dot_dimension_numbers<[1], [0], [0], [1], [0, 0, 1, 1], [], []>} : vector<8x432xbf16>, vector<432x64xbf16>, vector<8x64xf32> -> vector<8x64xf32>
    %c0_4 = arith.constant 0 : index
    %c0_5 = arith.constant 0 : index
    %4 = vector.load %arg4[%c0_4, %c0_5] : memref<1x64xf32, #tpu.memory_space<vmem>>, vector<1x64xf32>
    %5 = vector.broadcast %4 : vector<1x64xf32> to vector<8x64xf32>
    %6 = arith.mulf %3, %5 : vector<8x64xf32>
    %c0_6 = arith.constant 0 : index
    %c0_7 = arith.constant 0 : index
    %7 = vector.load %arg5[%c0_6, %c0_7] : memref<1x64xf32, #tpu.memory_space<vmem>>, vector<1x64xf32>
    %8 = vector.broadcast %7 : vector<1x64xf32> to vector<8x64xf32>
    %9 = arith.addf %6, %8 : vector<8x64xf32>
    %cst_8 = arith.constant 0.000000e+00 : f32
    %10 = vector.broadcast %cst_8 : f32 to vector<8x64xf32>
    %11 = arith.cmpf oge, %9, %10 : vector<8x64xf32>
    %cst_9 = arith.constant 2.000000e-01 : f32
    %12 = vector.broadcast %cst_9 : f32 to vector<8x64xf32>
    %13 = arith.mulf %12, %9 : vector<8x64xf32>
    %14 = arith.select %11, %9, %13 : vector<8x64xi1>, vector<8x64xf32>
    %15 = arith.truncf %14 : vector<8x64xf32> to vector<8x64xbf16>
    %c0_10 = arith.constant 0 : index
    %c0_11 = arith.constant 0 : index
    %c0_12 = arith.constant 0 : index
    %16 = vector.load %arg6[%c0_10, %c0_11, %c0_12] : memref<1x8x64xbf16, #tpu.memory_space<vmem>>, vector<1x8x64xbf16>
    %17 = vector.shape_cast %16 : vector<1x8x64xbf16> to vector<8x64xbf16>
    %18 = vector.shape_cast %15 : vector<8x64xbf16> to vector<1x8x64xbf16>
    tpu.vector_store %arg6[%c0_10, %c0_11, %c0_12], %18 {strides = array<i32>} : memref<1x8x64xbf16, #tpu.memory_space<vmem>>, vector<1x8x64xbf16>,
    return
  }
  func.func @transform_0(%arg0: i32, %arg1: i32) -> (i32, i32, i32) {
    %c0_i32 = arith.constant 0 : i32
    %c0_i32_0 = arith.constant 0 : i32
    return %arg0, %arg1, %c0_i32 : i32, i32, i32
  }
  func.func @transform_1(%arg0: i32, %arg1: i32) -> (i32, i32) {
    %c0_i32 = arith.constant 0 : i32
    %c0_i32_0 = arith.constant 0 : i32
    %c0_i32_1 = arith.constant 0 : i32
    return %c0_i32, %c0_i32_0 : i32, i32
  }
  func.func @transform_2(%arg0: i32, %arg1: i32) -> (i32, i32) {
    %c0_i32 = arith.constant 0 : i32
    %c0_i32_0 = arith.constant 0 : i32
    %c0_i32_1 = arith.constant 0 : i32
    return %c0_i32, %c0_i32_0 : i32, i32
  }
  func.func @transform_3(%arg0: i32, %arg1: i32) -> (i32, i32) {
    %c0_i32 = arith.constant 0 : i32
    %c0_i32_0 = arith.constant 0 : i32
    %c0_i32_1 = arith.constant 0 : i32
    return %c0_i32, %c0_i32_0 : i32, i32
  }
  func.func @transform_4(%arg0: i32, %arg1: i32) -> (i32, i32, i32) {
    %c0_i32 = arith.constant 0 : i32
    %c0_i32_0 = arith.constant 0 : i32
    return %arg0, %arg1, %c0_i32 : i32, i32, i32
  }
}

module attributes {stable_mosaic.version = 11 : i64} {
  func.func @_conv_bn_lrelu_kernel(%arg0: i32, %arg1: i32, %arg2: memref<1x4x192xbf16, #tpu.memory_space<vmem>>, %arg3: memref<192x64xbf16, #tpu.memory_space<vmem>>, %arg4: memref<1x64xf32, #tpu.memory_space<vmem>>, %arg5: memref<1x64xf32, #tpu.memory_space<vmem>>, %arg6: memref<1x4x64xbf16, #tpu.memory_space<vmem>>) attributes {dimension_semantics = [#tpu.dimension_semantics<parallel>, #tpu.dimension_semantics<parallel>], iteration_bounds = array<i64: 2, 1>, scalar_prefetch = 0 : i64, scratch_operands = 0 : i64, tpu.core_type = #tpu.core_type<tc>, window_params = [{transform_indices = @transform_0, window_bounds = array<i64: 1, 4, 192>}, {pipeline_mode = #tpu.pipeline_mode<synchronous>, transform_indices = @transform_1, window_bounds = array<i64: 192, 64>}, {pipeline_mode = #tpu.pipeline_mode<synchronous>, transform_indices = @transform_2, window_bounds = array<i64: 1, 64>}, {pipeline_mode = #tpu.pipeline_mode<synchronous>, transform_indices = @transform_3, window_bounds = array<i64: 1, 64>}, {transform_indices = @transform_4, window_bounds = array<i64: 1, 4, 64>}]} {
    %c0 = arith.constant 0 : index
    %c0_0 = arith.constant 0 : index
    %c0_1 = arith.constant 0 : index
    %0 = vector.load %arg2[%c0, %c0_0, %c0_1] : memref<1x4x192xbf16, #tpu.memory_space<vmem>>, vector<1x4x192xbf16>
    %1 = vector.shape_cast %0 : vector<1x4x192xbf16> to vector<4x192xbf16>
    %c0_2 = arith.constant 0 : index
    %c0_3 = arith.constant 0 : index
    %2 = vector.load %arg3[%c0_2, %c0_3] : memref<192x64xbf16, #tpu.memory_space<vmem>>, vector<192x64xbf16>
    %cst = arith.constant dense<0.000000e+00> : vector<4x64xf32>
    %3 = tpu.matmul %1, %2, %cst {dimension_numbers = #tpu.dot_dimension_numbers<[1], [0], [0], [1], [0, 0, 1, 1], [], []>} : vector<4x192xbf16>, vector<192x64xbf16>, vector<4x64xf32> -> vector<4x64xf32>
    %c0_4 = arith.constant 0 : index
    %c0_5 = arith.constant 0 : index
    %4 = vector.load %arg4[%c0_4, %c0_5] : memref<1x64xf32, #tpu.memory_space<vmem>>, vector<1x64xf32>
    %5 = vector.broadcast %4 : vector<1x64xf32> to vector<4x64xf32>
    %6 = arith.mulf %3, %5 : vector<4x64xf32>
    %c0_6 = arith.constant 0 : index
    %c0_7 = arith.constant 0 : index
    %7 = vector.load %arg5[%c0_6, %c0_7] : memref<1x64xf32, #tpu.memory_space<vmem>>, vector<1x64xf32>
    %8 = vector.broadcast %7 : vector<1x64xf32> to vector<4x64xf32>
    %9 = arith.addf %6, %8 : vector<4x64xf32>
    %cst_8 = arith.constant 0.000000e+00 : f32
    %10 = vector.broadcast %cst_8 : f32 to vector<4x64xf32>
    %11 = arith.cmpf oge, %9, %10 : vector<4x64xf32>
    %cst_9 = arith.constant 1.000000e-01 : f32
    %12 = vector.broadcast %cst_9 : f32 to vector<4x64xf32>
    %13 = arith.mulf %12, %9 : vector<4x64xf32>
    %14 = arith.select %11, %9, %13 : vector<4x64xi1>, vector<4x64xf32>
    %15 = arith.truncf %14 : vector<4x64xf32> to vector<4x64xbf16>
    %c0_10 = arith.constant 0 : index
    %c0_11 = arith.constant 0 : index
    %c0_12 = arith.constant 0 : index
    %16 = vector.load %arg6[%c0_10, %c0_11, %c0_12] : memref<1x4x64xbf16, #tpu.memory_space<vmem>>, vector<1x4x64xbf16>
    %17 = vector.shape_cast %16 : vector<1x4x64xbf16> to vector<4x64xbf16>
    %18 = vector.shape_cast %15 : vector<4x64xbf16> to vector<1x4x64xbf16>
    tpu.vector_store %arg6[%c0_10, %c0_11, %c0_12], %18 {strides = array<i32>} : memref<1x4x64xbf16, #tpu.memory_space<vmem>>, vector<1x4x64xbf16>,
    return
  }
  func.func @transform_0(%arg0: i32, %arg1: i32) -> (i32, i32, i32) {
    %c0_i32 = arith.constant 0 : i32
    %c0_i32_0 = arith.constant 0 : i32
    return %arg0, %arg1, %c0_i32 : i32, i32, i32
  }
  func.func @transform_1(%arg0: i32, %arg1: i32) -> (i32, i32) {
    %c0_i32 = arith.constant 0 : i32
    %c0_i32_0 = arith.constant 0 : i32
    %c0_i32_1 = arith.constant 0 : i32
    return %c0_i32, %c0_i32_0 : i32, i32
  }
  func.func @transform_2(%arg0: i32, %arg1: i32) -> (i32, i32) {
    %c0_i32 = arith.constant 0 : i32
    %c0_i32_0 = arith.constant 0 : i32
    %c0_i32_1 = arith.constant 0 : i32
    return %c0_i32, %c0_i32_0 : i32, i32
  }
  func.func @transform_3(%arg0: i32, %arg1: i32) -> (i32, i32) {
    %c0_i32 = arith.constant 0 : i32
    %c0_i32_0 = arith.constant 0 : i32
    %c0_i32_1 = arith.constant 0 : i32
    return %c0_i32, %c0_i32_0 : i32, i32
  }
  func.func @transform_4(%arg0: i32, %arg1: i32) -> (i32, i32, i32) {
    %c0_i32 = arith.constant 0 : i32
    %c0_i32_0 = arith.constant 0 : i32
    return %arg0, %arg1, %c0_i32 : i32, i32, i32
  }
}

module attributes {stable_mosaic.version = 11 : i64} {
  func.func @_conv_bn_lrelu_kernel(%arg0: i32, %arg1: i32, %arg2: memref<1x8x1152xbf16, #tpu.memory_space<vmem>>, %arg3: memref<1152x64xbf16, #tpu.memory_space<vmem>>, %arg4: memref<1x64xf32, #tpu.memory_space<vmem>>, %arg5: memref<1x64xf32, #tpu.memory_space<vmem>>, %arg6: memref<1x8x64xbf16, #tpu.memory_space<vmem>>) attributes {dimension_semantics = [#tpu.dimension_semantics<parallel>, #tpu.dimension_semantics<parallel>], iteration_bounds = array<i64: 2, 1>, scalar_prefetch = 0 : i64, scratch_operands = 0 : i64, tpu.core_type = #tpu.core_type<tc>, window_params = [{transform_indices = @transform_0, window_bounds = array<i64: 1, 8, 1152>}, {pipeline_mode = #tpu.pipeline_mode<synchronous>, transform_indices = @transform_1, window_bounds = array<i64: 1152, 64>}, {pipeline_mode = #tpu.pipeline_mode<synchronous>, transform_indices = @transform_2, window_bounds = array<i64: 1, 64>}, {pipeline_mode = #tpu.pipeline_mode<synchronous>, transform_indices = @transform_3, window_bounds = array<i64: 1, 64>}, {transform_indices = @transform_4, window_bounds = array<i64: 1, 8, 64>}]} {
    %c0 = arith.constant 0 : index
    %c0_0 = arith.constant 0 : index
    %c0_1 = arith.constant 0 : index
    %0 = vector.load %arg2[%c0, %c0_0, %c0_1] : memref<1x8x1152xbf16, #tpu.memory_space<vmem>>, vector<1x8x1152xbf16>
    %1 = vector.shape_cast %0 : vector<1x8x1152xbf16> to vector<8x1152xbf16>
    %c0_2 = arith.constant 0 : index
    %c0_3 = arith.constant 0 : index
    %2 = vector.load %arg3[%c0_2, %c0_3] : memref<1152x64xbf16, #tpu.memory_space<vmem>>, vector<1152x64xbf16>
    %cst = arith.constant dense<0.000000e+00> : vector<8x64xf32>
    %3 = tpu.matmul %1, %2, %cst {dimension_numbers = #tpu.dot_dimension_numbers<[1], [0], [0], [1], [0, 0, 1, 1], [], []>} : vector<8x1152xbf16>, vector<1152x64xbf16>, vector<8x64xf32> -> vector<8x64xf32>
    %c0_4 = arith.constant 0 : index
    %c0_5 = arith.constant 0 : index
    %4 = vector.load %arg4[%c0_4, %c0_5] : memref<1x64xf32, #tpu.memory_space<vmem>>, vector<1x64xf32>
    %5 = vector.broadcast %4 : vector<1x64xf32> to vector<8x64xf32>
    %6 = arith.mulf %3, %5 : vector<8x64xf32>
    %c0_6 = arith.constant 0 : index
    %c0_7 = arith.constant 0 : index
    %7 = vector.load %arg5[%c0_6, %c0_7] : memref<1x64xf32, #tpu.memory_space<vmem>>, vector<1x64xf32>
    %8 = vector.broadcast %7 : vector<1x64xf32> to vector<8x64xf32>
    %9 = arith.addf %6, %8 : vector<8x64xf32>
    %cst_8 = arith.constant 0.000000e+00 : f32
    %10 = vector.broadcast %cst_8 : f32 to vector<8x64xf32>
    %11 = arith.cmpf oge, %9, %10 : vector<8x64xf32>
    %cst_9 = arith.constant 2.000000e-01 : f32
    %12 = vector.broadcast %cst_9 : f32 to vector<8x64xf32>
    %13 = arith.mulf %12, %9 : vector<8x64xf32>
    %14 = arith.select %11, %9, %13 : vector<8x64xi1>, vector<8x64xf32>
    %15 = arith.truncf %14 : vector<8x64xf32> to vector<8x64xbf16>
    %c0_10 = arith.constant 0 : index
    %c0_11 = arith.constant 0 : index
    %c0_12 = arith.constant 0 : index
    %16 = vector.load %arg6[%c0_10, %c0_11, %c0_12] : memref<1x8x64xbf16, #tpu.memory_space<vmem>>, vector<1x8x64xbf16>
    %17 = vector.shape_cast %16 : vector<1x8x64xbf16> to vector<8x64xbf16>
    %18 = vector.shape_cast %15 : vector<8x64xbf16> to vector<1x8x64xbf16>
    tpu.vector_store %arg6[%c0_10, %c0_11, %c0_12], %18 {strides = array<i32>} : memref<1x8x64xbf16, #tpu.memory_space<vmem>>, vector<1x8x64xbf16>,
    return
  }
  func.func @transform_0(%arg0: i32, %arg1: i32) -> (i32, i32, i32) {
    %c0_i32 = arith.constant 0 : i32
    %c0_i32_0 = arith.constant 0 : i32
    return %arg0, %arg1, %c0_i32 : i32, i32, i32
  }
  func.func @transform_1(%arg0: i32, %arg1: i32) -> (i32, i32) {
    %c0_i32 = arith.constant 0 : i32
    %c0_i32_0 = arith.constant 0 : i32
    %c0_i32_1 = arith.constant 0 : i32
    return %c0_i32, %c0_i32_0 : i32, i32
  }
  func.func @transform_2(%arg0: i32, %arg1: i32) -> (i32, i32) {
    %c0_i32 = arith.constant 0 : i32
    %c0_i32_0 = arith.constant 0 : i32
    %c0_i32_1 = arith.constant 0 : i32
    return %c0_i32, %c0_i32_0 : i32, i32
  }
  func.func @transform_3(%arg0: i32, %arg1: i32) -> (i32, i32) {
    %c0_i32 = arith.constant 0 : i32
    %c0_i32_0 = arith.constant 0 : i32
    %c0_i32_1 = arith.constant 0 : i32
    return %c0_i32, %c0_i32_0 : i32, i32
  }
  func.func @transform_4(%arg0: i32, %arg1: i32) -> (i32, i32, i32) {
    %c0_i32 = arith.constant 0 : i32
    %c0_i32_0 = arith.constant 0 : i32
    return %arg0, %arg1, %c0_i32 : i32, i32, i32
  }
}

module attributes {stable_mosaic.version = 11 : i64} {
  func.func @_conv_bn_lrelu_kernel(%arg0: i32, %arg1: i32, %arg2: memref<1x16x1008xbf16, #tpu.memory_space<vmem>>, %arg3: memref<1008x48xbf16, #tpu.memory_space<vmem>>, %arg4: memref<1x48xf32, #tpu.memory_space<vmem>>, %arg5: memref<1x48xf32, #tpu.memory_space<vmem>>, %arg6: memref<1x16x48xbf16, #tpu.memory_space<vmem>>) attributes {dimension_semantics = [#tpu.dimension_semantics<parallel>, #tpu.dimension_semantics<parallel>], iteration_bounds = array<i64: 2, 1>, scalar_prefetch = 0 : i64, scratch_operands = 0 : i64, tpu.core_type = #tpu.core_type<tc>, window_params = [{transform_indices = @transform_0, window_bounds = array<i64: 1, 16, 1008>}, {pipeline_mode = #tpu.pipeline_mode<synchronous>, transform_indices = @transform_1, window_bounds = array<i64: 1008, 48>}, {pipeline_mode = #tpu.pipeline_mode<synchronous>, transform_indices = @transform_2, window_bounds = array<i64: 1, 48>}, {pipeline_mode = #tpu.pipeline_mode<synchronous>, transform_indices = @transform_3, window_bounds = array<i64: 1, 48>}, {transform_indices = @transform_4, window_bounds = array<i64: 1, 16, 48>}]} {
    %c0 = arith.constant 0 : index
    %c0_0 = arith.constant 0 : index
    %c0_1 = arith.constant 0 : index
    %0 = vector.load %arg2[%c0, %c0_0, %c0_1] : memref<1x16x1008xbf16, #tpu.memory_space<vmem>>, vector<1x16x1008xbf16>
    %1 = vector.shape_cast %0 : vector<1x16x1008xbf16> to vector<16x1008xbf16>
    %c0_2 = arith.constant 0 : index
    %c0_3 = arith.constant 0 : index
    %2 = vector.load %arg3[%c0_2, %c0_3] : memref<1008x48xbf16, #tpu.memory_space<vmem>>, vector<1008x48xbf16>
    %cst = arith.constant dense<0.000000e+00> : vector<16x48xf32>
    %3 = tpu.matmul %1, %2, %cst {dimension_numbers = #tpu.dot_dimension_numbers<[1], [0], [0], [1], [0, 0, 1, 1], [], []>} : vector<16x1008xbf16>, vector<1008x48xbf16>, vector<16x48xf32> -> vector<16x48xf32>
    %c0_4 = arith.constant 0 : index
    %c0_5 = arith.constant 0 : index
    %4 = vector.load %arg4[%c0_4, %c0_5] : memref<1x48xf32, #tpu.memory_space<vmem>>, vector<1x48xf32>
    %5 = vector.broadcast %4 : vector<1x48xf32> to vector<16x48xf32>
    %6 = arith.mulf %3, %5 : vector<16x48xf32>
    %c0_6 = arith.constant 0 : index
    %c0_7 = arith.constant 0 : index
    %7 = vector.load %arg5[%c0_6, %c0_7] : memref<1x48xf32, #tpu.memory_space<vmem>>, vector<1x48xf32>
    %8 = vector.broadcast %7 : vector<1x48xf32> to vector<16x48xf32>
    %9 = arith.addf %6, %8 : vector<16x48xf32>
    %cst_8 = arith.constant 0.000000e+00 : f32
    %10 = vector.broadcast %cst_8 : f32 to vector<16x48xf32>
    %11 = arith.cmpf oge, %9, %10 : vector<16x48xf32>
    %cst_9 = arith.constant 2.000000e-01 : f32
    %12 = vector.broadcast %cst_9 : f32 to vector<16x48xf32>
    %13 = arith.mulf %12, %9 : vector<16x48xf32>
    %14 = arith.select %11, %9, %13 : vector<16x48xi1>, vector<16x48xf32>
    %15 = arith.truncf %14 : vector<16x48xf32> to vector<16x48xbf16>
    %c0_10 = arith.constant 0 : index
    %c0_11 = arith.constant 0 : index
    %c0_12 = arith.constant 0 : index
    %16 = vector.load %arg6[%c0_10, %c0_11, %c0_12] : memref<1x16x48xbf16, #tpu.memory_space<vmem>>, vector<1x16x48xbf16>
    %17 = vector.shape_cast %16 : vector<1x16x48xbf16> to vector<16x48xbf16>
    %18 = vector.shape_cast %15 : vector<16x48xbf16> to vector<1x16x48xbf16>
    tpu.vector_store %arg6[%c0_10, %c0_11, %c0_12], %18 {strides = array<i32>} : memref<1x16x48xbf16, #tpu.memory_space<vmem>>, vector<1x16x48xbf16>,
    return
  }
  func.func @transform_0(%arg0: i32, %arg1: i32) -> (i32, i32, i32) {
    %c0_i32 = arith.constant 0 : i32
    %c0_i32_0 = arith.constant 0 : i32
    return %arg0, %arg1, %c0_i32 : i32, i32, i32
  }
  func.func @transform_1(%arg0: i32, %arg1: i32) -> (i32, i32) {
    %c0_i32 = arith.constant 0 : i32
    %c0_i32_0 = arith.constant 0 : i32
    %c0_i32_1 = arith.constant 0 : i32
    return %c0_i32, %c0_i32_0 : i32, i32
  }
  func.func @transform_2(%arg0: i32, %arg1: i32) -> (i32, i32) {
    %c0_i32 = arith.constant 0 : i32
    %c0_i32_0 = arith.constant 0 : i32
    %c0_i32_1 = arith.constant 0 : i32
    return %c0_i32, %c0_i32_0 : i32, i32
  }
  func.func @transform_3(%arg0: i32, %arg1: i32) -> (i32, i32) {
    %c0_i32 = arith.constant 0 : i32
    %c0_i32_0 = arith.constant 0 : i32
    %c0_i32_1 = arith.constant 0 : i32
    return %c0_i32, %c0_i32_0 : i32, i32
  }
  func.func @transform_4(%arg0: i32, %arg1: i32) -> (i32, i32, i32) {
    %c0_i32 = arith.constant 0 : i32
    %c0_i32_0 = arith.constant 0 : i32
    return %arg0, %arg1, %c0_i32 : i32, i32, i32
  }
}

module attributes {stable_mosaic.version = 11 : i64} {
  func.func @_conv_bn_lrelu_kernel(%arg0: i32, %arg1: i32, %arg2: memref<1x32x720xbf16, #tpu.memory_space<vmem>>, %arg3: memref<720x32xbf16, #tpu.memory_space<vmem>>, %arg4: memref<1x32xf32, #tpu.memory_space<vmem>>, %arg5: memref<1x32xf32, #tpu.memory_space<vmem>>, %arg6: memref<1x32x32xbf16, #tpu.memory_space<vmem>>) attributes {dimension_semantics = [#tpu.dimension_semantics<parallel>, #tpu.dimension_semantics<parallel>], iteration_bounds = array<i64: 2, 1>, scalar_prefetch = 0 : i64, scratch_operands = 0 : i64, tpu.core_type = #tpu.core_type<tc>, window_params = [{transform_indices = @transform_0, window_bounds = array<i64: 1, 32, 720>}, {pipeline_mode = #tpu.pipeline_mode<synchronous>, transform_indices = @transform_1, window_bounds = array<i64: 720, 32>}, {pipeline_mode = #tpu.pipeline_mode<synchronous>, transform_indices = @transform_2, window_bounds = array<i64: 1, 32>}, {pipeline_mode = #tpu.pipeline_mode<synchronous>, transform_indices = @transform_3, window_bounds = array<i64: 1, 32>}, {transform_indices = @transform_4, window_bounds = array<i64: 1, 32, 32>}]} {
    %c0 = arith.constant 0 : index
    %c0_0 = arith.constant 0 : index
    %c0_1 = arith.constant 0 : index
    %0 = vector.load %arg2[%c0, %c0_0, %c0_1] : memref<1x32x720xbf16, #tpu.memory_space<vmem>>, vector<1x32x720xbf16>
    %1 = vector.shape_cast %0 : vector<1x32x720xbf16> to vector<32x720xbf16>
    %c0_2 = arith.constant 0 : index
    %c0_3 = arith.constant 0 : index
    %2 = vector.load %arg3[%c0_2, %c0_3] : memref<720x32xbf16, #tpu.memory_space<vmem>>, vector<720x32xbf16>
    %cst = arith.constant dense<0.000000e+00> : vector<32x32xf32>
    %3 = tpu.matmul %1, %2, %cst {dimension_numbers = #tpu.dot_dimension_numbers<[1], [0], [0], [1], [0, 0, 1, 1], [], []>} : vector<32x720xbf16>, vector<720x32xbf16>, vector<32x32xf32> -> vector<32x32xf32>
    %c0_4 = arith.constant 0 : index
    %c0_5 = arith.constant 0 : index
    %4 = vector.load %arg4[%c0_4, %c0_5] : memref<1x32xf32, #tpu.memory_space<vmem>>, vector<1x32xf32>
    %5 = vector.broadcast %4 : vector<1x32xf32> to vector<32x32xf32>
    %6 = arith.mulf %3, %5 : vector<32x32xf32>
    %c0_6 = arith.constant 0 : index
    %c0_7 = arith.constant 0 : index
    %7 = vector.load %arg5[%c0_6, %c0_7] : memref<1x32xf32, #tpu.memory_space<vmem>>, vector<1x32xf32>
    %8 = vector.broadcast %7 : vector<1x32xf32> to vector<32x32xf32>
    %9 = arith.addf %6, %8 : vector<32x32xf32>
    %cst_8 = arith.constant 0.000000e+00 : f32
    %10 = vector.broadcast %cst_8 : f32 to vector<32x32xf32>
    %11 = arith.cmpf oge, %9, %10 : vector<32x32xf32>
    %cst_9 = arith.constant 2.000000e-01 : f32
    %12 = vector.broadcast %cst_9 : f32 to vector<32x32xf32>
    %13 = arith.mulf %12, %9 : vector<32x32xf32>
    %14 = arith.select %11, %9, %13 : vector<32x32xi1>, vector<32x32xf32>
    %15 = arith.truncf %14 : vector<32x32xf32> to vector<32x32xbf16>
    %c0_10 = arith.constant 0 : index
    %c0_11 = arith.constant 0 : index
    %c0_12 = arith.constant 0 : index
    %16 = vector.load %arg6[%c0_10, %c0_11, %c0_12] : memref<1x32x32xbf16, #tpu.memory_space<vmem>>, vector<1x32x32xbf16>
    %17 = vector.shape_cast %16 : vector<1x32x32xbf16> to vector<32x32xbf16>
    %18 = vector.shape_cast %15 : vector<32x32xbf16> to vector<1x32x32xbf16>
    tpu.vector_store %arg6[%c0_10, %c0_11, %c0_12], %18 {strides = array<i32>} : memref<1x32x32xbf16, #tpu.memory_space<vmem>>, vector<1x32x32xbf16>,
    return
  }
  func.func @transform_0(%arg0: i32, %arg1: i32) -> (i32, i32, i32) {
    %c0_i32 = arith.constant 0 : i32
    %c0_i32_0 = arith.constant 0 : i32
    return %arg0, %arg1, %c0_i32 : i32, i32, i32
  }
  func.func @transform_1(%arg0: i32, %arg1: i32) -> (i32, i32) {
    %c0_i32 = arith.constant 0 : i32
    %c0_i32_0 = arith.constant 0 : i32
    %c0_i32_1 = arith.constant 0 : i32
    return %c0_i32, %c0_i32_0 : i32, i32
  }
  func.func @transform_2(%arg0: i32, %arg1: i32) -> (i32, i32) {
    %c0_i32 = arith.constant 0 : i32
    %c0_i32_0 = arith.constant 0 : i32
    %c0_i32_1 = arith.constant 0 : i32
    return %c0_i32, %c0_i32_0 : i32, i32
  }
  func.func @transform_3(%arg0: i32, %arg1: i32) -> (i32, i32) {
    %c0_i32 = arith.constant 0 : i32
    %c0_i32_0 = arith.constant 0 : i32
    %c0_i32_1 = arith.constant 0 : i32
    return %c0_i32, %c0_i32_0 : i32, i32
  }
  func.func @transform_4(%arg0: i32, %arg1: i32) -> (i32, i32, i32) {
    %c0_i32 = arith.constant 0 : i32
    %c0_i32_0 = arith.constant 0 : i32
    return %arg0, %arg1, %c0_i32 : i32, i32, i32
  }
}

module attributes {stable_mosaic.version = 11 : i64} {
  func.func @_conv_bn_lrelu_kernel(%arg0: i32, %arg1: i32, %arg2: memref<1x64x432xbf16, #tpu.memory_space<vmem>>, %arg3: memref<432x16xbf16, #tpu.memory_space<vmem>>, %arg4: memref<1x16xf32, #tpu.memory_space<vmem>>, %arg5: memref<1x16xf32, #tpu.memory_space<vmem>>, %arg6: memref<1x64x16xbf16, #tpu.memory_space<vmem>>) attributes {dimension_semantics = [#tpu.dimension_semantics<parallel>, #tpu.dimension_semantics<parallel>], iteration_bounds = array<i64: 2, 1>, scalar_prefetch = 0 : i64, scratch_operands = 0 : i64, tpu.core_type = #tpu.core_type<tc>, window_params = [{transform_indices = @transform_0, window_bounds = array<i64: 1, 64, 432>}, {pipeline_mode = #tpu.pipeline_mode<synchronous>, transform_indices = @transform_1, window_bounds = array<i64: 432, 16>}, {pipeline_mode = #tpu.pipeline_mode<synchronous>, transform_indices = @transform_2, window_bounds = array<i64: 1, 16>}, {pipeline_mode = #tpu.pipeline_mode<synchronous>, transform_indices = @transform_3, window_bounds = array<i64: 1, 16>}, {transform_indices = @transform_4, window_bounds = array<i64: 1, 64, 16>}]} {
    %c0 = arith.constant 0 : index
    %c0_0 = arith.constant 0 : index
    %c0_1 = arith.constant 0 : index
    %0 = vector.load %arg2[%c0, %c0_0, %c0_1] : memref<1x64x432xbf16, #tpu.memory_space<vmem>>, vector<1x64x432xbf16>
    %1 = vector.shape_cast %0 : vector<1x64x432xbf16> to vector<64x432xbf16>
    %c0_2 = arith.constant 0 : index
    %c0_3 = arith.constant 0 : index
    %2 = vector.load %arg3[%c0_2, %c0_3] : memref<432x16xbf16, #tpu.memory_space<vmem>>, vector<432x16xbf16>
    %cst = arith.constant dense<0.000000e+00> : vector<64x16xf32>
    %3 = tpu.matmul %1, %2, %cst {dimension_numbers = #tpu.dot_dimension_numbers<[1], [0], [0], [1], [0, 0, 1, 1], [], []>} : vector<64x432xbf16>, vector<432x16xbf16>, vector<64x16xf32> -> vector<64x16xf32>
    %c0_4 = arith.constant 0 : index
    %c0_5 = arith.constant 0 : index
    %4 = vector.load %arg4[%c0_4, %c0_5] : memref<1x16xf32, #tpu.memory_space<vmem>>, vector<1x16xf32>
    %5 = vector.broadcast %4 : vector<1x16xf32> to vector<64x16xf32>
    %6 = arith.mulf %3, %5 : vector<64x16xf32>
    %c0_6 = arith.constant 0 : index
    %c0_7 = arith.constant 0 : index
    %7 = vector.load %arg5[%c0_6, %c0_7] : memref<1x16xf32, #tpu.memory_space<vmem>>, vector<1x16xf32>
    %8 = vector.broadcast %7 : vector<1x16xf32> to vector<64x16xf32>
    %9 = arith.addf %6, %8 : vector<64x16xf32>
    %cst_8 = arith.constant 0.000000e+00 : f32
    %10 = vector.broadcast %cst_8 : f32 to vector<64x16xf32>
    %11 = arith.cmpf oge, %9, %10 : vector<64x16xf32>
    %cst_9 = arith.constant 2.000000e-01 : f32
    %12 = vector.broadcast %cst_9 : f32 to vector<64x16xf32>
    %13 = arith.mulf %12, %9 : vector<64x16xf32>
    %14 = arith.select %11, %9, %13 : vector<64x16xi1>, vector<64x16xf32>
    %15 = arith.truncf %14 : vector<64x16xf32> to vector<64x16xbf16>
    %c0_10 = arith.constant 0 : index
    %c0_11 = arith.constant 0 : index
    %c0_12 = arith.constant 0 : index
    %16 = vector.load %arg6[%c0_10, %c0_11, %c0_12] : memref<1x64x16xbf16, #tpu.memory_space<vmem>>, vector<1x64x16xbf16>
    %17 = vector.shape_cast %16 : vector<1x64x16xbf16> to vector<64x16xbf16>
    %18 = vector.shape_cast %15 : vector<64x16xbf16> to vector<1x64x16xbf16>
    tpu.vector_store %arg6[%c0_10, %c0_11, %c0_12], %18 {strides = array<i32>} : memref<1x64x16xbf16, #tpu.memory_space<vmem>>, vector<1x64x16xbf16>,
    return
  }
  func.func @transform_0(%arg0: i32, %arg1: i32) -> (i32, i32, i32) {
    %c0_i32 = arith.constant 0 : i32
    %c0_i32_0 = arith.constant 0 : i32
    return %arg0, %arg1, %c0_i32 : i32, i32, i32
  }
  func.func @transform_1(%arg0: i32, %arg1: i32) -> (i32, i32) {
    %c0_i32 = arith.constant 0 : i32
    %c0_i32_0 = arith.constant 0 : i32
    %c0_i32_1 = arith.constant 0 : i32
    return %c0_i32, %c0_i32_0 : i32, i32
  }
  func.func @transform_2(%arg0: i32, %arg1: i32) -> (i32, i32) {
    %c0_i32 = arith.constant 0 : i32
    %c0_i32_0 = arith.constant 0 : i32
    %c0_i32_1 = arith.constant 0 : i32
    return %c0_i32, %c0_i32_0 : i32, i32
  }
  func.func @transform_3(%arg0: i32, %arg1: i32) -> (i32, i32) {
    %c0_i32 = arith.constant 0 : i32
    %c0_i32_0 = arith.constant 0 : i32
    %c0_i32_1 = arith.constant 0 : i32
    return %c0_i32, %c0_i32_0 : i32, i32
  }
  func.func @transform_4(%arg0: i32, %arg1: i32) -> (i32, i32, i32) {
    %c0_i32 = arith.constant 0 : i32
    %c0_i32_0 = arith.constant 0 : i32
    return %arg0, %arg1, %c0_i32 : i32, i32, i32
  }
}

module attributes {stable_mosaic.version = 11 : i64} {
  func.func @_out_conv_tanh_kernel(%arg0: i32, %arg1: i32, %arg2: memref<1x17x64xbf16, #tpu.memory_space<vmem>>, %arg3: memref<1x17xbf16, #tpu.memory_space<vmem>>, %arg4: memref<1x1xf32, #tpu.memory_space<vmem>>, %arg5: memref<1x1x64xf32, #tpu.memory_space<vmem>>) attributes {dimension_semantics = [#tpu.dimension_semantics<parallel>, #tpu.dimension_semantics<parallel>], iteration_bounds = array<i64: 2, 1>, scalar_prefetch = 0 : i64, scratch_operands = 0 : i64, tpu.core_type = #tpu.core_type<tc>, window_params = [{transform_indices = @transform_0, window_bounds = array<i64: 1, 17, 64>}, {pipeline_mode = #tpu.pipeline_mode<synchronous>, transform_indices = @transform_1, window_bounds = array<i64: 1, 17>}, {pipeline_mode = #tpu.pipeline_mode<synchronous>, transform_indices = @transform_2, window_bounds = array<i64: 1, 1>}, {transform_indices = @transform_3, window_bounds = array<i64: 1, 1, 64>}]} {
    %c0 = arith.constant 0 : index
    %c0_0 = arith.constant 0 : index
    %0 = vector.load %arg3[%c0, %c0_0] : memref<1x17xbf16, #tpu.memory_space<vmem>>, vector<1x17xbf16>
    %c0_1 = arith.constant 0 : index
    %c0_2 = arith.constant 0 : index
    %c0_3 = arith.constant 0 : index
    %1 = vector.load %arg2[%c0_1, %c0_2, %c0_3] : memref<1x17x64xbf16, #tpu.memory_space<vmem>>, vector<1x17x64xbf16>
    %2 = vector.shape_cast %1 : vector<1x17x64xbf16> to vector<17x64xbf16>
    %cst = arith.constant dense<0.000000e+00> : vector<1x64xf32>
    %3 = tpu.matmul %0, %2, %cst {dimension_numbers = #tpu.dot_dimension_numbers<[1], [0], [0], [1], [0, 0, 1, 1], [], []>} : vector<1x17xbf16>, vector<17x64xbf16>, vector<1x64xf32> -> vector<1x64xf32>
    %c0_4 = arith.constant 0 : index
    %c0_5 = arith.constant 0 : index
    %4 = vector.load %arg4[%c0_4, %c0_5] : memref<1x1xf32, #tpu.memory_space<vmem>>, vector<1x1xf32>
    %5 = vector.broadcast %4 : vector<1x1xf32> to vector<1x64xf32>
    %6 = arith.addf %3, %5 : vector<1x64xf32>
    %7 = math.tanh %6 : vector<1x64xf32>
    %c0_6 = arith.constant 0 : index
    %c0_7 = arith.constant 0 : index
    %c0_8 = arith.constant 0 : index
    %8 = vector.load %arg5[%c0_6, %c0_7, %c0_8] : memref<1x1x64xf32, #tpu.memory_space<vmem>>, vector<1x1x64xf32>
    %9 = vector.shape_cast %8 : vector<1x1x64xf32> to vector<1x64xf32>
    %10 = vector.shape_cast %7 : vector<1x64xf32> to vector<1x1x64xf32>
    tpu.vector_store %arg5[%c0_6, %c0_7, %c0_8], %10 {strides = array<i32>} : memref<1x1x64xf32, #tpu.memory_space<vmem>>, vector<1x1x64xf32>,
    return
  }
  func.func @transform_0(%arg0: i32, %arg1: i32) -> (i32, i32, i32) {
    %c0_i32 = arith.constant 0 : i32
    %c0_i32_0 = arith.constant 0 : i32
    return %arg0, %c0_i32, %arg1 : i32, i32, i32
  }
  func.func @transform_1(%arg0: i32, %arg1: i32) -> (i32, i32) {
    %c0_i32 = arith.constant 0 : i32
    %c0_i32_0 = arith.constant 0 : i32
    %c0_i32_1 = arith.constant 0 : i32
    return %c0_i32, %c0_i32_0 : i32, i32
  }
  func.func @transform_2(%arg0: i32, %arg1: i32) -> (i32, i32) {
    %c0_i32 = arith.constant 0 : i32
    %c0_i32_0 = arith.constant 0 : i32
    %c0_i32_1 = arith.constant 0 : i32
    return %c0_i32, %c0_i32_0 : i32, i32
  }
  func.func @transform_3(%arg0: i32, %arg1: i32) -> (i32, i32, i32) {
    %c0_i32 = arith.constant 0 : i32
    %c0_i32_0 = arith.constant 0 : i32
    return %arg0, %c0_i32, %arg1 : i32, i32, i32
  }
}

</mosaic_0001>

<llo_original>
// kernel: waveunet_forward.10
$region0: #{waveunet_forward.10}
  #allocation0 [shape = 'u32[]', space=smem, size = 0x4, offset = 0x4, fixed_abs, tag = 'smem constant byte address 0x4 - core index']
  #allocation1 [shape = 'u32[144,128]{1,0:T(1,128)}', space=vmem, size = 0x12000, scoped, tag = 'internal scratch']
  %s0 = inlined_call_operand.vmem [shape: bf16[2,64,9], index: 0, kind: input, shape index: {}]
  %s1 = inlined_call_operand.vmem [shape: bf16[9,16], index: 1, kind: input, shape index: {}]
  %s2 = inlined_call_operand.vmem [shape: f32[1,16], index: 2, kind: input, shape index: {}]
  %s3 = inlined_call_operand.vmem [shape: f32[1,16], index: 3, kind: input, shape index: {}]
  %s4 = inlined_call_operand.vmem [shape: bf16[2,64,16], index: 4, kind: output, shape index: {}]
  %s5 = sld [smem:[#allocation0]]
  $region49: #{waveunet_forward.10} parent=0
    _
  %s7 = ssub.s32 1, %s5
  %s8 = scalar_select 0, %s7, %s5
  loop: start=0, step=1, limit=4
  $region2: #{waveunet_forward.10} parent=0 // loop_pre_header
    _
  $region3: #{waveunet_forward.10} parent=0 // loop_header
    %s10 = sphi 0, %s14
    %p11 = scmp.ge.s32.totalorder %s10, 4
    %s17 = sphi 0, %s29
    %s18 = sphi 0, %s25
    %s19 = sphi 0, %s17
    %s20 = sphi 0, %s18
    %s21 = sphi 0, %s19
    %s22 = sphi 0, %s20
    %s34 = sphi 0, %s36
    %s37 = sphi 0, %s34
    %s38 = sphi 0, %s37
    %s54 = sphi 0, %s38
    %s58 = sphi 0, %s58
    %s60 = sphi 0, %s58
    %s61 = sphi 0, %s60
    %s75 = sphi 0, %s61
    %s79 = sphi 0, %s79
    %s81 = sphi 0, %s79
    %s82 = sphi 0, %s81
    %s96 = sphi 0, %s82
    %s100 = sphi 0, %s100
    %s102 = sphi 0, %s100
    %s103 = sphi 0, %s102
    %s117 = sphi 0, %s103
    %s125 = sphi 0, %s127
    %s128 = sphi 0, %s125
    %s129 = sphi 0, %s128
    %s145 = sphi 0, %s129
  $region4: #{waveunet_forward.10} parent=0 // loop_header_branch
    %13 = sbr.rel (%p11) target = $region8
  $region5: #{waveunet_forward.10} parent=0 // loop_body
    %s15 = ssub.s32 %s10, 1
    %s16 = ssub.s32 %s10, 2
    %s23 = sadd.s32 1, %s18
    %p24 = scmp.ge.s32.totalorder %s23, 1
    %s25 = scalar_select %p24, 0, %s23
    %s26 = sadd.s32 1, %s17
    %s27 = scalar_select %p24, %s26, %s17
    %p28 = scmp.ge.s32.totalorder %s27, 2
    %s29 = scalar_select %p28, 0, %s27
    %s30 = ssub.s32 %s17, %s29
    %s31 = ssub.s32 %s18, %s25
    %s32 = sor.u32 %s30, %s31
    %p33 = scmp.eq.s32.totalorder %s32, 0
    %s35 = sadd.s32 %s34, 1
    %s36 = scalar_select %p33, %s34, %s35
    %p39 = pneg %p33
    %p40 = scmp.eq.s32.totalorder %s10, 1
    %p41 = por %p39, %p40
    %p42 = scmp.ne.s32.totalorder %s34, %s37
    %p43 = scmp.eq.s32.totalorder %s10, 0
    %p44 = por %p42, %p43
    %p45 = scmp.ne.s32.totalorder %s34, %s37
    %p46 = scmp.eq.s32.totalorder %s15, 1
    %p47 = por %p45, %p46
    %p48 = scmp.ne.s32.totalorder %s37, %s38
    %p49 = scmp.eq.s32.totalorder %s15, 0
    %p50 = por %p48, %p49
    %p51 = scmp.ne.s32.totalorder %s37, %s38
    %p52 = scmp.eq.s32.totalorder %s16, 1
    %p53 = por %p51, %p52
    %p55 = scmp.ne.s32.totalorder %s38, %s54
    %p56 = scmp.eq.s32.totalorder %s16, 0
    %p57 = por %p55, %p56
    %s59 = sadd.s32 %s58, 1
    %p62 = scmp.eq.s32.totalorder %s10, 1
    %p63 = scmp.ne.s32.totalorder %s58, %s60
    %p64 = scmp.eq.s32.totalorder %s10, 0
    %p65 = por %p63, %p64
    %p66 = scmp.ne.s32.totalorder %s58, %s60
    %p67 = scmp.eq.s32.totalorder %s15, 1
    %p68 = por %p66, %p67
    %p69 = scmp.ne.s32.totalorder %s60, %s61
    %p70 = scmp.eq.s32.totalorder %s15, 0
    %p71 = por %p69, %p70
    %p72 = scmp.ne.s32.totalorder %s60, %s61
    %p73 = scmp.eq.s32.totalorder %s16, 1
    %p74 = por %p72, %p73
    %p76 = scmp.ne.s32.totalorder %s61, %s75
    %p77 = scmp.eq.s32.totalorder %s16, 0
    %p78 = por %p76, %p77
    %s80 = sadd.s32 %s79, 1
    %p83 = scmp.eq.s32.totalorder %s10, 1
    %p84 = scmp.ne.s32.totalorder %s79, %s81
    %p85 = scmp.eq.s32.totalorder %s10, 0
    %p86 = por %p84, %p85
    %p87 = scmp.ne.s32.totalorder %s79, %s81
    %p88 = scmp.eq.s32.totalorder %s15, 1
    %p89 = por %p87, %p88
    %p90 = scmp.ne.s32.totalorder %s81, %s82
    %p91 = scmp.eq.s32.totalorder %s15, 0
    %p92 = por %p90, %p91
    %p93 = scmp.ne.s32.totalorder %s81, %s82
    %p94 = scmp.eq.s32.totalorder %s16, 1
    %p95 = por %p93, %p94
    %p97 = scmp.ne.s32.totalorder %s82, %s96
    %p98 = scmp.eq.s32.totalorder %s16, 0
    %p99 = por %p97, %p98
    %s101 = sadd.s32 %s100, 1
    %p104 = scmp.eq.s32.totalorder %s10, 1
    %p105 = scmp.ne.s32.totalorder %s100, %s102
    %p106 = scmp.eq.s32.totalorder %s10, 0
    %p107 = por %p105, %p106
    %p108 = scmp.ne.s32.totalorder %s100, %s102
    %p109 = scmp.eq.s32.totalorder %s15, 1
    %p110 = por %p108, %p109
    %p111 = scmp.ne.s32.totalorder %s102, %s103
    %p112 = scmp.eq.s32.totalorder %s15, 0
    %p113 = por %p111, %p112
    %p114 = scmp.ne.s32.totalorder %s102, %s103
    %p115 = scmp.eq.s32.totalorder %s16, 1
    %p116 = por %p114, %p115
    %p118 = scmp.ne.s32.totalorder %s103, %s117
    %p119 = scmp.eq.s32.totalorder %s16, 0
    %p120 = por %p118, %p119
    %s121 = ssub.s32 %s17, %s29
    %s122 = ssub.s32 %s18, %s25
    %s123 = sor.u32 %s121, %s122
    %p124 = scmp.eq.s32.totalorder %s123, 0
    %s126 = sadd.s32 %s125, 1
    %s127 = scalar_select %p124, %s125, %s126
    %p130 = pneg %p124
    %p131 = scmp.eq.s32.totalorder %s10, 1
    %p132 = por %p130, %p131
    %p133 = scmp.ne.s32.totalorder %s125, %s128
    %p134 = scmp.eq.s32.totalorder %s10, 0
    %p135 = por %p133, %p134
    %p136 = scmp.ne.s32.totalorder %s125, %s128
    %p137 = scmp.eq.s32.totalorder %s15, 1
    %p138 = por %p136, %p137
    %p139 = scmp.ne.s32.totalorder %s128, %s129
    %p140 = scmp.eq.s32.totalorder %s15, 0
    %p141 = por %p139, %p140
    %p142 = scmp.ne.s32.totalorder %s128, %s129
    %p143 = scmp.eq.s32.totalorder %s16, 1
    %p144 = por %p142, %p143
    %p146 = scmp.ne.s32.totalorder %s129, %s145
    %p147 = scmp.eq.s32.totalorder %s16, 0
    %p148 = por %p146, %p147
    %p149 = scmp.le.s32.totalorder 1, %s10
    %p150 = scmp.lt.s32.totalorder %s10, 3
    %p151 = pnand %p149, %p150
    %p152 = pneg %p151
    // Predicated region
    $region9: #{waveunet_forward.10} parent=5 // pred_check
      _
    $region10: #{waveunet_forward.10} parent=5 // pred_check_branch
      %154 = sbr.rel (%p151) target = $region12
    $region11: #{waveunet_forward.10} parent=5 // pred_region
      %s155 = ssub.s32 %s10, 1
      // Predicated region
      $region13: #{waveunet_forward.10} parent=11 // pred_check
        %p156 = pneg %p71
      $region14: #{waveunet_forward.10} parent=11 // pred_check_branch
        %158 = sbr.rel (%p156) target = $region16
      $region15: #{waveunet_forward.10} parent=11 // pred_region
        _
      $region16: #{waveunet_forward.10} parent=11 // pred_fallthru
        _
      // Predicated region
      $region17: #{waveunet_forward.10} parent=11 // pred_check
        %p159 = pneg %p92
      $region18: #{waveunet_forward.10} parent=11 // pred_check_branch
        %161 = sbr.rel (%p159) target = $region20
      $region19: #{waveunet_forward.10} parent=11 // pred_region
        _
      $region20: #{waveunet_forward.10} parent=11 // pred_fallthru
        _
      // Predicated region
      $region21: #{waveunet_forward.10} parent=11 // pred_check
        %p162 = pneg %p113
      $region22: #{waveunet_forward.10} parent=11 // pred_check_branch
        %164 = sbr.rel (%p162) target = $region24
      $region23: #{waveunet_forward.10} parent=11 // pred_region
        _
      $region24: #{waveunet_forward.10} parent=11 // pred_fallthru
        _
    $region12: #{waveunet_forward.10} parent=5 // pred_fallthru
      _
    %p165 = scmp.lt.s32.totalorder %s10, 2
    // Predicated region
    $region25: #{waveunet_forward.10} parent=5 // pred_check
      %p166 = pneg %p165
    $region26: #{waveunet_forward.10} parent=5 // pred_check_branch
      %168 = sbr.rel (%p166) target = $region28
    $region27: #{waveunet_forward.10} parent=5 // pred_region
      // Predicated region
      $region29: #{waveunet_forward.10} parent=27 // pred_check
        %p169 = pneg %p44
      $region30: #{waveunet_forward.10} parent=27 // pred_check_branch
        %171 = sbr.rel (%p169) target = $region32
      $region31: #{waveunet_forward.10} parent=27 // pred_region
        %s172 = smul.u32 8, %s18
        %p173 = scmp.lt.s32.totalorder %s17, 1
        %s174 = scalar_select %p173, %s17, 1
        %p175 = scmp.lt.s32.totalorder %s172, 7
        %s176 = scalar_select %p175, %s172, 7
        %s177 = smul.addr %s174, 8
        %s178 = sadd.s32 %s176, %s177
        %s179 = smul.addr %s178, 4
        %s180 = scalar_lea.vmem %s0, %s179
        %s181 = smul.u32 8, %s18
      $region32: #{waveunet_forward.10} parent=27 // pred_fallthru
        _
    $region28: #{waveunet_forward.10} parent=5 // pred_fallthru
      _
    %p182 = scmp.le.s32.totalorder 1, %s10
    %p183 = scmp.lt.s32.totalorder %s10, 3
    %p184 = pnand %p182, %p183
    %p185 = pneg %p184
    // Predicated region
    $region33: #{waveunet_forward.10} parent=5 // pred_check
      _
    $region34: #{waveunet_forward.10} parent=5 // pred_check_branch
      %187 = sbr.rel (%p184) target = $region36
    $region35: #{waveunet_forward.10} parent=5 // pred_region
      %s188 = ssub.s32 %s10, 1
      %s189 = smul.u32 8, %s20
      %p190 = scmp.lt.s32.totalorder %s19, 1
      %s191 = scalar_select %p190, %s19, 1
      %p192 = scmp.lt.s32.totalorder %s189, 7
      %s193 = scalar_select %p192, %s189, 7
      %s194 = smul.addr %s191, 8
      %s195 = sadd.s32 %s193, %s194
      %s196 = smul.addr %s195, 4
      %s197 = scalar_lea.vmem %s0, %s196
      %p198 = pneg %p50
      %p199 = pneg %p47
      %p200 = pneg %p71
      %p201 = pneg %p68
      %p202 = pneg %p92
      %p203 = pneg %p89
      %p204 = pneg %p113
      %p205 = pneg %p110
      %p206 = pneg %p141
      %p207 = pneg %p138
      %s208 = smul.u32 8, %s20
      %p209 = scmp.lt.s32.totalorder %s19, 1
      %s210 = scalar_select %p209, %s19, 1
      %p211 = scmp.lt.s32.totalorder %s208, 7
      %s212 = scalar_select %p211, %s208, 7
      %s213 = smul.addr %s210, 8
      %s214 = sadd.s32 %s212, %s213
      %s215 = smul.addr %s214, 4
      %s216 = scalar_lea.vmem %s4, %s215
      %s217 = smul.u32 8, %s20
      %p218 = scmp.lt.s32.totalorder %s19, 1
      %s219 = scalar_select %p218, %s19, 1
      %p220 = scmp.lt.s32.totalorder %s217, 7
      %s221 = scalar_select %p220, %s217, 7
      %s222 = smul.addr %s219, 8
      %s223 = sadd.s32 %s221, %s222
      %s224 = smul.addr %s223, 4
      %s225 = scalar_lea.vmem %s0, %s224
      %s226 = smul.u32 8, %s20
      %s227 = smul.u32 8, %s20
      %p228 = scmp.lt.s32.totalorder %s19, 1
      %s229 = scalar_select %p228, %s19, 1
      %p230 = scmp.lt.s32.totalorder %s227, 7
      %s231 = scalar_select %p230, %s227, 7
      %s232 = smul.addr %s229, 8
      %s233 = sadd.s32 %s231, %s232
      %s234 = smul.addr %s233, 4
      %s235 = scalar_lea.vmem %s4, %s234
      %s236 = smul.u32 8, %s20
      %v238 = vld [vmem:[%s225] sm:$0xf]
      %v239 = vld [vmem:[%s225 + $0x4] sm:$0xf]
      %v240 = vld [vmem:[%s225 + $0x8] sm:$0xf]
      %v241 = vld [vmem:[%s225 + $0xc] sm:$0xf]
      %v242 = vld [vmem:[%s225 + $0x10] sm:$0xf]
      %v243 = vld [vmem:[%s225 + $0x14] sm:$0xf]
      %v244 = vld [vmem:[%s225 + $0x18] sm:$0xf]
      %v245 = vld [vmem:[%s225 + $0x1c] sm:$0xf]
      %v246 = vld [vmem:[%s1] sm:$0xf]
      %v247 = vld [vmem:[%s1 + $0x4] sm:$0x1]
      %v256 = vunpack.c.l.b16 %v238
      %v257 = vunpack.c.l.b16 %v239
      %v258 = vunpack.c.l.b16 %v240
      %v259 = vunpack.c.l.b16 %v241
      %v260 = vunpack.c.l.b16 %v242
      %v261 = vunpack.c.l.b16 %v243
      %v262 = vunpack.c.l.b16 %v244
      %v263 = vunpack.c.l.b16 %v245
      %v264 = vpack.c.b16 %v257, %v256
      %v265 = vpack.c.b16 %v259, %v258
      %v266 = vpack.c.b16 %v261, %v260
      %v267 = vpack.c.b16 %v263, %v262
      %v270 = vunpack.c.l.b16 %v246
      %v271 = vunpack.c.l.b16 %v247
      %v272 = vpack.c.b16 %v271, %v270
      %vm273 = vcmask 72704
      %v275 = vsel %vm273, %v264, 0
      %v278 = vsel %vm273, %v265, 0
      %v281 = vsel %vm273, %v266, 0
      %v284 = vsel %vm273, %v267, 0
      %vm286 = vcmask 1043456
      %vm287 = vcmask 1044480
      %v288 = vsel %vm286, 4294967295, 65535
      %v289 = vsel %vm287, %v288, 0
      %v291 = vand.u32 %v272, %v289
      %293 = vmatprep.subr.bf16.mxu0 0
      %294 = vmatpush1.bf16.msra.mxu0 %v291
      %295 = vmatprep.subr.bf16.mxu0 0
      %296 = vmatpush1.bf16.msra.mxu0 0
      %297 = vmatprep.subr.bf16.mxu0 0
      %298 = vmatpush1.bf16.msra.mxu0 0
      %299 = vmatprep.subr.bf16.mxu0 0
      %300 = vmatpush1.bf16.msra.mxu0 0
      %301 = vmatprep.subr.bf16.mxu0 0
      %302 = vmatpush1.bf16.msra.mxu0 0
      %303 = vmatprep.subr.bf16.mxu0 0
      %304 = vmatpush1.bf16.msra.mxu0 0
      %305 = vmatprep.subr.bf16.mxu0 0
      %306 = vmatpush1.bf16.msra.mxu0 0
      %307 = vmatprep.subr.bf16.mxu0 0
      %308 = vmatpush1.bf16.msra.mxu0 0
      %309 = vmatprep.subr.bf16.mxu0 0
      %310 = vmatpush1.bf16.msra.mxu0 0
      %311 = vmatprep.subr.bf16.mxu0 0
      %312 = vmatpush1.bf16.msra.mxu0 0
      %313 = vmatprep.subr.bf16.mxu0 0
      %314 = vmatpush1.bf16.msra.mxu0 0
      %315 = vmatprep.subr.bf16.mxu0 0
      %316 = vmatpush1.bf16.msra.mxu0 0
      %317 = vmatprep.subr.bf16.mxu0 0
      %318 = vmatpush1.bf16.msra.mxu0 0
      %319 = vmatprep.subr.bf16.mxu0 0
      %320 = vmatpush1.bf16.msra.mxu0 0
      %321 = vmatprep.subr.bf16.mxu0 0
      %322 = vmatpush1.bf16.msra.mxu0 0
      %323 = vmatprep.subr.bf16.mxu0 0
      %324 = vmatpush1.bf16.msra.mxu0 0
      %325 = vmatprep.mubr.bf16.mxu0 0
      %326 = vmatmul.mubr.bf16.gmra.mrb[0].mxu0 %v275
      %v327 = vpop.f32.mrb[0].mxu0
      %v328 = vadd.f32 0.0, %v327
      %v329 = vpop.f32.mrb[0].mxu0
      %v330 = vpop.f32.mrb[0].mxu0
      %v331 = vadd.f32 0.0, %v330
      %v332 = vpop.f32.mrb[0].mxu0
      %333 = vmatprep.mubr.bf16.mxu0 0
      %334 = vmatmul.mubr.bf16.gmra.mrb[0].mxu0 %v278
      %v335 = vpop.f32.mrb[0].mxu0
      %v336 = vadd.f32 0.0, %v335
      %v337 = vpop.f32.mrb[0].mxu0
      %v338 = vpop.f32.mrb[0].mxu0
      %v339 = vadd.f32 0.0, %v338
      %v340 = vpop.f32.mrb[0].mxu0
      %341 = vmatprep.mubr.bf16.mxu0 0
      %342 = vmatmul.mubr.bf16.gmra.mrb[0].mxu0 %v281
      %v343 = vpop.f32.mrb[0].mxu0
      %v344 = vadd.f32 0.0, %v343
      %v345 = vpop.f32.mrb[0].mxu0
      %v346 = vpop.f32.mrb[0].mxu0
      %v347 = vadd.f32 0.0, %v346
      %v348 = vpop.f32.mrb[0].mxu0
      %349 = vmatprep.mubr.bf16.mxu0 0
      %350 = vmatmul.mubr.bf16.gmra.mrb[0].mxu0 %v284
      %v351 = vpop.f32.mrb[0].mxu0
      %v352 = vadd.f32 0.0, %v351
      %v353 = vpop.f32.mrb[0].mxu0
      %v354 = vpop.f32.mrb[0].mxu0
      %v355 = vadd.f32 0.0, %v354
      %v356 = vpop.f32.mrb[0].mxu0
      %357 = vdwg.mxu0
      %v358 = vld [vmem:[%s2] sm:$0x1]
      %v360 = vlaneseq
      %v361 = vshrl.u32 %v360, 7
      %v362 = vsub.s32 0, %v361
      %v363 = vrot.slane %v358, %v362
      %v365 = vmul.f32 %v328, %v363
      %v366 = vmul.f32 %v331, %v363
      %v367 = vmul.f32 %v336, %v363
      %v368 = vmul.f32 %v339, %v363
      %v369 = vmul.f32 %v344, %v363
      %v370 = vmul.f32 %v347, %v363
      %v371 = vmul.f32 %v352, %v363
      %v372 = vmul.f32 %v355, %v363
      %v373 = vld [vmem:[%s3] sm:$0x1]
      %v375 = vlaneseq
      %v376 = vshrl.u32 %v375, 7
      %v377 = vsub.s32 0, %v376
      %v378 = vrot.slane %v373, %v377
      %v380 = vadd.f32 %v365, %v378
      %v381 = vadd.f32 %v366, %v378
      %v382 = vadd.f32 %v367, %v378
      %v383 = vadd.f32 %v368, %v378
      %v384 = vadd.f32 %v369, %v378
      %v385 = vadd.f32 %v370, %v378
      %v386 = vadd.f32 %v371, %v378
      %v387 = vadd.f32 %v372, %v378
      %vm388 = vcmp.ge.f32.partialorder %v380, 0.0
      %vm389 = vcmp.ge.f32.partialorder %v381, 0.0
      %vm390 = vcmp.ge.f32.partialorder %v382, 0.0
      %vm391 = vcmp.ge.f32.partialorder %v383, 0.0
      %vm392 = vcmp.ge.f32.partialorder %v384, 0.0
      %vm393 = vcmp.ge.f32.partialorder %v385, 0.0
      %vm394 = vcmp.ge.f32.partialorder %v386, 0.0
      %vm395 = vcmp.ge.f32.partialorder %v387, 0.0
      %v396 = vmul.f32 %v380, 0.2
      %v397 = vmul.f32 %v381, 0.2
      %v398 = vmul.f32 %v382, 0.2
      %v399 = vmul.f32 %v383, 0.2
      %v400 = vmul.f32 %v384, 0.2
      %v401 = vmul.f32 %v385, 0.2
      %v402 = vmul.f32 %v386, 0.2
      %v403 = vmul.f32 %v387, 0.2
      %v404 = vsel %vm388, %v380, %v396
      %v405 = vsel %vm389, %v381, %v397
      %v406 = vsel %vm390, %v382, %v398
      %v407 = vsel %vm391, %v383, %v399
      %v408 = vsel %vm392, %v384, %v400
      %v409 = vsel %vm393, %v385, %v401
      %v410 = vsel %vm394, %v386, %v402
      %v411 = vsel %vm395, %v387, %v403
      %v412 = vpack.c.bf16 %v405, %v404
      %v413 = vpack.c.bf16 %v407, %v406
      %v414 = vpack.c.bf16 %v409, %v408
      %v415 = vpack.c.bf16 %v411, %v410
      %v420 = vunpack.c.l.b16 %v412
      %v421 = vunpack.c.h.b16 %v412
      %v422 = vunpack.c.l.b16 %v413
      %v423 = vunpack.c.h.b16 %v413
      %v424 = vunpack.c.l.b16 %v414
      %v425 = vunpack.c.h.b16 %v414
      %v426 = vunpack.c.l.b16 %v415
      %v427 = vunpack.c.h.b16 %v415
      %v428 = vpack.c.b16 %v420, %v420
      %v429 = vpack.c.b16 %v421, %v421
      %v430 = vpack.c.b16 %v422, %v422
      %v431 = vpack.c.b16 %v423, %v423
      %v432 = vpack.c.b16 %v424, %v424
      %v433 = vpack.c.b16 %v425, %v425
      %v434 = vpack.c.b16 %v426, %v426
      %v435 = vpack.c.b16 %v427, %v427
      %vm444 = vcmask 125952
      %445 = vst.msk [vmem:[%s235] sm:$0xf] %vm444, %v428
      %446 = vst.msk [vmem:[%s235 + $0x4] sm:$0xf] %vm444, %v429
      %447 = vst.msk [vmem:[%s235 + $0x8] sm:$0xf] %vm444, %v430
      %448 = vst.msk [vmem:[%s235 + $0xc] sm:$0xf] %vm444, %v431
      %449 = vst.msk [vmem:[%s235 + $0x10] sm:$0xf] %vm444, %v432
      %450 = vst.msk [vmem:[%s235 + $0x14] sm:$0xf] %vm444, %v433
      %451 = vst.msk [vmem:[%s235 + $0x18] sm:$0xf] %vm444, %v434
      %452 = vst.msk [vmem:[%s235 + $0x1c] sm:$0xf] %vm444, %v435
      %s453 = smul.u32 8, %s20
      %p454 = scmp.lt.s32.totalorder %s19, 1
      %s455 = scalar_select %p454, %s19, 1
      %p456 = scmp.lt.s32.totalorder %s453, 7
      %s457 = scalar_select %p456, %s453, 7
      %s458 = smul.addr %s455, 8
      %s459 = sadd.s32 %s457, %s458
      %s460 = smul.addr %s459, 4
      %s461 = scalar_lea.vmem %s4, %s460
      // Predicated region
      $region37: #{waveunet_forward.10} parent=35 // pred_check
        %p462 = pneg %p138
      $region38: #{waveunet_forward.10} parent=35 // pred_check_branch
        %464 = sbr.rel (%p462) target = $region40
      $region39: #{waveunet_forward.10} parent=35 // pred_region
        %s465 = smul.u32 8, %s20
      $region40: #{waveunet_forward.10} parent=35 // pred_fallthru
        _
    $region36: #{waveunet_forward.10} parent=5 // pred_fallthru
      _
    %p466 = scmp.le.s32.totalorder 2, %s10
    // Predicated region
    $region41: #{waveunet_forward.10} parent=5 // pred_check
      %p467 = pneg %p466
    $region42: #{waveunet_forward.10} parent=5 // pred_check_branch
      %469 = sbr.rel (%p467) target = $region44
    $region43: #{waveunet_forward.10} parent=5 // pred_region
      %s470 = ssub.s32 %s10, 2
      // Predicated region
      $region45: #{waveunet_forward.10} parent=43 // pred_check
        %p471 = pneg %p144
      $region46: #{waveunet_forward.10} parent=43 // pred_check_branch
        %473 = sbr.rel (%p471) target = $region48
      $region47: #{waveunet_forward.10} parent=43 // pred_region
        %s474 = smul.u32 8, %s22
        %p475 = scmp.lt.s32.totalorder %s21, 1
        %s476 = scalar_select %p475, %s21, 1
        %p477 = scmp.lt.s32.totalorder %s474, 7
        %s478 = scalar_select %p477, %s474, 7
        %s479 = smul.addr %s476, 8
        %s480 = sadd.s32 %s478, %s479
        %s481 = smul.addr %s480, 4
        %s482 = scalar_lea.vmem %s4, %s481
      $region48: #{waveunet_forward.10} parent=43 // pred_fallthru
        _
    $region44: #{waveunet_forward.10} parent=5 // pred_fallthru
      _
  $region6: #{waveunet_forward.10} parent=0 // loop_footer
    %s14 = sadd.s32 1, %s10
  $region7: #{waveunet_forward.10} parent=0 // loop_footer_branch
    %9 = sbr.rel target = $region3
  $region8: #{waveunet_forward.10} parent=0 // loop_exit
    _

// kernel: waveunet_forward.11
$region0: #{waveunet_forward.11}
  #allocation0 [shape = 'u32[]', space=smem, size = 0x4, offset = 0x4, fixed_abs, tag = 'smem constant byte address 0x4 - core index']
  #allocation1 [shape = 'u32[144,128]{1,0:T(1,128)}', space=vmem, size = 0x12000, scoped, tag = 'internal scratch']
  %s0 = inlined_call_operand.vmem [shape: bf16[2,32,144], index: 0, kind: input, shape index: {}]
  %s1 = inlined_call_operand.vmem [shape: bf16[144,32], index: 1, kind: input, shape index: {}]
  %s2 = inlined_call_operand.vmem [shape: f32[1,32], index: 2, kind: input, shape index: {}]
  %s3 = inlined_call_operand.vmem [shape: f32[1,32], index: 3, kind: input, shape index: {}]
  %s4 = inlined_call_operand.vmem [shape: bf16[2,32,32], index: 4, kind: output, shape index: {}]
  %s5 = sld [smem:[#allocation0]]
  $region49: #{waveunet_forward.11} parent=0
    _
  %s7 = ssub.s32 1, %s5
  %s8 = scalar_select 0, %s7, %s5
  loop: start=0, step=1, limit=4
  $region2: #{waveunet_forward.11} parent=0 // loop_pre_header
    _
  $region3: #{waveunet_forward.11} parent=0 // loop_header
    %s10 = sphi 0, %s14
    %p11 = scmp.ge.s32.totalorder %s10, 4
    %s17 = sphi 0, %s29
    %s18 = sphi 0, %s25
    %s19 = sphi 0, %s17
    %s20 = sphi 0, %s18
    %s21 = sphi 0, %s19
    %s22 = sphi 0, %s20
    %s34 = sphi 0, %s36
    %s37 = sphi 0, %s34
    %s38 = sphi 0, %s37
    %s54 = sphi 0, %s38
    %s58 = sphi 0, %s58
    %s60 = sphi 0, %s58
    %s61 = sphi 0, %s60
    %s75 = sphi 0, %s61
    %s79 = sphi 0, %s79
    %s81 = sphi 0, %s79
    %s82 = sphi 0, %s81
    %s96 = sphi 0, %s82
    %s100 = sphi 0, %s100
    %s102 = sphi 0, %s100
    %s103 = sphi 0, %s102
    %s117 = sphi 0, %s103
    %s125 = sphi 0, %s127
    %s128 = sphi 0, %s125
    %s129 = sphi 0, %s128
    %s145 = sphi 0, %s129
  $region4: #{waveunet_forward.11} parent=0 // loop_header_branch
    %13 = sbr.rel (%p11) target = $region8
  $region5: #{waveunet_forward.11} parent=0 // loop_body
    %s15 = ssub.s32 %s10, 1
    %s16 = ssub.s32 %s10, 2
    %s23 = sadd.s32 1, %s18
    %p24 = scmp.ge.s32.totalorder %s23, 1
    %s25 = scalar_select %p24, 0, %s23
    %s26 = sadd.s32 1, %s17
    %s27 = scalar_select %p24, %s26, %s17
    %p28 = scmp.ge.s32.totalorder %s27, 2
    %s29 = scalar_select %p28, 0, %s27
    %s30 = ssub.s32 %s17, %s29
    %s31 = ssub.s32 %s18, %s25
    %s32 = sor.u32 %s30, %s31
    %p33 = scmp.eq.s32.totalorder %s32, 0
    %s35 = sadd.s32 %s34, 1
    %s36 = scalar_select %p33, %s34, %s35
    %p39 = pneg %p33
    %p40 = scmp.eq.s32.totalorder %s10, 1
    %p41 = por %p39, %p40
    %p42 = scmp.ne.s32.totalorder %s34, %s37
    %p43 = scmp.eq.s32.totalorder %s10, 0
    %p44 = por %p42, %p43
    %p45 = scmp.ne.s32.totalorder %s34, %s37
    %p46 = scmp.eq.s32.totalorder %s15, 1
    %p47 = por %p45, %p46
    %p48 = scmp.ne.s32.totalorder %s37, %s38
    %p49 = scmp.eq.s32.totalorder %s15, 0
    %p50 = por %p48, %p49
    %p51 = scmp.ne.s32.totalorder %s37, %s38
    %p52 = scmp.eq.s32.totalorder %s16, 1
    %p53 = por %p51, %p52
    %p55 = scmp.ne.s32.totalorder %s38, %s54
    %p56 = scmp.eq.s32.totalorder %s16, 0
    %p57 = por %p55, %p56
    %s59 = sadd.s32 %s58, 1
    %p62 = scmp.eq.s32.totalorder %s10, 1
    %p63 = scmp.ne.s32.totalorder %s58, %s60
    %p64 = scmp.eq.s32.totalorder %s10, 0
    %p65 = por %p63, %p64
    %p66 = scmp.ne.s32.totalorder %s58, %s60
    %p67 = scmp.eq.s32.totalorder %s15, 1
    %p68 = por %p66, %p67
    %p69 = scmp.ne.s32.totalorder %s60, %s61
    %p70 = scmp.eq.s32.totalorder %s15, 0
    %p71 = por %p69, %p70
    %p72 = scmp.ne.s32.totalorder %s60, %s61
    %p73 = scmp.eq.s32.totalorder %s16, 1
    %p74 = por %p72, %p73
    %p76 = scmp.ne.s32.totalorder %s61, %s75
    %p77 = scmp.eq.s32.totalorder %s16, 0
    %p78 = por %p76, %p77
    %s80 = sadd.s32 %s79, 1
    %p83 = scmp.eq.s32.totalorder %s10, 1
    %p84 = scmp.ne.s32.totalorder %s79, %s81
    %p85 = scmp.eq.s32.totalorder %s10, 0
    %p86 = por %p84, %p85
    %p87 = scmp.ne.s32.totalorder %s79, %s81
    %p88 = scmp.eq.s32.totalorder %s15, 1
    %p89 = por %p87, %p88
    %p90 = scmp.ne.s32.totalorder %s81, %s82
    %p91 = scmp.eq.s32.totalorder %s15, 0
    %p92 = por %p90, %p91
    %p93 = scmp.ne.s32.totalorder %s81, %s82
    %p94 = scmp.eq.s32.totalorder %s16, 1
    %p95 = por %p93, %p94
    %p97 = scmp.ne.s32.totalorder %s82, %s96
    %p98 = scmp.eq.s32.totalorder %s16, 0
    %p99 = por %p97, %p98
    %s101 = sadd.s32 %s100, 1
    %p104 = scmp.eq.s32.totalorder %s10, 1
    %p105 = scmp.ne.s32.totalorder %s100, %s102
    %p106 = scmp.eq.s32.totalorder %s10, 0
    %p107 = por %p105, %p106
    %p108 = scmp.ne.s32.totalorder %s100, %s102
    %p109 = scmp.eq.s32.totalorder %s15, 1
    %p110 = por %p108, %p109
    %p111 = scmp.ne.s32.totalorder %s102, %s103
    %p112 = scmp.eq.s32.totalorder %s15, 0
    %p113 = por %p111, %p112
    %p114 = scmp.ne.s32.totalorder %s102, %s103
    %p115 = scmp.eq.s32.totalorder %s16, 1
    %p116 = por %p114, %p115
    %p118 = scmp.ne.s32.totalorder %s103, %s117
    %p119 = scmp.eq.s32.totalorder %s16, 0
    %p120 = por %p118, %p119
    %s121 = ssub.s32 %s17, %s29
    %s122 = ssub.s32 %s18, %s25
    %s123 = sor.u32 %s121, %s122
    %p124 = scmp.eq.s32.totalorder %s123, 0
    %s126 = sadd.s32 %s125, 1
    %s127 = scalar_select %p124, %s125, %s126
    %p130 = pneg %p124
    %p131 = scmp.eq.s32.totalorder %s10, 1
    %p132 = por %p130, %p131
    %p133 = scmp.ne.s32.totalorder %s125, %s128
    %p134 = scmp.eq.s32.totalorder %s10, 0
    %p135 = por %p133, %p134
    %p136 = scmp.ne.s32.totalorder %s125, %s128
    %p137 = scmp.eq.s32.totalorder %s15, 1
    %p138 = por %p136, %p137
    %p139 = scmp.ne.s32.totalorder %s128, %s129
    %p140 = scmp.eq.s32.totalorder %s15, 0
    %p141 = por %p139, %p140
    %p142 = scmp.ne.s32.totalorder %s128, %s129
    %p143 = scmp.eq.s32.totalorder %s16, 1
    %p144 = por %p142, %p143
    %p146 = scmp.ne.s32.totalorder %s129, %s145
    %p147 = scmp.eq.s32.totalorder %s16, 0
    %p148 = por %p146, %p147
    %p149 = scmp.le.s32.totalorder 1, %s10
    %p150 = scmp.lt.s32.totalorder %s10, 3
    %p151 = pnand %p149, %p150
    %p152 = pneg %p151
    // Predicated region
    $region9: #{waveunet_forward.11} parent=5 // pred_check
      _
    $region10: #{waveunet_forward.11} parent=5 // pred_check_branch
      %154 = sbr.rel (%p151) target = $region12
    $region11: #{waveunet_forward.11} parent=5 // pred_region
      %s155 = ssub.s32 %s10, 1
      // Predicated region
      $region13: #{waveunet_forward.11} parent=11 // pred_check
        %p156 = pneg %p71
      $region14: #{waveunet_forward.11} parent=11 // pred_check_branch
        %158 = sbr.rel (%p156) target = $region16
      $region15: #{waveunet_forward.11} parent=11 // pred_region
        _
      $region16: #{waveunet_forward.11} parent=11 // pred_fallthru
        _
      // Predicated region
      $region17: #{waveunet_forward.11} parent=11 // pred_check
        %p159 = pneg %p92
      $region18: #{waveunet_forward.11} parent=11 // pred_check_branch
        %161 = sbr.rel (%p159) target = $region20
      $region19: #{waveunet_forward.11} parent=11 // pred_region
        _
      $region20: #{waveunet_forward.11} parent=11 // pred_fallthru
        _
      // Predicated region
      $region21: #{waveunet_forward.11} parent=11 // pred_check
        %p162 = pneg %p113
      $region22: #{waveunet_forward.11} parent=11 // pred_check_branch
        %164 = sbr.rel (%p162) target = $region24
      $region23: #{waveunet_forward.11} parent=11 // pred_region
        _
      $region24: #{waveunet_forward.11} parent=11 // pred_fallthru
        _
    $region12: #{waveunet_forward.11} parent=5 // pred_fallthru
      _
    %p165 = scmp.lt.s32.totalorder %s10, 2
    // Predicated region
    $region25: #{waveunet_forward.11} parent=5 // pred_check
      %p166 = pneg %p165
    $region26: #{waveunet_forward.11} parent=5 // pred_check_branch
      %168 = sbr.rel (%p166) target = $region28
    $region27: #{waveunet_forward.11} parent=5 // pred_region
      // Predicated region
      $region29: #{waveunet_forward.11} parent=27 // pred_check
        %p169 = pneg %p44
      $region30: #{waveunet_forward.11} parent=27 // pred_check_branch
        %171 = sbr.rel (%p169) target = $region32
      $region31: #{waveunet_forward.11} parent=27 // pred_region
        %s172 = smul.u32 4, %s18
        %p173 = scmp.lt.s32.totalorder %s17, 1
        %s174 = scalar_select %p173, %s17, 1
        %p175 = scmp.lt.s32.totalorder %s172, 3
        %s176 = scalar_select %p175, %s172, 3
        %s177 = smul.addr %s176, 2
        %s178 = smul.addr %s174, 8
        %s179 = sadd.s32 %s177, %s178
        %s180 = smul.addr %s179, 4
        %s181 = scalar_lea.vmem %s0, %s180
        %s182 = smul.u32 4, %s18
      $region32: #{waveunet_forward.11} parent=27 // pred_fallthru
        _
    $region28: #{waveunet_forward.11} parent=5 // pred_fallthru
      _
    %p183 = scmp.le.s32.totalorder 1, %s10
    %p184 = scmp.lt.s32.totalorder %s10, 3
    %p185 = pnand %p183, %p184
    %p186 = pneg %p185
    // Predicated region
    $region33: #{waveunet_forward.11} parent=5 // pred_check
      _
    $region34: #{waveunet_forward.11} parent=5 // pred_check_branch
      %188 = sbr.rel (%p185) target = $region36
    $region35: #{waveunet_forward.11} parent=5 // pred_region
      %s189 = ssub.s32 %s10, 1
      %s190 = smul.u32 4, %s20
      %p191 = scmp.lt.s32.totalorder %s19, 1
      %s192 = scalar_select %p191, %s19, 1
      %p193 = scmp.lt.s32.totalorder %s190, 3
      %s194 = scalar_select %p193, %s190, 3
      %s195 = smul.addr %s194, 2
      %s196 = smul.addr %s192, 8
      %s197 = sadd.s32 %s195, %s196
      %s198 = smul.addr %s197, 4
      %s199 = scalar_lea.vmem %s0, %s198
      %p200 = pneg %p50
      %p201 = pneg %p47
      %p202 = pneg %p71
      %p203 = pneg %p68
      %p204 = pneg %p92
      %p205 = pneg %p89
      %p206 = pneg %p113
      %p207 = pneg %p110
      %p208 = pneg %p141
      %p209 = pneg %p138
      %s210 = smul.u32 4, %s20
      %p211 = scmp.lt.s32.totalorder %s19, 1
      %s212 = scalar_select %p211, %s19, 1
      %p213 = scmp.lt.s32.totalorder %s210, 3
      %s214 = scalar_select %p213, %s210, 3
      %s215 = smul.addr %s212, 4
      %s216 = sadd.s32 %s214, %s215
      %s217 = smul.addr %s216, 4
      %s218 = scalar_lea.vmem %s4, %s217
      %s219 = smul.u32 4, %s20
      %p220 = scmp.lt.s32.totalorder %s19, 1
      %s221 = scalar_select %p220, %s19, 1
      %p222 = scmp.lt.s32.totalorder %s219, 3
      %s223 = scalar_select %p222, %s219, 3
      %s224 = smul.addr %s223, 2
      %s225 = smul.addr %s221, 8
      %s226 = sadd.s32 %s224, %s225
      %s227 = smul.addr %s226, 4
      %s228 = scalar_lea.vmem %s0, %s227
      %s229 = smul.u32 4, %s20
      %s230 = smul.u32 4, %s20
      %p231 = scmp.lt.s32.totalorder %s19, 1
      %s232 = scalar_select %p231, %s19, 1
      %p233 = scmp.lt.s32.totalorder %s230, 3
      %s234 = scalar_select %p233, %s230, 3
      %s235 = smul.addr %s232, 4
      %s236 = sadd.s32 %s234, %s235
      %s237 = smul.addr %s236, 4
      %s238 = scalar_lea.vmem %s4, %s237
      %s239 = smul.u32 4, %s20
      %v241 = vld [vmem:[%s228] sm:$0xff]
      %v242 = vld [vmem:[%s228 + $0x8] sm:$0xff]
      %v243 = vld [vmem:[%s228 + $0x10] sm:$0xff]
      %v244 = vld [vmem:[%s228 + $0x18] sm:$0xff]
      %v245 = vld [vmem:[%s1] sm:$0xf]
      %v246 = vld [vmem:[%s1 + $0x4] sm:$0xf]
      %v247 = vld [vmem:[%s1 + $0x8] sm:$0xf]
      %v248 = vld [vmem:[%s1 + $0xc] sm:$0xf]
      %v249 = vld [vmem:[%s1 + $0x10] sm:$0xf]
      %v250 = vld [vmem:[%s1 + $0x14] sm:$0xf]
      %v251 = vld [vmem:[%s1 + $0x18] sm:$0xf]
      %v252 = vld [vmem:[%s1 + $0x1c] sm:$0xf]
      %v253 = vld [vmem:[%s1 + $0x20] sm:$0xf]
      %v254 = vld [vmem:[%s1 + $0x24] sm:$0xf]
      %v255 = vld [vmem:[%s1 + $0x28] sm:$0xf]
      %v256 = vld [vmem:[%s1 + $0x2c] sm:$0xf]
      %v257 = vld [vmem:[%s1 + $0x30] sm:$0xf]
      %v258 = vld [vmem:[%s1 + $0x34] sm:$0xf]
      %v259 = vld [vmem:[%s1 + $0x38] sm:$0xf]
      %v260 = vld [vmem:[%s1 + $0x3c] sm:$0xf]
      %v261 = vld [vmem:[%s1 + $0x40] sm:$0xf]
      %v262 = vld [vmem:[%s1 + $0x44] sm:$0xf]
      %v267 = vunpack.c.l.b16 %v241
      %v268 = vunpack.c.h.b16 %v241
      %v269 = vunpack.c.l.b16 %v242
      %v270 = vunpack.c.h.b16 %v242
      %v271 = vunpack.c.l.b16 %v243
      %v272 = vunpack.c.h.b16 %v243
      %v273 = vunpack.c.l.b16 %v244
      %v274 = vunpack.c.h.b16 %v244
      %v275 = vpack.c.b16 %v269, %v267
      %v276 = vpack.c.b16 %v270, %v268
      %v277 = vpack.c.b16 %v273, %v271
      %v278 = vpack.c.b16 %v274, %v272
      %v299 = vunpack.c.l.b16 %v245
      %v300 = vunpack.c.l.b16 %v246
      %v301 = vunpack.c.l.b16 %v247
      %v302 = vunpack.c.l.b16 %v248
      %v303 = vunpack.c.l.b16 %v249
      %v304 = vunpack.c.l.b16 %v250
      %v305 = vunpack.c.l.b16 %v251
      %v306 = vunpack.c.l.b16 %v252
      %v307 = vunpack.c.l.b16 %v253
      %v308 = vunpack.c.l.b16 %v254
      %v309 = vunpack.c.l.b16 %v255
      %v310 = vunpack.c.l.b16 %v256
      %v311 = vunpack.c.l.b16 %v257
      %v312 = vunpack.c.l.b16 %v258
      %v313 = vunpack.c.l.b16 %v259
      %v314 = vunpack.c.l.b16 %v260
      %v315 = vunpack.c.l.b16 %v261
      %v316 = vunpack.c.l.b16 %v262
      %v317 = vpack.c.b16 %v300, %v299
      %v318 = vpack.c.b16 %v302, %v301
      %v319 = vpack.c.b16 %v304, %v303
      %v320 = vpack.c.b16 %v306, %v305
      %v321 = vpack.c.b16 %v308, %v307
      %v322 = vpack.c.b16 %v310, %v309
      %v323 = vpack.c.b16 %v312, %v311
      %v324 = vpack.c.b16 %v314, %v313
      %v325 = vpack.c.b16 %v316, %v315
      %vm335 = vcmask 130048
      %v337 = vsel %vm335, %v276, 0
      %v340 = vsel %vm335, %v278, 0
      %342 = vmatprep.subr.bf16.mxu0 0
      %343 = vmatpush1.bf16.msra.mxu0 %v317
      %344 = vmatprep.subr.bf16.mxu0 0
      %345 = vmatpush1.bf16.msra.mxu0 %v318
      %346 = vmatprep.subr.bf16.mxu0 0
      %347 = vmatpush1.bf16.msra.mxu0 %v319
      %348 = vmatprep.subr.bf16.mxu0 0
      %349 = vmatpush1.bf16.msra.mxu0 %v320
      %350 = vmatprep.subr.bf16.mxu0 0
      %351 = vmatpush1.bf16.msra.mxu0 %v321
      %352 = vmatprep.subr.bf16.mxu0 0
      %353 = vmatpush1.bf16.msra.mxu0 %v322
      %354 = vmatprep.subr.bf16.mxu0 0
      %355 = vmatpush1.bf16.msra.mxu0 %v323
      %356 = vmatprep.subr.bf16.mxu0 0
      %357 = vmatpush1.bf16.msra.mxu0 %v324
      %358 = vmatprep.subr.bf16.mxu0 0
      %359 = vmatpush1.bf16.msra.mxu0 %v325
      %360 = vmatprep.subr.bf16.mxu0 0
      %361 = vmatpush1.bf16.msra.mxu0 0
      %362 = vmatprep.subr.bf16.mxu0 0
      %363 = vmatpush1.bf16.msra.mxu0 0
      %364 = vmatprep.subr.bf16.mxu0 0
      %365 = vmatpush1.bf16.msra.mxu0 0
      %366 = vmatprep.subr.bf16.mxu0 0
      %367 = vmatpush1.bf16.msra.mxu0 0
      %368 = vmatprep.subr.bf16.mxu0 0
      %369 = vmatpush1.bf16.msra.mxu0 0
      %370 = vmatprep.subr.bf16.mxu0 0
      %371 = vmatpush1.bf16.msra.mxu0 0
      %372 = vmatprep.subr.bf16.mxu0 0
      %373 = vmatpush1.bf16.msra.mxu0 0
      %374 = vmatprep.mubr.bf16.mxu0 %v337
      %375 = vmatmul.mubr.bf16.gmra.mrb[0].mxu0 %v275
      %v376 = vpop.f32.mrb[0].mxu0
      %v377 = vadd.f32 0.0, %v376
      %v378 = vpop.f32.mrb[0].mxu0
      %v379 = vpop.f32.mrb[0].mxu0
      %v380 = vadd.f32 0.0, %v379
      %v381 = vpop.f32.mrb[0].mxu0
      %382 = vmatprep.mubr.bf16.mxu0 %v340
      %383 = vmatmul.mubr.bf16.gmra.mrb[0].mxu0 %v277
      %v384 = vpop.f32.mrb[0].mxu0
      %v385 = vadd.f32 0.0, %v384
      %v386 = vpop.f32.mrb[0].mxu0
      %v387 = vpop.f32.mrb[0].mxu0
      %v388 = vadd.f32 0.0, %v387
      %v389 = vpop.f32.mrb[0].mxu0
      %390 = vdwg.mxu0
      %v391 = vld [vmem:[%s2] sm:$0x1]
      %v393 = vlaneseq
      %v394 = vshrl.u32 %v393, 7
      %v395 = vsub.s32 0, %v394
      %v396 = vrot.slane %v391, %v395
      %v398 = vmul.f32 %v377, %v396
      %v399 = vmul.f32 %v380, %v396
      %v400 = vmul.f32 %v385, %v396
      %v401 = vmul.f32 %v388, %v396
      %v402 = vld [vmem:[%s3] sm:$0x1]
      %v404 = vlaneseq
      %v405 = vshrl.u32 %v404, 7
      %v406 = vsub.s32 0, %v405
      %v407 = vrot.slane %v402, %v406
      %v409 = vadd.f32 %v398, %v407
      %v410 = vadd.f32 %v399, %v407
      %v411 = vadd.f32 %v400, %v407
      %v412 = vadd.f32 %v401, %v407
      %vm413 = vcmp.ge.f32.partialorder %v409, 0.0
      %vm414 = vcmp.ge.f32.partialorder %v410, 0.0
      %vm415 = vcmp.ge.f32.partialorder %v411, 0.0
      %vm416 = vcmp.ge.f32.partialorder %v412, 0.0
      %v417 = vmul.f32 %v409, 0.2
      %v418 = vmul.f32 %v410, 0.2
      %v419 = vmul.f32 %v411, 0.2
      %v420 = vmul.f32 %v412, 0.2
      %v421 = vsel %vm413, %v409, %v417
      %v422 = vsel %vm414, %v410, %v418
      %v423 = vsel %vm415, %v411, %v419
      %v424 = vsel %vm416, %v412, %v420
      %v425 = vpack.c.bf16 %v422, %v421
      %v426 = vpack.c.bf16 %v424, %v423
      %v429 = vunpack.c.l.b16 %v425
      %v430 = vunpack.c.h.b16 %v425
      %v431 = vunpack.c.l.b16 %v426
      %v432 = vunpack.c.h.b16 %v426
      %v433 = vpack.c.b16 %v429, %v429
      %v434 = vpack.c.b16 %v430, %v430
      %v435 = vpack.c.b16 %v431, %v431
      %v436 = vpack.c.b16 %v432, %v432
      %vm441 = vcmask 257024
      %442 = vst.msk [vmem:[%s238] sm:$0xf] %vm441, %v433
      %443 = vst.msk [vmem:[%s238 + $0x4] sm:$0xf] %vm441, %v434
      %444 = vst.msk [vmem:[%s238 + $0x8] sm:$0xf] %vm441, %v435
      %445 = vst.msk [vmem:[%s238 + $0xc] sm:$0xf] %vm441, %v436
      %s446 = smul.u32 4, %s20
      %p447 = scmp.lt.s32.totalorder %s19, 1
      %s448 = scalar_select %p447, %s19, 1
      %p449 = scmp.lt.s32.totalorder %s446, 3
      %s450 = scalar_select %p449, %s446, 3
      %s451 = smul.addr %s448, 4
      %s452 = sadd.s32 %s450, %s451
      %s453 = smul.addr %s452, 4
      %s454 = scalar_lea.vmem %s4, %s453
      // Predicated region
      $region37: #{waveunet_forward.11} parent=35 // pred_check
        %p455 = pneg %p138
      $region38: #{waveunet_forward.11} parent=35 // pred_check_branch
        %457 = sbr.rel (%p455) target = $region40
      $region39: #{waveunet_forward.11} parent=35 // pred_region
        %s458 = smul.u32 4, %s20
      $region40: #{waveunet_forward.11} parent=35 // pred_fallthru
        _
    $region36: #{waveunet_forward.11} parent=5 // pred_fallthru
      _
    %p459 = scmp.le.s32.totalorder 2, %s10
    // Predicated region
    $region41: #{waveunet_forward.11} parent=5 // pred_check
      %p460 = pneg %p459
    $region42: #{waveunet_forward.11} parent=5 // pred_check_branch
      %462 = sbr.rel (%p460) target = $region44
    $region43: #{waveunet_forward.11} parent=5 // pred_region
      %s463 = ssub.s32 %s10, 2
      // Predicated region
      $region45: #{waveunet_forward.11} parent=43 // pred_check
        %p464 = pneg %p144
      $region46: #{waveunet_forward.11} parent=43 // pred_check_branch
        %466 = sbr.rel (%p464) target = $region48
      $region47: #{waveunet_forward.11} parent=43 // pred_region
        %s467 = smul.u32 4, %s22
        %p468 = scmp.lt.s32.totalorder %s21, 1
        %s469 = scalar_select %p468, %s21, 1
        %p470 = scmp.lt.s32.totalorder %s467, 3
        %s471 = scalar_select %p470, %s467, 3
        %s472 = smul.addr %s469, 4
        %s473 = sadd.s32 %s471, %s472
        %s474 = smul.addr %s473, 4
        %s475 = scalar_lea.vmem %s4, %s474
      $region48: #{waveunet_forward.11} parent=43 // pred_fallthru
        _
    $region44: #{waveunet_forward.11} parent=5 // pred_fallthru
      _
  $region6: #{waveunet_forward.11} parent=0 // loop_footer
    %s14 = sadd.s32 1, %s10
  $region7: #{waveunet_forward.11} parent=0 // loop_footer_branch
    %9 = sbr.rel target = $region3
  $region8: #{waveunet_forward.11} parent=0 // loop_exit
    _

// kernel: waveunet_forward.12
$region0: #{waveunet_forward.12}
  #allocation0 [shape = 'u32[]', space=smem, size = 0x4, offset = 0x4, fixed_abs, tag = 'smem constant byte address 0x4 - core index']
  #allocation1 [shape = 'u32[144,128]{1,0:T(1,128)}', space=vmem, size = 0x12000, scoped, tag = 'internal scratch']
  %s0 = inlined_call_operand.vmem [shape: bf16[2,16,288], index: 0, kind: input, shape index: {}]
  %s1 = inlined_call_operand.vmem [shape: bf16[288,48], index: 1, kind: input, shape index: {}]
  %s2 = inlined_call_operand.vmem [shape: f32[1,48], index: 2, kind: input, shape index: {}]
  %s3 = inlined_call_operand.vmem [shape: f32[1,48], index: 3, kind: input, shape index: {}]
  %s4 = inlined_call_operand.vmem [shape: bf16[2,16,48], index: 4, kind: output, shape index: {}]
  %s5 = sld [smem:[#allocation0]]
  $region49: #{waveunet_forward.12} parent=0
    _
  %s7 = ssub.s32 1, %s5
  %s8 = scalar_select 0, %s7, %s5
  loop: start=0, step=1, limit=4
  $region2: #{waveunet_forward.12} parent=0 // loop_pre_header
    _
  $region3: #{waveunet_forward.12} parent=0 // loop_header
    %s10 = sphi 0, %s14
    %p11 = scmp.ge.s32.totalorder %s10, 4
    %s17 = sphi 0, %s29
    %s18 = sphi 0, %s25
    %s19 = sphi 0, %s17
    %s20 = sphi 0, %s18
    %s21 = sphi 0, %s19
    %s22 = sphi 0, %s20
    %s34 = sphi 0, %s36
    %s37 = sphi 0, %s34
    %s38 = sphi 0, %s37
    %s54 = sphi 0, %s38
    %s58 = sphi 0, %s58
    %s60 = sphi 0, %s58
    %s61 = sphi 0, %s60
    %s75 = sphi 0, %s61
    %s79 = sphi 0, %s79
    %s81 = sphi 0, %s79
    %s82 = sphi 0, %s81
    %s96 = sphi 0, %s82
    %s100 = sphi 0, %s100
    %s102 = sphi 0, %s100
    %s103 = sphi 0, %s102
    %s117 = sphi 0, %s103
    %s125 = sphi 0, %s127
    %s128 = sphi 0, %s125
    %s129 = sphi 0, %s128
    %s145 = sphi 0, %s129
  $region4: #{waveunet_forward.12} parent=0 // loop_header_branch
    %13 = sbr.rel (%p11) target = $region8
  $region5: #{waveunet_forward.12} parent=0 // loop_body
    %s15 = ssub.s32 %s10, 1
    %s16 = ssub.s32 %s10, 2
    %s23 = sadd.s32 1, %s18
    %p24 = scmp.ge.s32.totalorder %s23, 1
    %s25 = scalar_select %p24, 0, %s23
    %s26 = sadd.s32 1, %s17
    %s27 = scalar_select %p24, %s26, %s17
    %p28 = scmp.ge.s32.totalorder %s27, 2
    %s29 = scalar_select %p28, 0, %s27
    %s30 = ssub.s32 %s17, %s29
    %s31 = ssub.s32 %s18, %s25
    %s32 = sor.u32 %s30, %s31
    %p33 = scmp.eq.s32.totalorder %s32, 0
    %s35 = sadd.s32 %s34, 1
    %s36 = scalar_select %p33, %s34, %s35
    %p39 = pneg %p33
    %p40 = scmp.eq.s32.totalorder %s10, 1
    %p41 = por %p39, %p40
    %p42 = scmp.ne.s32.totalorder %s34, %s37
    %p43 = scmp.eq.s32.totalorder %s10, 0
    %p44 = por %p42, %p43
    %p45 = scmp.ne.s32.totalorder %s34, %s37
    %p46 = scmp.eq.s32.totalorder %s15, 1
    %p47 = por %p45, %p46
    %p48 = scmp.ne.s32.totalorder %s37, %s38
    %p49 = scmp.eq.s32.totalorder %s15, 0
    %p50 = por %p48, %p49
    %p51 = scmp.ne.s32.totalorder %s37, %s38
    %p52 = scmp.eq.s32.totalorder %s16, 1
    %p53 = por %p51, %p52
    %p55 = scmp.ne.s32.totalorder %s38, %s54
    %p56 = scmp.eq.s32.totalorder %s16, 0
    %p57 = por %p55, %p56
    %s59 = sadd.s32 %s58, 1
    %p62 = scmp.eq.s32.totalorder %s10, 1
    %p63 = scmp.ne.s32.totalorder %s58, %s60
    %p64 = scmp.eq.s32.totalorder %s10, 0
    %p65 = por %p63, %p64
    %p66 = scmp.ne.s32.totalorder %s58, %s60
    %p67 = scmp.eq.s32.totalorder %s15, 1
    %p68 = por %p66, %p67
    %p69 = scmp.ne.s32.totalorder %s60, %s61
    %p70 = scmp.eq.s32.totalorder %s15, 0
    %p71 = por %p69, %p70
    %p72 = scmp.ne.s32.totalorder %s60, %s61
    %p73 = scmp.eq.s32.totalorder %s16, 1
    %p74 = por %p72, %p73
    %p76 = scmp.ne.s32.totalorder %s61, %s75
    %p77 = scmp.eq.s32.totalorder %s16, 0
    %p78 = por %p76, %p77
    %s80 = sadd.s32 %s79, 1
    %p83 = scmp.eq.s32.totalorder %s10, 1
    %p84 = scmp.ne.s32.totalorder %s79, %s81
    %p85 = scmp.eq.s32.totalorder %s10, 0
    %p86 = por %p84, %p85
    %p87 = scmp.ne.s32.totalorder %s79, %s81
    %p88 = scmp.eq.s32.totalorder %s15, 1
    %p89 = por %p87, %p88
    %p90 = scmp.ne.s32.totalorder %s81, %s82
    %p91 = scmp.eq.s32.totalorder %s15, 0
    %p92 = por %p90, %p91
    %p93 = scmp.ne.s32.totalorder %s81, %s82
    %p94 = scmp.eq.s32.totalorder %s16, 1
    %p95 = por %p93, %p94
    %p97 = scmp.ne.s32.totalorder %s82, %s96
    %p98 = scmp.eq.s32.totalorder %s16, 0
    %p99 = por %p97, %p98
    %s101 = sadd.s32 %s100, 1
    %p104 = scmp.eq.s32.totalorder %s10, 1
    %p105 = scmp.ne.s32.totalorder %s100, %s102
    %p106 = scmp.eq.s32.totalorder %s10, 0
    %p107 = por %p105, %p106
    %p108 = scmp.ne.s32.totalorder %s100, %s102
    %p109 = scmp.eq.s32.totalorder %s15, 1
    %p110 = por %p108, %p109
    %p111 = scmp.ne.s32.totalorder %s102, %s103
    %p112 = scmp.eq.s32.totalorder %s15, 0
    %p113 = por %p111, %p112
    %p114 = scmp.ne.s32.totalorder %s102, %s103
    %p115 = scmp.eq.s32.totalorder %s16, 1
    %p116 = por %p114, %p115
    %p118 = scmp.ne.s32.totalorder %s103, %s117
    %p119 = scmp.eq.s32.totalorder %s16, 0
    %p120 = por %p118, %p119
    %s121 = ssub.s32 %s17, %s29
    %s122 = ssub.s32 %s18, %s25
    %s123 = sor.u32 %s121, %s122
    %p124 = scmp.eq.s32.totalorder %s123, 0
    %s126 = sadd.s32 %s125, 1
    %s127 = scalar_select %p124, %s125, %s126
    %p130 = pneg %p124
    %p131 = scmp.eq.s32.totalorder %s10, 1
    %p132 = por %p130, %p131
    %p133 = scmp.ne.s32.totalorder %s125, %s128
    %p134 = scmp.eq.s32.totalorder %s10, 0
    %p135 = por %p133, %p134
    %p136 = scmp.ne.s32.totalorder %s125, %s128
    %p137 = scmp.eq.s32.totalorder %s15, 1
    %p138 = por %p136, %p137
    %p139 = scmp.ne.s32.totalorder %s128, %s129
    %p140 = scmp.eq.s32.totalorder %s15, 0
    %p141 = por %p139, %p140
    %p142 = scmp.ne.s32.totalorder %s128, %s129
    %p143 = scmp.eq.s32.totalorder %s16, 1
    %p144 = por %p142, %p143
    %p146 = scmp.ne.s32.totalorder %s129, %s145
    %p147 = scmp.eq.s32.totalorder %s16, 0
    %p148 = por %p146, %p147
    %p149 = scmp.le.s32.totalorder 1, %s10
    %p150 = scmp.lt.s32.totalorder %s10, 3
    %p151 = pnand %p149, %p150
    %p152 = pneg %p151
    // Predicated region
    $region9: #{waveunet_forward.12} parent=5 // pred_check
      _
    $region10: #{waveunet_forward.12} parent=5 // pred_check_branch
      %154 = sbr.rel (%p151) target = $region12
    $region11: #{waveunet_forward.12} parent=5 // pred_region
      %s155 = ssub.s32 %s10, 1
      // Predicated region
      $region13: #{waveunet_forward.12} parent=11 // pred_check
        %p156 = pneg %p71
      $region14: #{waveunet_forward.12} parent=11 // pred_check_branch
        %158 = sbr.rel (%p156) target = $region16
      $region15: #{waveunet_forward.12} parent=11 // pred_region
        _
      $region16: #{waveunet_forward.12} parent=11 // pred_fallthru
        _
      // Predicated region
      $region17: #{waveunet_forward.12} parent=11 // pred_check
        %p159 = pneg %p92
      $region18: #{waveunet_forward.12} parent=11 // pred_check_branch
        %161 = sbr.rel (%p159) target = $region20
      $region19: #{waveunet_forward.12} parent=11 // pred_region
        _
      $region20: #{waveunet_forward.12} parent=11 // pred_fallthru
        _
      // Predicated region
      $region21: #{waveunet_forward.12} parent=11 // pred_check
        %p162 = pneg %p113
      $region22: #{waveunet_forward.12} parent=11 // pred_check_branch
        %164 = sbr.rel (%p162) target = $region24
      $region23: #{waveunet_forward.12} parent=11 // pred_region
        _
      $region24: #{waveunet_forward.12} parent=11 // pred_fallthru
        _
    $region12: #{waveunet_forward.12} parent=5 // pred_fallthru
      _
    %p165 = scmp.lt.s32.totalorder %s10, 2
    // Predicated region
    $region25: #{waveunet_forward.12} parent=5 // pred_check
      %p166 = pneg %p165
    $region26: #{waveunet_forward.12} parent=5 // pred_check_branch
      %168 = sbr.rel (%p166) target = $region28
    $region27: #{waveunet_forward.12} parent=5 // pred_region
      // Predicated region
      $region29: #{waveunet_forward.12} parent=27 // pred_check
        %p169 = pneg %p44
      $region30: #{waveunet_forward.12} parent=27 // pred_check_branch
        %171 = sbr.rel (%p169) target = $region32
      $region31: #{waveunet_forward.12} parent=27 // pred_region
        %s172 = smul.u32 2, %s18
        %p173 = scmp.lt.s32.totalorder %s17, 1
        %s174 = scalar_select %p173, %s17, 1
        %p175 = scmp.lt.s32.totalorder %s172, 1
        %s176 = scalar_select %p175, %s172, 1
        %s177 = smul.addr %s176, 3
        %s178 = smul.addr %s174, 6
        %s179 = sadd.s32 %s177, %s178
        %s180 = smul.addr %s179, 4
        %s181 = scalar_lea.vmem %s0, %s180
        %s182 = smul.u32 2, %s18
      $region32: #{waveunet_forward.12} parent=27 // pred_fallthru
        _
    $region28: #{waveunet_forward.12} parent=5 // pred_fallthru
      _
    %p183 = scmp.le.s32.totalorder 1, %s10
    %p184 = scmp.lt.s32.totalorder %s10, 3
    %p185 = pnand %p183, %p184
    %p186 = pneg %p185
    // Predicated region
    $region33: #{waveunet_forward.12} parent=5 // pred_check
      _
    $region34: #{waveunet_forward.12} parent=5 // pred_check_branch
      %188 = sbr.rel (%p185) target = $region36
    $region35: #{waveunet_forward.12} parent=5 // pred_region
      %s189 = ssub.s32 %s10, 1
      %s190 = smul.u32 2, %s20
      %p191 = scmp.lt.s32.totalorder %s19, 1
      %s192 = scalar_select %p191, %s19, 1
      %p193 = scmp.lt.s32.totalorder %s190, 1
      %s194 = scalar_select %p193, %s190, 1
      %s195 = smul.addr %s194, 3
      %s196 = smul.addr %s192, 6
      %s197 = sadd.s32 %s195, %s196
      %s198 = smul.addr %s197, 4
      %s199 = scalar_lea.vmem %s0, %s198
      %p200 = pneg %p50
      %p201 = pneg %p47
      %p202 = pneg %p71
      %p203 = pneg %p68
      %p204 = pneg %p92
      %p205 = pneg %p89
      %p206 = pneg %p113
      %p207 = pneg %p110
      %p208 = pneg %p141
      %p209 = pneg %p138
      %s210 = smul.u32 2, %s20
      %p211 = scmp.lt.s32.totalorder %s19, 1
      %s212 = scalar_select %p211, %s19, 1
      %p213 = scmp.lt.s32.totalorder %s210, 1
      %s214 = scalar_select %p213, %s210, 1
      %s215 = smul.addr %s212, 2
      %s216 = sadd.s32 %s214, %s215
      %s217 = smul.addr %s216, 4
      %s218 = scalar_lea.vmem %s4, %s217
      %s219 = smul.u32 2, %s20
      %p220 = scmp.lt.s32.totalorder %s19, 1
      %s221 = scalar_select %p220, %s19, 1
      %p222 = scmp.lt.s32.totalorder %s219, 1
      %s223 = scalar_select %p222, %s219, 1
      %s224 = smul.addr %s223, 3
      %s225 = smul.addr %s221, 6
      %s226 = sadd.s32 %s224, %s225
      %s227 = smul.addr %s226, 4
      %s228 = scalar_lea.vmem %s0, %s227
      %s229 = smul.u32 2, %s20
      %s230 = smul.u32 2, %s20
      %p231 = scmp.lt.s32.totalorder %s19, 1
      %s232 = scalar_select %p231, %s19, 1
      %p233 = scmp.lt.s32.totalorder %s230, 1
      %s234 = scalar_select %p233, %s230, 1
      %s235 = smul.addr %s232, 2
      %s236 = sadd.s32 %s234, %s235
      %s237 = smul.addr %s236, 4
      %s238 = scalar_lea.vmem %s4, %s237
      %s239 = smul.u32 2, %s20
      %v241 = vld [vmem:[%s228] sm:$0xff]
      %v242 = vld [vmem:[%s228 + $0x8] sm:$0xf]
      %v243 = vld [vmem:[%s228 + $0xc] sm:$0xff]
      %v244 = vld [vmem:[%s228 + $0x14] sm:$0xf]
      %v245 = vld [vmem:[%s1] sm:$0xf]
      %v246 = vld [vmem:[%s1 + $0x4] sm:$0xf]
      %v247 = vld [vmem:[%s1 + $0x8] sm:$0xf]
      %v248 = vld [vmem:[%s1 + $0xc] sm:$0xf]
      %v249 = vld [vmem:[%s1 + $0x10] sm:$0xf]
      %v250 = vld [vmem:[%s1 + $0x14] sm:$0xf]
      %v251 = vld [vmem:[%s1 + $0x18] sm:$0xf]
      %v252 = vld [vmem:[%s1 + $0x1c] sm:$0xf]
      %v253 = vld [vmem:[%s1 + $0x20] sm:$0xf]
      %v254 = vld [vmem:[%s1 + $0x24] sm:$0xf]
      %v255 = vld [vmem:[%s1 + $0x28] sm:$0xf]
      %v256 = vld [vmem:[%s1 + $0x2c] sm:$0xf]
      %v257 = vld [vmem:[%s1 + $0x30] sm:$0xf]
      %v258 = vld [vmem:[%s1 + $0x34] sm:$0xf]
      %v259 = vld [vmem:[%s1 + $0x38] sm:$0xf]
      %v260 = vld [vmem:[%s1 + $0x3c] sm:$0xf]
      %v261 = vld [vmem:[%s1 + $0x40] sm:$0xf]
      %v262 = vld [vmem:[%s1 + $0x44] sm:$0xf]
      %v263 = vld [vmem:[%s1 + $0x48] sm:$0xf]
      %v264 = vld [vmem:[%s1 + $0x4c] sm:$0xf]
      %v265 = vld [vmem:[%s1 + $0x50] sm:$0xf]
      %v266 = vld [vmem:[%s1 + $0x54] sm:$0xf]
      %v267 = vld [vmem:[%s1 + $0x58] sm:$0xf]
      %v268 = vld [vmem:[%s1 + $0x5c] sm:$0xf]
      %v269 = vld [vmem:[%s1 + $0x60] sm:$0xf]
      %v270 = vld [vmem:[%s1 + $0x64] sm:$0xf]
      %v271 = vld [vmem:[%s1 + $0x68] sm:$0xf]
      %v272 = vld [vmem:[%s1 + $0x6c] sm:$0xf]
      %v273 = vld [vmem:[%s1 + $0x70] sm:$0xf]
      %v274 = vld [vmem:[%s1 + $0x74] sm:$0xf]
      %v275 = vld [vmem:[%s1 + $0x78] sm:$0xf]
      %v276 = vld [vmem:[%s1 + $0x7c] sm:$0xf]
      %v277 = vld [vmem:[%s1 + $0x80] sm:$0xf]
      %v278 = vld [vmem:[%s1 + $0x84] sm:$0xf]
      %v279 = vld [vmem:[%s1 + $0x88] sm:$0xf]
      %v280 = vld [vmem:[%s1 + $0x8c] sm:$0xf]
      %v285 = vunpack.c.l.b16 %v241
      %v286 = vunpack.c.h.b16 %v241
      %v287 = vunpack.c.l.b16 %v242
      %v288 = vunpack.c.l.b16 %v243
      %v289 = vunpack.c.h.b16 %v243
      %v290 = vunpack.c.l.b16 %v244
      %v291 = vpack.c.b16 %v288, %v285
      %v292 = vpack.c.b16 %v289, %v286
      %v293 = vpack.c.b16 %v290, %v287
      %v332 = vunpack.c.l.b16 %v245
      %v333 = vunpack.c.l.b16 %v246
      %v334 = vunpack.c.l.b16 %v247
      %v335 = vunpack.c.l.b16 %v248
      %v336 = vunpack.c.l.b16 %v249
      %v337 = vunpack.c.l.b16 %v250
      %v338 = vunpack.c.l.b16 %v251
      %v339 = vunpack.c.l.b16 %v252
      %v340 = vunpack.c.l.b16 %v253
      %v341 = vunpack.c.l.b16 %v254
      %v342 = vunpack.c.l.b16 %v255
      %v343 = vunpack.c.l.b16 %v256
      %v344 = vunpack.c.l.b16 %v257
      %v345 = vunpack.c.l.b16 %v258
      %v346 = vunpack.c.l.b16 %v259
      %v347 = vunpack.c.l.b16 %v260
      %v348 = vunpack.c.l.b16 %v261
      %v349 = vunpack.c.l.b16 %v262
      %v350 = vunpack.c.l.b16 %v263
      %v351 = vunpack.c.l.b16 %v264
      %v352 = vunpack.c.l.b16 %v265
      %v353 = vunpack.c.l.b16 %v266
      %v354 = vunpack.c.l.b16 %v267
      %v355 = vunpack.c.l.b16 %v268
      %v356 = vunpack.c.l.b16 %v269
      %v357 = vunpack.c.l.b16 %v270
      %v358 = vunpack.c.l.b16 %v271
      %v359 = vunpack.c.l.b16 %v272
      %v360 = vunpack.c.l.b16 %v273
      %v361 = vunpack.c.l.b16 %v274
      %v362 = vunpack.c.l.b16 %v275
      %v363 = vunpack.c.l.b16 %v276
      %v364 = vunpack.c.l.b16 %v277
      %v365 = vunpack.c.l.b16 %v278
      %v366 = vunpack.c.l.b16 %v279
      %v367 = vunpack.c.l.b16 %v280
      %v368 = vpack.c.b16 %v333, %v332
      %v369 = vpack.c.b16 %v335, %v334
      %v370 = vpack.c.b16 %v337, %v336
      %v371 = vpack.c.b16 %v339, %v338
      %v372 = vpack.c.b16 %v341, %v340
      %v373 = vpack.c.b16 %v343, %v342
      %v374 = vpack.c.b16 %v345, %v344
      %v375 = vpack.c.b16 %v347, %v346
      %v376 = vpack.c.b16 %v349, %v348
      %v377 = vpack.c.b16 %v351, %v350
      %v378 = vpack.c.b16 %v353, %v352
      %v379 = vpack.c.b16 %v355, %v354
      %v380 = vpack.c.b16 %v357, %v356
      %v381 = vpack.c.b16 %v359, %v358
      %v382 = vpack.c.b16 %v361, %v360
      %v383 = vpack.c.b16 %v363, %v362
      %v384 = vpack.c.b16 %v365, %v364
      %v385 = vpack.c.b16 %v367, %v366
      %vm404 = vcmask 261120
      %v406 = vsel %vm404, %v293, 0
      %408 = vmatprep.subr.bf16.mxu0 0
      %409 = vmatpush1.bf16.msra.mxu0 %v368
      %410 = vmatprep.subr.bf16.mxu0 0
      %411 = vmatpush1.bf16.msra.mxu0 %v369
      %412 = vmatprep.subr.bf16.mxu0 0
      %413 = vmatpush1.bf16.msra.mxu0 %v370
      %414 = vmatprep.subr.bf16.mxu0 0
      %415 = vmatpush1.bf16.msra.mxu0 %v371
      %416 = vmatprep.subr.bf16.mxu0 0
      %417 = vmatpush1.bf16.msra.mxu0 %v372
      %418 = vmatprep.subr.bf16.mxu0 0
      %419 = vmatpush1.bf16.msra.mxu0 %v373
      %420 = vmatprep.subr.bf16.mxu0 0
      %421 = vmatpush1.bf16.msra.mxu0 %v374
      %422 = vmatprep.subr.bf16.mxu0 0
      %423 = vmatpush1.bf16.msra.mxu0 %v375
      %424 = vmatprep.subr.bf16.mxu0 0
      %425 = vmatpush1.bf16.msra.mxu0 %v376
      %426 = vmatprep.subr.bf16.mxu0 0
      %427 = vmatpush1.bf16.msra.mxu0 %v377
      %428 = vmatprep.subr.bf16.mxu0 0
      %429 = vmatpush1.bf16.msra.mxu0 %v378
      %430 = vmatprep.subr.bf16.mxu0 0
      %431 = vmatpush1.bf16.msra.mxu0 %v379
      %432 = vmatprep.subr.bf16.mxu0 0
      %433 = vmatpush1.bf16.msra.mxu0 %v380
      %434 = vmatprep.subr.bf16.mxu0 0
      %435 = vmatpush1.bf16.msra.mxu0 %v381
      %436 = vmatprep.subr.bf16.mxu0 0
      %437 = vmatpush1.bf16.msra.mxu0 %v382
      %438 = vmatprep.subr.bf16.mxu0 0
      %439 = vmatpush1.bf16.msra.mxu0 %v383
      %440 = vmatprep.mubr.bf16.mxu0 %v292
      %441 = vmatmul.mubr.bf16.gmra.mrb[0].mxu0 %v291
      %v442 = vpop.f32.mrb[0].mxu0
      %v443 = vadd.f32 0.0, %v442
      %v444 = vpop.f32.mrb[0].mxu0
      %v445 = vpop.f32.mrb[0].mxu0
      %v446 = vadd.f32 0.0, %v445
      %v447 = vpop.f32.mrb[0].mxu0
      %448 = vdwg.mxu0
      %449 = vmatprep.subr.bf16.mxu0 0
      %450 = vmatpush1.bf16.msra.mxu0 %v384
      %451 = vmatprep.subr.bf16.mxu0 0
      %452 = vmatpush1.bf16.msra.mxu0 %v385
      %453 = vmatprep.subr.bf16.mxu0 0
      %454 = vmatpush1.bf16.msra.mxu0 0
      %455 = vmatprep.subr.bf16.mxu0 0
      %456 = vmatpush1.bf16.msra.mxu0 0
      %457 = vmatprep.subr.bf16.mxu0 0
      %458 = vmatpush1.bf16.msra.mxu0 0
      %459 = vmatprep.subr.bf16.mxu0 0
      %460 = vmatpush1.bf16.msra.mxu0 0
      %461 = vmatprep.subr.bf16.mxu0 0
      %462 = vmatpush1.bf16.msra.mxu0 0
      %463 = vmatprep.subr.bf16.mxu0 0
      %464 = vmatpush1.bf16.msra.mxu0 0
      %465 = vmatprep.subr.bf16.mxu0 0
      %466 = vmatpush1.bf16.msra.mxu0 0
      %467 = vmatprep.subr.bf16.mxu0 0
      %468 = vmatpush1.bf16.msra.mxu0 0
      %469 = vmatprep.subr.bf16.mxu0 0
      %470 = vmatpush1.bf16.msra.mxu0 0
      %471 = vmatprep.subr.bf16.mxu0 0
      %472 = vmatpush1.bf16.msra.mxu0 0
      %473 = vmatprep.subr.bf16.mxu0 0
      %474 = vmatpush1.bf16.msra.mxu0 0
      %475 = vmatprep.subr.bf16.mxu0 0
      %476 = vmatpush1.bf16.msra.mxu0 0
      %477 = vmatprep.subr.bf16.mxu0 0
      %478 = vmatpush1.bf16.msra.mxu0 0
      %479 = vmatprep.subr.bf16.mxu0 0
      %480 = vmatpush1.bf16.msra.mxu0 0
      %481 = vmatprep.mubr.bf16.mxu0 0
      %482 = vmatmul.mubr.bf16.gmra.mrb[0].mxu0 %v406
      %v483 = vpop.f32.mrb[0].mxu0
      %v484 = vadd.f32 %v443, %v483
      %v485 = vpop.f32.mrb[0].mxu0
      %v486 = vpop.f32.mrb[0].mxu0
      %v487 = vadd.f32 %v446, %v486
      %v488 = vpop.f32.mrb[0].mxu0
      %489 = vdwg.mxu0
      %v490 = vld [vmem:[%s2] sm:$0x1]
      %v492 = vlaneseq
      %v493 = vshrl.u32 %v492, 7
      %v494 = vsub.s32 0, %v493
      %v495 = vrot.slane %v490, %v494
      %v497 = vmul.f32 %v484, %v495
      %v498 = vmul.f32 %v487, %v495
      %v499 = vld [vmem:[%s3] sm:$0x1]
      %v501 = vlaneseq
      %v502 = vshrl.u32 %v501, 7
      %v503 = vsub.s32 0, %v502
      %v504 = vrot.slane %v499, %v503
      %v506 = vadd.f32 %v497, %v504
      %v507 = vadd.f32 %v498, %v504
      %vm508 = vcmp.ge.f32.partialorder %v506, 0.0
      %vm509 = vcmp.ge.f32.partialorder %v507, 0.0
      %v510 = vmul.f32 %v506, 0.2
      %v511 = vmul.f32 %v507, 0.2
      %v512 = vsel %vm508, %v506, %v510
      %v513 = vsel %vm509, %v507, %v511
      %v514 = vpack.c.bf16 %v513, %v512
      %v516 = vunpack.c.l.b16 %v514
      %v517 = vunpack.c.h.b16 %v514
      %v518 = vpack.c.b16 %v516, %v516
      %v519 = vpack.c.b16 %v517, %v517
      %vm522 = vcmask 388096
      %523 = vst.msk [vmem:[%s238] sm:$0xf] %vm522, %v518
      %524 = vst.msk [vmem:[%s238 + $0x4] sm:$0xf] %vm522, %v519
      %s525 = smul.u32 2, %s20
      %p526 = scmp.lt.s32.totalorder %s19, 1
      %s527 = scalar_select %p526, %s19, 1
      %p528 = scmp.lt.s32.totalorder %s525, 1
      %s529 = scalar_select %p528, %s525, 1
      %s530 = smul.addr %s527, 2
      %s531 = sadd.s32 %s529, %s530
      %s532 = smul.addr %s531, 4
      %s533 = scalar_lea.vmem %s4, %s532
      // Predicated region
      $region37: #{waveunet_forward.12} parent=35 // pred_check
        %p534 = pneg %p138
      $region38: #{waveunet_forward.12} parent=35 // pred_check_branch
        %536 = sbr.rel (%p534) target = $region40
      $region39: #{waveunet_forward.12} parent=35 // pred_region
        %s537 = smul.u32 2, %s20
      $region40: #{waveunet_forward.12} parent=35 // pred_fallthru
        _
    $region36: #{waveunet_forward.12} parent=5 // pred_fallthru
      _
    %p538 = scmp.le.s32.totalorder 2, %s10
    // Predicated region
    $region41: #{waveunet_forward.12} parent=5 // pred_check
      %p539 = pneg %p538
    $region42: #{waveunet_forward.12} parent=5 // pred_check_branch
      %541 = sbr.rel (%p539) target = $region44
    $region43: #{waveunet_forward.12} parent=5 // pred_region
      %s542 = ssub.s32 %s10, 2
      // Predicated region
      $region45: #{waveunet_forward.12} parent=43 // pred_check
        %p543 = pneg %p144
      $region46: #{waveunet_forward.12} parent=43 // pred_check_branch
        %545 = sbr.rel (%p543) target = $region48
      $region47: #{waveunet_forward.12} parent=43 // pred_region
        %s546 = smul.u32 2, %s22
        %p547 = scmp.lt.s32.totalorder %s21, 1
        %s548 = scalar_select %p547, %s21, 1
        %p549 = scmp.lt.s32.totalorder %s546, 1
        %s550 = scalar_select %p549, %s546, 1
        %s551 = smul.addr %s548, 2
        %s552 = sadd.s32 %s550, %s551
        %s553 = smul.addr %s552, 4
        %s554 = scalar_lea.vmem %s4, %s553
      $region48: #{waveunet_forward.12} parent=43 // pred_fallthru
        _
    $region44: #{waveunet_forward.12} parent=5 // pred_fallthru
      _
  $region6: #{waveunet_forward.12} parent=0 // loop_footer
    %s14 = sadd.s32 1, %s10
  $region7: #{waveunet_forward.12} parent=0 // loop_footer_branch
    %9 = sbr.rel target = $region3
  $region8: #{waveunet_forward.12} parent=0 // loop_exit
    _

// kernel: waveunet_forward.13
$region0: #{waveunet_forward.13}
  #allocation0 [shape = 'u32[]', space=smem, size = 0x4, offset = 0x4, fixed_abs, tag = 'smem constant byte address 0x4 - core index']
  #allocation1 [shape = 'u32[144,128]{1,0:T(1,128)}', space=vmem, size = 0x12000, scoped, tag = 'internal scratch']
  %s0 = inlined_call_operand.vmem [shape: bf16[2,8,432], index: 0, kind: input, shape index: {}]
  %s1 = inlined_call_operand.vmem [shape: bf16[432,64], index: 1, kind: input, shape index: {}]
  %s2 = inlined_call_operand.vmem [shape: f32[1,64], index: 2, kind: input, shape index: {}]
  %s3 = inlined_call_operand.vmem [shape: f32[1,64], index: 3, kind: input, shape index: {}]
  %s4 = inlined_call_operand.vmem [shape: bf16[2,8,64], index: 4, kind: output, shape index: {}]
  %s5 = sld [smem:[#allocation0]]
  $region49: #{waveunet_forward.13} parent=0
    _
  %s7 = ssub.s32 1, %s5
  %s8 = scalar_select 0, %s7, %s5
  loop: start=0, step=1, limit=4
  $region2: #{waveunet_forward.13} parent=0 // loop_pre_header
    _
  $region3: #{waveunet_forward.13} parent=0 // loop_header
    %s10 = sphi 0, %s14
    %p11 = scmp.ge.s32.totalorder %s10, 4
    %s17 = sphi 0, %s29
    %s18 = sphi 0, %s25
    %s19 = sphi 0, %s17
    %s20 = sphi 0, %s18
    %s21 = sphi 0, %s19
    %s22 = sphi 0, %s20
    %s34 = sphi 0, %s36
    %s37 = sphi 0, %s34
    %s38 = sphi 0, %s37
    %s54 = sphi 0, %s38
    %s58 = sphi 0, %s58
    %s60 = sphi 0, %s58
    %s61 = sphi 0, %s60
    %s75 = sphi 0, %s61
    %s79 = sphi 0, %s79
    %s81 = sphi 0, %s79
    %s82 = sphi 0, %s81
    %s96 = sphi 0, %s82
    %s100 = sphi 0, %s100
    %s102 = sphi 0, %s100
    %s103 = sphi 0, %s102
    %s117 = sphi 0, %s103
    %s125 = sphi 0, %s127
    %s128 = sphi 0, %s125
    %s129 = sphi 0, %s128
    %s145 = sphi 0, %s129
  $region4: #{waveunet_forward.13} parent=0 // loop_header_branch
    %13 = sbr.rel (%p11) target = $region8
  $region5: #{waveunet_forward.13} parent=0 // loop_body
    %s15 = ssub.s32 %s10, 1
    %s16 = ssub.s32 %s10, 2
    %s23 = sadd.s32 1, %s18
    %p24 = scmp.ge.s32.totalorder %s23, 1
    %s25 = scalar_select %p24, 0, %s23
    %s26 = sadd.s32 1, %s17
    %s27 = scalar_select %p24, %s26, %s17
    %p28 = scmp.ge.s32.totalorder %s27, 2
    %s29 = scalar_select %p28, 0, %s27
    %s30 = ssub.s32 %s17, %s29
    %s31 = ssub.s32 %s18, %s25
    %s32 = sor.u32 %s30, %s31
    %p33 = scmp.eq.s32.totalorder %s32, 0
    %s35 = sadd.s32 %s34, 1
    %s36 = scalar_select %p33, %s34, %s35
    %p39 = pneg %p33
    %p40 = scmp.eq.s32.totalorder %s10, 1
    %p41 = por %p39, %p40
    %p42 = scmp.ne.s32.totalorder %s34, %s37
    %p43 = scmp.eq.s32.totalorder %s10, 0
    %p44 = por %p42, %p43
    %p45 = scmp.ne.s32.totalorder %s34, %s37
    %p46 = scmp.eq.s32.totalorder %s15, 1
    %p47 = por %p45, %p46
    %p48 = scmp.ne.s32.totalorder %s37, %s38
    %p49 = scmp.eq.s32.totalorder %s15, 0
    %p50 = por %p48, %p49
    %p51 = scmp.ne.s32.totalorder %s37, %s38
    %p52 = scmp.eq.s32.totalorder %s16, 1
    %p53 = por %p51, %p52
    %p55 = scmp.ne.s32.totalorder %s38, %s54
    %p56 = scmp.eq.s32.totalorder %s16, 0
    %p57 = por %p55, %p56
    %s59 = sadd.s32 %s58, 1
    %p62 = scmp.eq.s32.totalorder %s10, 1
    %p63 = scmp.ne.s32.totalorder %s58, %s60
    %p64 = scmp.eq.s32.totalorder %s10, 0
    %p65 = por %p63, %p64
    %p66 = scmp.ne.s32.totalorder %s58, %s60
    %p67 = scmp.eq.s32.totalorder %s15, 1
    %p68 = por %p66, %p67
    %p69 = scmp.ne.s32.totalorder %s60, %s61
    %p70 = scmp.eq.s32.totalorder %s15, 0
    %p71 = por %p69, %p70
    %p72 = scmp.ne.s32.totalorder %s60, %s61
    %p73 = scmp.eq.s32.totalorder %s16, 1
    %p74 = por %p72, %p73
    %p76 = scmp.ne.s32.totalorder %s61, %s75
    %p77 = scmp.eq.s32.totalorder %s16, 0
    %p78 = por %p76, %p77
    %s80 = sadd.s32 %s79, 1
    %p83 = scmp.eq.s32.totalorder %s10, 1
    %p84 = scmp.ne.s32.totalorder %s79, %s81
    %p85 = scmp.eq.s32.totalorder %s10, 0
    %p86 = por %p84, %p85
    %p87 = scmp.ne.s32.totalorder %s79, %s81
    %p88 = scmp.eq.s32.totalorder %s15, 1
    %p89 = por %p87, %p88
    %p90 = scmp.ne.s32.totalorder %s81, %s82
    %p91 = scmp.eq.s32.totalorder %s15, 0
    %p92 = por %p90, %p91
    %p93 = scmp.ne.s32.totalorder %s81, %s82
    %p94 = scmp.eq.s32.totalorder %s16, 1
    %p95 = por %p93, %p94
    %p97 = scmp.ne.s32.totalorder %s82, %s96
    %p98 = scmp.eq.s32.totalorder %s16, 0
    %p99 = por %p97, %p98
    %s101 = sadd.s32 %s100, 1
    %p104 = scmp.eq.s32.totalorder %s10, 1
    %p105 = scmp.ne.s32.totalorder %s100, %s102
    %p106 = scmp.eq.s32.totalorder %s10, 0
    %p107 = por %p105, %p106
    %p108 = scmp.ne.s32.totalorder %s100, %s102
    %p109 = scmp.eq.s32.totalorder %s15, 1
    %p110 = por %p108, %p109
    %p111 = scmp.ne.s32.totalorder %s102, %s103
    %p112 = scmp.eq.s32.totalorder %s15, 0
    %p113 = por %p111, %p112
    %p114 = scmp.ne.s32.totalorder %s102, %s103
    %p115 = scmp.eq.s32.totalorder %s16, 1
    %p116 = por %p114, %p115
    %p118 = scmp.ne.s32.totalorder %s103, %s117
    %p119 = scmp.eq.s32.totalorder %s16, 0
    %p120 = por %p118, %p119
    %s121 = ssub.s32 %s17, %s29
    %s122 = ssub.s32 %s18, %s25
    %s123 = sor.u32 %s121, %s122
    %p124 = scmp.eq.s32.totalorder %s123, 0
    %s126 = sadd.s32 %s125, 1
    %s127 = scalar_select %p124, %s125, %s126
    %p130 = pneg %p124
    %p131 = scmp.eq.s32.totalorder %s10, 1
    %p132 = por %p130, %p131
    %p133 = scmp.ne.s32.totalorder %s125, %s128
    %p134 = scmp.eq.s32.totalorder %s10, 0
    %p135 = por %p133, %p134
    %p136 = scmp.ne.s32.totalorder %s125, %s128
    %p137 = scmp.eq.s32.totalorder %s15, 1
    %p138 = por %p136, %p137
    %p139 = scmp.ne.s32.totalorder %s128, %s129
    %p140 = scmp.eq.s32.totalorder %s15, 0
    %p141 = por %p139, %p140
    %p142 = scmp.ne.s32.totalorder %s128, %s129
    %p143 = scmp.eq.s32.totalorder %s16, 1
    %p144 = por %p142, %p143
    %p146 = scmp.ne.s32.totalorder %s129, %s145
    %p147 = scmp.eq.s32.totalorder %s16, 0
    %p148 = por %p146, %p147
    %p149 = scmp.le.s32.totalorder 1, %s10
    %p150 = scmp.lt.s32.totalorder %s10, 3
    %p151 = pnand %p149, %p150
    %p152 = pneg %p151
    // Predicated region
    $region9: #{waveunet_forward.13} parent=5 // pred_check
      _
    $region10: #{waveunet_forward.13} parent=5 // pred_check_branch
      %154 = sbr.rel (%p151) target = $region12
    $region11: #{waveunet_forward.13} parent=5 // pred_region
      %s155 = ssub.s32 %s10, 1
      // Predicated region
      $region13: #{waveunet_forward.13} parent=11 // pred_check
        %p156 = pneg %p71
      $region14: #{waveunet_forward.13} parent=11 // pred_check_branch
        %158 = sbr.rel (%p156) target = $region16
      $region15: #{waveunet_forward.13} parent=11 // pred_region
        _
      $region16: #{waveunet_forward.13} parent=11 // pred_fallthru
        _
      // Predicated region
      $region17: #{waveunet_forward.13} parent=11 // pred_check
        %p159 = pneg %p92
      $region18: #{waveunet_forward.13} parent=11 // pred_check_branch
        %161 = sbr.rel (%p159) target = $region20
      $region19: #{waveunet_forward.13} parent=11 // pred_region
        _
      $region20: #{waveunet_forward.13} parent=11 // pred_fallthru
        _
      // Predicated region
      $region21: #{waveunet_forward.13} parent=11 // pred_check
        %p162 = pneg %p113
      $region22: #{waveunet_forward.13} parent=11 // pred_check_branch
        %164 = sbr.rel (%p162) target = $region24
      $region23: #{waveunet_forward.13} parent=11 // pred_region
        _
      $region24: #{waveunet_forward.13} parent=11 // pred_fallthru
        _
    $region12: #{waveunet_forward.13} parent=5 // pred_fallthru
      _
    %p165 = scmp.lt.s32.totalorder %s10, 2
    // Predicated region
    $region25: #{waveunet_forward.13} parent=5 // pred_check
      %p166 = pneg %p165
    $region26: #{waveunet_forward.13} parent=5 // pred_check_branch
      %168 = sbr.rel (%p166) target = $region28
    $region27: #{waveunet_forward.13} parent=5 // pred_region
      // Predicated region
      $region29: #{waveunet_forward.13} parent=27 // pred_check
        %p169 = pneg %p44
      $region30: #{waveunet_forward.13} parent=27 // pred_check_branch
        %171 = sbr.rel (%p169) target = $region32
      $region31: #{waveunet_forward.13} parent=27 // pred_region
        %p172 = scmp.lt.s32.totalorder %s17, 1
        %s173 = scalar_select %p172, %s17, 1
        %p174 = scmp.lt.s32.totalorder %s18, 0
        %s175 = scalar_select %p174, %s18, 0
        %s176 = smul.addr %s175, 4
        %s177 = smul.addr %s173, 4
        %s178 = sadd.s32 %s176, %s177
        %s179 = smul.addr %s178, 4
        %s180 = scalar_lea.vmem %s0, %s179
      $region32: #{waveunet_forward.13} parent=27 // pred_fallthru
        _
    $region28: #{waveunet_forward.13} parent=5 // pred_fallthru
      _
    %p181 = scmp.le.s32.totalorder 1, %s10
    %p182 = scmp.lt.s32.totalorder %s10, 3
    %p183 = pnand %p181, %p182
    %p184 = pneg %p183
    // Predicated region
    $region33: #{waveunet_forward.13} parent=5 // pred_check
      _
    $region34: #{waveunet_forward.13} parent=5 // pred_check_branch
      %186 = sbr.rel (%p183) target = $region36
    $region35: #{waveunet_forward.13} parent=5 // pred_region
      %s187 = ssub.s32 %s10, 1
      %p188 = scmp.lt.s32.totalorder %s19, 1
      %s189 = scalar_select %p188, %s19, 1
      %p190 = scmp.lt.s32.totalorder %s20, 0
      %s191 = scalar_select %p190, %s20, 0
      %s192 = smul.addr %s191, 4
      %s193 = smul.addr %s189, 4
      %s194 = sadd.s32 %s192, %s193
      %s195 = smul.addr %s194, 4
      %s196 = scalar_lea.vmem %s0, %s195
      %p197 = pneg %p50
      %p198 = pneg %p47
      %p199 = pneg %p71
      %p200 = pneg %p68
      %p201 = pneg %p92
      %p202 = pneg %p89
      %p203 = pneg %p113
      %p204 = pneg %p110
      %p205 = pneg %p141
      %p206 = pneg %p138
      %p207 = scmp.lt.s32.totalorder %s19, 1
      %s208 = scalar_select %p207, %s19, 1
      %p209 = scmp.lt.s32.totalorder %s20, 0
      %s210 = scalar_select %p209, %s20, 0
      %s211 = sadd.s32 %s210, %s208
      %s212 = smul.addr %s211, 4
      %s213 = scalar_lea.vmem %s4, %s212
      %p214 = scmp.lt.s32.totalorder %s19, 1
      %s215 = scalar_select %p214, %s19, 1
      %p216 = scmp.lt.s32.totalorder %s20, 0
      %s217 = scalar_select %p216, %s20, 0
      %s218 = smul.addr %s217, 4
      %s219 = smul.addr %s215, 4
      %s220 = sadd.s32 %s218, %s219
      %s221 = smul.addr %s220, 4
      %s222 = scalar_lea.vmem %s0, %s221
      %p223 = scmp.lt.s32.totalorder %s19, 1
      %s224 = scalar_select %p223, %s19, 1
      %p225 = scmp.lt.s32.totalorder %s20, 0
      %s226 = scalar_select %p225, %s20, 0
      %s227 = sadd.s32 %s226, %s224
      %s228 = smul.addr %s227, 4
      %s229 = scalar_lea.vmem %s4, %s228
      %v231 = vld [vmem:[%s222] sm:$0xff]
      %v232 = vld [vmem:[%s222 + $0x8] sm:$0xff]
      %v233 = vld [vmem:[%s1] sm:$0xf]
      %v234 = vld [vmem:[%s1 + $0x4] sm:$0xf]
      %v235 = vld [vmem:[%s1 + $0x8] sm:$0xf]
      %v236 = vld [vmem:[%s1 + $0xc] sm:$0xf]
      %v237 = vld [vmem:[%s1 + $0x10] sm:$0xf]
      %v238 = vld [vmem:[%s1 + $0x14] sm:$0xf]
      %v239 = vld [vmem:[%s1 + $0x18] sm:$0xf]
      %v240 = vld [vmem:[%s1 + $0x1c] sm:$0xf]
      %v241 = vld [vmem:[%s1 + $0x20] sm:$0xf]
      %v242 = vld [vmem:[%s1 + $0x24] sm:$0xf]
      %v243 = vld [vmem:[%s1 + $0x28] sm:$0xf]
      %v244 = vld [vmem:[%s1 + $0x2c] sm:$0xf]
      %v245 = vld [vmem:[%s1 + $0x30] sm:$0xf]
      %v246 = vld [vmem:[%s1 + $0x34] sm:$0xf]
      %v247 = vld [vmem:[%s1 + $0x38] sm:$0xf]
      %v248 = vld [vmem:[%s1 + $0x3c] sm:$0xf]
      %v249 = vld [vmem:[%s1 + $0x40] sm:$0xf]
      %v250 = vld [vmem:[%s1 + $0x44] sm:$0xf]
      %v251 = vld [vmem:[%s1 + $0x48] sm:$0xf]
      %v252 = vld [vmem:[%s1 + $0x4c] sm:$0xf]
      %v253 = vld [vmem:[%s1 + $0x50] sm:$0xf]
      %v254 = vld [vmem:[%s1 + $0x54] sm:$0xf]
      %v255 = vld [vmem:[%s1 + $0x58] sm:$0xf]
      %v256 = vld [vmem:[%s1 + $0x5c] sm:$0xf]
      %v257 = vld [vmem:[%s1 + $0x60] sm:$0xf]
      %v258 = vld [vmem:[%s1 + $0x64] sm:$0xf]
      %v259 = vld [vmem:[%s1 + $0x68] sm:$0xf]
      %v260 = vld [vmem:[%s1 + $0x6c] sm:$0xf]
      %v261 = vld [vmem:[%s1 + $0x70] sm:$0xf]
      %v262 = vld [vmem:[%s1 + $0x74] sm:$0xf]
      %v263 = vld [vmem:[%s1 + $0x78] sm:$0xf]
      %v264 = vld [vmem:[%s1 + $0x7c] sm:$0xf]
      %v265 = vld [vmem:[%s1 + $0x80] sm:$0xf]
      %v266 = vld [vmem:[%s1 + $0x84] sm:$0xf]
      %v267 = vld [vmem:[%s1 + $0x88] sm:$0xf]
      %v268 = vld [vmem:[%s1 + $0x8c] sm:$0xf]
      %v269 = vld [vmem:[%s1 + $0x90] sm:$0xf]
      %v270 = vld [vmem:[%s1 + $0x94] sm:$0xf]
      %v271 = vld [vmem:[%s1 + $0x98] sm:$0xf]
      %v272 = vld [vmem:[%s1 + $0x9c] sm:$0xf]
      %v273 = vld [vmem:[%s1 + $0xa0] sm:$0xf]
      %v274 = vld [vmem:[%s1 + $0xa4] sm:$0xf]
      %v275 = vld [vmem:[%s1 + $0xa8] sm:$0xf]
      %v276 = vld [vmem:[%s1 + $0xac] sm:$0xf]
      %v277 = vld [vmem:[%s1 + $0xb0] sm:$0xf]
      %v278 = vld [vmem:[%s1 + $0xb4] sm:$0xf]
      %v279 = vld [vmem:[%s1 + $0xb8] sm:$0xf]
      %v280 = vld [vmem:[%s1 + $0xbc] sm:$0xf]
      %v281 = vld [vmem:[%s1 + $0xc0] sm:$0xf]
      %v282 = vld [vmem:[%s1 + $0xc4] sm:$0xf]
      %v283 = vld [vmem:[%s1 + $0xc8] sm:$0xf]
      %v284 = vld [vmem:[%s1 + $0xcc] sm:$0xf]
      %v285 = vld [vmem:[%s1 + $0xd0] sm:$0xf]
      %v286 = vld [vmem:[%s1 + $0xd4] sm:$0xf]
      %v289 = vunpack.c.l.b16 %v231
      %v290 = vunpack.c.h.b16 %v231
      %v291 = vunpack.c.l.b16 %v232
      %v292 = vunpack.c.h.b16 %v232
      %v293 = vpack.c.b16 %v289, %v289
      %v294 = vpack.c.b16 %v290, %v290
      %v295 = vpack.c.b16 %v291, %v291
      %v296 = vpack.c.b16 %v292, %v292
      %v354 = vunpack.c.l.b16 %v233
      %v355 = vunpack.c.l.b16 %v234
      %v356 = vunpack.c.l.b16 %v235
      %v357 = vunpack.c.l.b16 %v236
      %v358 = vunpack.c.l.b16 %v237
      %v359 = vunpack.c.l.b16 %v238
      %v360 = vunpack.c.l.b16 %v239
      %v361 = vunpack.c.l.b16 %v240
      %v362 = vunpack.c.l.b16 %v241
      %v363 = vunpack.c.l.b16 %v242
      %v364 = vunpack.c.l.b16 %v243
      %v365 = vunpack.c.l.b16 %v244
      %v366 = vunpack.c.l.b16 %v245
      %v367 = vunpack.c.l.b16 %v246
      %v368 = vunpack.c.l.b16 %v247
      %v369 = vunpack.c.l.b16 %v248
      %v370 = vunpack.c.l.b16 %v249
      %v371 = vunpack.c.l.b16 %v250
      %v372 = vunpack.c.l.b16 %v251
      %v373 = vunpack.c.l.b16 %v252
      %v374 = vunpack.c.l.b16 %v253
      %v375 = vunpack.c.l.b16 %v254
      %v376 = vunpack.c.l.b16 %v255
      %v377 = vunpack.c.l.b16 %v256
      %v378 = vunpack.c.l.b16 %v257
      %v379 = vunpack.c.l.b16 %v258
      %v380 = vunpack.c.l.b16 %v259
      %v381 = vunpack.c.l.b16 %v260
      %v382 = vunpack.c.l.b16 %v261
      %v383 = vunpack.c.l.b16 %v262
      %v384 = vunpack.c.l.b16 %v263
      %v385 = vunpack.c.l.b16 %v264
      %v386 = vunpack.c.l.b16 %v265
      %v387 = vunpack.c.l.b16 %v266
      %v388 = vunpack.c.l.b16 %v267
      %v389 = vunpack.c.l.b16 %v268
      %v390 = vunpack.c.l.b16 %v269
      %v391 = vunpack.c.l.b16 %v270
      %v392 = vunpack.c.l.b16 %v271
      %v393 = vunpack.c.l.b16 %v272
      %v394 = vunpack.c.l.b16 %v273
      %v395 = vunpack.c.l.b16 %v274
      %v396 = vunpack.c.l.b16 %v275
      %v397 = vunpack.c.l.b16 %v276
      %v398 = vunpack.c.l.b16 %v277
      %v399 = vunpack.c.l.b16 %v278
      %v400 = vunpack.c.l.b16 %v279
      %v401 = vunpack.c.l.b16 %v280
      %v402 = vunpack.c.l.b16 %v281
      %v403 = vunpack.c.l.b16 %v282
      %v404 = vunpack.c.l.b16 %v283
      %v405 = vunpack.c.l.b16 %v284
      %v406 = vunpack.c.l.b16 %v285
      %v407 = vunpack.c.l.b16 %v286
      %v408 = vpack.c.b16 %v355, %v354
      %v409 = vpack.c.b16 %v357, %v356
      %v410 = vpack.c.b16 %v359, %v358
      %v411 = vpack.c.b16 %v361, %v360
      %v412 = vpack.c.b16 %v363, %v362
      %v413 = vpack.c.b16 %v365, %v364
      %v414 = vpack.c.b16 %v367, %v366
      %v415 = vpack.c.b16 %v369, %v368
      %v416 = vpack.c.b16 %v371, %v370
      %v417 = vpack.c.b16 %v373, %v372
      %v418 = vpack.c.b16 %v375, %v374
      %v419 = vpack.c.b16 %v377, %v376
      %v420 = vpack.c.b16 %v379, %v378
      %v421 = vpack.c.b16 %v381, %v380
      %v422 = vpack.c.b16 %v383, %v382
      %v423 = vpack.c.b16 %v385, %v384
      %v424 = vpack.c.b16 %v387, %v386
      %v425 = vpack.c.b16 %v389, %v388
      %v426 = vpack.c.b16 %v391, %v390
      %v427 = vpack.c.b16 %v393, %v392
      %v428 = vpack.c.b16 %v395, %v394
      %v429 = vpack.c.b16 %v397, %v396
      %v430 = vpack.c.b16 %v399, %v398
      %v431 = vpack.c.b16 %v401, %v400
      %v432 = vpack.c.b16 %v403, %v402
      %v433 = vpack.c.b16 %v405, %v404
      %v434 = vpack.c.b16 %v407, %v406
      %vm462 = vcmask 392192
      %v464 = vsel %vm462, %v296, 0
      %466 = vmatprep.subr.bf16.mxu0 0
      %467 = vmatpush1.bf16.msra.mxu0 %v408
      %468 = vmatprep.subr.bf16.mxu0 0
      %469 = vmatpush1.bf16.msra.mxu0 %v409
      %470 = vmatprep.subr.bf16.mxu0 0
      %471 = vmatpush1.bf16.msra.mxu0 %v410
      %472 = vmatprep.subr.bf16.mxu0 0
      %473 = vmatpush1.bf16.msra.mxu0 %v411
      %474 = vmatprep.subr.bf16.mxu0 0
      %475 = vmatpush1.bf16.msra.mxu0 %v412
      %476 = vmatprep.subr.bf16.mxu0 0
      %477 = vmatpush1.bf16.msra.mxu0 %v413
      %478 = vmatprep.subr.bf16.mxu0 0
      %479 = vmatpush1.bf16.msra.mxu0 %v414
      %480 = vmatprep.subr.bf16.mxu0 0
      %481 = vmatpush1.bf16.msra.mxu0 %v415
      %482 = vmatprep.subr.bf16.mxu0 0
      %483 = vmatpush1.bf16.msra.mxu0 %v416
      %484 = vmatprep.subr.bf16.mxu0 0
      %485 = vmatpush1.bf16.msra.mxu0 %v417
      %486 = vmatprep.subr.bf16.mxu0 0
      %487 = vmatpush1.bf16.msra.mxu0 %v418
      %488 = vmatprep.subr.bf16.mxu0 0
      %489 = vmatpush1.bf16.msra.mxu0 %v419
      %490 = vmatprep.subr.bf16.mxu0 0
      %491 = vmatpush1.bf16.msra.mxu0 %v420
      %492 = vmatprep.subr.bf16.mxu0 0
      %493 = vmatpush1.bf16.msra.mxu0 %v421
      %494 = vmatprep.subr.bf16.mxu0 0
      %495 = vmatpush1.bf16.msra.mxu0 %v422
      %496 = vmatprep.subr.bf16.mxu0 0
      %497 = vmatpush1.bf16.msra.mxu0 %v423
      %498 = vmatprep.mubr.bf16.mxu0 %v294
      %499 = vmatmul.mubr.bf16.gmra.mrb[0].mxu0 %v293
      %v500 = vpop.f32.mrb[0].mxu0
      %v501 = vadd.f32 0.0, %v500
      %v502 = vpop.f32.mrb[0].mxu0
      %v503 = vpop.f32.mrb[0].mxu0
      %v504 = vpop.f32.mrb[0].mxu0
      %505 = vdwg.mxu0
      %506 = vmatprep.subr.bf16.mxu0 0
      %507 = vmatpush1.bf16.msra.mxu0 %v424
      %508 = vmatprep.subr.bf16.mxu0 0
      %509 = vmatpush1.bf16.msra.mxu0 %v425
      %510 = vmatprep.subr.bf16.mxu0 0
      %511 = vmatpush1.bf16.msra.mxu0 %v426
      %512 = vmatprep.subr.bf16.mxu0 0
      %513 = vmatpush1.bf16.msra.mxu0 %v427
      %514 = vmatprep.subr.bf16.mxu0 0
      %515 = vmatpush1.bf16.msra.mxu0 %v428
      %516 = vmatprep.subr.bf16.mxu0 0
      %517 = vmatpush1.bf16.msra.mxu0 %v429
      %518 = vmatprep.subr.bf16.mxu0 0
      %519 = vmatpush1.bf16.msra.mxu0 %v430
      %520 = vmatprep.subr.bf16.mxu0 0
      %521 = vmatpush1.bf16.msra.mxu0 %v431
      %522 = vmatprep.subr.bf16.mxu0 0
      %523 = vmatpush1.bf16.msra.mxu0 %v432
      %524 = vmatprep.subr.bf16.mxu0 0
      %525 = vmatpush1.bf16.msra.mxu0 %v433
      %526 = vmatprep.subr.bf16.mxu0 0
      %527 = vmatpush1.bf16.msra.mxu0 %v434
      %528 = vmatprep.subr.bf16.mxu0 0
      %529 = vmatpush1.bf16.msra.mxu0 0
      %530 = vmatprep.subr.bf16.mxu0 0
      %531 = vmatpush1.bf16.msra.mxu0 0
      %532 = vmatprep.subr.bf16.mxu0 0
      %533 = vmatpush1.bf16.msra.mxu0 0
      %534 = vmatprep.subr.bf16.mxu0 0
      %535 = vmatpush1.bf16.msra.mxu0 0
      %536 = vmatprep.subr.bf16.mxu0 0
      %537 = vmatpush1.bf16.msra.mxu0 0
      %538 = vmatprep.mubr.bf16.mxu0 %v464
      %539 = vmatmul.mubr.bf16.gmra.mrb[0].mxu0 %v295
      %v540 = vpop.f32.mrb[0].mxu0
      %v541 = vadd.f32 %v501, %v540
      %v542 = vpop.f32.mrb[0].mxu0
      %v543 = vpop.f32.mrb[0].mxu0
      %v544 = vpop.f32.mrb[0].mxu0
      %545 = vdwg.mxu0
      %v546 = vld [vmem:[%s2] sm:$0x1]
      %v548 = vlaneseq
      %v549 = vshrl.u32 %v548, 7
      %v550 = vsub.s32 0, %v549
      %v551 = vrot.slane %v546, %v550
      %v553 = vmul.f32 %v541, %v551
      %v554 = vld [vmem:[%s3] sm:$0x1]
      %v556 = vlaneseq
      %v557 = vshrl.u32 %v556, 7
      %v558 = vsub.s32 0, %v557
      %v559 = vrot.slane %v554, %v558
      %v561 = vadd.f32 %v553, %v559
      %vm562 = vcmp.ge.f32.partialorder %v561, 0.0
      %v563 = vmul.f32 %v561, 0.2
      %v564 = vsel %vm562, %v561, %v563
      %v565 = vpack.c.bf16 %v564, %v564
      %vm566 = vcmask 519168
      %567 = vst.msk [vmem:[%s229] sm:$0xf] %vm566, %v565
      %p568 = scmp.lt.s32.totalorder %s19, 1
      %s569 = scalar_select %p568, %s19, 1
      %p570 = scmp.lt.s32.totalorder %s20, 0
      %s571 = scalar_select %p570, %s20, 0
      %s572 = sadd.s32 %s571, %s569
      %s573 = smul.addr %s572, 4
      %s574 = scalar_lea.vmem %s4, %s573
      // Predicated region
      $region37: #{waveunet_forward.13} parent=35 // pred_check
        %p575 = pneg %p138
      $region38: #{waveunet_forward.13} parent=35 // pred_check_branch
        %577 = sbr.rel (%p575) target = $region40
      $region39: #{waveunet_forward.13} parent=35 // pred_region
        _
      $region40: #{waveunet_forward.13} parent=35 // pred_fallthru
        _
    $region36: #{waveunet_forward.13} parent=5 // pred_fallthru
      _
    %p578 = scmp.le.s32.totalorder 2, %s10
    // Predicated region
    $region41: #{waveunet_forward.13} parent=5 // pred_check
      %p579 = pneg %p578
    $region42: #{waveunet_forward.13} parent=5 // pred_check_branch
      %581 = sbr.rel (%p579) target = $region44
    $region43: #{waveunet_forward.13} parent=5 // pred_region
      %s582 = ssub.s32 %s10, 2
      // Predicated region
      $region45: #{waveunet_forward.13} parent=43 // pred_check
        %p583 = pneg %p144
      $region46: #{waveunet_forward.13} parent=43 // pred_check_branch
        %585 = sbr.rel (%p583) target = $region48
      $region47: #{waveunet_forward.13} parent=43 // pred_region
        %p586 = scmp.lt.s32.totalorder %s21, 1
        %s587 = scalar_select %p586, %s21, 1
        %p588 = scmp.lt.s32.totalorder %s22, 0
        %s589 = scalar_select %p588, %s22, 0
        %s590 = sadd.s32 %s589, %s587
        %s591 = smul.addr %s590, 4
        %s592 = scalar_lea.vmem %s4, %s591
      $region48: #{waveunet_forward.13} parent=43 // pred_fallthru
        _
    $region44: #{waveunet_forward.13} parent=5 // pred_fallthru
      _
  $region6: #{waveunet_forward.13} parent=0 // loop_footer
    %s14 = sadd.s32 1, %s10
  $region7: #{waveunet_forward.13} parent=0 // loop_footer_branch
    %9 = sbr.rel target = $region3
  $region8: #{waveunet_forward.13} parent=0 // loop_exit
    _

// kernel: waveunet_forward.14
$region0: #{waveunet_forward.14}
  #allocation0 [shape = 'u32[]', space=smem, size = 0x4, offset = 0x4, fixed_abs, tag = 'smem constant byte address 0x4 - core index']
  #allocation1 [shape = 'u32[144,128]{1,0:T(1,128)}', space=vmem, size = 0x12000, scoped, tag = 'internal scratch']
  %s0 = inlined_call_operand.vmem [shape: bf16[2,4,192], index: 0, kind: input, shape index: {}]
  %s1 = inlined_call_operand.vmem [shape: bf16[192,64], index: 1, kind: input, shape index: {}]
  %s2 = inlined_call_operand.vmem [shape: f32[1,64], index: 2, kind: input, shape index: {}]
  %s3 = inlined_call_operand.vmem [shape: f32[1,64], index: 3, kind: input, shape index: {}]
  %s4 = inlined_call_operand.vmem [shape: bf16[2,4,64], index: 4, kind: output, shape index: {}]
  %s5 = sld [smem:[#allocation0]]
  $region49: #{waveunet_forward.14} parent=0
    _
  %s7 = ssub.s32 1, %s5
  %s8 = scalar_select 0, %s7, %s5
  loop: start=0, step=1, limit=4
  $region2: #{waveunet_forward.14} parent=0 // loop_pre_header
    _
  $region3: #{waveunet_forward.14} parent=0 // loop_header
    %s10 = sphi 0, %s14
    %p11 = scmp.ge.s32.totalorder %s10, 4
    %s17 = sphi 0, %s29
    %s18 = sphi 0, %s25
    %s19 = sphi 0, %s17
    %s20 = sphi 0, %s18
    %s21 = sphi 0, %s19
    %s22 = sphi 0, %s20
    %s34 = sphi 0, %s36
    %s37 = sphi 0, %s34
    %s38 = sphi 0, %s37
    %s54 = sphi 0, %s38
    %s58 = sphi 0, %s58
    %s60 = sphi 0, %s58
    %s61 = sphi 0, %s60
    %s75 = sphi 0, %s61
    %s79 = sphi 0, %s79
    %s81 = sphi 0, %s79
    %s82 = sphi 0, %s81
    %s96 = sphi 0, %s82
    %s100 = sphi 0, %s100
    %s102 = sphi 0, %s100
    %s103 = sphi 0, %s102
    %s117 = sphi 0, %s103
    %s125 = sphi 0, %s127
    %s128 = sphi 0, %s125
    %s129 = sphi 0, %s128
    %s145 = sphi 0, %s129
  $region4: #{waveunet_forward.14} parent=0 // loop_header_branch
    %13 = sbr.rel (%p11) target = $region8
  $region5: #{waveunet_forward.14} parent=0 // loop_body
    %s15 = ssub.s32 %s10, 1
    %s16 = ssub.s32 %s10, 2
    %s23 = sadd.s32 1, %s18
    %p24 = scmp.ge.s32.totalorder %s23, 1
    %s25 = scalar_select %p24, 0, %s23
    %s26 = sadd.s32 1, %s17
    %s27 = scalar_select %p24, %s26, %s17
    %p28 = scmp.ge.s32.totalorder %s27, 2
    %s29 = scalar_select %p28, 0, %s27
    %s30 = ssub.s32 %s17, %s29
    %s31 = ssub.s32 %s18, %s25
    %s32 = sor.u32 %s30, %s31
    %p33 = scmp.eq.s32.totalorder %s32, 0
    %s35 = sadd.s32 %s34, 1
    %s36 = scalar_select %p33, %s34, %s35
    %p39 = pneg %p33
    %p40 = scmp.eq.s32.totalorder %s10, 1
    %p41 = por %p39, %p40
    %p42 = scmp.ne.s32.totalorder %s34, %s37
    %p43 = scmp.eq.s32.totalorder %s10, 0
    %p44 = por %p42, %p43
    %p45 = scmp.ne.s32.totalorder %s34, %s37
    %p46 = scmp.eq.s32.totalorder %s15, 1
    %p47 = por %p45, %p46
    %p48 = scmp.ne.s32.totalorder %s37, %s38
    %p49 = scmp.eq.s32.totalorder %s15, 0
    %p50 = por %p48, %p49
    %p51 = scmp.ne.s32.totalorder %s37, %s38
    %p52 = scmp.eq.s32.totalorder %s16, 1
    %p53 = por %p51, %p52
    %p55 = scmp.ne.s32.totalorder %s38, %s54
    %p56 = scmp.eq.s32.totalorder %s16, 0
    %p57 = por %p55, %p56
    %s59 = sadd.s32 %s58, 1
    %p62 = scmp.eq.s32.totalorder %s10, 1
    %p63 = scmp.ne.s32.totalorder %s58, %s60
    %p64 = scmp.eq.s32.totalorder %s10, 0
    %p65 = por %p63, %p64
    %p66 = scmp.ne.s32.totalorder %s58, %s60
    %p67 = scmp.eq.s32.totalorder %s15, 1
    %p68 = por %p66, %p67
    %p69 = scmp.ne.s32.totalorder %s60, %s61
    %p70 = scmp.eq.s32.totalorder %s15, 0
    %p71 = por %p69, %p70
    %p72 = scmp.ne.s32.totalorder %s60, %s61
    %p73 = scmp.eq.s32.totalorder %s16, 1
    %p74 = por %p72, %p73
    %p76 = scmp.ne.s32.totalorder %s61, %s75
    %p77 = scmp.eq.s32.totalorder %s16, 0
    %p78 = por %p76, %p77
    %s80 = sadd.s32 %s79, 1
    %p83 = scmp.eq.s32.totalorder %s10, 1
    %p84 = scmp.ne.s32.totalorder %s79, %s81
    %p85 = scmp.eq.s32.totalorder %s10, 0
    %p86 = por %p84, %p85
    %p87 = scmp.ne.s32.totalorder %s79, %s81
    %p88 = scmp.eq.s32.totalorder %s15, 1
    %p89 = por %p87, %p88
    %p90 = scmp.ne.s32.totalorder %s81, %s82
    %p91 = scmp.eq.s32.totalorder %s15, 0
    %p92 = por %p90, %p91
    %p93 = scmp.ne.s32.totalorder %s81, %s82
    %p94 = scmp.eq.s32.totalorder %s16, 1
    %p95 = por %p93, %p94
    %p97 = scmp.ne.s32.totalorder %s82, %s96
    %p98 = scmp.eq.s32.totalorder %s16, 0
    %p99 = por %p97, %p98
    %s101 = sadd.s32 %s100, 1
    %p104 = scmp.eq.s32.totalorder %s10, 1
    %p105 = scmp.ne.s32.totalorder %s100, %s102
    %p106 = scmp.eq.s32.totalorder %s10, 0
    %p107 = por %p105, %p106
    %p108 = scmp.ne.s32.totalorder %s100, %s102
    %p109 = scmp.eq.s32.totalorder %s15, 1
    %p110 = por %p108, %p109
    %p111 = scmp.ne.s32.totalorder %s102, %s103
    %p112 = scmp.eq.s32.totalorder %s15, 0
    %p113 = por %p111, %p112
    %p114 = scmp.ne.s32.totalorder %s102, %s103
    %p115 = scmp.eq.s32.totalorder %s16, 1
    %p116 = por %p114, %p115
    %p118 = scmp.ne.s32.totalorder %s103, %s117
    %p119 = scmp.eq.s32.totalorder %s16, 0
    %p120 = por %p118, %p119
    %s121 = ssub.s32 %s17, %s29
    %s122 = ssub.s32 %s18, %s25
    %s123 = sor.u32 %s121, %s122
    %p124 = scmp.eq.s32.totalorder %s123, 0
    %s126 = sadd.s32 %s125, 1
    %s127 = scalar_select %p124, %s125, %s126
    %p130 = pneg %p124
    %p131 = scmp.eq.s32.totalorder %s10, 1
    %p132 = por %p130, %p131
    %p133 = scmp.ne.s32.totalorder %s125, %s128
    %p134 = scmp.eq.s32.totalorder %s10, 0
    %p135 = por %p133, %p134
    %p136 = scmp.ne.s32.totalorder %s125, %s128
    %p137 = scmp.eq.s32.totalorder %s15, 1
    %p138 = por %p136, %p137
    %p139 = scmp.ne.s32.totalorder %s128, %s129
    %p140 = scmp.eq.s32.totalorder %s15, 0
    %p141 = por %p139, %p140
    %p142 = scmp.ne.s32.totalorder %s128, %s129
    %p143 = scmp.eq.s32.totalorder %s16, 1
    %p144 = por %p142, %p143
    %p146 = scmp.ne.s32.totalorder %s129, %s145
    %p147 = scmp.eq.s32.totalorder %s16, 0
    %p148 = por %p146, %p147
    %p149 = scmp.le.s32.totalorder 1, %s10
    %p150 = scmp.lt.s32.totalorder %s10, 3
    %p151 = pnand %p149, %p150
    %p152 = pneg %p151
    // Predicated region
    $region9: #{waveunet_forward.14} parent=5 // pred_check
      _
    $region10: #{waveunet_forward.14} parent=5 // pred_check_branch
      %154 = sbr.rel (%p151) target = $region12
    $region11: #{waveunet_forward.14} parent=5 // pred_region
      %s155 = ssub.s32 %s10, 1
      // Predicated region
      $region13: #{waveunet_forward.14} parent=11 // pred_check
        %p156 = pneg %p71
      $region14: #{waveunet_forward.14} parent=11 // pred_check_branch
        %158 = sbr.rel (%p156) target = $region16
      $region15: #{waveunet_forward.14} parent=11 // pred_region
        _
      $region16: #{waveunet_forward.14} parent=11 // pred_fallthru
        _
      // Predicated region
      $region17: #{waveunet_forward.14} parent=11 // pred_check
        %p159 = pneg %p92
      $region18: #{waveunet_forward.14} parent=11 // pred_check_branch
        %161 = sbr.rel (%p159) target = $region20
      $region19: #{waveunet_forward.14} parent=11 // pred_region
        _
      $region20: #{waveunet_forward.14} parent=11 // pred_fallthru
        _
      // Predicated region
      $region21: #{waveunet_forward.14} parent=11 // pred_check
        %p162 = pneg %p113
      $region22: #{waveunet_forward.14} parent=11 // pred_check_branch
        %164 = sbr.rel (%p162) target = $region24
      $region23: #{waveunet_forward.14} parent=11 // pred_region
        _
      $region24: #{waveunet_forward.14} parent=11 // pred_fallthru
        _
    $region12: #{waveunet_forward.14} parent=5 // pred_fallthru
      _
    %p165 = scmp.lt.s32.totalorder %s10, 2
    // Predicated region
    $region25: #{waveunet_forward.14} parent=5 // pred_check
      %p166 = pneg %p165
    $region26: #{waveunet_forward.14} parent=5 // pred_check_branch
      %168 = sbr.rel (%p166) target = $region28
    $region27: #{waveunet_forward.14} parent=5 // pred_region
      // Predicated region
      $region29: #{waveunet_forward.14} parent=27 // pred_check
        %p169 = pneg %p44
      $region30: #{waveunet_forward.14} parent=27 // pred_check_branch
        %171 = sbr.rel (%p169) target = $region32
      $region31: #{waveunet_forward.14} parent=27 // pred_region
        %p172 = scmp.lt.s32.totalorder %s17, 1
        %s173 = scalar_select %p172, %s17, 1
        %p174 = scmp.lt.s32.totalorder %s18, 0
        %s175 = scalar_select %p174, %s18, 0
        %s176 = smul.addr %s175, 2
        %s177 = smul.addr %s173, 2
        %s178 = sadd.s32 %s176, %s177
        %s179 = smul.addr %s178, 2
        %s180 = scalar_lea.vmem %s0, %s179
      $region32: #{waveunet_forward.14} parent=27 // pred_fallthru
        _
    $region28: #{waveunet_forward.14} parent=5 // pred_fallthru
      _
    %p181 = scmp.le.s32.totalorder 1, %s10
    %p182 = scmp.lt.s32.totalorder %s10, 3
    %p183 = pnand %p181, %p182
    %p184 = pneg %p183
    // Predicated region
    $region33: #{waveunet_forward.14} parent=5 // pred_check
      _
    $region34: #{waveunet_forward.14} parent=5 // pred_check_branch
      %186 = sbr.rel (%p183) target = $region36
    $region35: #{waveunet_forward.14} parent=5 // pred_region
      %s187 = ssub.s32 %s10, 1
      %p188 = scmp.lt.s32.totalorder %s19, 1
      %s189 = scalar_select %p188, %s19, 1
      %p190 = scmp.lt.s32.totalorder %s20, 0
      %s191 = scalar_select %p190, %s20, 0
      %s192 = smul.addr %s191, 2
      %s193 = smul.addr %s189, 2
      %s194 = sadd.s32 %s192, %s193
      %s195 = smul.addr %s194, 2
      %s196 = scalar_lea.vmem %s0, %s195
      %p197 = pneg %p50
      %p198 = pneg %p47
      %p199 = pneg %p71
      %p200 = pneg %p68
      %p201 = pneg %p92
      %p202 = pneg %p89
      %p203 = pneg %p113
      %p204 = pneg %p110
      %p205 = pneg %p141
      %p206 = pneg %p138
      %p207 = scmp.lt.s32.totalorder %s19, 1
      %s208 = scalar_select %p207, %s19, 1
      %p209 = scmp.lt.s32.totalorder %s20, 0
      %s210 = scalar_select %p209, %s20, 0
      %s211 = sadd.s32 %s210, %s208
      %s212 = smul.addr %s211, 2
      %s213 = scalar_lea.vmem %s4, %s212
      %p214 = scmp.lt.s32.totalorder %s19, 1
      %s215 = scalar_select %p214, %s19, 1
      %p216 = scmp.lt.s32.totalorder %s20, 0
      %s217 = scalar_select %p216, %s20, 0
      %s218 = smul.addr %s217, 2
      %s219 = smul.addr %s215, 2
      %s220 = sadd.s32 %s218, %s219
      %s221 = smul.addr %s220, 2
      %s222 = scalar_lea.vmem %s0, %s221
      %p223 = scmp.lt.s32.totalorder %s19, 1
      %s224 = scalar_select %p223, %s19, 1
      %p225 = scmp.lt.s32.totalorder %s20, 0
      %s226 = scalar_select %p225, %s20, 0
      %s227 = sadd.s32 %s226, %s224
      %s228 = smul.addr %s227, 2
      %s229 = scalar_lea.vmem %s4, %s228
      %v231 = vld [vmem:[%s222] sm:$0xf]
      %v232 = vld [vmem:[%s1] sm:$0xf]
      %v233 = vld [vmem:[%s1 + $0x4] sm:$0xf]
      %v234 = vld [vmem:[%s1 + $0x8] sm:$0xf]
      %v235 = vld [vmem:[%s1 + $0xc] sm:$0xf]
      %v236 = vld [vmem:[%s1 + $0x10] sm:$0xf]
      %v237 = vld [vmem:[%s1 + $0x14] sm:$0xf]
      %v238 = vld [vmem:[%s1 + $0x18] sm:$0xf]
      %v239 = vld [vmem:[%s1 + $0x1c] sm:$0xf]
      %v240 = vld [vmem:[%s1 + $0x20] sm:$0xf]
      %v241 = vld [vmem:[%s1 + $0x24] sm:$0xf]
      %v242 = vld [vmem:[%s1 + $0x28] sm:$0xf]
      %v243 = vld [vmem:[%s1 + $0x2c] sm:$0xf]
      %v244 = vld [vmem:[%s1 + $0x30] sm:$0xf]
      %v245 = vld [vmem:[%s1 + $0x34] sm:$0xf]
      %v246 = vld [vmem:[%s1 + $0x38] sm:$0xf]
      %v247 = vld [vmem:[%s1 + $0x3c] sm:$0xf]
      %v248 = vld [vmem:[%s1 + $0x40] sm:$0xf]
      %v249 = vld [vmem:[%s1 + $0x44] sm:$0xf]
      %v250 = vld [vmem:[%s1 + $0x48] sm:$0xf]
      %v251 = vld [vmem:[%s1 + $0x4c] sm:$0xf]
      %v252 = vld [vmem:[%s1 + $0x50] sm:$0xf]
      %v253 = vld [vmem:[%s1 + $0x54] sm:$0xf]
      %v254 = vld [vmem:[%s1 + $0x58] sm:$0xf]
      %v255 = vld [vmem:[%s1 + $0x5c] sm:$0xf]
      %v258 = vunpack.c.l.s4 1983009808
      %v259 = vunpack.c.0.s8 %v258
      %v260 = vlaneseq
      %v261 = vshrl.u32 %v260, 7
      %v262 = vsub.s32 %v259, %v261
      %v263 = vrot.slane %v231, %v262
      %v264 = vcombine.high %v263, %v263
      %v290 = vunpack.c.l.b16 %v232
      %v291 = vunpack.c.l.b16 %v233
      %v292 = vunpack.c.l.b16 %v234
      %v293 = vunpack.c.l.b16 %v235
      %v294 = vunpack.c.l.b16 %v236
      %v295 = vunpack.c.l.b16 %v237
      %v296 = vunpack.c.l.b16 %v238
      %v297 = vunpack.c.l.b16 %v239
      %v298 = vunpack.c.l.b16 %v240
      %v299 = vunpack.c.l.b16 %v241
      %v300 = vunpack.c.l.b16 %v242
      %v301 = vunpack.c.l.b16 %v243
      %v302 = vunpack.c.l.b16 %v244
      %v303 = vunpack.c.l.b16 %v245
      %v304 = vunpack.c.l.b16 %v246
      %v305 = vunpack.c.l.b16 %v247
      %v306 = vunpack.c.l.b16 %v248
      %v307 = vunpack.c.l.b16 %v249
      %v308 = vunpack.c.l.b16 %v250
      %v309 = vunpack.c.l.b16 %v251
      %v310 = vunpack.c.l.b16 %v252
      %v311 = vunpack.c.l.b16 %v253
      %v312 = vunpack.c.l.b16 %v254
      %v313 = vunpack.c.l.b16 %v255
      %v314 = vpack.c.b16 %v291, %v290
      %v315 = vpack.c.b16 %v293, %v292
      %v316 = vpack.c.b16 %v295, %v294
      %v317 = vpack.c.b16 %v297, %v296
      %v318 = vpack.c.b16 %v299, %v298
      %v319 = vpack.c.b16 %v301, %v300
      %v320 = vpack.c.b16 %v303, %v302
      %v321 = vpack.c.b16 %v305, %v304
      %v322 = vpack.c.b16 %v307, %v306
      %v323 = vpack.c.b16 %v309, %v308
      %v324 = vpack.c.b16 %v311, %v310
      %v325 = vpack.c.b16 %v313, %v312
      %vm338 = vcmask 523264
      %v340 = vsel %vm338, %v264, 0
      %342 = vmatprep.subr.bf16.mxu0 0
      %343 = vmatpush1.bf16.msra.mxu0 %v314
      %344 = vmatprep.subr.bf16.mxu0 0
      %345 = vmatpush1.bf16.msra.mxu0 %v315
      %346 = vmatprep.subr.bf16.mxu0 0
      %347 = vmatpush1.bf16.msra.mxu0 %v316
      %348 = vmatprep.subr.bf16.mxu0 0
      %349 = vmatpush1.bf16.msra.mxu0 %v317
      %350 = vmatprep.subr.bf16.mxu0 0
      %351 = vmatpush1.bf16.msra.mxu0 %v318
      %352 = vmatprep.subr.bf16.mxu0 0
      %353 = vmatpush1.bf16.msra.mxu0 %v319
      %354 = vmatprep.subr.bf16.mxu0 0
      %355 = vmatpush1.bf16.msra.mxu0 %v320
      %356 = vmatprep.subr.bf16.mxu0 0
      %357 = vmatpush1.bf16.msra.mxu0 %v321
      %358 = vmatprep.subr.bf16.mxu0 0
      %359 = vmatpush1.bf16.msra.mxu0 %v322
      %360 = vmatprep.subr.bf16.mxu0 0
      %361 = vmatpush1.bf16.msra.mxu0 %v323
      %362 = vmatprep.subr.bf16.mxu0 0
      %363 = vmatpush1.bf16.msra.mxu0 %v324
      %364 = vmatprep.subr.bf16.mxu0 0
      %365 = vmatpush1.bf16.msra.mxu0 %v325
      %366 = vmatprep.subr.bf16.mxu0 0
      %367 = vmatpush1.bf16.msra.mxu0 0
      %368 = vmatprep.subr.bf16.mxu0 0
      %369 = vmatpush1.bf16.msra.mxu0 0
      %370 = vmatprep.subr.bf16.mxu0 0
      %371 = vmatpush1.bf16.msra.mxu0 0
      %372 = vmatprep.subr.bf16.mxu0 0
      %373 = vmatpush1.bf16.msra.mxu0 0
      %374 = vmatprep.mubr.bf16.mxu0 %v340
      %375 = vmatmul.mubr.bf16.gmra.mrb[0].mxu0 %v263
      %v376 = vpop.f32.mrb[0].mxu0
      %v377 = vadd.f32 0.0, %v376
      %v378 = vpop.f32.mrb[0].mxu0
      %v379 = vpop.f32.mrb[0].mxu0
      %v380 = vpop.f32.mrb[0].mxu0
      %381 = vdwg.mxu0
      %v382 = vld [vmem:[%s2] sm:$0x1]
      %v384 = vlaneseq
      %v385 = vshrl.u32 %v384, 7
      %v386 = vsub.s32 0, %v385
      %v387 = vrot.slane %v382, %v386
      %v389 = vmul.f32 %v377, %v387
      %v390 = vld [vmem:[%s3] sm:$0x1]
      %v392 = vlaneseq
      %v393 = vshrl.u32 %v392, 7
      %v394 = vsub.s32 0, %v393
      %v395 = vrot.slane %v390, %v394
      %v397 = vadd.f32 %v389, %v395
      %vm398 = vcmp.ge.f32.partialorder %v397, 0.0
      %v399 = vmul.f32 %v397, 0.1
      %v400 = vsel %vm398, %v397, %v399
      %v401 = vpack.c.bf16 %v400, %v400
      %vm402 = vcmask 517120
      %403 = vst.msk [vmem:[%s229] sm:$0x3] %vm402, %v401
      %p404 = scmp.lt.s32.totalorder %s19, 1
      %s405 = scalar_select %p404, %s19, 1
      %p406 = scmp.lt.s32.totalorder %s20, 0
      %s407 = scalar_select %p406, %s20, 0
      %s408 = sadd.s32 %s407, %s405
      %s409 = smul.addr %s408, 2
      %s410 = scalar_lea.vmem %s4, %s409
      // Predicated region
      $region37: #{waveunet_forward.14} parent=35 // pred_check
        %p411 = pneg %p138
      $region38: #{waveunet_forward.14} parent=35 // pred_check_branch
        %413 = sbr.rel (%p411) target = $region40
      $region39: #{waveunet_forward.14} parent=35 // pred_region
        _
      $region40: #{waveunet_forward.14} parent=35 // pred_fallthru
        _
    $region36: #{waveunet_forward.14} parent=5 // pred_fallthru
      _
    %p414 = scmp.le.s32.totalorder 2, %s10
    // Predicated region
    $region41: #{waveunet_forward.14} parent=5 // pred_check
      %p415 = pneg %p414
    $region42: #{waveunet_forward.14} parent=5 // pred_check_branch
      %417 = sbr.rel (%p415) target = $region44
    $region43: #{waveunet_forward.14} parent=5 // pred_region
      %s418 = ssub.s32 %s10, 2
      // Predicated region
      $region45: #{waveunet_forward.14} parent=43 // pred_check
        %p419 = pneg %p144
      $region46: #{waveunet_forward.14} parent=43 // pred_check_branch
        %421 = sbr.rel (%p419) target = $region48
      $region47: #{waveunet_forward.14} parent=43 // pred_region
        %p422 = scmp.lt.s32.totalorder %s21, 1
        %s423 = scalar_select %p422, %s21, 1
        %p424 = scmp.lt.s32.totalorder %s22, 0
        %s425 = scalar_select %p424, %s22, 0
        %s426 = sadd.s32 %s425, %s423
        %s427 = smul.addr %s426, 2
        %s428 = scalar_lea.vmem %s4, %s427
      $region48: #{waveunet_forward.14} parent=43 // pred_fallthru
        _
    $region44: #{waveunet_forward.14} parent=5 // pred_fallthru
      _
  $region6: #{waveunet_forward.14} parent=0 // loop_footer
    %s14 = sadd.s32 1, %s10
  $region7: #{waveunet_forward.14} parent=0 // loop_footer_branch
    %9 = sbr.rel target = $region3
  $region8: #{waveunet_forward.14} parent=0 // loop_exit
    _

// kernel: waveunet_forward.15
$region0: #{waveunet_forward.15}
  #allocation0 [shape = 'u32[]', space=smem, size = 0x4, offset = 0x4, fixed_abs, tag = 'smem constant byte address 0x4 - core index']
  #allocation1 [shape = 'u32[144,128]{1,0:T(1,128)}', space=vmem, size = 0x12000, scoped, tag = 'internal scratch']
  %s0 = inlined_call_operand.vmem [shape: bf16[2,8,1152], index: 0, kind: input, shape index: {}]
  %s1 = inlined_call_operand.vmem [shape: bf16[1152,64], index: 1, kind: input, shape index: {}]
  %s2 = inlined_call_operand.vmem [shape: f32[1,64], index: 2, kind: input, shape index: {}]
  %s3 = inlined_call_operand.vmem [shape: f32[1,64], index: 3, kind: input, shape index: {}]
  %s4 = inlined_call_operand.vmem [shape: bf16[2,8,64], index: 4, kind: output, shape index: {}]
  %s5 = sld [smem:[#allocation0]]
  $region49: #{waveunet_forward.15} parent=0
    _
  %s7 = ssub.s32 1, %s5
  %s8 = scalar_select 0, %s7, %s5
  loop: start=0, step=1, limit=4
  $region2: #{waveunet_forward.15} parent=0 // loop_pre_header
    _
  $region3: #{waveunet_forward.15} parent=0 // loop_header
    %s10 = sphi 0, %s14
    %p11 = scmp.ge.s32.totalorder %s10, 4
    %s17 = sphi 0, %s29
    %s18 = sphi 0, %s25
    %s19 = sphi 0, %s17
    %s20 = sphi 0, %s18
    %s21 = sphi 0, %s19
    %s22 = sphi 0, %s20
    %s34 = sphi 0, %s36
    %s37 = sphi 0, %s34
    %s38 = sphi 0, %s37
    %s54 = sphi 0, %s38
    %s58 = sphi 0, %s58
    %s60 = sphi 0, %s58
    %s61 = sphi 0, %s60
    %s75 = sphi 0, %s61
    %s79 = sphi 0, %s79
    %s81 = sphi 0, %s79
    %s82 = sphi 0, %s81
    %s96 = sphi 0, %s82
    %s100 = sphi 0, %s100
    %s102 = sphi 0, %s100
    %s103 = sphi 0, %s102
    %s117 = sphi 0, %s103
    %s125 = sphi 0, %s127
    %s128 = sphi 0, %s125
    %s129 = sphi 0, %s128
    %s145 = sphi 0, %s129
  $region4: #{waveunet_forward.15} parent=0 // loop_header_branch
    %13 = sbr.rel (%p11) target = $region8
  $region5: #{waveunet_forward.15} parent=0 // loop_body
    %s15 = ssub.s32 %s10, 1
    %s16 = ssub.s32 %s10, 2
    %s23 = sadd.s32 1, %s18
    %p24 = scmp.ge.s32.totalorder %s23, 1
    %s25 = scalar_select %p24, 0, %s23
    %s26 = sadd.s32 1, %s17
    %s27 = scalar_select %p24, %s26, %s17
    %p28 = scmp.ge.s32.totalorder %s27, 2
    %s29 = scalar_select %p28, 0, %s27
    %s30 = ssub.s32 %s17, %s29
    %s31 = ssub.s32 %s18, %s25
    %s32 = sor.u32 %s30, %s31
    %p33 = scmp.eq.s32.totalorder %s32, 0
    %s35 = sadd.s32 %s34, 1
    %s36 = scalar_select %p33, %s34, %s35
    %p39 = pneg %p33
    %p40 = scmp.eq.s32.totalorder %s10, 1
    %p41 = por %p39, %p40
    %p42 = scmp.ne.s32.totalorder %s34, %s37
    %p43 = scmp.eq.s32.totalorder %s10, 0
    %p44 = por %p42, %p43
    %p45 = scmp.ne.s32.totalorder %s34, %s37
    %p46 = scmp.eq.s32.totalorder %s15, 1
    %p47 = por %p45, %p46
    %p48 = scmp.ne.s32.totalorder %s37, %s38
    %p49 = scmp.eq.s32.totalorder %s15, 0
    %p50 = por %p48, %p49
    %p51 = scmp.ne.s32.totalorder %s37, %s38
    %p52 = scmp.eq.s32.totalorder %s16, 1
    %p53 = por %p51, %p52
    %p55 = scmp.ne.s32.totalorder %s38, %s54
    %p56 = scmp.eq.s32.totalorder %s16, 0
    %p57 = por %p55, %p56
    %s59 = sadd.s32 %s58, 1
    %p62 = scmp.eq.s32.totalorder %s10, 1
    %p63 = scmp.ne.s32.totalorder %s58, %s60
    %p64 = scmp.eq.s32.totalorder %s10, 0
    %p65 = por %p63, %p64
    %p66 = scmp.ne.s32.totalorder %s58, %s60
    %p67 = scmp.eq.s32.totalorder %s15, 1
    %p68 = por %p66, %p67
    %p69 = scmp.ne.s32.totalorder %s60, %s61
    %p70 = scmp.eq.s32.totalorder %s15, 0
    %p71 = por %p69, %p70
    %p72 = scmp.ne.s32.totalorder %s60, %s61
    %p73 = scmp.eq.s32.totalorder %s16, 1
    %p74 = por %p72, %p73
    %p76 = scmp.ne.s32.totalorder %s61, %s75
    %p77 = scmp.eq.s32.totalorder %s16, 0
    %p78 = por %p76, %p77
    %s80 = sadd.s32 %s79, 1
    %p83 = scmp.eq.s32.totalorder %s10, 1
    %p84 = scmp.ne.s32.totalorder %s79, %s81
    %p85 = scmp.eq.s32.totalorder %s10, 0
    %p86 = por %p84, %p85
    %p87 = scmp.ne.s32.totalorder %s79, %s81
    %p88 = scmp.eq.s32.totalorder %s15, 1
    %p89 = por %p87, %p88
    %p90 = scmp.ne.s32.totalorder %s81, %s82
    %p91 = scmp.eq.s32.totalorder %s15, 0
    %p92 = por %p90, %p91
    %p93 = scmp.ne.s32.totalorder %s81, %s82
    %p94 = scmp.eq.s32.totalorder %s16, 1
    %p95 = por %p93, %p94
    %p97 = scmp.ne.s32.totalorder %s82, %s96
    %p98 = scmp.eq.s32.totalorder %s16, 0
    %p99 = por %p97, %p98
    %s101 = sadd.s32 %s100, 1
    %p104 = scmp.eq.s32.totalorder %s10, 1
    %p105 = scmp.ne.s32.totalorder %s100, %s102
    %p106 = scmp.eq.s32.totalorder %s10, 0
    %p107 = por %p105, %p106
    %p108 = scmp.ne.s32.totalorder %s100, %s102
    %p109 = scmp.eq.s32.totalorder %s15, 1
    %p110 = por %p108, %p109
    %p111 = scmp.ne.s32.totalorder %s102, %s103
    %p112 = scmp.eq.s32.totalorder %s15, 0
    %p113 = por %p111, %p112
    %p114 = scmp.ne.s32.totalorder %s102, %s103
    %p115 = scmp.eq.s32.totalorder %s16, 1
    %p116 = por %p114, %p115
    %p118 = scmp.ne.s32.totalorder %s103, %s117
    %p119 = scmp.eq.s32.totalorder %s16, 0
    %p120 = por %p118, %p119
    %s121 = ssub.s32 %s17, %s29
    %s122 = ssub.s32 %s18, %s25
    %s123 = sor.u32 %s121, %s122
    %p124 = scmp.eq.s32.totalorder %s123, 0
    %s126 = sadd.s32 %s125, 1
    %s127 = scalar_select %p124, %s125, %s126
    %p130 = pneg %p124
    %p131 = scmp.eq.s32.totalorder %s10, 1
    %p132 = por %p130, %p131
    %p133 = scmp.ne.s32.totalorder %s125, %s128
    %p134 = scmp.eq.s32.totalorder %s10, 0
    %p135 = por %p133, %p134
    %p136 = scmp.ne.s32.totalorder %s125, %s128
    %p137 = scmp.eq.s32.totalorder %s15, 1
    %p138 = por %p136, %p137
    %p139 = scmp.ne.s32.totalorder %s128, %s129
    %p140 = scmp.eq.s32.totalorder %s15, 0
    %p141 = por %p139, %p140
    %p142 = scmp.ne.s32.totalorder %s128, %s129
    %p143 = scmp.eq.s32.totalorder %s16, 1
    %p144 = por %p142, %p143
    %p146 = scmp.ne.s32.totalorder %s129, %s145
    %p147 = scmp.eq.s32.totalorder %s16, 0
    %p148 = por %p146, %p147
    %p149 = scmp.le.s32.totalorder 1, %s10
    %p150 = scmp.lt.s32.totalorder %s10, 3
    %p151 = pnand %p149, %p150
    %p152 = pneg %p151
    // Predicated region
    $region9: #{waveunet_forward.15} parent=5 // pred_check
      _
    $region10: #{waveunet_forward.15} parent=5 // pred_check_branch
      %154 = sbr.rel (%p151) target = $region12
    $region11: #{waveunet_forward.15} parent=5 // pred_region
      %s155 = ssub.s32 %s10, 1
      // Predicated region
      $region13: #{waveunet_forward.15} parent=11 // pred_check
        %p156 = pneg %p71
      $region14: #{waveunet_forward.15} parent=11 // pred_check_branch
        %158 = sbr.rel (%p156) target = $region16
      $region15: #{waveunet_forward.15} parent=11 // pred_region
        _
      $region16: #{waveunet_forward.15} parent=11 // pred_fallthru
        _
      // Predicated region
      $region17: #{waveunet_forward.15} parent=11 // pred_check
        %p159 = pneg %p92
      $region18: #{waveunet_forward.15} parent=11 // pred_check_branch
        %161 = sbr.rel (%p159) target = $region20
      $region19: #{waveunet_forward.15} parent=11 // pred_region
        _
      $region20: #{waveunet_forward.15} parent=11 // pred_fallthru
        _
      // Predicated region
      $region21: #{waveunet_forward.15} parent=11 // pred_check
        %p162 = pneg %p113
      $region22: #{waveunet_forward.15} parent=11 // pred_check_branch
        %164 = sbr.rel (%p162) target = $region24
      $region23: #{waveunet_forward.15} parent=11 // pred_region
        _
      $region24: #{waveunet_forward.15} parent=11 // pred_fallthru
        _
    $region12: #{waveunet_forward.15} parent=5 // pred_fallthru
      _
    %p165 = scmp.lt.s32.totalorder %s10, 2
    // Predicated region
    $region25: #{waveunet_forward.15} parent=5 // pred_check
      %p166 = pneg %p165
    $region26: #{waveunet_forward.15} parent=5 // pred_check_branch
      %168 = sbr.rel (%p166) target = $region28
    $region27: #{waveunet_forward.15} parent=5 // pred_region
      // Predicated region
      $region29: #{waveunet_forward.15} parent=27 // pred_check
        %p169 = pneg %p44
      $region30: #{waveunet_forward.15} parent=27 // pred_check_branch
        %171 = sbr.rel (%p169) target = $region32
      $region31: #{waveunet_forward.15} parent=27 // pred_region
        %p172 = scmp.lt.s32.totalorder %s17, 1
        %s173 = scalar_select %p172, %s17, 1
        %p174 = scmp.lt.s32.totalorder %s18, 0
        %s175 = scalar_select %p174, %s18, 0
        %s176 = smul.addr %s175, 9
        %s177 = smul.addr %s173, 9
        %s178 = sadd.s32 %s176, %s177
        %s179 = smul.addr %s178, 4
        %s180 = scalar_lea.vmem %s0, %s179
      $region32: #{waveunet_forward.15} parent=27 // pred_fallthru
        _
    $region28: #{waveunet_forward.15} parent=5 // pred_fallthru
      _
    %p181 = scmp.le.s32.totalorder 1, %s10
    %p182 = scmp.lt.s32.totalorder %s10, 3
    %p183 = pnand %p181, %p182
    %p184 = pneg %p183
    // Predicated region
    $region33: #{waveunet_forward.15} parent=5 // pred_check
      _
    $region34: #{waveunet_forward.15} parent=5 // pred_check_branch
      %186 = sbr.rel (%p183) target = $region36
    $region35: #{waveunet_forward.15} parent=5 // pred_region
      %s187 = ssub.s32 %s10, 1
      %p188 = scmp.lt.s32.totalorder %s19, 1
      %s189 = scalar_select %p188, %s19, 1
      %p190 = scmp.lt.s32.totalorder %s20, 0
      %s191 = scalar_select %p190, %s20, 0
      %s192 = smul.addr %s191, 9
      %s193 = smul.addr %s189, 9
      %s194 = sadd.s32 %s192, %s193
      %s195 = smul.addr %s194, 4
      %s196 = scalar_lea.vmem %s0, %s195
      %p197 = pneg %p50
      %p198 = pneg %p47
      %p199 = pneg %p71
      %p200 = pneg %p68
      %p201 = pneg %p92
      %p202 = pneg %p89
      %p203 = pneg %p113
      %p204 = pneg %p110
      %p205 = pneg %p141
      %p206 = pneg %p138
      %p207 = scmp.lt.s32.totalorder %s19, 1
      %s208 = scalar_select %p207, %s19, 1
      %p209 = scmp.lt.s32.totalorder %s20, 0
      %s210 = scalar_select %p209, %s20, 0
      %s211 = sadd.s32 %s210, %s208
      %s212 = smul.addr %s211, 4
      %s213 = scalar_lea.vmem %s4, %s212
      %p214 = scmp.lt.s32.totalorder %s19, 1
      %s215 = scalar_select %p214, %s19, 1
      %p216 = scmp.lt.s32.totalorder %s20, 0
      %s217 = scalar_select %p216, %s20, 0
      %s218 = smul.addr %s217, 9
      %s219 = smul.addr %s215, 9
      %s220 = sadd.s32 %s218, %s219
      %s221 = smul.addr %s220, 4
      %s222 = scalar_lea.vmem %s0, %s221
      %p223 = scmp.lt.s32.totalorder %s19, 1
      %s224 = scalar_select %p223, %s19, 1
      %p225 = scmp.lt.s32.totalorder %s20, 0
      %s226 = scalar_select %p225, %s20, 0
      %s227 = sadd.s32 %s226, %s224
      %s228 = smul.addr %s227, 4
      %s229 = scalar_lea.vmem %s4, %s228
      %v231 = vld [vmem:[%s222] sm:$0xff]
      %v232 = vld [vmem:[%s222 + $0x8] sm:$0xff]
      %v233 = vld [vmem:[%s222 + $0x10] sm:$0xff]
      %v234 = vld [vmem:[%s222 + $0x18] sm:$0xff]
      %v235 = vld [vmem:[%s222 + $0x20] sm:$0xf]
      %v236 = vld [vmem:[%s1] sm:$0xf]
      %v237 = vld [vmem:[%s1 + $0x4] sm:$0xf]
      %v238 = vld [vmem:[%s1 + $0x8] sm:$0xf]
      %v239 = vld [vmem:[%s1 + $0xc] sm:$0xf]
      %v240 = vld [vmem:[%s1 + $0x10] sm:$0xf]
      %v241 = vld [vmem:[%s1 + $0x14] sm:$0xf]
      %v242 = vld [vmem:[%s1 + $0x18] sm:$0xf]
      %v243 = vld [vmem:[%s1 + $0x1c] sm:$0xf]
      %v244 = vld [vmem:[%s1 + $0x20] sm:$0xf]
      %v245 = vld [vmem:[%s1 + $0x24] sm:$0xf]
      %v246 = vld [vmem:[%s1 + $0x28] sm:$0xf]
      %v247 = vld [vmem:[%s1 + $0x2c] sm:$0xf]
      %v248 = vld [vmem:[%s1 + $0x30] sm:$0xf]
      %v249 = vld [vmem:[%s1 + $0x34] sm:$0xf]
      %v250 = vld [vmem:[%s1 + $0x38] sm:$0xf]
      %v251 = vld [vmem:[%s1 + $0x3c] sm:$0xf]
      %v252 = vld [vmem:[%s1 + $0x40] sm:$0xf]
      %v253 = vld [vmem:[%s1 + $0x44] sm:$0xf]
      %v254 = vld [vmem:[%s1 + $0x48] sm:$0xf]
      %v255 = vld [vmem:[%s1 + $0x4c] sm:$0xf]
      %v256 = vld [vmem:[%s1 + $0x50] sm:$0xf]
      %v257 = vld [vmem:[%s1 + $0x54] sm:$0xf]
      %v258 = vld [vmem:[%s1 + $0x58] sm:$0xf]
      %v259 = vld [vmem:[%s1 + $0x5c] sm:$0xf]
      %v260 = vld [vmem:[%s1 + $0x60] sm:$0xf]
      %v261 = vld [vmem:[%s1 + $0x64] sm:$0xf]
      %v262 = vld [vmem:[%s1 + $0x68] sm:$0xf]
      %v263 = vld [vmem:[%s1 + $0x6c] sm:$0xf]
      %v264 = vld [vmem:[%s1 + $0x70] sm:$0xf]
      %v265 = vld [vmem:[%s1 + $0x74] sm:$0xf]
      %v266 = vld [vmem:[%s1 + $0x78] sm:$0xf]
      %v267 = vld [vmem:[%s1 + $0x7c] sm:$0xf]
      %v268 = vld [vmem:[%s1 + $0x80] sm:$0xf]
      %v269 = vld [vmem:[%s1 + $0x84] sm:$0xf]
      %v270 = vld [vmem:[%s1 + $0x88] sm:$0xf]
      %v271 = vld [vmem:[%s1 + $0x8c] sm:$0xf]
      %v272 = vld [vmem:[%s1 + $0x90] sm:$0xf]
      %v273 = vld [vmem:[%s1 + $0x94] sm:$0xf]
      %v274 = vld [vmem:[%s1 + $0x98] sm:$0xf]
      %v275 = vld [vmem:[%s1 + $0x9c] sm:$0xf]
      %v276 = vld [vmem:[%s1 + $0xa0] sm:$0xf]
      %v277 = vld [vmem:[%s1 + $0xa4] sm:$0xf]
      %v278 = vld [vmem:[%s1 + $0xa8] sm:$0xf]
      %v279 = vld [vmem:[%s1 + $0xac] sm:$0xf]
      %v280 = vld [vmem:[%s1 + $0xb0] sm:$0xf]
      %v281 = vld [vmem:[%s1 + $0xb4] sm:$0xf]
      %v282 = vld [vmem:[%s1 + $0xb8] sm:$0xf]
      %v283 = vld [vmem:[%s1 + $0xbc] sm:$0xf]
      %v284 = vld [vmem:[%s1 + $0xc0] sm:$0xf]
      %v285 = vld [vmem:[%s1 + $0xc4] sm:$0xf]
      %v286 = vld [vmem:[%s1 + $0xc8] sm:$0xf]
      %v287 = vld [vmem:[%s1 + $0xcc] sm:$0xf]
      %v288 = vld [vmem:[%s1 + $0xd0] sm:$0xf]
      %v289 = vld [vmem:[%s1 + $0xd4] sm:$0xf]
      %v290 = vld [vmem:[%s1 + $0xd8] sm:$0xf]
      %v291 = vld [vmem:[%s1 + $0xdc] sm:$0xf]
      %v292 = vld [vmem:[%s1 + $0xe0] sm:$0xf]
      %v293 = vld [vmem:[%s1 + $0xe4] sm:$0xf]
      %v294 = vld [vmem:[%s1 + $0xe8] sm:$0xf]
      %v295 = vld [vmem:[%s1 + $0xec] sm:$0xf]
      %v296 = vld [vmem:[%s1 + $0xf0] sm:$0xf]
      %v297 = vld [vmem:[%s1 + $0xf4] sm:$0xf]
      %v298 = vld [vmem:[%s1 + $0xf8] sm:$0xf]
      %v299 = vld [vmem:[%s1 + $0xfc] sm:$0xf]
      %v300 = vld [vmem:[%s1 + $0x100] sm:$0xf]
      %v301 = vld [vmem:[%s1 + $0x104] sm:$0xf]
      %v302 = vld [vmem:[%s1 + $0x108] sm:$0xf]
      %v303 = vld [vmem:[%s1 + $0x10c] sm:$0xf]
      %v304 = vld [vmem:[%s1 + $0x110] sm:$0xf]
      %v305 = vld [vmem:[%s1 + $0x114] sm:$0xf]
      %v306 = vld [vmem:[%s1 + $0x118] sm:$0xf]
      %v307 = vld [vmem:[%s1 + $0x11c] sm:$0xf]
      %v308 = vld [vmem:[%s1 + $0x120] sm:$0xf]
      %v309 = vld [vmem:[%s1 + $0x124] sm:$0xf]
      %v310 = vld [vmem:[%s1 + $0x128] sm:$0xf]
      %v311 = vld [vmem:[%s1 + $0x12c] sm:$0xf]
      %v312 = vld [vmem:[%s1 + $0x130] sm:$0xf]
      %v313 = vld [vmem:[%s1 + $0x134] sm:$0xf]
      %v314 = vld [vmem:[%s1 + $0x138] sm:$0xf]
      %v315 = vld [vmem:[%s1 + $0x13c] sm:$0xf]
      %v316 = vld [vmem:[%s1 + $0x140] sm:$0xf]
      %v317 = vld [vmem:[%s1 + $0x144] sm:$0xf]
      %v318 = vld [vmem:[%s1 + $0x148] sm:$0xf]
      %v319 = vld [vmem:[%s1 + $0x14c] sm:$0xf]
      %v320 = vld [vmem:[%s1 + $0x150] sm:$0xf]
      %v321 = vld [vmem:[%s1 + $0x154] sm:$0xf]
      %v322 = vld [vmem:[%s1 + $0x158] sm:$0xf]
      %v323 = vld [vmem:[%s1 + $0x15c] sm:$0xf]
      %v324 = vld [vmem:[%s1 + $0x160] sm:$0xf]
      %v325 = vld [vmem:[%s1 + $0x164] sm:$0xf]
      %v326 = vld [vmem:[%s1 + $0x168] sm:$0xf]
      %v327 = vld [vmem:[%s1 + $0x16c] sm:$0xf]
      %v328 = vld [vmem:[%s1 + $0x170] sm:$0xf]
      %v329 = vld [vmem:[%s1 + $0x174] sm:$0xf]
      %v330 = vld [vmem:[%s1 + $0x178] sm:$0xf]
      %v331 = vld [vmem:[%s1 + $0x17c] sm:$0xf]
      %v332 = vld [vmem:[%s1 + $0x180] sm:$0xf]
      %v333 = vld [vmem:[%s1 + $0x184] sm:$0xf]
      %v334 = vld [vmem:[%s1 + $0x188] sm:$0xf]
      %v335 = vld [vmem:[%s1 + $0x18c] sm:$0xf]
      %v336 = vld [vmem:[%s1 + $0x190] sm:$0xf]
      %v337 = vld [vmem:[%s1 + $0x194] sm:$0xf]
      %v338 = vld [vmem:[%s1 + $0x198] sm:$0xf]
      %v339 = vld [vmem:[%s1 + $0x19c] sm:$0xf]
      %v340 = vld [vmem:[%s1 + $0x1a0] sm:$0xf]
      %v341 = vld [vmem:[%s1 + $0x1a4] sm:$0xf]
      %v342 = vld [vmem:[%s1 + $0x1a8] sm:$0xf]
      %v343 = vld [vmem:[%s1 + $0x1ac] sm:$0xf]
      %v344 = vld [vmem:[%s1 + $0x1b0] sm:$0xf]
      %v345 = vld [vmem:[%s1 + $0x1b4] sm:$0xf]
      %v346 = vld [vmem:[%s1 + $0x1b8] sm:$0xf]
      %v347 = vld [vmem:[%s1 + $0x1bc] sm:$0xf]
      %v348 = vld [vmem:[%s1 + $0x1c0] sm:$0xf]
      %v349 = vld [vmem:[%s1 + $0x1c4] sm:$0xf]
      %v350 = vld [vmem:[%s1 + $0x1c8] sm:$0xf]
      %v351 = vld [vmem:[%s1 + $0x1cc] sm:$0xf]
      %v352 = vld [vmem:[%s1 + $0x1d0] sm:$0xf]
      %v353 = vld [vmem:[%s1 + $0x1d4] sm:$0xf]
      %v354 = vld [vmem:[%s1 + $0x1d8] sm:$0xf]
      %v355 = vld [vmem:[%s1 + $0x1dc] sm:$0xf]
      %v356 = vld [vmem:[%s1 + $0x1e0] sm:$0xf]
      %v357 = vld [vmem:[%s1 + $0x1e4] sm:$0xf]
      %v358 = vld [vmem:[%s1 + $0x1e8] sm:$0xf]
      %v359 = vld [vmem:[%s1 + $0x1ec] sm:$0xf]
      %v360 = vld [vmem:[%s1 + $0x1f0] sm:$0xf]
      %v361 = vld [vmem:[%s1 + $0x1f4] sm:$0xf]
      %v362 = vld [vmem:[%s1 + $0x1f8] sm:$0xf]
      %v363 = vld [vmem:[%s1 + $0x1fc] sm:$0xf]
      %v364 = vld [vmem:[%s1 + $0x200] sm:$0xf]
      %v365 = vld [vmem:[%s1 + $0x204] sm:$0xf]
      %v366 = vld [vmem:[%s1 + $0x208] sm:$0xf]
      %v367 = vld [vmem:[%s1 + $0x20c] sm:$0xf]
      %v368 = vld [vmem:[%s1 + $0x210] sm:$0xf]
      %v369 = vld [vmem:[%s1 + $0x214] sm:$0xf]
      %v370 = vld [vmem:[%s1 + $0x218] sm:$0xf]
      %v371 = vld [vmem:[%s1 + $0x21c] sm:$0xf]
      %v372 = vld [vmem:[%s1 + $0x220] sm:$0xf]
      %v373 = vld [vmem:[%s1 + $0x224] sm:$0xf]
      %v374 = vld [vmem:[%s1 + $0x228] sm:$0xf]
      %v375 = vld [vmem:[%s1 + $0x22c] sm:$0xf]
      %v376 = vld [vmem:[%s1 + $0x230] sm:$0xf]
      %v377 = vld [vmem:[%s1 + $0x234] sm:$0xf]
      %v378 = vld [vmem:[%s1 + $0x238] sm:$0xf]
      %v379 = vld [vmem:[%s1 + $0x23c] sm:$0xf]
      %v385 = vunpack.c.l.b16 %v231
      %v386 = vunpack.c.h.b16 %v231
      %v387 = vunpack.c.l.b16 %v232
      %v388 = vunpack.c.h.b16 %v232
      %v389 = vunpack.c.l.b16 %v233
      %v390 = vunpack.c.h.b16 %v233
      %v391 = vunpack.c.l.b16 %v234
      %v392 = vunpack.c.h.b16 %v234
      %v393 = vunpack.c.l.b16 %v235
      %v394 = vpack.c.b16 %v385, %v385
      %v395 = vpack.c.b16 %v386, %v386
      %v396 = vpack.c.b16 %v387, %v387
      %v397 = vpack.c.b16 %v388, %v388
      %v398 = vpack.c.b16 %v389, %v389
      %v399 = vpack.c.b16 %v390, %v390
      %v400 = vpack.c.b16 %v391, %v391
      %v401 = vpack.c.b16 %v392, %v392
      %v402 = vpack.c.b16 %v393, %v393
      %v556 = vunpack.c.l.b16 %v236
      %v557 = vunpack.c.l.b16 %v237
      %v558 = vunpack.c.l.b16 %v238
      %v559 = vunpack.c.l.b16 %v239
      %v560 = vunpack.c.l.b16 %v240
      %v561 = vunpack.c.l.b16 %v241
      %v562 = vunpack.c.l.b16 %v242
      %v563 = vunpack.c.l.b16 %v243
      %v564 = vunpack.c.l.b16 %v244
      %v565 = vunpack.c.l.b16 %v245
      %v566 = vunpack.c.l.b16 %v246
      %v567 = vunpack.c.l.b16 %v247
      %v568 = vunpack.c.l.b16 %v248
      %v569 = vunpack.c.l.b16 %v249
      %v570 = vunpack.c.l.b16 %v250
      %v571 = vunpack.c.l.b16 %v251
      %v572 = vunpack.c.l.b16 %v252
      %v573 = vunpack.c.l.b16 %v253
      %v574 = vunpack.c.l.b16 %v254
      %v575 = vunpack.c.l.b16 %v255
      %v576 = vunpack.c.l.b16 %v256
      %v577 = vunpack.c.l.b16 %v257
      %v578 = vunpack.c.l.b16 %v258
      %v579 = vunpack.c.l.b16 %v259
      %v580 = vunpack.c.l.b16 %v260
      %v581 = vunpack.c.l.b16 %v261
      %v582 = vunpack.c.l.b16 %v262
      %v583 = vunpack.c.l.b16 %v263
      %v584 = vunpack.c.l.b16 %v264
      %v585 = vunpack.c.l.b16 %v265
      %v586 = vunpack.c.l.b16 %v266
      %v587 = vunpack.c.l.b16 %v267
      %v588 = vunpack.c.l.b16 %v268
      %v589 = vunpack.c.l.b16 %v269
      %v590 = vunpack.c.l.b16 %v270
      %v591 = vunpack.c.l.b16 %v271
      %v592 = vunpack.c.l.b16 %v272
      %v593 = vunpack.c.l.b16 %v273
      %v594 = vunpack.c.l.b16 %v274
      %v595 = vunpack.c.l.b16 %v275
      %v596 = vunpack.c.l.b16 %v276
      %v597 = vunpack.c.l.b16 %v277
      %v598 = vunpack.c.l.b16 %v278
      %v599 = vunpack.c.l.b16 %v279
      %v600 = vunpack.c.l.b16 %v280
      %v601 = vunpack.c.l.b16 %v281
      %v602 = vunpack.c.l.b16 %v282
      %v603 = vunpack.c.l.b16 %v283
      %v604 = vunpack.c.l.b16 %v284
      %v605 = vunpack.c.l.b16 %v285
      %v606 = vunpack.c.l.b16 %v286
      %v607 = vunpack.c.l.b16 %v287
      %v608 = vunpack.c.l.b16 %v288
      %v609 = vunpack.c.l.b16 %v289
      %v610 = vunpack.c.l.b16 %v290
      %v611 = vunpack.c.l.b16 %v291
      %v612 = vunpack.c.l.b16 %v292
      %v613 = vunpack.c.l.b16 %v293
      %v614 = vunpack.c.l.b16 %v294
      %v615 = vunpack.c.l.b16 %v295
      %v616 = vunpack.c.l.b16 %v296
      %v617 = vunpack.c.l.b16 %v297
      %v618 = vunpack.c.l.b16 %v298
      %v619 = vunpack.c.l.b16 %v299
      %v620 = vunpack.c.l.b16 %v300
      %v621 = vunpack.c.l.b16 %v301
      %v622 = vunpack.c.l.b16 %v302
      %v623 = vunpack.c.l.b16 %v303
      %v624 = vunpack.c.l.b16 %v304
      %v625 = vunpack.c.l.b16 %v305
      %v626 = vunpack.c.l.b16 %v306
      %v627 = vunpack.c.l.b16 %v307
      %v628 = vunpack.c.l.b16 %v308
      %v629 = vunpack.c.l.b16 %v309
      %v630 = vunpack.c.l.b16 %v310
      %v631 = vunpack.c.l.b16 %v311
      %v632 = vunpack.c.l.b16 %v312
      %v633 = vunpack.c.l.b16 %v313
      %v634 = vunpack.c.l.b16 %v314
      %v635 = vunpack.c.l.b16 %v315
      %v636 = vunpack.c.l.b16 %v316
      %v637 = vunpack.c.l.b16 %v317
      %v638 = vunpack.c.l.b16 %v318
      %v639 = vunpack.c.l.b16 %v319
      %v640 = vunpack.c.l.b16 %v320
      %v641 = vunpack.c.l.b16 %v321
      %v642 = vunpack.c.l.b16 %v322
      %v643 = vunpack.c.l.b16 %v323
      %v644 = vunpack.c.l.b16 %v324
      %v645 = vunpack.c.l.b16 %v325
      %v646 = vunpack.c.l.b16 %v326
      %v647 = vunpack.c.l.b16 %v327
      %v648 = vunpack.c.l.b16 %v328
      %v649 = vunpack.c.l.b16 %v329
      %v650 = vunpack.c.l.b16 %v330
      %v651 = vunpack.c.l.b16 %v331
      %v652 = vunpack.c.l.b16 %v332
      %v653 = vunpack.c.l.b16 %v333
      %v654 = vunpack.c.l.b16 %v334
      %v655 = vunpack.c.l.b16 %v335
      %v656 = vunpack.c.l.b16 %v336
      %v657 = vunpack.c.l.b16 %v337
      %v658 = vunpack.c.l.b16 %v338
      %v659 = vunpack.c.l.b16 %v339
      %v660 = vunpack.c.l.b16 %v340
      %v661 = vunpack.c.l.b16 %v341
      %v662 = vunpack.c.l.b16 %v342
      %v663 = vunpack.c.l.b16 %v343
      %v664 = vunpack.c.l.b16 %v344
      %v665 = vunpack.c.l.b16 %v345
      %v666 = vunpack.c.l.b16 %v346
      %v667 = vunpack.c.l.b16 %v347
      %v668 = vunpack.c.l.b16 %v348
      %v669 = vunpack.c.l.b16 %v349
      %v670 = vunpack.c.l.b16 %v350
      %v671 = vunpack.c.l.b16 %v351
      %v672 = vunpack.c.l.b16 %v352
      %v673 = vunpack.c.l.b16 %v353
      %v674 = vunpack.c.l.b16 %v354
      %v675 = vunpack.c.l.b16 %v355
      %v676 = vunpack.c.l.b16 %v356
      %v677 = vunpack.c.l.b16 %v357
      %v678 = vunpack.c.l.b16 %v358
      %v679 = vunpack.c.l.b16 %v359
      %v680 = vunpack.c.l.b16 %v360
      %v681 = vunpack.c.l.b16 %v361
      %v682 = vunpack.c.l.b16 %v362
      %v683 = vunpack.c.l.b16 %v363
      %v684 = vunpack.c.l.b16 %v364
      %v685 = vunpack.c.l.b16 %v365
      %v686 = vunpack.c.l.b16 %v366
      %v687 = vunpack.c.l.b16 %v367
      %v688 = vunpack.c.l.b16 %v368
      %v689 = vunpack.c.l.b16 %v369
      %v690 = vunpack.c.l.b16 %v370
      %v691 = vunpack.c.l.b16 %v371
      %v692 = vunpack.c.l.b16 %v372
      %v693 = vunpack.c.l.b16 %v373
      %v694 = vunpack.c.l.b16 %v374
      %v695 = vunpack.c.l.b16 %v375
      %v696 = vunpack.c.l.b16 %v376
      %v697 = vunpack.c.l.b16 %v377
      %v698 = vunpack.c.l.b16 %v378
      %v699 = vunpack.c.l.b16 %v379
      %v700 = vpack.c.b16 %v557, %v556
      %v701 = vpack.c.b16 %v559, %v558
      %v702 = vpack.c.b16 %v561, %v560
      %v703 = vpack.c.b16 %v563, %v562
      %v704 = vpack.c.b16 %v565, %v564
      %v705 = vpack.c.b16 %v567, %v566
      %v706 = vpack.c.b16 %v569, %v568
      %v707 = vpack.c.b16 %v571, %v570
      %v708 = vpack.c.b16 %v573, %v572
      %v709 = vpack.c.b16 %v575, %v574
      %v710 = vpack.c.b16 %v577, %v576
      %v711 = vpack.c.b16 %v579, %v578
      %v712 = vpack.c.b16 %v581, %v580
      %v713 = vpack.c.b16 %v583, %v582
      %v714 = vpack.c.b16 %v585, %v584
      %v715 = vpack.c.b16 %v587, %v586
      %v716 = vpack.c.b16 %v589, %v588
      %v717 = vpack.c.b16 %v591, %v590
      %v718 = vpack.c.b16 %v593, %v592
      %v719 = vpack.c.b16 %v595, %v594
      %v720 = vpack.c.b16 %v597, %v596
      %v721 = vpack.c.b16 %v599, %v598
      %v722 = vpack.c.b16 %v601, %v600
      %v723 = vpack.c.b16 %v603, %v602
      %v724 = vpack.c.b16 %v605, %v604
      %v725 = vpack.c.b16 %v607, %v606
      %v726 = vpack.c.b16 %v609, %v608
      %v727 = vpack.c.b16 %v611, %v610
      %v728 = vpack.c.b16 %v613, %v612
      %v729 = vpack.c.b16 %v615, %v614
      %v730 = vpack.c.b16 %v617, %v616
      %v731 = vpack.c.b16 %v619, %v618
      %v732 = vpack.c.b16 %v621, %v620
      %v733 = vpack.c.b16 %v623, %v622
      %v734 = vpack.c.b16 %v625, %v624
      %v735 = vpack.c.b16 %v627, %v626
      %v736 = vpack.c.b16 %v629, %v628
      %v737 = vpack.c.b16 %v631, %v630
      %v738 = vpack.c.b16 %v633, %v632
      %v739 = vpack.c.b16 %v635, %v634
      %v740 = vpack.c.b16 %v637, %v636
      %v741 = vpack.c.b16 %v639, %v638
      %v742 = vpack.c.b16 %v641, %v640
      %v743 = vpack.c.b16 %v643, %v642
      %v744 = vpack.c.b16 %v645, %v644
      %v745 = vpack.c.b16 %v647, %v646
      %v746 = vpack.c.b16 %v649, %v648
      %v747 = vpack.c.b16 %v651, %v650
      %v748 = vpack.c.b16 %v653, %v652
      %v749 = vpack.c.b16 %v655, %v654
      %v750 = vpack.c.b16 %v657, %v656
      %v751 = vpack.c.b16 %v659, %v658
      %v752 = vpack.c.b16 %v661, %v660
      %v753 = vpack.c.b16 %v663, %v662
      %v754 = vpack.c.b16 %v665, %v664
      %v755 = vpack.c.b16 %v667, %v666
      %v756 = vpack.c.b16 %v669, %v668
      %v757 = vpack.c.b16 %v671, %v670
      %v758 = vpack.c.b16 %v673, %v672
      %v759 = vpack.c.b16 %v675, %v674
      %v760 = vpack.c.b16 %v677, %v676
      %v761 = vpack.c.b16 %v679, %v678
      %v762 = vpack.c.b16 %v681, %v680
      %v763 = vpack.c.b16 %v683, %v682
      %v764 = vpack.c.b16 %v685, %v684
      %v765 = vpack.c.b16 %v687, %v686
      %v766 = vpack.c.b16 %v689, %v688
      %v767 = vpack.c.b16 %v691, %v690
      %v768 = vpack.c.b16 %v693, %v692
      %v769 = vpack.c.b16 %v695, %v694
      %v770 = vpack.c.b16 %v697, %v696
      %v771 = vpack.c.b16 %v699, %v698
      %844 = vmatprep.subr.bf16.mxu0 0
      %845 = vmatpush1.bf16.msra.mxu0 %v700
      %846 = vmatprep.subr.bf16.mxu0 0
      %847 = vmatpush1.bf16.msra.mxu0 %v701
      %848 = vmatprep.subr.bf16.mxu0 0
      %849 = vmatpush1.bf16.msra.mxu0 %v702
      %850 = vmatprep.subr.bf16.mxu0 0
      %851 = vmatpush1.bf16.msra.mxu0 %v703
      %852 = vmatprep.subr.bf16.mxu0 0
      %853 = vmatpush1.bf16.msra.mxu0 %v704
      %854 = vmatprep.subr.bf16.mxu0 0
      %855 = vmatpush1.bf16.msra.mxu0 %v705
      %856 = vmatprep.subr.bf16.mxu0 0
      %857 = vmatpush1.bf16.msra.mxu0 %v706
      %858 = vmatprep.subr.bf16.mxu0 0
      %859 = vmatpush1.bf16.msra.mxu0 %v707
      %860 = vmatprep.subr.bf16.mxu0 0
      %861 = vmatpush1.bf16.msra.mxu0 %v708
      %862 = vmatprep.subr.bf16.mxu0 0
      %863 = vmatpush1.bf16.msra.mxu0 %v709
      %864 = vmatprep.subr.bf16.mxu0 0
      %865 = vmatpush1.bf16.msra.mxu0 %v710
      %866 = vmatprep.subr.bf16.mxu0 0
      %867 = vmatpush1.bf16.msra.mxu0 %v711
      %868 = vmatprep.subr.bf16.mxu0 0
      %869 = vmatpush1.bf16.msra.mxu0 %v712
      %870 = vmatprep.subr.bf16.mxu0 0
      %871 = vmatpush1.bf16.msra.mxu0 %v713
      %872 = vmatprep.subr.bf16.mxu0 0
      %873 = vmatpush1.bf16.msra.mxu0 %v714
      %874 = vmatprep.subr.bf16.mxu0 0
      %875 = vmatpush1.bf16.msra.mxu0 %v715
      %876 = vmatprep.mubr.bf16.mxu0 %v395
      %877 = vmatmul.mubr.bf16.gmra.mrb[0].mxu0 %v394
      %v878 = vpop.f32.mrb[0].mxu0
      %v879 = vadd.f32 0.0, %v878
      %v880 = vpop.f32.mrb[0].mxu0
      %v881 = vpop.f32.mrb[0].mxu0
      %v882 = vpop.f32.mrb[0].mxu0
      %883 = vdwg.mxu0
      %884 = vmatprep.subr.bf16.mxu0 0
      %885 = vmatpush1.bf16.msra.mxu0 %v716
      %886 = vmatprep.subr.bf16.mxu0 0
      %887 = vmatpush1.bf16.msra.mxu0 %v717
      %888 = vmatprep.subr.bf16.mxu0 0
      %889 = vmatpush1.bf16.msra.mxu0 %v718
      %890 = vmatprep.subr.bf16.mxu0 0
      %891 = vmatpush1.bf16.msra.mxu0 %v719
      %892 = vmatprep.subr.bf16.mxu0 0
      %893 = vmatpush1.bf16.msra.mxu0 %v720
      %894 = vmatprep.subr.bf16.mxu0 0
      %895 = vmatpush1.bf16.msra.mxu0 %v721
      %896 = vmatprep.subr.bf16.mxu0 0
      %897 = vmatpush1.bf16.msra.mxu0 %v722
      %898 = vmatprep.subr.bf16.mxu0 0
      %899 = vmatpush1.bf16.msra.mxu0 %v723
      %900 = vmatprep.subr.bf16.mxu0 0
      %901 = vmatpush1.bf16.msra.mxu0 %v724
      %902 = vmatprep.subr.bf16.mxu0 0
      %903 = vmatpush1.bf16.msra.mxu0 %v725
      %904 = vmatprep.subr.bf16.mxu0 0
      %905 = vmatpush1.bf16.msra.mxu0 %v726
      %906 = vmatprep.subr.bf16.mxu0 0
      %907 = vmatpush1.bf16.msra.mxu0 %v727
      %908 = vmatprep.subr.bf16.mxu0 0
      %909 = vmatpush1.bf16.msra.mxu0 %v728
      %910 = vmatprep.subr.bf16.mxu0 0
      %911 = vmatpush1.bf16.msra.mxu0 %v729
      %912 = vmatprep.subr.bf16.mxu0 0
      %913 = vmatpush1.bf16.msra.mxu0 %v730
      %914 = vmatprep.subr.bf16.mxu0 0
      %915 = vmatpush1.bf16.msra.mxu0 %v731
      %916 = vmatprep.mubr.bf16.mxu0 %v397
      %917 = vmatmul.mubr.bf16.gmra.mrb[0].mxu0 %v396
      %v918 = vpop.f32.mrb[0].mxu0
      %v919 = vadd.f32 %v879, %v918
      %v920 = vpop.f32.mrb[0].mxu0
      %v921 = vpop.f32.mrb[0].mxu0
      %v922 = vpop.f32.mrb[0].mxu0
      %923 = vdwg.mxu0
      %924 = vmatprep.subr.bf16.mxu0 0
      %925 = vmatpush1.bf16.msra.mxu0 %v732
      %926 = vmatprep.subr.bf16.mxu0 0
      %927 = vmatpush1.bf16.msra.mxu0 %v733
      %928 = vmatprep.subr.bf16.mxu0 0
      %929 = vmatpush1.bf16.msra.mxu0 %v734
      %930 = vmatprep.subr.bf16.mxu0 0
      %931 = vmatpush1.bf16.msra.mxu0 %v735
      %932 = vmatprep.subr.bf16.mxu0 0
      %933 = vmatpush1.bf16.msra.mxu0 %v736
      %934 = vmatprep.subr.bf16.mxu0 0
      %935 = vmatpush1.bf16.msra.mxu0 %v737
      %936 = vmatprep.subr.bf16.mxu0 0
      %937 = vmatpush1.bf16.msra.mxu0 %v738
      %938 = vmatprep.subr.bf16.mxu0 0
      %939 = vmatpush1.bf16.msra.mxu0 %v739
      %940 = vmatprep.subr.bf16.mxu0 0
      %941 = vmatpush1.bf16.msra.mxu0 %v740
      %942 = vmatprep.subr.bf16.mxu0 0
      %943 = vmatpush1.bf16.msra.mxu0 %v741
      %944 = vmatprep.subr.bf16.mxu0 0
      %945 = vmatpush1.bf16.msra.mxu0 %v742
      %946 = vmatprep.subr.bf16.mxu0 0
      %947 = vmatpush1.bf16.msra.mxu0 %v743
      %948 = vmatprep.subr.bf16.mxu0 0
      %949 = vmatpush1.bf16.msra.mxu0 %v744
      %950 = vmatprep.subr.bf16.mxu0 0
      %951 = vmatpush1.bf16.msra.mxu0 %v745
      %952 = vmatprep.subr.bf16.mxu0 0
      %953 = vmatpush1.bf16.msra.mxu0 %v746
      %954 = vmatprep.subr.bf16.mxu0 0
      %955 = vmatpush1.bf16.msra.mxu0 %v747
      %956 = vmatprep.mubr.bf16.mxu0 %v399
      %957 = vmatmul.mubr.bf16.gmra.mrb[0].mxu0 %v398
      %v958 = vpop.f32.mrb[0].mxu0
      %v959 = vadd.f32 %v919, %v958
      %v960 = vpop.f32.mrb[0].mxu0
      %v961 = vpop.f32.mrb[0].mxu0
      %v962 = vpop.f32.mrb[0].mxu0
      %963 = vdwg.mxu0
      %964 = vmatprep.subr.bf16.mxu0 0
      %965 = vmatpush1.bf16.msra.mxu0 %v748
      %966 = vmatprep.subr.bf16.mxu0 0
      %967 = vmatpush1.bf16.msra.mxu0 %v749
      %968 = vmatprep.subr.bf16.mxu0 0
      %969 = vmatpush1.bf16.msra.mxu0 %v750
      %970 = vmatprep.subr.bf16.mxu0 0
      %971 = vmatpush1.bf16.msra.mxu0 %v751
      %972 = vmatprep.subr.bf16.mxu0 0
      %973 = vmatpush1.bf16.msra.mxu0 %v752
      %974 = vmatprep.subr.bf16.mxu0 0
      %975 = vmatpush1.bf16.msra.mxu0 %v753
      %976 = vmatprep.subr.bf16.mxu0 0
      %977 = vmatpush1.bf16.msra.mxu0 %v754
      %978 = vmatprep.subr.bf16.mxu0 0
      %979 = vmatpush1.bf16.msra.mxu0 %v755
      %980 = vmatprep.subr.bf16.mxu0 0
      %981 = vmatpush1.bf16.msra.mxu0 %v756
      %982 = vmatprep.subr.bf16.mxu0 0
      %983 = vmatpush1.bf16.msra.mxu0 %v757
      %984 = vmatprep.subr.bf16.mxu0 0
      %985 = vmatpush1.bf16.msra.mxu0 %v758
      %986 = vmatprep.subr.bf16.mxu0 0
      %987 = vmatpush1.bf16.msra.mxu0 %v759
      %988 = vmatprep.subr.bf16.mxu0 0
      %989 = vmatpush1.bf16.msra.mxu0 %v760
      %990 = vmatprep.subr.bf16.mxu0 0
      %991 = vmatpush1.bf16.msra.mxu0 %v761
      %992 = vmatprep.subr.bf16.mxu0 0
      %993 = vmatpush1.bf16.msra.mxu0 %v762
      %994 = vmatprep.subr.bf16.mxu0 0
      %995 = vmatpush1.bf16.msra.mxu0 %v763
      %996 = vmatprep.mubr.bf16.mxu0 %v401
      %997 = vmatmul.mubr.bf16.gmra.mrb[0].mxu0 %v400
      %v998 = vpop.f32.mrb[0].mxu0
      %v999 = vadd.f32 %v959, %v998
      %v1000 = vpop.f32.mrb[0].mxu0
      %v1001 = vpop.f32.mrb[0].mxu0
      %v1002 = vpop.f32.mrb[0].mxu0
      %1003 = vdwg.mxu0
      %1004 = vmatprep.subr.bf16.mxu0 0
      %1005 = vmatpush1.bf16.msra.mxu0 %v764
      %1006 = vmatprep.subr.bf16.mxu0 0
      %1007 = vmatpush1.bf16.msra.mxu0 %v765
      %1008 = vmatprep.subr.bf16.mxu0 0
      %1009 = vmatpush1.bf16.msra.mxu0 %v766
      %1010 = vmatprep.subr.bf16.mxu0 0
      %1011 = vmatpush1.bf16.msra.mxu0 %v767
      %1012 = vmatprep.subr.bf16.mxu0 0
      %1013 = vmatpush1.bf16.msra.mxu0 %v768
      %1014 = vmatprep.subr.bf16.mxu0 0
      %1015 = vmatpush1.bf16.msra.mxu0 %v769
      %1016 = vmatprep.subr.bf16.mxu0 0
      %1017 = vmatpush1.bf16.msra.mxu0 %v770
      %1018 = vmatprep.subr.bf16.mxu0 0
      %1019 = vmatpush1.bf16.msra.mxu0 %v771
      %1020 = vmatprep.subr.bf16.mxu0 0
      %1021 = vmatpush1.bf16.msra.mxu0 0
      %1022 = vmatprep.subr.bf16.mxu0 0
      %1023 = vmatpush1.bf16.msra.mxu0 0
      %1024 = vmatprep.subr.bf16.mxu0 0
      %1025 = vmatpush1.bf16.msra.mxu0 0
      %1026 = vmatprep.subr.bf16.mxu0 0
      %1027 = vmatpush1.bf16.msra.mxu0 0
      %1028 = vmatprep.subr.bf16.mxu0 0
      %1029 = vmatpush1.bf16.msra.mxu0 0
      %1030 = vmatprep.subr.bf16.mxu0 0
      %1031 = vmatpush1.bf16.msra.mxu0 0
      %1032 = vmatprep.subr.bf16.mxu0 0
      %1033 = vmatpush1.bf16.msra.mxu0 0
      %1034 = vmatprep.subr.bf16.mxu0 0
      %1035 = vmatpush1.bf16.msra.mxu0 0
      %1036 = vmatprep.mubr.bf16.mxu0 0
      %1037 = vmatmul.mubr.bf16.gmra.mrb[0].mxu0 %v402
      %v1038 = vpop.f32.mrb[0].mxu0
      %v1039 = vadd.f32 %v999, %v1038
      %v1040 = vpop.f32.mrb[0].mxu0
      %v1041 = vpop.f32.mrb[0].mxu0
      %v1042 = vpop.f32.mrb[0].mxu0
      %1043 = vdwg.mxu0
      %v1044 = vld [vmem:[%s2] sm:$0x1]
      %v1046 = vlaneseq
      %v1047 = vshrl.u32 %v1046, 7
      %v1048 = vsub.s32 0, %v1047
      %v1049 = vrot.slane %v1044, %v1048
      %v1051 = vmul.f32 %v1039, %v1049
      %v1052 = vld [vmem:[%s3] sm:$0x1]
      %v1054 = vlaneseq
      %v1055 = vshrl.u32 %v1054, 7
      %v1056 = vsub.s32 0, %v1055
      %v1057 = vrot.slane %v1052, %v1056
      %v1059 = vadd.f32 %v1051, %v1057
      %vm1060 = vcmp.ge.f32.partialorder %v1059, 0.0
      %v1061 = vmul.f32 %v1059, 0.2
      %v1062 = vsel %vm1060, %v1059, %v1061
      %v1063 = vpack.c.bf16 %v1062, %v1062
      %vm1064 = vcmask 519168
      %1065 = vst.msk [vmem:[%s229] sm:$0xf] %vm1064, %v1063
      %p1066 = scmp.lt.s32.totalorder %s19, 1
      %s1067 = scalar_select %p1066, %s19, 1
      %p1068 = scmp.lt.s32.totalorder %s20, 0
      %s1069 = scalar_select %p1068, %s20, 0
      %s1070 = sadd.s32 %s1069, %s1067
      %s1071 = smul.addr %s1070, 4
      %s1072 = scalar_lea.vmem %s4, %s1071
      // Predicated region
      $region37: #{waveunet_forward.15} parent=35 // pred_check
        %p1073 = pneg %p138
      $region38: #{waveunet_forward.15} parent=35 // pred_check_branch
        %1075 = sbr.rel (%p1073) target = $region40
      $region39: #{waveunet_forward.15} parent=35 // pred_region
        _
      $region40: #{waveunet_forward.15} parent=35 // pred_fallthru
        _
    $region36: #{waveunet_forward.15} parent=5 // pred_fallthru
      _
    %p1076 = scmp.le.s32.totalorder 2, %s10
    // Predicated region
    $region41: #{waveunet_forward.15} parent=5 // pred_check
      %p1077 = pneg %p1076
    $region42: #{waveunet_forward.15} parent=5 // pred_check_branch
      %1079 = sbr.rel (%p1077) target = $region44
    $region43: #{waveunet_forward.15} parent=5 // pred_region
      %s1080 = ssub.s32 %s10, 2
      // Predicated region
      $region45: #{waveunet_forward.15} parent=43 // pred_check
        %p1081 = pneg %p144
      $region46: #{waveunet_forward.15} parent=43 // pred_check_branch
        %1083 = sbr.rel (%p1081) target = $region48
      $region47: #{waveunet_forward.15} parent=43 // pred_region
        %p1084 = scmp.lt.s32.totalorder %s21, 1
        %s1085 = scalar_select %p1084, %s21, 1
        %p1086 = scmp.lt.s32.totalorder %s22, 0
        %s1087 = scalar_select %p1086, %s22, 0
        %s1088 = sadd.s32 %s1087, %s1085
        %s1089 = smul.addr %s1088, 4
        %s1090 = scalar_lea.vmem %s4, %s1089
      $region48: #{waveunet_forward.15} parent=43 // pred_fallthru
        _
    $region44: #{waveunet_forward.15} parent=5 // pred_fallthru
      _
  $region6: #{waveunet_forward.15} parent=0 // loop_footer
    %s14 = sadd.s32 1, %s10
  $region7: #{waveunet_forward.15} parent=0 // loop_footer_branch
    %9 = sbr.rel target = $region3
  $region8: #{waveunet_forward.15} parent=0 // loop_exit
    _

// kernel: waveunet_forward.16
$region0: #{waveunet_forward.16}
  #allocation0 [shape = 'u32[]', space=smem, size = 0x4, offset = 0x4, fixed_abs, tag = 'smem constant byte address 0x4 - core index']
  #allocation1 [shape = 'u32[144,128]{1,0:T(1,128)}', space=vmem, size = 0x12000, scoped, tag = 'internal scratch']
  %s0 = inlined_call_operand.vmem [shape: bf16[2,16,1008], index: 0, kind: input, shape index: {}]
  %s1 = inlined_call_operand.vmem [shape: bf16[1008,48], index: 1, kind: input, shape index: {}]
  %s2 = inlined_call_operand.vmem [shape: f32[1,48], index: 2, kind: input, shape index: {}]
  %s3 = inlined_call_operand.vmem [shape: f32[1,48], index: 3, kind: input, shape index: {}]
  %s4 = inlined_call_operand.vmem [shape: bf16[2,16,48], index: 4, kind: output, shape index: {}]
  %s5 = sld [smem:[#allocation0]]
  $region49: #{waveunet_forward.16} parent=0
    _
  %s7 = ssub.s32 1, %s5
  %s8 = scalar_select 0, %s7, %s5
  loop: start=0, step=1, limit=4
  $region2: #{waveunet_forward.16} parent=0 // loop_pre_header
    _
  $region3: #{waveunet_forward.16} parent=0 // loop_header
    %s10 = sphi 0, %s14
    %p11 = scmp.ge.s32.totalorder %s10, 4
    %s17 = sphi 0, %s29
    %s18 = sphi 0, %s25
    %s19 = sphi 0, %s17
    %s20 = sphi 0, %s18
    %s21 = sphi 0, %s19
    %s22 = sphi 0, %s20
    %s34 = sphi 0, %s36
    %s37 = sphi 0, %s34
    %s38 = sphi 0, %s37
    %s54 = sphi 0, %s38
    %s58 = sphi 0, %s58
    %s60 = sphi 0, %s58
    %s61 = sphi 0, %s60
    %s75 = sphi 0, %s61
    %s79 = sphi 0, %s79
    %s81 = sphi 0, %s79
    %s82 = sphi 0, %s81
    %s96 = sphi 0, %s82
    %s100 = sphi 0, %s100
    %s102 = sphi 0, %s100
    %s103 = sphi 0, %s102
    %s117 = sphi 0, %s103
    %s125 = sphi 0, %s127
    %s128 = sphi 0, %s125
    %s129 = sphi 0, %s128
    %s145 = sphi 0, %s129
  $region4: #{waveunet_forward.16} parent=0 // loop_header_branch
    %13 = sbr.rel (%p11) target = $region8
  $region5: #{waveunet_forward.16} parent=0 // loop_body
    %s15 = ssub.s32 %s10, 1
    %s16 = ssub.s32 %s10, 2
    %s23 = sadd.s32 1, %s18
    %p24 = scmp.ge.s32.totalorder %s23, 1
    %s25 = scalar_select %p24, 0, %s23
    %s26 = sadd.s32 1, %s17
    %s27 = scalar_select %p24, %s26, %s17
    %p28 = scmp.ge.s32.totalorder %s27, 2
    %s29 = scalar_select %p28, 0, %s27
    %s30 = ssub.s32 %s17, %s29
    %s31 = ssub.s32 %s18, %s25
    %s32 = sor.u32 %s30, %s31
    %p33 = scmp.eq.s32.totalorder %s32, 0
    %s35 = sadd.s32 %s34, 1
    %s36 = scalar_select %p33, %s34, %s35
    %p39 = pneg %p33
    %p40 = scmp.eq.s32.totalorder %s10, 1
    %p41 = por %p39, %p40
    %p42 = scmp.ne.s32.totalorder %s34, %s37
    %p43 = scmp.eq.s32.totalorder %s10, 0
    %p44 = por %p42, %p43
    %p45 = scmp.ne.s32.totalorder %s34, %s37
    %p46 = scmp.eq.s32.totalorder %s15, 1
    %p47 = por %p45, %p46
    %p48 = scmp.ne.s32.totalorder %s37, %s38
    %p49 = scmp.eq.s32.totalorder %s15, 0
    %p50 = por %p48, %p49
    %p51 = scmp.ne.s32.totalorder %s37, %s38
    %p52 = scmp.eq.s32.totalorder %s16, 1
    %p53 = por %p51, %p52
    %p55 = scmp.ne.s32.totalorder %s38, %s54
    %p56 = scmp.eq.s32.totalorder %s16, 0
    %p57 = por %p55, %p56
    %s59 = sadd.s32 %s58, 1
    %p62 = scmp.eq.s32.totalorder %s10, 1
    %p63 = scmp.ne.s32.totalorder %s58, %s60
    %p64 = scmp.eq.s32.totalorder %s10, 0
    %p65 = por %p63, %p64
    %p66 = scmp.ne.s32.totalorder %s58, %s60
    %p67 = scmp.eq.s32.totalorder %s15, 1
    %p68 = por %p66, %p67
    %p69 = scmp.ne.s32.totalorder %s60, %s61
    %p70 = scmp.eq.s32.totalorder %s15, 0
    %p71 = por %p69, %p70
    %p72 = scmp.ne.s32.totalorder %s60, %s61
    %p73 = scmp.eq.s32.totalorder %s16, 1
    %p74 = por %p72, %p73
    %p76 = scmp.ne.s32.totalorder %s61, %s75
    %p77 = scmp.eq.s32.totalorder %s16, 0
    %p78 = por %p76, %p77
    %s80 = sadd.s32 %s79, 1
    %p83 = scmp.eq.s32.totalorder %s10, 1
    %p84 = scmp.ne.s32.totalorder %s79, %s81
    %p85 = scmp.eq.s32.totalorder %s10, 0
    %p86 = por %p84, %p85
    %p87 = scmp.ne.s32.totalorder %s79, %s81
    %p88 = scmp.eq.s32.totalorder %s15, 1
    %p89 = por %p87, %p88
    %p90 = scmp.ne.s32.totalorder %s81, %s82
    %p91 = scmp.eq.s32.totalorder %s15, 0
    %p92 = por %p90, %p91
    %p93 = scmp.ne.s32.totalorder %s81, %s82
    %p94 = scmp.eq.s32.totalorder %s16, 1
    %p95 = por %p93, %p94
    %p97 = scmp.ne.s32.totalorder %s82, %s96
    %p98 = scmp.eq.s32.totalorder %s16, 0
    %p99 = por %p97, %p98
    %s101 = sadd.s32 %s100, 1
    %p104 = scmp.eq.s32.totalorder %s10, 1
    %p105 = scmp.ne.s32.totalorder %s100, %s102
    %p106 = scmp.eq.s32.totalorder %s10, 0
    %p107 = por %p105, %p106
    %p108 = scmp.ne.s32.totalorder %s100, %s102
    %p109 = scmp.eq.s32.totalorder %s15, 1
    %p110 = por %p108, %p109
    %p111 = scmp.ne.s32.totalorder %s102, %s103
    %p112 = scmp.eq.s32.totalorder %s15, 0
    %p113 = por %p111, %p112
    %p114 = scmp.ne.s32.totalorder %s102, %s103
    %p115 = scmp.eq.s32.totalorder %s16, 1
    %p116 = por %p114, %p115
    %p118 = scmp.ne.s32.totalorder %s103, %s117
    %p119 = scmp.eq.s32.totalorder %s16, 0
    %p120 = por %p118, %p119
    %s121 = ssub.s32 %s17, %s29
    %s122 = ssub.s32 %s18, %s25
    %s123 = sor.u32 %s121, %s122
    %p124 = scmp.eq.s32.totalorder %s123, 0
    %s126 = sadd.s32 %s125, 1
    %s127 = scalar_select %p124, %s125, %s126
    %p130 = pneg %p124
    %p131 = scmp.eq.s32.totalorder %s10, 1
    %p132 = por %p130, %p131
    %p133 = scmp.ne.s32.totalorder %s125, %s128
    %p134 = scmp.eq.s32.totalorder %s10, 0
    %p135 = por %p133, %p134
    %p136 = scmp.ne.s32.totalorder %s125, %s128
    %p137 = scmp.eq.s32.totalorder %s15, 1
    %p138 = por %p136, %p137
    %p139 = scmp.ne.s32.totalorder %s128, %s129
    %p140 = scmp.eq.s32.totalorder %s15, 0
    %p141 = por %p139, %p140
    %p142 = scmp.ne.s32.totalorder %s128, %s129
    %p143 = scmp.eq.s32.totalorder %s16, 1
    %p144 = por %p142, %p143
    %p146 = scmp.ne.s32.totalorder %s129, %s145
    %p147 = scmp.eq.s32.totalorder %s16, 0
    %p148 = por %p146, %p147
    %p149 = scmp.le.s32.totalorder 1, %s10
    %p150 = scmp.lt.s32.totalorder %s10, 3
    %p151 = pnand %p149, %p150
    %p152 = pneg %p151
    // Predicated region
    $region9: #{waveunet_forward.16} parent=5 // pred_check
      _
    $region10: #{waveunet_forward.16} parent=5 // pred_check_branch
      %154 = sbr.rel (%p151) target = $region12
    $region11: #{waveunet_forward.16} parent=5 // pred_region
      %s155 = ssub.s32 %s10, 1
      // Predicated region
      $region13: #{waveunet_forward.16} parent=11 // pred_check
        %p156 = pneg %p71
      $region14: #{waveunet_forward.16} parent=11 // pred_check_branch
        %158 = sbr.rel (%p156) target = $region16
      $region15: #{waveunet_forward.16} parent=11 // pred_region
        _
      $region16: #{waveunet_forward.16} parent=11 // pred_fallthru
        _
      // Predicated region
      $region17: #{waveunet_forward.16} parent=11 // pred_check
        %p159 = pneg %p92
      $region18: #{waveunet_forward.16} parent=11 // pred_check_branch
        %161 = sbr.rel (%p159) target = $region20
      $region19: #{waveunet_forward.16} parent=11 // pred_region
        _
      $region20: #{waveunet_forward.16} parent=11 // pred_fallthru
        _
      // Predicated region
      $region21: #{waveunet_forward.16} parent=11 // pred_check
        %p162 = pneg %p113
      $region22: #{waveunet_forward.16} parent=11 // pred_check_branch
        %164 = sbr.rel (%p162) target = $region24
      $region23: #{waveunet_forward.16} parent=11 // pred_region
        _
      $region24: #{waveunet_forward.16} parent=11 // pred_fallthru
        _
    $region12: #{waveunet_forward.16} parent=5 // pred_fallthru
      _
    %p165 = scmp.lt.s32.totalorder %s10, 2
    // Predicated region
    $region25: #{waveunet_forward.16} parent=5 // pred_check
      %p166 = pneg %p165
    $region26: #{waveunet_forward.16} parent=5 // pred_check_branch
      %168 = sbr.rel (%p166) target = $region28
    $region27: #{waveunet_forward.16} parent=5 // pred_region
      // Predicated region
      $region29: #{waveunet_forward.16} parent=27 // pred_check
        %p169 = pneg %p44
      $region30: #{waveunet_forward.16} parent=27 // pred_check_branch
        %171 = sbr.rel (%p169) target = $region32
      $region31: #{waveunet_forward.16} parent=27 // pred_region
        %s172 = smul.u32 2, %s18
        %p173 = scmp.lt.s32.totalorder %s17, 1
        %s174 = scalar_select %p173, %s17, 1
        %p175 = scmp.lt.s32.totalorder %s172, 1
        %s176 = scalar_select %p175, %s172, 1
        %s177 = smul.addr %s176, 8
        %s178 = smul.addr %s174, 16
        %s179 = sadd.s32 %s177, %s178
        %s180 = smul.addr %s179, 4
        %s181 = scalar_lea.vmem %s0, %s180
        %s182 = smul.u32 2, %s18
      $region32: #{waveunet_forward.16} parent=27 // pred_fallthru
        _
    $region28: #{waveunet_forward.16} parent=5 // pred_fallthru
      _
    %p183 = scmp.le.s32.totalorder 1, %s10
    %p184 = scmp.lt.s32.totalorder %s10, 3
    %p185 = pnand %p183, %p184
    %p186 = pneg %p185
    // Predicated region
    $region33: #{waveunet_forward.16} parent=5 // pred_check
      _
    $region34: #{waveunet_forward.16} parent=5 // pred_check_branch
      %188 = sbr.rel (%p185) target = $region36
    $region35: #{waveunet_forward.16} parent=5 // pred_region
      %s189 = ssub.s32 %s10, 1
      %s190 = smul.u32 2, %s20
      %p191 = scmp.lt.s32.totalorder %s19, 1
      %s192 = scalar_select %p191, %s19, 1
      %p193 = scmp.lt.s32.totalorder %s190, 1
      %s194 = scalar_select %p193, %s190, 1
      %s195 = smul.addr %s194, 8
      %s196 = smul.addr %s192, 16
      %s197 = sadd.s32 %s195, %s196
      %s198 = smul.addr %s197, 4
      %s199 = scalar_lea.vmem %s0, %s198
      %p200 = pneg %p50
      %p201 = pneg %p47
      %p202 = pneg %p71
      %p203 = pneg %p68
      %p204 = pneg %p92
      %p205 = pneg %p89
      %p206 = pneg %p113
      %p207 = pneg %p110
      %p208 = pneg %p141
      %p209 = pneg %p138
      %s210 = smul.u32 2, %s20
      %p211 = scmp.lt.s32.totalorder %s19, 1
      %s212 = scalar_select %p211, %s19, 1
      %p213 = scmp.lt.s32.totalorder %s210, 1
      %s214 = scalar_select %p213, %s210, 1
      %s215 = smul.addr %s212, 2
      %s216 = sadd.s32 %s214, %s215
      %s217 = smul.addr %s216, 4
      %s218 = scalar_lea.vmem %s4, %s217
      %s219 = smul.u32 2, %s20
      %p220 = scmp.lt.s32.totalorder %s19, 1
      %s221 = scalar_select %p220, %s19, 1
      %p222 = scmp.lt.s32.totalorder %s219, 1
      %s223 = scalar_select %p222, %s219, 1
      %s224 = smul.addr %s223, 8
      %s225 = smul.addr %s221, 16
      %s226 = sadd.s32 %s224, %s225
      %s227 = smul.addr %s226, 4
      %s228 = scalar_lea.vmem %s0, %s227
      %s229 = smul.u32 2, %s20
      %s230 = smul.u32 2, %s20
      %p231 = scmp.lt.s32.totalorder %s19, 1
      %s232 = scalar_select %p231, %s19, 1
      %p233 = scmp.lt.s32.totalorder %s230, 1
      %s234 = scalar_select %p233, %s230, 1
      %s235 = smul.addr %s232, 2
      %s236 = sadd.s32 %s234, %s235
      %s237 = smul.addr %s236, 4
      %s238 = scalar_lea.vmem %s4, %s237
      %s239 = smul.u32 2, %s20
      %v241 = vld [vmem:[%s228] sm:$0xff]
      %v242 = vld [vmem:[%s228 + $0x8] sm:$0xff]
      %v243 = vld [vmem:[%s228 + $0x10] sm:$0xff]
      %v244 = vld [vmem:[%s228 + $0x18] sm:$0xff]
      %v245 = vld [vmem:[%s228 + $0x20] sm:$0xff]
      %v246 = vld [vmem:[%s228 + $0x28] sm:$0xff]
      %v247 = vld [vmem:[%s228 + $0x30] sm:$0xff]
      %v248 = vld [vmem:[%s228 + $0x38] sm:$0xff]
      %v249 = vld [vmem:[%s1] sm:$0xf]
      %v250 = vld [vmem:[%s1 + $0x4] sm:$0xf]
      %v251 = vld [vmem:[%s1 + $0x8] sm:$0xf]
      %v252 = vld [vmem:[%s1 + $0xc] sm:$0xf]
      %v253 = vld [vmem:[%s1 + $0x10] sm:$0xf]
      %v254 = vld [vmem:[%s1 + $0x14] sm:$0xf]
      %v255 = vld [vmem:[%s1 + $0x18] sm:$0xf]
      %v256 = vld [vmem:[%s1 + $0x1c] sm:$0xf]
      %v257 = vld [vmem:[%s1 + $0x20] sm:$0xf]
      %v258 = vld [vmem:[%s1 + $0x24] sm:$0xf]
      %v259 = vld [vmem:[%s1 + $0x28] sm:$0xf]
      %v260 = vld [vmem:[%s1 + $0x2c] sm:$0xf]
      %v261 = vld [vmem:[%s1 + $0x30] sm:$0xf]
      %v262 = vld [vmem:[%s1 + $0x34] sm:$0xf]
      %v263 = vld [vmem:[%s1 + $0x38] sm:$0xf]
      %v264 = vld [vmem:[%s1 + $0x3c] sm:$0xf]
      %v265 = vld [vmem:[%s1 + $0x40] sm:$0xf]
      %v266 = vld [vmem:[%s1 + $0x44] sm:$0xf]
      %v267 = vld [vmem:[%s1 + $0x48] sm:$0xf]
      %v268 = vld [vmem:[%s1 + $0x4c] sm:$0xf]
      %v269 = vld [vmem:[%s1 + $0x50] sm:$0xf]
      %v270 = vld [vmem:[%s1 + $0x54] sm:$0xf]
      %v271 = vld [vmem:[%s1 + $0x58] sm:$0xf]
      %v272 = vld [vmem:[%s1 + $0x5c] sm:$0xf]
      %v273 = vld [vmem:[%s1 + $0x60] sm:$0xf]
      %v274 = vld [vmem:[%s1 + $0x64] sm:$0xf]
      %v275 = vld [vmem:[%s1 + $0x68] sm:$0xf]
      %v276 = vld [vmem:[%s1 + $0x6c] sm:$0xf]
      %v277 = vld [vmem:[%s1 + $0x70] sm:$0xf]
      %v278 = vld [vmem:[%s1 + $0x74] sm:$0xf]
      %v279 = vld [vmem:[%s1 + $0x78] sm:$0xf]
      %v280 = vld [vmem:[%s1 + $0x7c] sm:$0xf]
      %v281 = vld [vmem:[%s1 + $0x80] sm:$0xf]
      %v282 = vld [vmem:[%s1 + $0x84] sm:$0xf]
      %v283 = vld [vmem:[%s1 + $0x88] sm:$0xf]
      %v284 = vld [vmem:[%s1 + $0x8c] sm:$0xf]
      %v285 = vld [vmem:[%s1 + $0x90] sm:$0xf]
      %v286 = vld [vmem:[%s1 + $0x94] sm:$0xf]
      %v287 = vld [vmem:[%s1 + $0x98] sm:$0xf]
      %v288 = vld [vmem:[%s1 + $0x9c] sm:$0xf]
      %v289 = vld [vmem:[%s1 + $0xa0] sm:$0xf]
      %v290 = vld [vmem:[%s1 + $0xa4] sm:$0xf]
      %v291 = vld [vmem:[%s1 + $0xa8] sm:$0xf]
      %v292 = vld [vmem:[%s1 + $0xac] sm:$0xf]
      %v293 = vld [vmem:[%s1 + $0xb0] sm:$0xf]
      %v294 = vld [vmem:[%s1 + $0xb4] sm:$0xf]
      %v295 = vld [vmem:[%s1 + $0xb8] sm:$0xf]
      %v296 = vld [vmem:[%s1 + $0xbc] sm:$0xf]
      %v297 = vld [vmem:[%s1 + $0xc0] sm:$0xf]
      %v298 = vld [vmem:[%s1 + $0xc4] sm:$0xf]
      %v299 = vld [vmem:[%s1 + $0xc8] sm:$0xf]
      %v300 = vld [vmem:[%s1 + $0xcc] sm:$0xf]
      %v301 = vld [vmem:[%s1 + $0xd0] sm:$0xf]
      %v302 = vld [vmem:[%s1 + $0xd4] sm:$0xf]
      %v303 = vld [vmem:[%s1 + $0xd8] sm:$0xf]
      %v304 = vld [vmem:[%s1 + $0xdc] sm:$0xf]
      %v305 = vld [vmem:[%s1 + $0xe0] sm:$0xf]
      %v306 = vld [vmem:[%s1 + $0xe4] sm:$0xf]
      %v307 = vld [vmem:[%s1 + $0xe8] sm:$0xf]
      %v308 = vld [vmem:[%s1 + $0xec] sm:$0xf]
      %v309 = vld [vmem:[%s1 + $0xf0] sm:$0xf]
      %v310 = vld [vmem:[%s1 + $0xf4] sm:$0xf]
      %v311 = vld [vmem:[%s1 + $0xf8] sm:$0xf]
      %v312 = vld [vmem:[%s1 + $0xfc] sm:$0xf]
      %v313 = vld [vmem:[%s1 + $0x100] sm:$0xf]
      %v314 = vld [vmem:[%s1 + $0x104] sm:$0xf]
      %v315 = vld [vmem:[%s1 + $0x108] sm:$0xf]
      %v316 = vld [vmem:[%s1 + $0x10c] sm:$0xf]
      %v317 = vld [vmem:[%s1 + $0x110] sm:$0xf]
      %v318 = vld [vmem:[%s1 + $0x114] sm:$0xf]
      %v319 = vld [vmem:[%s1 + $0x118] sm:$0xf]
      %v320 = vld [vmem:[%s1 + $0x11c] sm:$0xf]
      %v321 = vld [vmem:[%s1 + $0x120] sm:$0xf]
      %v322 = vld [vmem:[%s1 + $0x124] sm:$0xf]
      %v323 = vld [vmem:[%s1 + $0x128] sm:$0xf]
      %v324 = vld [vmem:[%s1 + $0x12c] sm:$0xf]
      %v325 = vld [vmem:[%s1 + $0x130] sm:$0xf]
      %v326 = vld [vmem:[%s1 + $0x134] sm:$0xf]
      %v327 = vld [vmem:[%s1 + $0x138] sm:$0xf]
      %v328 = vld [vmem:[%s1 + $0x13c] sm:$0xf]
      %v329 = vld [vmem:[%s1 + $0x140] sm:$0xf]
      %v330 = vld [vmem:[%s1 + $0x144] sm:$0xf]
      %v331 = vld [vmem:[%s1 + $0x148] sm:$0xf]
      %v332 = vld [vmem:[%s1 + $0x14c] sm:$0xf]
      %v333 = vld [vmem:[%s1 + $0x150] sm:$0xf]
      %v334 = vld [vmem:[%s1 + $0x154] sm:$0xf]
      %v335 = vld [vmem:[%s1 + $0x158] sm:$0xf]
      %v336 = vld [vmem:[%s1 + $0x15c] sm:$0xf]
      %v337 = vld [vmem:[%s1 + $0x160] sm:$0xf]
      %v338 = vld [vmem:[%s1 + $0x164] sm:$0xf]
      %v339 = vld [vmem:[%s1 + $0x168] sm:$0xf]
      %v340 = vld [vmem:[%s1 + $0x16c] sm:$0xf]
      %v341 = vld [vmem:[%s1 + $0x170] sm:$0xf]
      %v342 = vld [vmem:[%s1 + $0x174] sm:$0xf]
      %v343 = vld [vmem:[%s1 + $0x178] sm:$0xf]
      %v344 = vld [vmem:[%s1 + $0x17c] sm:$0xf]
      %v345 = vld [vmem:[%s1 + $0x180] sm:$0xf]
      %v346 = vld [vmem:[%s1 + $0x184] sm:$0xf]
      %v347 = vld [vmem:[%s1 + $0x188] sm:$0xf]
      %v348 = vld [vmem:[%s1 + $0x18c] sm:$0xf]
      %v349 = vld [vmem:[%s1 + $0x190] sm:$0xf]
      %v350 = vld [vmem:[%s1 + $0x194] sm:$0xf]
      %v351 = vld [vmem:[%s1 + $0x198] sm:$0xf]
      %v352 = vld [vmem:[%s1 + $0x19c] sm:$0xf]
      %v353 = vld [vmem:[%s1 + $0x1a0] sm:$0xf]
      %v354 = vld [vmem:[%s1 + $0x1a4] sm:$0xf]
      %v355 = vld [vmem:[%s1 + $0x1a8] sm:$0xf]
      %v356 = vld [vmem:[%s1 + $0x1ac] sm:$0xf]
      %v357 = vld [vmem:[%s1 + $0x1b0] sm:$0xf]
      %v358 = vld [vmem:[%s1 + $0x1b4] sm:$0xf]
      %v359 = vld [vmem:[%s1 + $0x1b8] sm:$0xf]
      %v360 = vld [vmem:[%s1 + $0x1bc] sm:$0xf]
      %v361 = vld [vmem:[%s1 + $0x1c0] sm:$0xf]
      %v362 = vld [vmem:[%s1 + $0x1c4] sm:$0xf]
      %v363 = vld [vmem:[%s1 + $0x1c8] sm:$0xf]
      %v364 = vld [vmem:[%s1 + $0x1cc] sm:$0xf]
      %v365 = vld [vmem:[%s1 + $0x1d0] sm:$0xf]
      %v366 = vld [vmem:[%s1 + $0x1d4] sm:$0xf]
      %v367 = vld [vmem:[%s1 + $0x1d8] sm:$0xf]
      %v368 = vld [vmem:[%s1 + $0x1dc] sm:$0xf]
      %v369 = vld [vmem:[%s1 + $0x1e0] sm:$0xf]
      %v370 = vld [vmem:[%s1 + $0x1e4] sm:$0xf]
      %v371 = vld [vmem:[%s1 + $0x1e8] sm:$0xf]
      %v372 = vld [vmem:[%s1 + $0x1ec] sm:$0xf]
      %v373 = vld [vmem:[%s1 + $0x1f0] sm:$0xf]
      %v374 = vld [vmem:[%s1 + $0x1f4] sm:$0xf]
      %v383 = vunpack.c.l.b16 %v241
      %v384 = vunpack.c.h.b16 %v241
      %v385 = vunpack.c.l.b16 %v242
      %v386 = vunpack.c.h.b16 %v242
      %v387 = vunpack.c.l.b16 %v243
      %v388 = vunpack.c.h.b16 %v243
      %v389 = vunpack.c.l.b16 %v244
      %v390 = vunpack.c.h.b16 %v244
      %v391 = vunpack.c.l.b16 %v245
      %v392 = vunpack.c.h.b16 %v245
      %v393 = vunpack.c.l.b16 %v246
      %v394 = vunpack.c.h.b16 %v246
      %v395 = vunpack.c.l.b16 %v247
      %v396 = vunpack.c.h.b16 %v247
      %v397 = vunpack.c.l.b16 %v248
      %v398 = vunpack.c.h.b16 %v248
      %v399 = vpack.c.b16 %v391, %v383
      %v400 = vpack.c.b16 %v392, %v384
      %v401 = vpack.c.b16 %v393, %v385
      %v402 = vpack.c.b16 %v394, %v386
      %v403 = vpack.c.b16 %v395, %v387
      %v404 = vpack.c.b16 %v396, %v388
      %v405 = vpack.c.b16 %v397, %v389
      %v406 = vpack.c.b16 %v398, %v390
      %v540 = vunpack.c.l.b16 %v249
      %v541 = vunpack.c.l.b16 %v250
      %v542 = vunpack.c.l.b16 %v251
      %v543 = vunpack.c.l.b16 %v252
      %v544 = vunpack.c.l.b16 %v253
      %v545 = vunpack.c.l.b16 %v254
      %v546 = vunpack.c.l.b16 %v255
      %v547 = vunpack.c.l.b16 %v256
      %v548 = vunpack.c.l.b16 %v257
      %v549 = vunpack.c.l.b16 %v258
      %v550 = vunpack.c.l.b16 %v259
      %v551 = vunpack.c.l.b16 %v260
      %v552 = vunpack.c.l.b16 %v261
      %v553 = vunpack.c.l.b16 %v262
      %v554 = vunpack.c.l.b16 %v263
      %v555 = vunpack.c.l.b16 %v264
      %v556 = vunpack.c.l.b16 %v265
      %v557 = vunpack.c.l.b16 %v266
      %v558 = vunpack.c.l.b16 %v267
      %v559 = vunpack.c.l.b16 %v268
      %v560 = vunpack.c.l.b16 %v269
      %v561 = vunpack.c.l.b16 %v270
      %v562 = vunpack.c.l.b16 %v271
      %v563 = vunpack.c.l.b16 %v272
      %v564 = vunpack.c.l.b16 %v273
      %v565 = vunpack.c.l.b16 %v274
      %v566 = vunpack.c.l.b16 %v275
      %v567 = vunpack.c.l.b16 %v276
      %v568 = vunpack.c.l.b16 %v277
      %v569 = vunpack.c.l.b16 %v278
      %v570 = vunpack.c.l.b16 %v279
      %v571 = vunpack.c.l.b16 %v280
      %v572 = vunpack.c.l.b16 %v281
      %v573 = vunpack.c.l.b16 %v282
      %v574 = vunpack.c.l.b16 %v283
      %v575 = vunpack.c.l.b16 %v284
      %v576 = vunpack.c.l.b16 %v285
      %v577 = vunpack.c.l.b16 %v286
      %v578 = vunpack.c.l.b16 %v287
      %v579 = vunpack.c.l.b16 %v288
      %v580 = vunpack.c.l.b16 %v289
      %v581 = vunpack.c.l.b16 %v290
      %v582 = vunpack.c.l.b16 %v291
      %v583 = vunpack.c.l.b16 %v292
      %v584 = vunpack.c.l.b16 %v293
      %v585 = vunpack.c.l.b16 %v294
      %v586 = vunpack.c.l.b16 %v295
      %v587 = vunpack.c.l.b16 %v296
      %v588 = vunpack.c.l.b16 %v297
      %v589 = vunpack.c.l.b16 %v298
      %v590 = vunpack.c.l.b16 %v299
      %v591 = vunpack.c.l.b16 %v300
      %v592 = vunpack.c.l.b16 %v301
      %v593 = vunpack.c.l.b16 %v302
      %v594 = vunpack.c.l.b16 %v303
      %v595 = vunpack.c.l.b16 %v304
      %v596 = vunpack.c.l.b16 %v305
      %v597 = vunpack.c.l.b16 %v306
      %v598 = vunpack.c.l.b16 %v307
      %v599 = vunpack.c.l.b16 %v308
      %v600 = vunpack.c.l.b16 %v309
      %v601 = vunpack.c.l.b16 %v310
      %v602 = vunpack.c.l.b16 %v311
      %v603 = vunpack.c.l.b16 %v312
      %v604 = vunpack.c.l.b16 %v313
      %v605 = vunpack.c.l.b16 %v314
      %v606 = vunpack.c.l.b16 %v315
      %v607 = vunpack.c.l.b16 %v316
      %v608 = vunpack.c.l.b16 %v317
      %v609 = vunpack.c.l.b16 %v318
      %v610 = vunpack.c.l.b16 %v319
      %v611 = vunpack.c.l.b16 %v320
      %v612 = vunpack.c.l.b16 %v321
      %v613 = vunpack.c.l.b16 %v322
      %v614 = vunpack.c.l.b16 %v323
      %v615 = vunpack.c.l.b16 %v324
      %v616 = vunpack.c.l.b16 %v325
      %v617 = vunpack.c.l.b16 %v326
      %v618 = vunpack.c.l.b16 %v327
      %v619 = vunpack.c.l.b16 %v328
      %v620 = vunpack.c.l.b16 %v329
      %v621 = vunpack.c.l.b16 %v330
      %v622 = vunpack.c.l.b16 %v331
      %v623 = vunpack.c.l.b16 %v332
      %v624 = vunpack.c.l.b16 %v333
      %v625 = vunpack.c.l.b16 %v334
      %v626 = vunpack.c.l.b16 %v335
      %v627 = vunpack.c.l.b16 %v336
      %v628 = vunpack.c.l.b16 %v337
      %v629 = vunpack.c.l.b16 %v338
      %v630 = vunpack.c.l.b16 %v339
      %v631 = vunpack.c.l.b16 %v340
      %v632 = vunpack.c.l.b16 %v341
      %v633 = vunpack.c.l.b16 %v342
      %v634 = vunpack.c.l.b16 %v343
      %v635 = vunpack.c.l.b16 %v344
      %v636 = vunpack.c.l.b16 %v345
      %v637 = vunpack.c.l.b16 %v346
      %v638 = vunpack.c.l.b16 %v347
      %v639 = vunpack.c.l.b16 %v348
      %v640 = vunpack.c.l.b16 %v349
      %v641 = vunpack.c.l.b16 %v350
      %v642 = vunpack.c.l.b16 %v351
      %v643 = vunpack.c.l.b16 %v352
      %v644 = vunpack.c.l.b16 %v353
      %v645 = vunpack.c.l.b16 %v354
      %v646 = vunpack.c.l.b16 %v355
      %v647 = vunpack.c.l.b16 %v356
      %v648 = vunpack.c.l.b16 %v357
      %v649 = vunpack.c.l.b16 %v358
      %v650 = vunpack.c.l.b16 %v359
      %v651 = vunpack.c.l.b16 %v360
      %v652 = vunpack.c.l.b16 %v361
      %v653 = vunpack.c.l.b16 %v362
      %v654 = vunpack.c.l.b16 %v363
      %v655 = vunpack.c.l.b16 %v364
      %v656 = vunpack.c.l.b16 %v365
      %v657 = vunpack.c.l.b16 %v366
      %v658 = vunpack.c.l.b16 %v367
      %v659 = vunpack.c.l.b16 %v368
      %v660 = vunpack.c.l.b16 %v369
      %v661 = vunpack.c.l.b16 %v370
      %v662 = vunpack.c.l.b16 %v371
      %v663 = vunpack.c.l.b16 %v372
      %v664 = vunpack.c.l.b16 %v373
      %v665 = vunpack.c.l.b16 %v374
      %v666 = vpack.c.b16 %v541, %v540
      %v667 = vpack.c.b16 %v543, %v542
      %v668 = vpack.c.b16 %v545, %v544
      %v669 = vpack.c.b16 %v547, %v546
      %v670 = vpack.c.b16 %v549, %v548
      %v671 = vpack.c.b16 %v551, %v550
      %v672 = vpack.c.b16 %v553, %v552
      %v673 = vpack.c.b16 %v555, %v554
      %v674 = vpack.c.b16 %v557, %v556
      %v675 = vpack.c.b16 %v559, %v558
      %v676 = vpack.c.b16 %v561, %v560
      %v677 = vpack.c.b16 %v563, %v562
      %v678 = vpack.c.b16 %v565, %v564
      %v679 = vpack.c.b16 %v567, %v566
      %v680 = vpack.c.b16 %v569, %v568
      %v681 = vpack.c.b16 %v571, %v570
      %v682 = vpack.c.b16 %v573, %v572
      %v683 = vpack.c.b16 %v575, %v574
      %v684 = vpack.c.b16 %v577, %v576
      %v685 = vpack.c.b16 %v579, %v578
      %v686 = vpack.c.b16 %v581, %v580
      %v687 = vpack.c.b16 %v583, %v582
      %v688 = vpack.c.b16 %v585, %v584
      %v689 = vpack.c.b16 %v587, %v586
      %v690 = vpack.c.b16 %v589, %v588
      %v691 = vpack.c.b16 %v591, %v590
      %v692 = vpack.c.b16 %v593, %v592
      %v693 = vpack.c.b16 %v595, %v594
      %v694 = vpack.c.b16 %v597, %v596
      %v695 = vpack.c.b16 %v599, %v598
      %v696 = vpack.c.b16 %v601, %v600
      %v697 = vpack.c.b16 %v603, %v602
      %v698 = vpack.c.b16 %v605, %v604
      %v699 = vpack.c.b16 %v607, %v606
      %v700 = vpack.c.b16 %v609, %v608
      %v701 = vpack.c.b16 %v611, %v610
      %v702 = vpack.c.b16 %v613, %v612
      %v703 = vpack.c.b16 %v615, %v614
      %v704 = vpack.c.b16 %v617, %v616
      %v705 = vpack.c.b16 %v619, %v618
      %v706 = vpack.c.b16 %v621, %v620
      %v707 = vpack.c.b16 %v623, %v622
      %v708 = vpack.c.b16 %v625, %v624
      %v709 = vpack.c.b16 %v627, %v626
      %v710 = vpack.c.b16 %v629, %v628
      %v711 = vpack.c.b16 %v631, %v630
      %v712 = vpack.c.b16 %v633, %v632
      %v713 = vpack.c.b16 %v635, %v634
      %v714 = vpack.c.b16 %v637, %v636
      %v715 = vpack.c.b16 %v639, %v638
      %v716 = vpack.c.b16 %v641, %v640
      %v717 = vpack.c.b16 %v643, %v642
      %v718 = vpack.c.b16 %v645, %v644
      %v719 = vpack.c.b16 %v647, %v646
      %v720 = vpack.c.b16 %v649, %v648
      %v721 = vpack.c.b16 %v651, %v650
      %v722 = vpack.c.b16 %v653, %v652
      %v723 = vpack.c.b16 %v655, %v654
      %v724 = vpack.c.b16 %v657, %v656
      %v725 = vpack.c.b16 %v659, %v658
      %v726 = vpack.c.b16 %v661, %v660
      %v727 = vpack.c.b16 %v663, %v662
      %v728 = vpack.c.b16 %v665, %v664
      %vm792 = vcmask 916480
      %v794 = vsel %vm792, %v406, 0
      %796 = vmatprep.subr.bf16.mxu0 0
      %797 = vmatpush1.bf16.msra.mxu0 %v666
      %798 = vmatprep.subr.bf16.mxu0 0
      %799 = vmatpush1.bf16.msra.mxu0 %v667
      %800 = vmatprep.subr.bf16.mxu0 0
      %801 = vmatpush1.bf16.msra.mxu0 %v668
      %802 = vmatprep.subr.bf16.mxu0 0
      %803 = vmatpush1.bf16.msra.mxu0 %v669
      %804 = vmatprep.subr.bf16.mxu0 0
      %805 = vmatpush1.bf16.msra.mxu0 %v670
      %806 = vmatprep.subr.bf16.mxu0 0
      %807 = vmatpush1.bf16.msra.mxu0 %v671
      %808 = vmatprep.subr.bf16.mxu0 0
      %809 = vmatpush1.bf16.msra.mxu0 %v672
      %810 = vmatprep.subr.bf16.mxu0 0
      %811 = vmatpush1.bf16.msra.mxu0 %v673
      %812 = vmatprep.subr.bf16.mxu0 0
      %813 = vmatpush1.bf16.msra.mxu0 %v674
      %814 = vmatprep.subr.bf16.mxu0 0
      %815 = vmatpush1.bf16.msra.mxu0 %v675
      %816 = vmatprep.subr.bf16.mxu0 0
      %817 = vmatpush1.bf16.msra.mxu0 %v676
      %818 = vmatprep.subr.bf16.mxu0 0
      %819 = vmatpush1.bf16.msra.mxu0 %v677
      %820 = vmatprep.subr.bf16.mxu0 0
      %821 = vmatpush1.bf16.msra.mxu0 %v678
      %822 = vmatprep.subr.bf16.mxu0 0
      %823 = vmatpush1.bf16.msra.mxu0 %v679
      %824 = vmatprep.subr.bf16.mxu0 0
      %825 = vmatpush1.bf16.msra.mxu0 %v680
      %826 = vmatprep.subr.bf16.mxu0 0
      %827 = vmatpush1.bf16.msra.mxu0 %v681
      %828 = vmatprep.mubr.bf16.mxu0 %v400
      %829 = vmatmul.mubr.bf16.gmra.mrb[0].mxu0 %v399
      %v830 = vpop.f32.mrb[0].mxu0
      %v831 = vadd.f32 0.0, %v830
      %v832 = vpop.f32.mrb[0].mxu0
      %v833 = vpop.f32.mrb[0].mxu0
      %v834 = vadd.f32 0.0, %v833
      %v835 = vpop.f32.mrb[0].mxu0
      %836 = vdwg.mxu0
      %837 = vmatprep.subr.bf16.mxu0 0
      %838 = vmatpush1.bf16.msra.mxu0 %v682
      %839 = vmatprep.subr.bf16.mxu0 0
      %840 = vmatpush1.bf16.msra.mxu0 %v683
      %841 = vmatprep.subr.bf16.mxu0 0
      %842 = vmatpush1.bf16.msra.mxu0 %v684
      %843 = vmatprep.subr.bf16.mxu0 0
      %844 = vmatpush1.bf16.msra.mxu0 %v685
      %845 = vmatprep.subr.bf16.mxu0 0
      %846 = vmatpush1.bf16.msra.mxu0 %v686
      %847 = vmatprep.subr.bf16.mxu0 0
      %848 = vmatpush1.bf16.msra.mxu0 %v687
      %849 = vmatprep.subr.bf16.mxu0 0
      %850 = vmatpush1.bf16.msra.mxu0 %v688
      %851 = vmatprep.subr.bf16.mxu0 0
      %852 = vmatpush1.bf16.msra.mxu0 %v689
      %853 = vmatprep.subr.bf16.mxu0 0
      %854 = vmatpush1.bf16.msra.mxu0 %v690
      %855 = vmatprep.subr.bf16.mxu0 0
      %856 = vmatpush1.bf16.msra.mxu0 %v691
      %857 = vmatprep.subr.bf16.mxu0 0
      %858 = vmatpush1.bf16.msra.mxu0 %v692
      %859 = vmatprep.subr.bf16.mxu0 0
      %860 = vmatpush1.bf16.msra.mxu0 %v693
      %861 = vmatprep.subr.bf16.mxu0 0
      %862 = vmatpush1.bf16.msra.mxu0 %v694
      %863 = vmatprep.subr.bf16.mxu0 0
      %864 = vmatpush1.bf16.msra.mxu0 %v695
      %865 = vmatprep.subr.bf16.mxu0 0
      %866 = vmatpush1.bf16.msra.mxu0 %v696
      %867 = vmatprep.subr.bf16.mxu0 0
      %868 = vmatpush1.bf16.msra.mxu0 %v697
      %869 = vmatprep.mubr.bf16.mxu0 %v402
      %870 = vmatmul.mubr.bf16.gmra.mrb[0].mxu0 %v401
      %v871 = vpop.f32.mrb[0].mxu0
      %v872 = vadd.f32 %v831, %v871
      %v873 = vpop.f32.mrb[0].mxu0
      %v874 = vpop.f32.mrb[0].mxu0
      %v875 = vadd.f32 %v834, %v874
      %v876 = vpop.f32.mrb[0].mxu0
      %877 = vdwg.mxu0
      %878 = vmatprep.subr.bf16.mxu0 0
      %879 = vmatpush1.bf16.msra.mxu0 %v698
      %880 = vmatprep.subr.bf16.mxu0 0
      %881 = vmatpush1.bf16.msra.mxu0 %v699
      %882 = vmatprep.subr.bf16.mxu0 0
      %883 = vmatpush1.bf16.msra.mxu0 %v700
      %884 = vmatprep.subr.bf16.mxu0 0
      %885 = vmatpush1.bf16.msra.mxu0 %v701
      %886 = vmatprep.subr.bf16.mxu0 0
      %887 = vmatpush1.bf16.msra.mxu0 %v702
      %888 = vmatprep.subr.bf16.mxu0 0
      %889 = vmatpush1.bf16.msra.mxu0 %v703
      %890 = vmatprep.subr.bf16.mxu0 0
      %891 = vmatpush1.bf16.msra.mxu0 %v704
      %892 = vmatprep.subr.bf16.mxu0 0
      %893 = vmatpush1.bf16.msra.mxu0 %v705
      %894 = vmatprep.subr.bf16.mxu0 0
      %895 = vmatpush1.bf16.msra.mxu0 %v706
      %896 = vmatprep.subr.bf16.mxu0 0
      %897 = vmatpush1.bf16.msra.mxu0 %v707
      %898 = vmatprep.subr.bf16.mxu0 0
      %899 = vmatpush1.bf16.msra.mxu0 %v708
      %900 = vmatprep.subr.bf16.mxu0 0
      %901 = vmatpush1.bf16.msra.mxu0 %v709
      %902 = vmatprep.subr.bf16.mxu0 0
      %903 = vmatpush1.bf16.msra.mxu0 %v710
      %904 = vmatprep.subr.bf16.mxu0 0
      %905 = vmatpush1.bf16.msra.mxu0 %v711
      %906 = vmatprep.subr.bf16.mxu0 0
      %907 = vmatpush1.bf16.msra.mxu0 %v712
      %908 = vmatprep.subr.bf16.mxu0 0
      %909 = vmatpush1.bf16.msra.mxu0 %v713
      %910 = vmatprep.mubr.bf16.mxu0 %v404
      %911 = vmatmul.mubr.bf16.gmra.mrb[0].mxu0 %v403
      %v912 = vpop.f32.mrb[0].mxu0
      %v913 = vadd.f32 %v872, %v912
      %v914 = vpop.f32.mrb[0].mxu0
      %v915 = vpop.f32.mrb[0].mxu0
      %v916 = vadd.f32 %v875, %v915
      %v917 = vpop.f32.mrb[0].mxu0
      %918 = vdwg.mxu0
      %919 = vmatprep.subr.bf16.mxu0 0
      %920 = vmatpush1.bf16.msra.mxu0 %v714
      %921 = vmatprep.subr.bf16.mxu0 0
      %922 = vmatpush1.bf16.msra.mxu0 %v715
      %923 = vmatprep.subr.bf16.mxu0 0
      %924 = vmatpush1.bf16.msra.mxu0 %v716
      %925 = vmatprep.subr.bf16.mxu0 0
      %926 = vmatpush1.bf16.msra.mxu0 %v717
      %927 = vmatprep.subr.bf16.mxu0 0
      %928 = vmatpush1.bf16.msra.mxu0 %v718
      %929 = vmatprep.subr.bf16.mxu0 0
      %930 = vmatpush1.bf16.msra.mxu0 %v719
      %931 = vmatprep.subr.bf16.mxu0 0
      %932 = vmatpush1.bf16.msra.mxu0 %v720
      %933 = vmatprep.subr.bf16.mxu0 0
      %934 = vmatpush1.bf16.msra.mxu0 %v721
      %935 = vmatprep.subr.bf16.mxu0 0
      %936 = vmatpush1.bf16.msra.mxu0 %v722
      %937 = vmatprep.subr.bf16.mxu0 0
      %938 = vmatpush1.bf16.msra.mxu0 %v723
      %939 = vmatprep.subr.bf16.mxu0 0
      %940 = vmatpush1.bf16.msra.mxu0 %v724
      %941 = vmatprep.subr.bf16.mxu0 0
      %942 = vmatpush1.bf16.msra.mxu0 %v725
      %943 = vmatprep.subr.bf16.mxu0 0
      %944 = vmatpush1.bf16.msra.mxu0 %v726
      %945 = vmatprep.subr.bf16.mxu0 0
      %946 = vmatpush1.bf16.msra.mxu0 %v727
      %947 = vmatprep.subr.bf16.mxu0 0
      %948 = vmatpush1.bf16.msra.mxu0 %v728
      %949 = vmatprep.subr.bf16.mxu0 0
      %950 = vmatpush1.bf16.msra.mxu0 0
      %951 = vmatprep.mubr.bf16.mxu0 %v794
      %952 = vmatmul.mubr.bf16.gmra.mrb[0].mxu0 %v405
      %v953 = vpop.f32.mrb[0].mxu0
      %v954 = vadd.f32 %v913, %v953
      %v955 = vpop.f32.mrb[0].mxu0
      %v956 = vpop.f32.mrb[0].mxu0
      %v957 = vadd.f32 %v916, %v956
      %v958 = vpop.f32.mrb[0].mxu0
      %959 = vdwg.mxu0
      %v960 = vld [vmem:[%s2] sm:$0x1]
      %v962 = vlaneseq
      %v963 = vshrl.u32 %v962, 7
      %v964 = vsub.s32 0, %v963
      %v965 = vrot.slane %v960, %v964
      %v967 = vmul.f32 %v954, %v965
      %v968 = vmul.f32 %v957, %v965
      %v969 = vld [vmem:[%s3] sm:$0x1]
      %v971 = vlaneseq
      %v972 = vshrl.u32 %v971, 7
      %v973 = vsub.s32 0, %v972
      %v974 = vrot.slane %v969, %v973
      %v976 = vadd.f32 %v967, %v974
      %v977 = vadd.f32 %v968, %v974
      %vm978 = vcmp.ge.f32.partialorder %v976, 0.0
      %vm979 = vcmp.ge.f32.partialorder %v977, 0.0
      %v980 = vmul.f32 %v976, 0.2
      %v981 = vmul.f32 %v977, 0.2
      %v982 = vsel %vm978, %v976, %v980
      %v983 = vsel %vm979, %v977, %v981
      %v984 = vpack.c.bf16 %v983, %v982
      %v986 = vunpack.c.l.b16 %v984
      %v987 = vunpack.c.h.b16 %v984
      %v988 = vpack.c.b16 %v986, %v986
      %v989 = vpack.c.b16 %v987, %v987
      %vm992 = vcmask 388096
      %993 = vst.msk [vmem:[%s238] sm:$0xf] %vm992, %v988
      %994 = vst.msk [vmem:[%s238 + $0x4] sm:$0xf] %vm992, %v989
      %s995 = smul.u32 2, %s20
      %p996 = scmp.lt.s32.totalorder %s19, 1
      %s997 = scalar_select %p996, %s19, 1
      %p998 = scmp.lt.s32.totalorder %s995, 1
      %s999 = scalar_select %p998, %s995, 1
      %s1000 = smul.addr %s997, 2
      %s1001 = sadd.s32 %s999, %s1000
      %s1002 = smul.addr %s1001, 4
      %s1003 = scalar_lea.vmem %s4, %s1002
      // Predicated region
      $region37: #{waveunet_forward.16} parent=35 // pred_check
        %p1004 = pneg %p138
      $region38: #{waveunet_forward.16} parent=35 // pred_check_branch
        %1006 = sbr.rel (%p1004) target = $region40
      $region39: #{waveunet_forward.16} parent=35 // pred_region
        %s1007 = smul.u32 2, %s20
      $region40: #{waveunet_forward.16} parent=35 // pred_fallthru
        _
    $region36: #{waveunet_forward.16} parent=5 // pred_fallthru
      _
    %p1008 = scmp.le.s32.totalorder 2, %s10
    // Predicated region
    $region41: #{waveunet_forward.16} parent=5 // pred_check
      %p1009 = pneg %p1008
    $region42: #{waveunet_forward.16} parent=5 // pred_check_branch
      %1011 = sbr.rel (%p1009) target = $region44
    $region43: #{waveunet_forward.16} parent=5 // pred_region
      %s1012 = ssub.s32 %s10, 2
      // Predicated region
      $region45: #{waveunet_forward.16} parent=43 // pred_check
        %p1013 = pneg %p144
      $region46: #{waveunet_forward.16} parent=43 // pred_check_branch
        %1015 = sbr.rel (%p1013) target = $region48
      $region47: #{waveunet_forward.16} parent=43 // pred_region
        %s1016 = smul.u32 2, %s22
        %p1017 = scmp.lt.s32.totalorder %s21, 1
        %s1018 = scalar_select %p1017, %s21, 1
        %p1019 = scmp.lt.s32.totalorder %s1016, 1
        %s1020 = scalar_select %p1019, %s1016, 1
        %s1021 = smul.addr %s1018, 2
        %s1022 = sadd.s32 %s1020, %s1021
        %s1023 = smul.addr %s1022, 4
        %s1024 = scalar_lea.vmem %s4, %s1023
      $region48: #{waveunet_forward.16} parent=43 // pred_fallthru
        _
    $region44: #{waveunet_forward.16} parent=5 // pred_fallthru
      _
  $region6: #{waveunet_forward.16} parent=0 // loop_footer
    %s14 = sadd.s32 1, %s10
  $region7: #{waveunet_forward.16} parent=0 // loop_footer_branch
    %9 = sbr.rel target = $region3
  $region8: #{waveunet_forward.16} parent=0 // loop_exit
    _

// kernel: waveunet_forward.17
$region0: #{waveunet_forward.17}
  #allocation0 [shape = 'u32[]', space=smem, size = 0x4, offset = 0x4, fixed_abs, tag = 'smem constant byte address 0x4 - core index']
  #allocation1 [shape = 'u32[144,128]{1,0:T(1,128)}', space=vmem, size = 0x12000, scoped, tag = 'internal scratch']
  %s0 = inlined_call_operand.vmem [shape: bf16[2,32,720], index: 0, kind: input, shape index: {}]
  %s1 = inlined_call_operand.vmem [shape: bf16[720,32], index: 1, kind: input, shape index: {}]
  %s2 = inlined_call_operand.vmem [shape: f32[1,32], index: 2, kind: input, shape index: {}]
  %s3 = inlined_call_operand.vmem [shape: f32[1,32], index: 3, kind: input, shape index: {}]
  %s4 = inlined_call_operand.vmem [shape: bf16[2,32,32], index: 4, kind: output, shape index: {}]
  %s5 = sld [smem:[#allocation0]]
  $region49: #{waveunet_forward.17} parent=0
    _
  %s7 = ssub.s32 1, %s5
  %s8 = scalar_select 0, %s7, %s5
  loop: start=0, step=1, limit=4
  $region2: #{waveunet_forward.17} parent=0 // loop_pre_header
    _
  $region3: #{waveunet_forward.17} parent=0 // loop_header
    %s10 = sphi 0, %s14
    %p11 = scmp.ge.s32.totalorder %s10, 4
    %s17 = sphi 0, %s29
    %s18 = sphi 0, %s25
    %s19 = sphi 0, %s17
    %s20 = sphi 0, %s18
    %s21 = sphi 0, %s19
    %s22 = sphi 0, %s20
    %s34 = sphi 0, %s36
    %s37 = sphi 0, %s34
    %s38 = sphi 0, %s37
    %s54 = sphi 0, %s38
    %s58 = sphi 0, %s58
    %s60 = sphi 0, %s58
    %s61 = sphi 0, %s60
    %s75 = sphi 0, %s61
    %s79 = sphi 0, %s79
    %s81 = sphi 0, %s79
    %s82 = sphi 0, %s81
    %s96 = sphi 0, %s82
    %s100 = sphi 0, %s100
    %s102 = sphi 0, %s100
    %s103 = sphi 0, %s102
    %s117 = sphi 0, %s103
    %s125 = sphi 0, %s127
    %s128 = sphi 0, %s125
    %s129 = sphi 0, %s128
    %s145 = sphi 0, %s129
  $region4: #{waveunet_forward.17} parent=0 // loop_header_branch
    %13 = sbr.rel (%p11) target = $region8
  $region5: #{waveunet_forward.17} parent=0 // loop_body
    %s15 = ssub.s32 %s10, 1
    %s16 = ssub.s32 %s10, 2
    %s23 = sadd.s32 1, %s18
    %p24 = scmp.ge.s32.totalorder %s23, 1
    %s25 = scalar_select %p24, 0, %s23
    %s26 = sadd.s32 1, %s17
    %s27 = scalar_select %p24, %s26, %s17
    %p28 = scmp.ge.s32.totalorder %s27, 2
    %s29 = scalar_select %p28, 0, %s27
    %s30 = ssub.s32 %s17, %s29
    %s31 = ssub.s32 %s18, %s25
    %s32 = sor.u32 %s30, %s31
    %p33 = scmp.eq.s32.totalorder %s32, 0
    %s35 = sadd.s32 %s34, 1
    %s36 = scalar_select %p33, %s34, %s35
    %p39 = pneg %p33
    %p40 = scmp.eq.s32.totalorder %s10, 1
    %p41 = por %p39, %p40
    %p42 = scmp.ne.s32.totalorder %s34, %s37
    %p43 = scmp.eq.s32.totalorder %s10, 0
    %p44 = por %p42, %p43
    %p45 = scmp.ne.s32.totalorder %s34, %s37
    %p46 = scmp.eq.s32.totalorder %s15, 1
    %p47 = por %p45, %p46
    %p48 = scmp.ne.s32.totalorder %s37, %s38
    %p49 = scmp.eq.s32.totalorder %s15, 0
    %p50 = por %p48, %p49
    %p51 = scmp.ne.s32.totalorder %s37, %s38
    %p52 = scmp.eq.s32.totalorder %s16, 1
    %p53 = por %p51, %p52
    %p55 = scmp.ne.s32.totalorder %s38, %s54
    %p56 = scmp.eq.s32.totalorder %s16, 0
    %p57 = por %p55, %p56
    %s59 = sadd.s32 %s58, 1
    %p62 = scmp.eq.s32.totalorder %s10, 1
    %p63 = scmp.ne.s32.totalorder %s58, %s60
    %p64 = scmp.eq.s32.totalorder %s10, 0
    %p65 = por %p63, %p64
    %p66 = scmp.ne.s32.totalorder %s58, %s60
    %p67 = scmp.eq.s32.totalorder %s15, 1
    %p68 = por %p66, %p67
    %p69 = scmp.ne.s32.totalorder %s60, %s61
    %p70 = scmp.eq.s32.totalorder %s15, 0
    %p71 = por %p69, %p70
    %p72 = scmp.ne.s32.totalorder %s60, %s61
    %p73 = scmp.eq.s32.totalorder %s16, 1
    %p74 = por %p72, %p73
    %p76 = scmp.ne.s32.totalorder %s61, %s75
    %p77 = scmp.eq.s32.totalorder %s16, 0
    %p78 = por %p76, %p77
    %s80 = sadd.s32 %s79, 1
    %p83 = scmp.eq.s32.totalorder %s10, 1
    %p84 = scmp.ne.s32.totalorder %s79, %s81
    %p85 = scmp.eq.s32.totalorder %s10, 0
    %p86 = por %p84, %p85
    %p87 = scmp.ne.s32.totalorder %s79, %s81
    %p88 = scmp.eq.s32.totalorder %s15, 1
    %p89 = por %p87, %p88
    %p90 = scmp.ne.s32.totalorder %s81, %s82
    %p91 = scmp.eq.s32.totalorder %s15, 0
    %p92 = por %p90, %p91
    %p93 = scmp.ne.s32.totalorder %s81, %s82
    %p94 = scmp.eq.s32.totalorder %s16, 1
    %p95 = por %p93, %p94
    %p97 = scmp.ne.s32.totalorder %s82, %s96
    %p98 = scmp.eq.s32.totalorder %s16, 0
    %p99 = por %p97, %p98
    %s101 = sadd.s32 %s100, 1
    %p104 = scmp.eq.s32.totalorder %s10, 1
    %p105 = scmp.ne.s32.totalorder %s100, %s102
    %p106 = scmp.eq.s32.totalorder %s10, 0
    %p107 = por %p105, %p106
    %p108 = scmp.ne.s32.totalorder %s100, %s102
    %p109 = scmp.eq.s32.totalorder %s15, 1
    %p110 = por %p108, %p109
    %p111 = scmp.ne.s32.totalorder %s102, %s103
    %p112 = scmp.eq.s32.totalorder %s15, 0
    %p113 = por %p111, %p112
    %p114 = scmp.ne.s32.totalorder %s102, %s103
    %p115 = scmp.eq.s32.totalorder %s16, 1
    %p116 = por %p114, %p115
    %p118 = scmp.ne.s32.totalorder %s103, %s117
    %p119 = scmp.eq.s32.totalorder %s16, 0
    %p120 = por %p118, %p119
    %s121 = ssub.s32 %s17, %s29
    %s122 = ssub.s32 %s18, %s25
    %s123 = sor.u32 %s121, %s122
    %p124 = scmp.eq.s32.totalorder %s123, 0
    %s126 = sadd.s32 %s125, 1
    %s127 = scalar_select %p124, %s125, %s126
    %p130 = pneg %p124
    %p131 = scmp.eq.s32.totalorder %s10, 1
    %p132 = por %p130, %p131
    %p133 = scmp.ne.s32.totalorder %s125, %s128
    %p134 = scmp.eq.s32.totalorder %s10, 0
    %p135 = por %p133, %p134
    %p136 = scmp.ne.s32.totalorder %s125, %s128
    %p137 = scmp.eq.s32.totalorder %s15, 1
    %p138 = por %p136, %p137
    %p139 = scmp.ne.s32.totalorder %s128, %s129
    %p140 = scmp.eq.s32.totalorder %s15, 0
    %p141 = por %p139, %p140
    %p142 = scmp.ne.s32.totalorder %s128, %s129
    %p143 = scmp.eq.s32.totalorder %s16, 1
    %p144 = por %p142, %p143
    %p146 = scmp.ne.s32.totalorder %s129, %s145
    %p147 = scmp.eq.s32.totalorder %s16, 0
    %p148 = por %p146, %p147
    %p149 = scmp.le.s32.totalorder 1, %s10
    %p150 = scmp.lt.s32.totalorder %s10, 3
    %p151 = pnand %p149, %p150
    %p152 = pneg %p151
    // Predicated region
    $region9: #{waveunet_forward.17} parent=5 // pred_check
      _
    $region10: #{waveunet_forward.17} parent=5 // pred_check_branch
      %154 = sbr.rel (%p151) target = $region12
    $region11: #{waveunet_forward.17} parent=5 // pred_region
      %s155 = ssub.s32 %s10, 1
      // Predicated region
      $region13: #{waveunet_forward.17} parent=11 // pred_check
        %p156 = pneg %p71
      $region14: #{waveunet_forward.17} parent=11 // pred_check_branch
        %158 = sbr.rel (%p156) target = $region16
      $region15: #{waveunet_forward.17} parent=11 // pred_region
        _
      $region16: #{waveunet_forward.17} parent=11 // pred_fallthru
        _
      // Predicated region
      $region17: #{waveunet_forward.17} parent=11 // pred_check
        %p159 = pneg %p92
      $region18: #{waveunet_forward.17} parent=11 // pred_check_branch
        %161 = sbr.rel (%p159) target = $region20
      $region19: #{waveunet_forward.17} parent=11 // pred_region
        _
      $region20: #{waveunet_forward.17} parent=11 // pred_fallthru
        _
      // Predicated region
      $region21: #{waveunet_forward.17} parent=11 // pred_check
        %p162 = pneg %p113
      $region22: #{waveunet_forward.17} parent=11 // pred_check_branch
        %164 = sbr.rel (%p162) target = $region24
      $region23: #{waveunet_forward.17} parent=11 // pred_region
        _
      $region24: #{waveunet_forward.17} parent=11 // pred_fallthru
        _
    $region12: #{waveunet_forward.17} parent=5 // pred_fallthru
      _
    %p165 = scmp.lt.s32.totalorder %s10, 2
    // Predicated region
    $region25: #{waveunet_forward.17} parent=5 // pred_check
      %p166 = pneg %p165
    $region26: #{waveunet_forward.17} parent=5 // pred_check_branch
      %168 = sbr.rel (%p166) target = $region28
    $region27: #{waveunet_forward.17} parent=5 // pred_region
      // Predicated region
      $region29: #{waveunet_forward.17} parent=27 // pred_check
        %p169 = pneg %p44
      $region30: #{waveunet_forward.17} parent=27 // pred_check_branch
        %171 = sbr.rel (%p169) target = $region32
      $region31: #{waveunet_forward.17} parent=27 // pred_region
        %s172 = smul.u32 4, %s18
        %p173 = scmp.lt.s32.totalorder %s17, 1
        %s174 = scalar_select %p173, %s17, 1
        %p175 = scmp.lt.s32.totalorder %s172, 3
        %s176 = scalar_select %p175, %s172, 3
        %s177 = smul.addr %s176, 6
        %s178 = smul.addr %s174, 24
        %s179 = sadd.s32 %s177, %s178
        %s180 = smul.addr %s179, 4
        %s181 = scalar_lea.vmem %s0, %s180
        %s182 = smul.u32 4, %s18
      $region32: #{waveunet_forward.17} parent=27 // pred_fallthru
        _
    $region28: #{waveunet_forward.17} parent=5 // pred_fallthru
      _
    %p183 = scmp.le.s32.totalorder 1, %s10
    %p184 = scmp.lt.s32.totalorder %s10, 3
    %p185 = pnand %p183, %p184
    %p186 = pneg %p185
    // Predicated region
    $region33: #{waveunet_forward.17} parent=5 // pred_check
      _
    $region34: #{waveunet_forward.17} parent=5 // pred_check_branch
      %188 = sbr.rel (%p185) target = $region36
    $region35: #{waveunet_forward.17} parent=5 // pred_region
      %s189 = ssub.s32 %s10, 1
      %s190 = smul.u32 4, %s20
      %p191 = scmp.lt.s32.totalorder %s19, 1
      %s192 = scalar_select %p191, %s19, 1
      %p193 = scmp.lt.s32.totalorder %s190, 3
      %s194 = scalar_select %p193, %s190, 3
      %s195 = smul.addr %s194, 6
      %s196 = smul.addr %s192, 24
      %s197 = sadd.s32 %s195, %s196
      %s198 = smul.addr %s197, 4
      %s199 = scalar_lea.vmem %s0, %s198
      %p200 = pneg %p50
      %p201 = pneg %p47
      %p202 = pneg %p71
      %p203 = pneg %p68
      %p204 = pneg %p92
      %p205 = pneg %p89
      %p206 = pneg %p113
      %p207 = pneg %p110
      %p208 = pneg %p141
      %p209 = pneg %p138
      %s210 = smul.u32 4, %s20
      %p211 = scmp.lt.s32.totalorder %s19, 1
      %s212 = scalar_select %p211, %s19, 1
      %p213 = scmp.lt.s32.totalorder %s210, 3
      %s214 = scalar_select %p213, %s210, 3
      %s215 = smul.addr %s212, 4
      %s216 = sadd.s32 %s214, %s215
      %s217 = smul.addr %s216, 4
      %s218 = scalar_lea.vmem %s4, %s217
      %s219 = smul.u32 4, %s20
      %p220 = scmp.lt.s32.totalorder %s19, 1
      %s221 = scalar_select %p220, %s19, 1
      %p222 = scmp.lt.s32.totalorder %s219, 3
      %s223 = scalar_select %p222, %s219, 3
      %s224 = smul.addr %s223, 6
      %s225 = smul.addr %s221, 24
      %s226 = sadd.s32 %s224, %s225
      %s227 = smul.addr %s226, 4
      %s228 = scalar_lea.vmem %s0, %s227
      %s229 = smul.u32 4, %s20
      %s230 = smul.u32 4, %s20
      %p231 = scmp.lt.s32.totalorder %s19, 1
      %s232 = scalar_select %p231, %s19, 1
      %p233 = scmp.lt.s32.totalorder %s230, 3
      %s234 = scalar_select %p233, %s230, 3
      %s235 = smul.addr %s232, 4
      %s236 = sadd.s32 %s234, %s235
      %s237 = smul.addr %s236, 4
      %s238 = scalar_lea.vmem %s4, %s237
      %s239 = smul.u32 4, %s20
      %v241 = vld [vmem:[%s228] sm:$0xff]
      %v242 = vld [vmem:[%s228 + $0x8] sm:$0xff]
      %v243 = vld [vmem:[%s228 + $0x10] sm:$0xff]
      %v244 = vld [vmem:[%s228 + $0x18] sm:$0xff]
      %v245 = vld [vmem:[%s228 + $0x20] sm:$0xff]
      %v246 = vld [vmem:[%s228 + $0x28] sm:$0xff]
      %v247 = vld [vmem:[%s228 + $0x30] sm:$0xff]
      %v248 = vld [vmem:[%s228 + $0x38] sm:$0xff]
      %v249 = vld [vmem:[%s228 + $0x40] sm:$0xff]
      %v250 = vld [vmem:[%s228 + $0x48] sm:$0xff]
      %v251 = vld [vmem:[%s228 + $0x50] sm:$0xff]
      %v252 = vld [vmem:[%s228 + $0x58] sm:$0xff]
      %v253 = vld [vmem:[%s1] sm:$0xf]
      %v254 = vld [vmem:[%s1 + $0x4] sm:$0xf]
      %v255 = vld [vmem:[%s1 + $0x8] sm:$0xf]
      %v256 = vld [vmem:[%s1 + $0xc] sm:$0xf]
      %v257 = vld [vmem:[%s1 + $0x10] sm:$0xf]
      %v258 = vld [vmem:[%s1 + $0x14] sm:$0xf]
      %v259 = vld [vmem:[%s1 + $0x18] sm:$0xf]
      %v260 = vld [vmem:[%s1 + $0x1c] sm:$0xf]
      %v261 = vld [vmem:[%s1 + $0x20] sm:$0xf]
      %v262 = vld [vmem:[%s1 + $0x24] sm:$0xf]
      %v263 = vld [vmem:[%s1 + $0x28] sm:$0xf]
      %v264 = vld [vmem:[%s1 + $0x2c] sm:$0xf]
      %v265 = vld [vmem:[%s1 + $0x30] sm:$0xf]
      %v266 = vld [vmem:[%s1 + $0x34] sm:$0xf]
      %v267 = vld [vmem:[%s1 + $0x38] sm:$0xf]
      %v268 = vld [vmem:[%s1 + $0x3c] sm:$0xf]
      %v269 = vld [vmem:[%s1 + $0x40] sm:$0xf]
      %v270 = vld [vmem:[%s1 + $0x44] sm:$0xf]
      %v271 = vld [vmem:[%s1 + $0x48] sm:$0xf]
      %v272 = vld [vmem:[%s1 + $0x4c] sm:$0xf]
      %v273 = vld [vmem:[%s1 + $0x50] sm:$0xf]
      %v274 = vld [vmem:[%s1 + $0x54] sm:$0xf]
      %v275 = vld [vmem:[%s1 + $0x58] sm:$0xf]
      %v276 = vld [vmem:[%s1 + $0x5c] sm:$0xf]
      %v277 = vld [vmem:[%s1 + $0x60] sm:$0xf]
      %v278 = vld [vmem:[%s1 + $0x64] sm:$0xf]
      %v279 = vld [vmem:[%s1 + $0x68] sm:$0xf]
      %v280 = vld [vmem:[%s1 + $0x6c] sm:$0xf]
      %v281 = vld [vmem:[%s1 + $0x70] sm:$0xf]
      %v282 = vld [vmem:[%s1 + $0x74] sm:$0xf]
      %v283 = vld [vmem:[%s1 + $0x78] sm:$0xf]
      %v284 = vld [vmem:[%s1 + $0x7c] sm:$0xf]
      %v285 = vld [vmem:[%s1 + $0x80] sm:$0xf]
      %v286 = vld [vmem:[%s1 + $0x84] sm:$0xf]
      %v287 = vld [vmem:[%s1 + $0x88] sm:$0xf]
      %v288 = vld [vmem:[%s1 + $0x8c] sm:$0xf]
      %v289 = vld [vmem:[%s1 + $0x90] sm:$0xf]
      %v290 = vld [vmem:[%s1 + $0x94] sm:$0xf]
      %v291 = vld [vmem:[%s1 + $0x98] sm:$0xf]
      %v292 = vld [vmem:[%s1 + $0x9c] sm:$0xf]
      %v293 = vld [vmem:[%s1 + $0xa0] sm:$0xf]
      %v294 = vld [vmem:[%s1 + $0xa4] sm:$0xf]
      %v295 = vld [vmem:[%s1 + $0xa8] sm:$0xf]
      %v296 = vld [vmem:[%s1 + $0xac] sm:$0xf]
      %v297 = vld [vmem:[%s1 + $0xb0] sm:$0xf]
      %v298 = vld [vmem:[%s1 + $0xb4] sm:$0xf]
      %v299 = vld [vmem:[%s1 + $0xb8] sm:$0xf]
      %v300 = vld [vmem:[%s1 + $0xbc] sm:$0xf]
      %v301 = vld [vmem:[%s1 + $0xc0] sm:$0xf]
      %v302 = vld [vmem:[%s1 + $0xc4] sm:$0xf]
      %v303 = vld [vmem:[%s1 + $0xc8] sm:$0xf]
      %v304 = vld [vmem:[%s1 + $0xcc] sm:$0xf]
      %v305 = vld [vmem:[%s1 + $0xd0] sm:$0xf]
      %v306 = vld [vmem:[%s1 + $0xd4] sm:$0xf]
      %v307 = vld [vmem:[%s1 + $0xd8] sm:$0xf]
      %v308 = vld [vmem:[%s1 + $0xdc] sm:$0xf]
      %v309 = vld [vmem:[%s1 + $0xe0] sm:$0xf]
      %v310 = vld [vmem:[%s1 + $0xe4] sm:$0xf]
      %v311 = vld [vmem:[%s1 + $0xe8] sm:$0xf]
      %v312 = vld [vmem:[%s1 + $0xec] sm:$0xf]
      %v313 = vld [vmem:[%s1 + $0xf0] sm:$0xf]
      %v314 = vld [vmem:[%s1 + $0xf4] sm:$0xf]
      %v315 = vld [vmem:[%s1 + $0xf8] sm:$0xf]
      %v316 = vld [vmem:[%s1 + $0xfc] sm:$0xf]
      %v317 = vld [vmem:[%s1 + $0x100] sm:$0xf]
      %v318 = vld [vmem:[%s1 + $0x104] sm:$0xf]
      %v319 = vld [vmem:[%s1 + $0x108] sm:$0xf]
      %v320 = vld [vmem:[%s1 + $0x10c] sm:$0xf]
      %v321 = vld [vmem:[%s1 + $0x110] sm:$0xf]
      %v322 = vld [vmem:[%s1 + $0x114] sm:$0xf]
      %v323 = vld [vmem:[%s1 + $0x118] sm:$0xf]
      %v324 = vld [vmem:[%s1 + $0x11c] sm:$0xf]
      %v325 = vld [vmem:[%s1 + $0x120] sm:$0xf]
      %v326 = vld [vmem:[%s1 + $0x124] sm:$0xf]
      %v327 = vld [vmem:[%s1 + $0x128] sm:$0xf]
      %v328 = vld [vmem:[%s1 + $0x12c] sm:$0xf]
      %v329 = vld [vmem:[%s1 + $0x130] sm:$0xf]
      %v330 = vld [vmem:[%s1 + $0x134] sm:$0xf]
      %v331 = vld [vmem:[%s1 + $0x138] sm:$0xf]
      %v332 = vld [vmem:[%s1 + $0x13c] sm:$0xf]
      %v333 = vld [vmem:[%s1 + $0x140] sm:$0xf]
      %v334 = vld [vmem:[%s1 + $0x144] sm:$0xf]
      %v335 = vld [vmem:[%s1 + $0x148] sm:$0xf]
      %v336 = vld [vmem:[%s1 + $0x14c] sm:$0xf]
      %v337 = vld [vmem:[%s1 + $0x150] sm:$0xf]
      %v338 = vld [vmem:[%s1 + $0x154] sm:$0xf]
      %v339 = vld [vmem:[%s1 + $0x158] sm:$0xf]
      %v340 = vld [vmem:[%s1 + $0x15c] sm:$0xf]
      %v341 = vld [vmem:[%s1 + $0x160] sm:$0xf]
      %v342 = vld [vmem:[%s1 + $0x164] sm:$0xf]
      %v355 = vunpack.c.l.b16 %v241
      %v356 = vunpack.c.h.b16 %v241
      %v357 = vunpack.c.l.b16 %v242
      %v358 = vunpack.c.h.b16 %v242
      %v359 = vunpack.c.l.b16 %v243
      %v360 = vunpack.c.h.b16 %v243
      %v361 = vunpack.c.l.b16 %v244
      %v362 = vunpack.c.h.b16 %v244
      %v363 = vunpack.c.l.b16 %v245
      %v364 = vunpack.c.h.b16 %v245
      %v365 = vunpack.c.l.b16 %v246
      %v366 = vunpack.c.h.b16 %v246
      %v367 = vunpack.c.l.b16 %v247
      %v368 = vunpack.c.h.b16 %v247
      %v369 = vunpack.c.l.b16 %v248
      %v370 = vunpack.c.h.b16 %v248
      %v371 = vunpack.c.l.b16 %v249
      %v372 = vunpack.c.h.b16 %v249
      %v373 = vunpack.c.l.b16 %v250
      %v374 = vunpack.c.h.b16 %v250
      %v375 = vunpack.c.l.b16 %v251
      %v376 = vunpack.c.h.b16 %v251
      %v377 = vunpack.c.l.b16 %v252
      %v378 = vunpack.c.h.b16 %v252
      %v379 = vpack.c.b16 %v361, %v355
      %v380 = vpack.c.b16 %v362, %v356
      %v381 = vpack.c.b16 %v363, %v357
      %v382 = vpack.c.b16 %v364, %v358
      %v383 = vpack.c.b16 %v365, %v359
      %v384 = vpack.c.b16 %v366, %v360
      %v385 = vpack.c.b16 %v373, %v367
      %v386 = vpack.c.b16 %v374, %v368
      %v387 = vpack.c.b16 %v375, %v369
      %v388 = vpack.c.b16 %v376, %v370
      %v389 = vpack.c.b16 %v377, %v371
      %v390 = vpack.c.b16 %v378, %v372
      %v491 = vunpack.c.l.b16 %v253
      %v492 = vunpack.c.l.b16 %v254
      %v493 = vunpack.c.l.b16 %v255
      %v494 = vunpack.c.l.b16 %v256
      %v495 = vunpack.c.l.b16 %v257
      %v496 = vunpack.c.l.b16 %v258
      %v497 = vunpack.c.l.b16 %v259
      %v498 = vunpack.c.l.b16 %v260
      %v499 = vunpack.c.l.b16 %v261
      %v500 = vunpack.c.l.b16 %v262
      %v501 = vunpack.c.l.b16 %v263
      %v502 = vunpack.c.l.b16 %v264
      %v503 = vunpack.c.l.b16 %v265
      %v504 = vunpack.c.l.b16 %v266
      %v505 = vunpack.c.l.b16 %v267
      %v506 = vunpack.c.l.b16 %v268
      %v507 = vunpack.c.l.b16 %v269
      %v508 = vunpack.c.l.b16 %v270
      %v509 = vunpack.c.l.b16 %v271
      %v510 = vunpack.c.l.b16 %v272
      %v511 = vunpack.c.l.b16 %v273
      %v512 = vunpack.c.l.b16 %v274
      %v513 = vunpack.c.l.b16 %v275
      %v514 = vunpack.c.l.b16 %v276
      %v515 = vunpack.c.l.b16 %v277
      %v516 = vunpack.c.l.b16 %v278
      %v517 = vunpack.c.l.b16 %v279
      %v518 = vunpack.c.l.b16 %v280
      %v519 = vunpack.c.l.b16 %v281
      %v520 = vunpack.c.l.b16 %v282
      %v521 = vunpack.c.l.b16 %v283
      %v522 = vunpack.c.l.b16 %v284
      %v523 = vunpack.c.l.b16 %v285
      %v524 = vunpack.c.l.b16 %v286
      %v525 = vunpack.c.l.b16 %v287
      %v526 = vunpack.c.l.b16 %v288
      %v527 = vunpack.c.l.b16 %v289
      %v528 = vunpack.c.l.b16 %v290
      %v529 = vunpack.c.l.b16 %v291
      %v530 = vunpack.c.l.b16 %v292
      %v531 = vunpack.c.l.b16 %v293
      %v532 = vunpack.c.l.b16 %v294
      %v533 = vunpack.c.l.b16 %v295
      %v534 = vunpack.c.l.b16 %v296
      %v535 = vunpack.c.l.b16 %v297
      %v536 = vunpack.c.l.b16 %v298
      %v537 = vunpack.c.l.b16 %v299
      %v538 = vunpack.c.l.b16 %v300
      %v539 = vunpack.c.l.b16 %v301
      %v540 = vunpack.c.l.b16 %v302
      %v541 = vunpack.c.l.b16 %v303
      %v542 = vunpack.c.l.b16 %v304
      %v543 = vunpack.c.l.b16 %v305
      %v544 = vunpack.c.l.b16 %v306
      %v545 = vunpack.c.l.b16 %v307
      %v546 = vunpack.c.l.b16 %v308
      %v547 = vunpack.c.l.b16 %v309
      %v548 = vunpack.c.l.b16 %v310
      %v549 = vunpack.c.l.b16 %v311
      %v550 = vunpack.c.l.b16 %v312
      %v551 = vunpack.c.l.b16 %v313
      %v552 = vunpack.c.l.b16 %v314
      %v553 = vunpack.c.l.b16 %v315
      %v554 = vunpack.c.l.b16 %v316
      %v555 = vunpack.c.l.b16 %v317
      %v556 = vunpack.c.l.b16 %v318
      %v557 = vunpack.c.l.b16 %v319
      %v558 = vunpack.c.l.b16 %v320
      %v559 = vunpack.c.l.b16 %v321
      %v560 = vunpack.c.l.b16 %v322
      %v561 = vunpack.c.l.b16 %v323
      %v562 = vunpack.c.l.b16 %v324
      %v563 = vunpack.c.l.b16 %v325
      %v564 = vunpack.c.l.b16 %v326
      %v565 = vunpack.c.l.b16 %v327
      %v566 = vunpack.c.l.b16 %v328
      %v567 = vunpack.c.l.b16 %v329
      %v568 = vunpack.c.l.b16 %v330
      %v569 = vunpack.c.l.b16 %v331
      %v570 = vunpack.c.l.b16 %v332
      %v571 = vunpack.c.l.b16 %v333
      %v572 = vunpack.c.l.b16 %v334
      %v573 = vunpack.c.l.b16 %v335
      %v574 = vunpack.c.l.b16 %v336
      %v575 = vunpack.c.l.b16 %v337
      %v576 = vunpack.c.l.b16 %v338
      %v577 = vunpack.c.l.b16 %v339
      %v578 = vunpack.c.l.b16 %v340
      %v579 = vunpack.c.l.b16 %v341
      %v580 = vunpack.c.l.b16 %v342
      %v581 = vpack.c.b16 %v492, %v491
      %v582 = vpack.c.b16 %v494, %v493
      %v583 = vpack.c.b16 %v496, %v495
      %v584 = vpack.c.b16 %v498, %v497
      %v585 = vpack.c.b16 %v500, %v499
      %v586 = vpack.c.b16 %v502, %v501
      %v587 = vpack.c.b16 %v504, %v503
      %v588 = vpack.c.b16 %v506, %v505
      %v589 = vpack.c.b16 %v508, %v507
      %v590 = vpack.c.b16 %v510, %v509
      %v591 = vpack.c.b16 %v512, %v511
      %v592 = vpack.c.b16 %v514, %v513
      %v593 = vpack.c.b16 %v516, %v515
      %v594 = vpack.c.b16 %v518, %v517
      %v595 = vpack.c.b16 %v520, %v519
      %v596 = vpack.c.b16 %v522, %v521
      %v597 = vpack.c.b16 %v524, %v523
      %v598 = vpack.c.b16 %v526, %v525
      %v599 = vpack.c.b16 %v528, %v527
      %v600 = vpack.c.b16 %v530, %v529
      %v601 = vpack.c.b16 %v532, %v531
      %v602 = vpack.c.b16 %v534, %v533
      %v603 = vpack.c.b16 %v536, %v535
      %v604 = vpack.c.b16 %v538, %v537
      %v605 = vpack.c.b16 %v540, %v539
      %v606 = vpack.c.b16 %v542, %v541
      %v607 = vpack.c.b16 %v544, %v543
      %v608 = vpack.c.b16 %v546, %v545
      %v609 = vpack.c.b16 %v548, %v547
      %v610 = vpack.c.b16 %v550, %v549
      %v611 = vpack.c.b16 %v552, %v551
      %v612 = vpack.c.b16 %v554, %v553
      %v613 = vpack.c.b16 %v556, %v555
      %v614 = vpack.c.b16 %v558, %v557
      %v615 = vpack.c.b16 %v560, %v559
      %v616 = vpack.c.b16 %v562, %v561
      %v617 = vpack.c.b16 %v564, %v563
      %v618 = vpack.c.b16 %v566, %v565
      %v619 = vpack.c.b16 %v568, %v567
      %v620 = vpack.c.b16 %v570, %v569
      %v621 = vpack.c.b16 %v572, %v571
      %v622 = vpack.c.b16 %v574, %v573
      %v623 = vpack.c.b16 %v576, %v575
      %v624 = vpack.c.b16 %v578, %v577
      %v625 = vpack.c.b16 %v580, %v579
      %vm671 = vcmask 654336
      %v673 = vsel %vm671, %v384, 0
      %v676 = vsel %vm671, %v390, 0
      %678 = vmatprep.subr.bf16.mxu0 0
      %679 = vmatpush1.bf16.msra.mxu0 %v581
      %680 = vmatprep.subr.bf16.mxu0 0
      %681 = vmatpush1.bf16.msra.mxu0 %v582
      %682 = vmatprep.subr.bf16.mxu0 0
      %683 = vmatpush1.bf16.msra.mxu0 %v583
      %684 = vmatprep.subr.bf16.mxu0 0
      %685 = vmatpush1.bf16.msra.mxu0 %v584
      %686 = vmatprep.subr.bf16.mxu0 0
      %687 = vmatpush1.bf16.msra.mxu0 %v585
      %688 = vmatprep.subr.bf16.mxu0 0
      %689 = vmatpush1.bf16.msra.mxu0 %v586
      %690 = vmatprep.subr.bf16.mxu0 0
      %691 = vmatpush1.bf16.msra.mxu0 %v587
      %692 = vmatprep.subr.bf16.mxu0 0
      %693 = vmatpush1.bf16.msra.mxu0 %v588
      %694 = vmatprep.subr.bf16.mxu0 0
      %695 = vmatpush1.bf16.msra.mxu0 %v589
      %696 = vmatprep.subr.bf16.mxu0 0
      %697 = vmatpush1.bf16.msra.mxu0 %v590
      %698 = vmatprep.subr.bf16.mxu0 0
      %699 = vmatpush1.bf16.msra.mxu0 %v591
      %700 = vmatprep.subr.bf16.mxu0 0
      %701 = vmatpush1.bf16.msra.mxu0 %v592
      %702 = vmatprep.subr.bf16.mxu0 0
      %703 = vmatpush1.bf16.msra.mxu0 %v593
      %704 = vmatprep.subr.bf16.mxu0 0
      %705 = vmatpush1.bf16.msra.mxu0 %v594
      %706 = vmatprep.subr.bf16.mxu0 0
      %707 = vmatpush1.bf16.msra.mxu0 %v595
      %708 = vmatprep.subr.bf16.mxu0 0
      %709 = vmatpush1.bf16.msra.mxu0 %v596
      %710 = vmatprep.mubr.bf16.mxu0 %v380
      %711 = vmatmul.mubr.bf16.gmra.mrb[0].mxu0 %v379
      %v712 = vpop.f32.mrb[0].mxu0
      %v713 = vadd.f32 0.0, %v712
      %v714 = vpop.f32.mrb[0].mxu0
      %v715 = vpop.f32.mrb[0].mxu0
      %v716 = vadd.f32 0.0, %v715
      %v717 = vpop.f32.mrb[0].mxu0
      %718 = vmatprep.mubr.bf16.mxu0 %v386
      %719 = vmatmul.mubr.bf16.gmra.mrb[0].mxu0 %v385
      %v720 = vpop.f32.mrb[0].mxu0
      %v721 = vadd.f32 0.0, %v720
      %v722 = vpop.f32.mrb[0].mxu0
      %v723 = vpop.f32.mrb[0].mxu0
      %v724 = vadd.f32 0.0, %v723
      %v725 = vpop.f32.mrb[0].mxu0
      %726 = vdwg.mxu0
      %727 = vmatprep.subr.bf16.mxu0 0
      %728 = vmatpush1.bf16.msra.mxu0 %v597
      %729 = vmatprep.subr.bf16.mxu0 0
      %730 = vmatpush1.bf16.msra.mxu0 %v598
      %731 = vmatprep.subr.bf16.mxu0 0
      %732 = vmatpush1.bf16.msra.mxu0 %v599
      %733 = vmatprep.subr.bf16.mxu0 0
      %734 = vmatpush1.bf16.msra.mxu0 %v600
      %735 = vmatprep.subr.bf16.mxu0 0
      %736 = vmatpush1.bf16.msra.mxu0 %v601
      %737 = vmatprep.subr.bf16.mxu0 0
      %738 = vmatpush1.bf16.msra.mxu0 %v602
      %739 = vmatprep.subr.bf16.mxu0 0
      %740 = vmatpush1.bf16.msra.mxu0 %v603
      %741 = vmatprep.subr.bf16.mxu0 0
      %742 = vmatpush1.bf16.msra.mxu0 %v604
      %743 = vmatprep.subr.bf16.mxu0 0
      %744 = vmatpush1.bf16.msra.mxu0 %v605
      %745 = vmatprep.subr.bf16.mxu0 0
      %746 = vmatpush1.bf16.msra.mxu0 %v606
      %747 = vmatprep.subr.bf16.mxu0 0
      %748 = vmatpush1.bf16.msra.mxu0 %v607
      %749 = vmatprep.subr.bf16.mxu0 0
      %750 = vmatpush1.bf16.msra.mxu0 %v608
      %751 = vmatprep.subr.bf16.mxu0 0
      %752 = vmatpush1.bf16.msra.mxu0 %v609
      %753 = vmatprep.subr.bf16.mxu0 0
      %754 = vmatpush1.bf16.msra.mxu0 %v610
      %755 = vmatprep.subr.bf16.mxu0 0
      %756 = vmatpush1.bf16.msra.mxu0 %v611
      %757 = vmatprep.subr.bf16.mxu0 0
      %758 = vmatpush1.bf16.msra.mxu0 %v612
      %759 = vmatprep.mubr.bf16.mxu0 %v382
      %760 = vmatmul.mubr.bf16.gmra.mrb[0].mxu0 %v381
      %v761 = vpop.f32.mrb[0].mxu0
      %v762 = vadd.f32 %v713, %v761
      %v763 = vpop.f32.mrb[0].mxu0
      %v764 = vpop.f32.mrb[0].mxu0
      %v765 = vadd.f32 %v716, %v764
      %v766 = vpop.f32.mrb[0].mxu0
      %767 = vmatprep.mubr.bf16.mxu0 %v388
      %768 = vmatmul.mubr.bf16.gmra.mrb[0].mxu0 %v387
      %v769 = vpop.f32.mrb[0].mxu0
      %v770 = vadd.f32 %v721, %v769
      %v771 = vpop.f32.mrb[0].mxu0
      %v772 = vpop.f32.mrb[0].mxu0
      %v773 = vadd.f32 %v724, %v772
      %v774 = vpop.f32.mrb[0].mxu0
      %775 = vdwg.mxu0
      %776 = vmatprep.subr.bf16.mxu0 0
      %777 = vmatpush1.bf16.msra.mxu0 %v613
      %778 = vmatprep.subr.bf16.mxu0 0
      %779 = vmatpush1.bf16.msra.mxu0 %v614
      %780 = vmatprep.subr.bf16.mxu0 0
      %781 = vmatpush1.bf16.msra.mxu0 %v615
      %782 = vmatprep.subr.bf16.mxu0 0
      %783 = vmatpush1.bf16.msra.mxu0 %v616
      %784 = vmatprep.subr.bf16.mxu0 0
      %785 = vmatpush1.bf16.msra.mxu0 %v617
      %786 = vmatprep.subr.bf16.mxu0 0
      %787 = vmatpush1.bf16.msra.mxu0 %v618
      %788 = vmatprep.subr.bf16.mxu0 0
      %789 = vmatpush1.bf16.msra.mxu0 %v619
      %790 = vmatprep.subr.bf16.mxu0 0
      %791 = vmatpush1.bf16.msra.mxu0 %v620
      %792 = vmatprep.subr.bf16.mxu0 0
      %793 = vmatpush1.bf16.msra.mxu0 %v621
      %794 = vmatprep.subr.bf16.mxu0 0
      %795 = vmatpush1.bf16.msra.mxu0 %v622
      %796 = vmatprep.subr.bf16.mxu0 0
      %797 = vmatpush1.bf16.msra.mxu0 %v623
      %798 = vmatprep.subr.bf16.mxu0 0
      %799 = vmatpush1.bf16.msra.mxu0 %v624
      %800 = vmatprep.subr.bf16.mxu0 0
      %801 = vmatpush1.bf16.msra.mxu0 %v625
      %802 = vmatprep.subr.bf16.mxu0 0
      %803 = vmatpush1.bf16.msra.mxu0 0
      %804 = vmatprep.subr.bf16.mxu0 0
      %805 = vmatpush1.bf16.msra.mxu0 0
      %806 = vmatprep.subr.bf16.mxu0 0
      %807 = vmatpush1.bf16.msra.mxu0 0
      %808 = vmatprep.mubr.bf16.mxu0 %v673
      %809 = vmatmul.mubr.bf16.gmra.mrb[0].mxu0 %v383
      %v810 = vpop.f32.mrb[0].mxu0
      %v811 = vadd.f32 %v762, %v810
      %v812 = vpop.f32.mrb[0].mxu0
      %v813 = vpop.f32.mrb[0].mxu0
      %v814 = vadd.f32 %v765, %v813
      %v815 = vpop.f32.mrb[0].mxu0
      %816 = vmatprep.mubr.bf16.mxu0 %v676
      %817 = vmatmul.mubr.bf16.gmra.mrb[0].mxu0 %v389
      %v818 = vpop.f32.mrb[0].mxu0
      %v819 = vadd.f32 %v770, %v818
      %v820 = vpop.f32.mrb[0].mxu0
      %v821 = vpop.f32.mrb[0].mxu0
      %v822 = vadd.f32 %v773, %v821
      %v823 = vpop.f32.mrb[0].mxu0
      %824 = vdwg.mxu0
      %v825 = vld [vmem:[%s2] sm:$0x1]
      %v827 = vlaneseq
      %v828 = vshrl.u32 %v827, 7
      %v829 = vsub.s32 0, %v828
      %v830 = vrot.slane %v825, %v829
      %v832 = vmul.f32 %v811, %v830
      %v833 = vmul.f32 %v814, %v830
      %v834 = vmul.f32 %v819, %v830
      %v835 = vmul.f32 %v822, %v830
      %v836 = vld [vmem:[%s3] sm:$0x1]
      %v838 = vlaneseq
      %v839 = vshrl.u32 %v838, 7
      %v840 = vsub.s32 0, %v839
      %v841 = vrot.slane %v836, %v840
      %v843 = vadd.f32 %v832, %v841
      %v844 = vadd.f32 %v833, %v841
      %v845 = vadd.f32 %v834, %v841
      %v846 = vadd.f32 %v835, %v841
      %vm847 = vcmp.ge.f32.partialorder %v843, 0.0
      %vm848 = vcmp.ge.f32.partialorder %v844, 0.0
      %vm849 = vcmp.ge.f32.partialorder %v845, 0.0
      %vm850 = vcmp.ge.f32.partialorder %v846, 0.0
      %v851 = vmul.f32 %v843, 0.2
      %v852 = vmul.f32 %v844, 0.2
      %v853 = vmul.f32 %v845, 0.2
      %v854 = vmul.f32 %v846, 0.2
      %v855 = vsel %vm847, %v843, %v851
      %v856 = vsel %vm848, %v844, %v852
      %v857 = vsel %vm849, %v845, %v853
      %v858 = vsel %vm850, %v846, %v854
      %v859 = vpack.c.bf16 %v856, %v855
      %v860 = vpack.c.bf16 %v858, %v857
      %v863 = vunpack.c.l.b16 %v859
      %v864 = vunpack.c.h.b16 %v859
      %v865 = vunpack.c.l.b16 %v860
      %v866 = vunpack.c.h.b16 %v860
      %v867 = vpack.c.b16 %v863, %v863
      %v868 = vpack.c.b16 %v864, %v864
      %v869 = vpack.c.b16 %v865, %v865
      %v870 = vpack.c.b16 %v866, %v866
      %vm875 = vcmask 257024
      %876 = vst.msk [vmem:[%s238] sm:$0xf] %vm875, %v867
      %877 = vst.msk [vmem:[%s238 + $0x4] sm:$0xf] %vm875, %v868
      %878 = vst.msk [vmem:[%s238 + $0x8] sm:$0xf] %vm875, %v869
      %879 = vst.msk [vmem:[%s238 + $0xc] sm:$0xf] %vm875, %v870
      %s880 = smul.u32 4, %s20
      %p881 = scmp.lt.s32.totalorder %s19, 1
      %s882 = scalar_select %p881, %s19, 1
      %p883 = scmp.lt.s32.totalorder %s880, 3
      %s884 = scalar_select %p883, %s880, 3
      %s885 = smul.addr %s882, 4
      %s886 = sadd.s32 %s884, %s885
      %s887 = smul.addr %s886, 4
      %s888 = scalar_lea.vmem %s4, %s887
      // Predicated region
      $region37: #{waveunet_forward.17} parent=35 // pred_check
        %p889 = pneg %p138
      $region38: #{waveunet_forward.17} parent=35 // pred_check_branch
        %891 = sbr.rel (%p889) target = $region40
      $region39: #{waveunet_forward.17} parent=35 // pred_region
        %s892 = smul.u32 4, %s20
      $region40: #{waveunet_forward.17} parent=35 // pred_fallthru
        _
    $region36: #{waveunet_forward.17} parent=5 // pred_fallthru
      _
    %p893 = scmp.le.s32.totalorder 2, %s10
    // Predicated region
    $region41: #{waveunet_forward.17} parent=5 // pred_check
      %p894 = pneg %p893
    $region42: #{waveunet_forward.17} parent=5 // pred_check_branch
      %896 = sbr.rel (%p894) target = $region44
    $region43: #{waveunet_forward.17} parent=5 // pred_region
      %s897 = ssub.s32 %s10, 2
      // Predicated region
      $region45: #{waveunet_forward.17} parent=43 // pred_check
        %p898 = pneg %p144
      $region46: #{waveunet_forward.17} parent=43 // pred_check_branch
        %900 = sbr.rel (%p898) target = $region48
      $region47: #{waveunet_forward.17} parent=43 // pred_region
        %s901 = smul.u32 4, %s22
        %p902 = scmp.lt.s32.totalorder %s21, 1
        %s903 = scalar_select %p902, %s21, 1
        %p904 = scmp.lt.s32.totalorder %s901, 3
        %s905 = scalar_select %p904, %s901, 3
        %s906 = smul.addr %s903, 4
        %s907 = sadd.s32 %s905, %s906
        %s908 = smul.addr %s907, 4
        %s909 = scalar_lea.vmem %s4, %s908
      $region48: #{waveunet_forward.17} parent=43 // pred_fallthru
        _
    $region44: #{waveunet_forward.17} parent=5 // pred_fallthru
      _
  $region6: #{waveunet_forward.17} parent=0 // loop_footer
    %s14 = sadd.s32 1, %s10
  $region7: #{waveunet_forward.17} parent=0 // loop_footer_branch
    %9 = sbr.rel target = $region3
  $region8: #{waveunet_forward.17} parent=0 // loop_exit
    _

// kernel: waveunet_forward.19
$region0: #{waveunet_forward.19}
  #allocation0 [shape = 'u32[]', space=smem, size = 0x4, offset = 0x4, fixed_abs, tag = 'smem constant byte address 0x4 - core index']
  #allocation1 [shape = 'u32[144,128]{1,0:T(1,128)}', space=vmem, size = 0x12000, scoped, tag = 'internal scratch']
  #allocation2 [shape = 'f32[1,1]{1,0:T(1,128)S(1)}', space=vmem, size = 0x200, scoped, tag = 'scoped memory for waveunet_forward.19']
  %s0 = inlined_call_operand.vmem [shape: bf16[2,17,64], index: 0, kind: input, shape index: {}]
  %s1 = inlined_call_operand.vmem [shape: bf16[1,17], index: 1, kind: input, shape index: {}]
  %s2 = inlined_call_operand.<no memory space> [shape: f32[1,1], index: 2, kind: input, shape index: {}]
  %s3 = inlined_call_operand.hbm [shape: f32[2,1,64], index: 3, kind: output, shape index: {}]
  %s4 = sld [smem:[#allocation0]]
  $region45: #{waveunet_forward.19} parent=0
    _
  %s6 = ssub.s32 1, %s4
  %s7 = scalar_select 0, %s6, %s4
  %v8 = vstv %s2
  %9 = vst [vmem:[#allocation2] sm:$0x1] %v8
  $region1: #{waveunet_forward.19} parent=0
    #allocation3 [shape = 'u8[1024]{0}', space=vmem, size = 0x400, scoped, tag = 'output window, operand 0']
    #allocation4 [shape = 's32[2]{0}', space=sflag, size = 0x8, scoped, tag = 'scoped memory for waveunet_forward.19']
    %10 = vsyncpa [#allocation4], 0
    %s11 = scalar_lea.sflag [#allocation4], 1
    %12 = vsyncpa %s11, 0
    loop: start=0, step=1, limit=4
    $region2: #{waveunet_forward.19} parent=1 // loop_pre_header
      _
    $region3: #{waveunet_forward.19} parent=1 // loop_header
      %s14 = sphi 0, %s18
      %p15 = scmp.ge.s32.totalorder %s14, 4
      %s21 = sphi 0, %s33
      %s22 = sphi 0, %s29
      %s23 = sphi 0, %s21
      %s24 = sphi 0, %s22
      %s25 = sphi 0, %s23
      %s26 = sphi 0, %s24
      %s38 = sphi 0, %s40
      %s41 = sphi 0, %s38
      %s42 = sphi 0, %s41
      %s58 = sphi 0, %s42
      %s62 = sphi 0, %s62
      %s64 = sphi 0, %s62
      %s65 = sphi 0, %s64
      %s79 = sphi 0, %s65
      %s83 = sphi 0, %s83
      %s85 = sphi 0, %s83
      %s86 = sphi 0, %s85
      %s100 = sphi 0, %s86
      %s108 = sphi 0, %s110
      %s111 = sphi 0, %s108
      %s112 = sphi 0, %s111
      %s128 = sphi 0, %s112
    $region4: #{waveunet_forward.19} parent=1 // loop_header_branch
      %17 = sbr.rel (%p15) target = $region8
    $region5: #{waveunet_forward.19} parent=1 // loop_body
      %s19 = ssub.s32 %s14, 1
      %s20 = ssub.s32 %s14, 2
      %s27 = sadd.s32 1, %s22
      %p28 = scmp.ge.s32.totalorder %s27, 1
      %s29 = scalar_select %p28, 0, %s27
      %s30 = sadd.s32 1, %s21
      %s31 = scalar_select %p28, %s30, %s21
      %p32 = scmp.ge.s32.totalorder %s31, 2
      %s33 = scalar_select %p32, 0, %s31
      %s34 = ssub.s32 %s21, %s33
      %s35 = ssub.s32 %s22, %s29
      %s36 = sor.u32 %s34, %s35
      %p37 = scmp.eq.s32.totalorder %s36, 0
      %s39 = sadd.s32 %s38, 1
      %s40 = scalar_select %p37, %s38, %s39
      %p43 = pneg %p37
      %p44 = scmp.eq.s32.totalorder %s14, 1
      %p45 = por %p43, %p44
      %p46 = scmp.ne.s32.totalorder %s38, %s41
      %p47 = scmp.eq.s32.totalorder %s14, 0
      %p48 = por %p46, %p47
      %p49 = scmp.ne.s32.totalorder %s38, %s41
      %p50 = scmp.eq.s32.totalorder %s19, 1
      %p51 = por %p49, %p50
      %p52 = scmp.ne.s32.totalorder %s41, %s42
      %p53 = scmp.eq.s32.totalorder %s19, 0
      %p54 = por %p52, %p53
      %p55 = scmp.ne.s32.totalorder %s41, %s42
      %p56 = scmp.eq.s32.totalorder %s20, 1
      %p57 = por %p55, %p56
      %p59 = scmp.ne.s32.totalorder %s42, %s58
      %p60 = scmp.eq.s32.totalorder %s20, 0
      %p61 = por %p59, %p60
      %s63 = sadd.s32 %s62, 1
      %p66 = scmp.eq.s32.totalorder %s14, 1
      %p67 = scmp.ne.s32.totalorder %s62, %s64
      %p68 = scmp.eq.s32.totalorder %s14, 0
      %p69 = por %p67, %p68
      %p70 = scmp.ne.s32.totalorder %s62, %s64
      %p71 = scmp.eq.s32.totalorder %s19, 1
      %p72 = por %p70, %p71
      %p73 = scmp.ne.s32.totalorder %s64, %s65
      %p74 = scmp.eq.s32.totalorder %s19, 0
      %p75 = por %p73, %p74
      %p76 = scmp.ne.s32.totalorder %s64, %s65
      %p77 = scmp.eq.s32.totalorder %s20, 1
      %p78 = por %p76, %p77
      %p80 = scmp.ne.s32.totalorder %s65, %s79
      %p81 = scmp.eq.s32.totalorder %s20, 0
      %p82 = por %p80, %p81
      %s84 = sadd.s32 %s83, 1
      %p87 = scmp.eq.s32.totalorder %s14, 1
      %p88 = scmp.ne.s32.totalorder %s83, %s85
      %p89 = scmp.eq.s32.totalorder %s14, 0
      %p90 = por %p88, %p89
      %p91 = scmp.ne.s32.totalorder %s83, %s85
      %p92 = scmp.eq.s32.totalorder %s19, 1
      %p93 = por %p91, %p92
      %p94 = scmp.ne.s32.totalorder %s85, %s86
      %p95 = scmp.eq.s32.totalorder %s19, 0
      %p96 = por %p94, %p95
      %p97 = scmp.ne.s32.totalorder %s85, %s86
      %p98 = scmp.eq.s32.totalorder %s20, 1
      %p99 = por %p97, %p98
      %p101 = scmp.ne.s32.totalorder %s86, %s100
      %p102 = scmp.eq.s32.totalorder %s20, 0
      %p103 = por %p101, %p102
      %s104 = ssub.s32 %s21, %s33
      %s105 = ssub.s32 %s22, %s29
      %s106 = sor.u32 %s104, %s105
      %p107 = scmp.eq.s32.totalorder %s106, 0
      %s109 = sadd.s32 %s108, 1
      %s110 = scalar_select %p107, %s108, %s109
      %p113 = pneg %p107
      %p114 = scmp.eq.s32.totalorder %s14, 1
      %p115 = por %p113, %p114
      %p116 = scmp.ne.s32.totalorder %s108, %s111
      %p117 = scmp.eq.s32.totalorder %s14, 0
      %p118 = por %p116, %p117
      %p119 = scmp.ne.s32.totalorder %s108, %s111
      %p120 = scmp.eq.s32.totalorder %s19, 1
      %p121 = por %p119, %p120
      %p122 = scmp.ne.s32.totalorder %s111, %s112
      %p123 = scmp.eq.s32.totalorder %s19, 0
      %p124 = por %p122, %p123
      %p125 = scmp.ne.s32.totalorder %s111, %s112
      %p126 = scmp.eq.s32.totalorder %s20, 1
      %p127 = por %p125, %p126
      %p129 = scmp.ne.s32.totalorder %s112, %s128
      %p130 = scmp.eq.s32.totalorder %s20, 0
      %p131 = por %p129, %p130
      %p132 = scmp.le.s32.totalorder 1, %s14
      %p133 = scmp.lt.s32.totalorder %s14, 3
      %p134 = pnand %p132, %p133
      %p135 = pneg %p134
      // Predicated region
      $region9: #{waveunet_forward.19} parent=5 // pred_check
        _
      $region10: #{waveunet_forward.19} parent=5 // pred_check_branch
        %137 = sbr.rel (%p134) target = $region12
      $region11: #{waveunet_forward.19} parent=5 // pred_region
        %s138 = ssub.s32 %s14, 1
        // Predicated region
        $region13: #{waveunet_forward.19} parent=11 // pred_check
          %p139 = pneg %p75
        $region14: #{waveunet_forward.19} parent=11 // pred_check_branch
          %141 = sbr.rel (%p139) target = $region16
        $region15: #{waveunet_forward.19} parent=11 // pred_region
          _
        $region16: #{waveunet_forward.19} parent=11 // pred_fallthru
          _
        // Predicated region
        $region17: #{waveunet_forward.19} parent=11 // pred_check
          %p142 = pneg %p96
        $region18: #{waveunet_forward.19} parent=11 // pred_check_branch
          %144 = sbr.rel (%p142) target = $region20
        $region19: #{waveunet_forward.19} parent=11 // pred_region
          _
        $region20: #{waveunet_forward.19} parent=11 // pred_fallthru
          _
      $region12: #{waveunet_forward.19} parent=5 // pred_fallthru
        _
      %p145 = scmp.lt.s32.totalorder %s14, 2
      // Predicated region
      $region21: #{waveunet_forward.19} parent=5 // pred_check
        %p146 = pneg %p145
      $region22: #{waveunet_forward.19} parent=5 // pred_check_branch
        %148 = sbr.rel (%p146) target = $region24
      $region23: #{waveunet_forward.19} parent=5 // pred_region
        // Predicated region
        $region25: #{waveunet_forward.19} parent=23 // pred_check
          %p149 = pneg %p48
        $region26: #{waveunet_forward.19} parent=23 // pred_check_branch
          %151 = sbr.rel (%p149) target = $region28
        $region27: #{waveunet_forward.19} parent=23 // pred_region
          %p152 = scmp.lt.s32.totalorder %s21, 1
          %s153 = scalar_select %p152, %s21, 1
          %p154 = scmp.lt.s32.totalorder %s22, 0
          %s155 = scalar_select %p154, %s22, 0
          %s156 = smul.addr %s153, 3
          %s157 = sadd.s32 %s155, %s156
          %s158 = smul.addr %s157, 4
          %s159 = scalar_lea.vmem %s0, %s158
        $region28: #{waveunet_forward.19} parent=23 // pred_fallthru
          _
      $region24: #{waveunet_forward.19} parent=5 // pred_fallthru
        _
      %p160 = scmp.le.s32.totalorder 1, %s14
      %p161 = scmp.lt.s32.totalorder %s14, 3
      %p162 = pnand %p160, %p161
      %p163 = pneg %p162
      // Predicated region
      $region29: #{waveunet_forward.19} parent=5 // pred_check
        _
      $region30: #{waveunet_forward.19} parent=5 // pred_check_branch
        %165 = sbr.rel (%p162) target = $region32
      $region31: #{waveunet_forward.19} parent=5 // pred_region
        %s166 = ssub.s32 %s14, 1
        %p167 = scmp.lt.s32.totalorder %s23, 1
        %s168 = scalar_select %p167, %s23, 1
        %p169 = scmp.lt.s32.totalorder %s24, 0
        %s170 = scalar_select %p169, %s24, 0
        %s171 = smul.addr %s168, 3
        %s172 = sadd.s32 %s170, %s171
        %s173 = smul.addr %s172, 4
        %s174 = scalar_lea.vmem %s0, %s173
        %p175 = pneg %p54
        %p176 = pneg %p51
        %p177 = pneg %p75
        %p178 = pneg %p72
        %p179 = pneg %p96
        %p180 = pneg %p93
        %p181 = pneg %p124
        %p182 = pneg %p121
        %s183 = sand.u32 %s111, 1
        %s184 = scalar_lea.sflag [#allocation4], %s183
        %s185 = sand.u32 %s111, 1
        %s186 = scalar_lea.vmem [#allocation3], %s185
        %p187 = scmp.lt.s32.totalorder %s23, 1
        %s188 = scalar_select %p187, %s23, 1
        %p189 = scmp.lt.s32.totalorder %s24, 0
        %s190 = scalar_select %p189, %s24, 0
        %s191 = smul.addr %s188, 3
        %s192 = sadd.s32 %s190, %s191
        %s193 = smul.addr %s192, 4
        %s194 = scalar_lea.vmem %s0, %s193
        %v196 = vld [vmem:[%s1] sm:$0x1]
        %v197 = vld [vmem:[%s194] sm:$0xf]
        %v198 = vld [vmem:[%s194 + $0x4] sm:$0xf]
        %v199 = vld [vmem:[%s194 + $0x8] sm:$0x1]
        %v200 = vld [vmem:[#allocation2] sm:$0x1]
        %202 = vset.pattern.permute.xlu0 0
        %203 = vperm.xlu0 %202, %v200
        %v204 = vpop.permute.xlu0 %203
        %v206 = vlaneseq
        %v207 = vshrl.u32 %v206, 7
        %v208 = vsub.s32 0, %v207
        %v209 = vrot.slane %v204, %v208
        %v213 = vunpack.c.l.b16 %v197
        %v214 = vunpack.c.l.b16 %v198
        %v215 = vunpack.c.l.b16 %v199
        %v216 = vpack.c.b16 %v214, %v213
        %v217 = vpack.c.b16 %v215, %v215
        %vm219 = vcmask 138240
        %v221 = vsel %vm219, %v196, 0
        %vm223 = vcmask 1040384
        %v224 = vsel 0, 4294967295, 65535
        %v225 = vsel %vm223, %v224, 0
        %v227 = vand.u32 %v217, %v225
        %229 = vmatprep.subr.bf16.mxu0 0
        %230 = vmatpush1.bf16.msra.mxu0 %v216
        %231 = vmatprep.subr.bf16.mxu0 0
        %232 = vmatpush1.bf16.msra.mxu0 %v227
        %233 = vmatprep.subr.bf16.mxu0 0
        %234 = vmatpush1.bf16.msra.mxu0 0
        %235 = vmatprep.subr.bf16.mxu0 0
        %236 = vmatpush1.bf16.msra.mxu0 0
        %237 = vmatprep.subr.bf16.mxu0 0
        %238 = vmatpush1.bf16.msra.mxu0 0
        %239 = vmatprep.subr.bf16.mxu0 0
        %240 = vmatpush1.bf16.msra.mxu0 0
        %241 = vmatprep.subr.bf16.mxu0 0
        %242 = vmatpush1.bf16.msra.mxu0 0
        %243 = vmatprep.subr.bf16.mxu0 0
        %244 = vmatpush1.bf16.msra.mxu0 0
        %245 = vmatprep.subr.bf16.mxu0 0
        %246 = vmatpush1.bf16.msra.mxu0 0
        %247 = vmatprep.subr.bf16.mxu0 0
        %248 = vmatpush1.bf16.msra.mxu0 0
        %249 = vmatprep.subr.bf16.mxu0 0
        %250 = vmatpush1.bf16.msra.mxu0 0
        %251 = vmatprep.subr.bf16.mxu0 0
        %252 = vmatpush1.bf16.msra.mxu0 0
        %253 = vmatprep.subr.bf16.mxu0 0
        %254 = vmatpush1.bf16.msra.mxu0 0
        %255 = vmatprep.subr.bf16.mxu0 0
        %256 = vmatpush1.bf16.msra.mxu0 0
        %257 = vmatprep.subr.bf16.mxu0 0
        %258 = vmatpush1.bf16.msra.mxu0 0
        %259 = vmatprep.subr.bf16.mxu0 0
        %260 = vmatpush1.bf16.msra.mxu0 0
        %261 = vmatprep.mubr.bf16.mxu0 0
        %262 = vmatmul.mubr.bf16.gmra.mrb[0].mxu0 %v221
        %v263 = vpop.f32.mrb[0].mxu0
        %v264 = vadd.f32 %v209, %v263
        %v265 = vpop.f32.mrb[0].mxu0
        %v266 = vpop.f32.mrb[0].mxu0
        %v267 = vpop.f32.mrb[0].mxu0
        %268 = vdwg.mxu0
        %v269 = vtanh.pop %v264
        %vm270 = vcmask 516096
        %271 = vst.msk [vmem:[%s186] sm:$0x1] %vm270, %v269
        %s272 = sand.u32 %s111, 1
        %s273 = scalar_lea.sflag [#allocation4], %s272
        %s274 = sand.u32 %s111, 1
        %s275 = scalar_lea.vmem [#allocation3], %s274
        // Predicated region
        $region33: #{waveunet_forward.19} parent=31 // pred_check
          %p276 = pneg %p121
        $region34: #{waveunet_forward.19} parent=31 // pred_check_branch
          %278 = sbr.rel (%p276) target = $region36
        $region35: #{waveunet_forward.19} parent=31 // pred_region
          %s280 = ssub.s32 16, 16
          %281 = vsyncadd %s273, %s280
          %s282 = sadd.s32 %s24, %s23
          %s283 = smul.addr %s282, 16
          %s284 = scalar_lea.hbm %s3, %s283
          %s286 = sshll.u32 %s275, 4
          %s287 = int_to_ptr.vmem [resolvable:$true] %s286
          %289 = dma.vmem_to_hbm [thread:$0]  %s287, 16, %s284, %s273
        $region36: #{waveunet_forward.19} parent=31 // pred_fallthru
          _
      $region32: #{waveunet_forward.19} parent=5 // pred_fallthru
        _
      %p290 = scmp.le.s32.totalorder 2, %s14
      // Predicated region
      $region37: #{waveunet_forward.19} parent=5 // pred_check
        %p291 = pneg %p290
      $region38: #{waveunet_forward.19} parent=5 // pred_check_branch
        %293 = sbr.rel (%p291) target = $region40
      $region39: #{waveunet_forward.19} parent=5 // pred_region
        %s294 = ssub.s32 %s14, 2
        // Predicated region
        $region41: #{waveunet_forward.19} parent=39 // pred_check
          %p295 = pneg %p127
        $region42: #{waveunet_forward.19} parent=39 // pred_check_branch
          %297 = sbr.rel (%p295) target = $region44
        $region43: #{waveunet_forward.19} parent=39 // pred_region
          %s298 = sand.u32 %s112, 1
          %s299 = scalar_lea.sflag [#allocation4], %s298
          %s300 = sand.u32 %s112, 1
          %s301 = scalar_lea.vmem [#allocation3], %s300
          %302 = dma.done %s299, 16
        $region44: #{waveunet_forward.19} parent=39 // pred_fallthru
          _
      $region40: #{waveunet_forward.19} parent=5 // pred_fallthru
        _
    $region6: #{waveunet_forward.19} parent=1 // loop_footer
      %s18 = sadd.s32 1, %s14
    $region7: #{waveunet_forward.19} parent=1 // loop_footer_branch
      %13 = sbr.rel target = $region3
    $region8: #{waveunet_forward.19} parent=1 // loop_exit
      _
    %303 = vsyncpa [#allocation4], 1
    %s304 = scalar_lea.sflag [#allocation4], 1
    %305 = vsyncpa %s304, 1

// kernel: waveunet_forward.18
$region0: #{waveunet_forward.18}
  #allocation0 [shape = 'u32[]', space=smem, size = 0x4, offset = 0x4, fixed_abs, tag = 'smem constant byte address 0x4 - core index']
  #allocation1 [shape = 'u32[144,128]{1,0:T(1,128)}', space=vmem, size = 0x12000, scoped, tag = 'internal scratch']
  %s0 = inlined_call_operand.vmem [shape: bf16[2,64,432], index: 0, kind: input, shape index: {}]
  %s1 = inlined_call_operand.vmem [shape: bf16[432,16], index: 1, kind: input, shape index: {}]
  %s2 = inlined_call_operand.vmem [shape: f32[1,16], index: 2, kind: input, shape index: {}]
  %s3 = inlined_call_operand.vmem [shape: f32[1,16], index: 3, kind: input, shape index: {}]
  %s4 = inlined_call_operand.vmem [shape: bf16[2,64,16], index: 4, kind: output, shape index: {}]
  %s5 = sld [smem:[#allocation0]]
  $region49: #{waveunet_forward.18} parent=0
    _
  %s7 = ssub.s32 1, %s5
  %s8 = scalar_select 0, %s7, %s5
  loop: start=0, step=1, limit=4
  $region2: #{waveunet_forward.18} parent=0 // loop_pre_header
    _
  $region3: #{waveunet_forward.18} parent=0 // loop_header
    %s10 = sphi 0, %s14
    %p11 = scmp.ge.s32.totalorder %s10, 4
    %s17 = sphi 0, %s29
    %s18 = sphi 0, %s25
    %s19 = sphi 0, %s17
    %s20 = sphi 0, %s18
    %s21 = sphi 0, %s19
    %s22 = sphi 0, %s20
    %s34 = sphi 0, %s36
    %s37 = sphi 0, %s34
    %s38 = sphi 0, %s37
    %s54 = sphi 0, %s38
    %s58 = sphi 0, %s58
    %s60 = sphi 0, %s58
    %s61 = sphi 0, %s60
    %s75 = sphi 0, %s61
    %s79 = sphi 0, %s79
    %s81 = sphi 0, %s79
    %s82 = sphi 0, %s81
    %s96 = sphi 0, %s82
    %s100 = sphi 0, %s100
    %s102 = sphi 0, %s100
    %s103 = sphi 0, %s102
    %s117 = sphi 0, %s103
    %s125 = sphi 0, %s127
    %s128 = sphi 0, %s125
    %s129 = sphi 0, %s128
    %s145 = sphi 0, %s129
  $region4: #{waveunet_forward.18} parent=0 // loop_header_branch
    %13 = sbr.rel (%p11) target = $region8
  $region5: #{waveunet_forward.18} parent=0 // loop_body
    %s15 = ssub.s32 %s10, 1
    %s16 = ssub.s32 %s10, 2
    %s23 = sadd.s32 1, %s18
    %p24 = scmp.ge.s32.totalorder %s23, 1
    %s25 = scalar_select %p24, 0, %s23
    %s26 = sadd.s32 1, %s17
    %s27 = scalar_select %p24, %s26, %s17
    %p28 = scmp.ge.s32.totalorder %s27, 2
    %s29 = scalar_select %p28, 0, %s27
    %s30 = ssub.s32 %s17, %s29
    %s31 = ssub.s32 %s18, %s25
    %s32 = sor.u32 %s30, %s31
    %p33 = scmp.eq.s32.totalorder %s32, 0
    %s35 = sadd.s32 %s34, 1
    %s36 = scalar_select %p33, %s34, %s35
    %p39 = pneg %p33
    %p40 = scmp.eq.s32.totalorder %s10, 1
    %p41 = por %p39, %p40
    %p42 = scmp.ne.s32.totalorder %s34, %s37
    %p43 = scmp.eq.s32.totalorder %s10, 0
    %p44 = por %p42, %p43
    %p45 = scmp.ne.s32.totalorder %s34, %s37
    %p46 = scmp.eq.s32.totalorder %s15, 1
    %p47 = por %p45, %p46
    %p48 = scmp.ne.s32.totalorder %s37, %s38
    %p49 = scmp.eq.s32.totalorder %s15, 0
    %p50 = por %p48, %p49
    %p51 = scmp.ne.s32.totalorder %s37, %s38
    %p52 = scmp.eq.s32.totalorder %s16, 1
    %p53 = por %p51, %p52
    %p55 = scmp.ne.s32.totalorder %s38, %s54
    %p56 = scmp.eq.s32.totalorder %s16, 0
    %p57 = por %p55, %p56
    %s59 = sadd.s32 %s58, 1
    %p62 = scmp.eq.s32.totalorder %s10, 1
    %p63 = scmp.ne.s32.totalorder %s58, %s60
    %p64 = scmp.eq.s32.totalorder %s10, 0
    %p65 = por %p63, %p64
    %p66 = scmp.ne.s32.totalorder %s58, %s60
    %p67 = scmp.eq.s32.totalorder %s15, 1
    %p68 = por %p66, %p67
    %p69 = scmp.ne.s32.totalorder %s60, %s61
    %p70 = scmp.eq.s32.totalorder %s15, 0
    %p71 = por %p69, %p70
    %p72 = scmp.ne.s32.totalorder %s60, %s61
    %p73 = scmp.eq.s32.totalorder %s16, 1
    %p74 = por %p72, %p73
    %p76 = scmp.ne.s32.totalorder %s61, %s75
    %p77 = scmp.eq.s32.totalorder %s16, 0
    %p78 = por %p76, %p77
    %s80 = sadd.s32 %s79, 1
    %p83 = scmp.eq.s32.totalorder %s10, 1
    %p84 = scmp.ne.s32.totalorder %s79, %s81
    %p85 = scmp.eq.s32.totalorder %s10, 0
    %p86 = por %p84, %p85
    %p87 = scmp.ne.s32.totalorder %s79, %s81
    %p88 = scmp.eq.s32.totalorder %s15, 1
    %p89 = por %p87, %p88
    %p90 = scmp.ne.s32.totalorder %s81, %s82
    %p91 = scmp.eq.s32.totalorder %s15, 0
    %p92 = por %p90, %p91
    %p93 = scmp.ne.s32.totalorder %s81, %s82
    %p94 = scmp.eq.s32.totalorder %s16, 1
    %p95 = por %p93, %p94
    %p97 = scmp.ne.s32.totalorder %s82, %s96
    %p98 = scmp.eq.s32.totalorder %s16, 0
    %p99 = por %p97, %p98
    %s101 = sadd.s32 %s100, 1
    %p104 = scmp.eq.s32.totalorder %s10, 1
    %p105 = scmp.ne.s32.totalorder %s100, %s102
    %p106 = scmp.eq.s32.totalorder %s10, 0
    %p107 = por %p105, %p106
    %p108 = scmp.ne.s32.totalorder %s100, %s102
    %p109 = scmp.eq.s32.totalorder %s15, 1
    %p110 = por %p108, %p109
    %p111 = scmp.ne.s32.totalorder %s102, %s103
    %p112 = scmp.eq.s32.totalorder %s15, 0
    %p113 = por %p111, %p112
    %p114 = scmp.ne.s32.totalorder %s102, %s103
    %p115 = scmp.eq.s32.totalorder %s16, 1
    %p116 = por %p114, %p115
    %p118 = scmp.ne.s32.totalorder %s103, %s117
    %p119 = scmp.eq.s32.totalorder %s16, 0
    %p120 = por %p118, %p119
    %s121 = ssub.s32 %s17, %s29
    %s122 = ssub.s32 %s18, %s25
    %s123 = sor.u32 %s121, %s122
    %p124 = scmp.eq.s32.totalorder %s123, 0
    %s126 = sadd.s32 %s125, 1
    %s127 = scalar_select %p124, %s125, %s126
    %p130 = pneg %p124
    %p131 = scmp.eq.s32.totalorder %s10, 1
    %p132 = por %p130, %p131
    %p133 = scmp.ne.s32.totalorder %s125, %s128
    %p134 = scmp.eq.s32.totalorder %s10, 0
    %p135 = por %p133, %p134
    %p136 = scmp.ne.s32.totalorder %s125, %s128
    %p137 = scmp.eq.s32.totalorder %s15, 1
    %p138 = por %p136, %p137
    %p139 = scmp.ne.s32.totalorder %s128, %s129
    %p140 = scmp.eq.s32.totalorder %s15, 0
    %p141 = por %p139, %p140
    %p142 = scmp.ne.s32.totalorder %s128, %s129
    %p143 = scmp.eq.s32.totalorder %s16, 1
    %p144 = por %p142, %p143
    %p146 = scmp.ne.s32.totalorder %s129, %s145
    %p147 = scmp.eq.s32.totalorder %s16, 0
    %p148 = por %p146, %p147
    %p149 = scmp.le.s32.totalorder 1, %s10
    %p150 = scmp.lt.s32.totalorder %s10, 3
    %p151 = pnand %p149, %p150
    %p152 = pneg %p151
    // Predicated region
    $region9: #{waveunet_forward.18} parent=5 // pred_check
      _
    $region10: #{waveunet_forward.18} parent=5 // pred_check_branch
      %154 = sbr.rel (%p151) target = $region12
    $region11: #{waveunet_forward.18} parent=5 // pred_region
      %s155 = ssub.s32 %s10, 1
      // Predicated region
      $region13: #{waveunet_forward.18} parent=11 // pred_check
        %p156 = pneg %p71
      $region14: #{waveunet_forward.18} parent=11 // pred_check_branch
        %158 = sbr.rel (%p156) target = $region16
      $region15: #{waveunet_forward.18} parent=11 // pred_region
        _
      $region16: #{waveunet_forward.18} parent=11 // pred_fallthru
        _
      // Predicated region
      $region17: #{waveunet_forward.18} parent=11 // pred_check
        %p159 = pneg %p92
      $region18: #{waveunet_forward.18} parent=11 // pred_check_branch
        %161 = sbr.rel (%p159) target = $region20
      $region19: #{waveunet_forward.18} parent=11 // pred_region
        _
      $region20: #{waveunet_forward.18} parent=11 // pred_fallthru
        _
      // Predicated region
      $region21: #{waveunet_forward.18} parent=11 // pred_check
        %p162 = pneg %p113
      $region22: #{waveunet_forward.18} parent=11 // pred_check_branch
        %164 = sbr.rel (%p162) target = $region24
      $region23: #{waveunet_forward.18} parent=11 // pred_region
        _
      $region24: #{waveunet_forward.18} parent=11 // pred_fallthru
        _
    $region12: #{waveunet_forward.18} parent=5 // pred_fallthru
      _
    %p165 = scmp.lt.s32.totalorder %s10, 2
    // Predicated region
    $region25: #{waveunet_forward.18} parent=5 // pred_check
      %p166 = pneg %p165
    $region26: #{waveunet_forward.18} parent=5 // pred_check_branch
      %168 = sbr.rel (%p166) target = $region28
    $region27: #{waveunet_forward.18} parent=5 // pred_region
      // Predicated region
      $region29: #{waveunet_forward.18} parent=27 // pred_check
        %p169 = pneg %p44
      $region30: #{waveunet_forward.18} parent=27 // pred_check_branch
        %171 = sbr.rel (%p169) target = $region32
      $region31: #{waveunet_forward.18} parent=27 // pred_region
        %s172 = smul.u32 8, %s18
        %p173 = scmp.lt.s32.totalorder %s17, 1
        %s174 = scalar_select %p173, %s17, 1
        %p175 = scmp.lt.s32.totalorder %s172, 7
        %s176 = scalar_select %p175, %s172, 7
        %s177 = smul.addr %s176, 4
        %s178 = smul.addr %s174, 32
        %s179 = sadd.s32 %s177, %s178
        %s180 = smul.addr %s179, 4
        %s181 = scalar_lea.vmem %s0, %s180
        %s182 = smul.u32 8, %s18
      $region32: #{waveunet_forward.18} parent=27 // pred_fallthru
        _
    $region28: #{waveunet_forward.18} parent=5 // pred_fallthru
      _
    %p183 = scmp.le.s32.totalorder 1, %s10
    %p184 = scmp.lt.s32.totalorder %s10, 3
    %p185 = pnand %p183, %p184
    %p186 = pneg %p185
    // Predicated region
    $region33: #{waveunet_forward.18} parent=5 // pred_check
      _
    $region34: #{waveunet_forward.18} parent=5 // pred_check_branch
      %188 = sbr.rel (%p185) target = $region36
    $region35: #{waveunet_forward.18} parent=5 // pred_region
      %s189 = ssub.s32 %s10, 1
      %s190 = smul.u32 8, %s20
      %p191 = scmp.lt.s32.totalorder %s19, 1
      %s192 = scalar_select %p191, %s19, 1
      %p193 = scmp.lt.s32.totalorder %s190, 7
      %s194 = scalar_select %p193, %s190, 7
      %s195 = smul.addr %s194, 4
      %s196 = smul.addr %s192, 32
      %s197 = sadd.s32 %s195, %s196
      %s198 = smul.addr %s197, 4
      %s199 = scalar_lea.vmem %s0, %s198
      %p200 = pneg %p50
      %p201 = pneg %p47
      %p202 = pneg %p71
      %p203 = pneg %p68
      %p204 = pneg %p92
      %p205 = pneg %p89
      %p206 = pneg %p113
      %p207 = pneg %p110
      %p208 = pneg %p141
      %p209 = pneg %p138
      %s210 = smul.u32 8, %s20
      %p211 = scmp.lt.s32.totalorder %s19, 1
      %s212 = scalar_select %p211, %s19, 1
      %p213 = scmp.lt.s32.totalorder %s210, 7
      %s214 = scalar_select %p213, %s210, 7
      %s215 = smul.addr %s212, 8
      %s216 = sadd.s32 %s214, %s215
      %s217 = smul.addr %s216, 4
      %s218 = scalar_lea.vmem %s4, %s217
      %s219 = smul.u32 8, %s20
      %p220 = scmp.lt.s32.totalorder %s19, 1
      %s221 = scalar_select %p220, %s19, 1
      %p222 = scmp.lt.s32.totalorder %s219, 7
      %s223 = scalar_select %p222, %s219, 7
      %s224 = smul.addr %s223, 4
      %s225 = smul.addr %s221, 32
      %s226 = sadd.s32 %s224, %s225
      %s227 = smul.addr %s226, 4
      %s228 = scalar_lea.vmem %s0, %s227
      %s229 = smul.u32 8, %s20
      %s230 = smul.u32 8, %s20
      %p231 = scmp.lt.s32.totalorder %s19, 1
      %s232 = scalar_select %p231, %s19, 1
      %p233 = scmp.lt.s32.totalorder %s230, 7
      %s234 = scalar_select %p233, %s230, 7
      %s235 = smul.addr %s232, 8
      %s236 = sadd.s32 %s234, %s235
      %s237 = smul.addr %s236, 4
      %s238 = scalar_lea.vmem %s4, %s237
      %s239 = smul.u32 8, %s20
      %v241 = vld [vmem:[%s228] sm:$0xff]
      %v242 = vld [vmem:[%s228 + $0x8] sm:$0xff]
      %v243 = vld [vmem:[%s228 + $0x10] sm:$0xff]
      %v244 = vld [vmem:[%s228 + $0x18] sm:$0xff]
      %v245 = vld [vmem:[%s228 + $0x20] sm:$0xff]
      %v246 = vld [vmem:[%s228 + $0x28] sm:$0xff]
      %v247 = vld [vmem:[%s228 + $0x30] sm:$0xff]
      %v248 = vld [vmem:[%s228 + $0x38] sm:$0xff]
      %v249 = vld [vmem:[%s228 + $0x40] sm:$0xff]
      %v250 = vld [vmem:[%s228 + $0x48] sm:$0xff]
      %v251 = vld [vmem:[%s228 + $0x50] sm:$0xff]
      %v252 = vld [vmem:[%s228 + $0x58] sm:$0xff]
      %v253 = vld [vmem:[%s228 + $0x60] sm:$0xff]
      %v254 = vld [vmem:[%s228 + $0x68] sm:$0xff]
      %v255 = vld [vmem:[%s228 + $0x70] sm:$0xff]
      %v256 = vld [vmem:[%s228 + $0x78] sm:$0xff]
      %v257 = vld [vmem:[%s1] sm:$0xf]
      %v258 = vld [vmem:[%s1 + $0x4] sm:$0xf]
      %v259 = vld [vmem:[%s1 + $0x8] sm:$0xf]
      %v260 = vld [vmem:[%s1 + $0xc] sm:$0xf]
      %v261 = vld [vmem:[%s1 + $0x10] sm:$0xf]
      %v262 = vld [vmem:[%s1 + $0x14] sm:$0xf]
      %v263 = vld [vmem:[%s1 + $0x18] sm:$0xf]
      %v264 = vld [vmem:[%s1 + $0x1c] sm:$0xf]
      %v265 = vld [vmem:[%s1 + $0x20] sm:$0xf]
      %v266 = vld [vmem:[%s1 + $0x24] sm:$0xf]
      %v267 = vld [vmem:[%s1 + $0x28] sm:$0xf]
      %v268 = vld [vmem:[%s1 + $0x2c] sm:$0xf]
      %v269 = vld [vmem:[%s1 + $0x30] sm:$0xf]
      %v270 = vld [vmem:[%s1 + $0x34] sm:$0xf]
      %v271 = vld [vmem:[%s1 + $0x38] sm:$0xf]
      %v272 = vld [vmem:[%s1 + $0x3c] sm:$0xf]
      %v273 = vld [vmem:[%s1 + $0x40] sm:$0xf]
      %v274 = vld [vmem:[%s1 + $0x44] sm:$0xf]
      %v275 = vld [vmem:[%s1 + $0x48] sm:$0xf]
      %v276 = vld [vmem:[%s1 + $0x4c] sm:$0xf]
      %v277 = vld [vmem:[%s1 + $0x50] sm:$0xf]
      %v278 = vld [vmem:[%s1 + $0x54] sm:$0xf]
      %v279 = vld [vmem:[%s1 + $0x58] sm:$0xf]
      %v280 = vld [vmem:[%s1 + $0x5c] sm:$0xf]
      %v281 = vld [vmem:[%s1 + $0x60] sm:$0xf]
      %v282 = vld [vmem:[%s1 + $0x64] sm:$0xf]
      %v283 = vld [vmem:[%s1 + $0x68] sm:$0xf]
      %v284 = vld [vmem:[%s1 + $0x6c] sm:$0xf]
      %v285 = vld [vmem:[%s1 + $0x70] sm:$0xf]
      %v286 = vld [vmem:[%s1 + $0x74] sm:$0xf]
      %v287 = vld [vmem:[%s1 + $0x78] sm:$0xf]
      %v288 = vld [vmem:[%s1 + $0x7c] sm:$0xf]
      %v289 = vld [vmem:[%s1 + $0x80] sm:$0xf]
      %v290 = vld [vmem:[%s1 + $0x84] sm:$0xf]
      %v291 = vld [vmem:[%s1 + $0x88] sm:$0xf]
      %v292 = vld [vmem:[%s1 + $0x8c] sm:$0xf]
      %v293 = vld [vmem:[%s1 + $0x90] sm:$0xf]
      %v294 = vld [vmem:[%s1 + $0x94] sm:$0xf]
      %v295 = vld [vmem:[%s1 + $0x98] sm:$0xf]
      %v296 = vld [vmem:[%s1 + $0x9c] sm:$0xf]
      %v297 = vld [vmem:[%s1 + $0xa0] sm:$0xf]
      %v298 = vld [vmem:[%s1 + $0xa4] sm:$0xf]
      %v299 = vld [vmem:[%s1 + $0xa8] sm:$0xf]
      %v300 = vld [vmem:[%s1 + $0xac] sm:$0xf]
      %v301 = vld [vmem:[%s1 + $0xb0] sm:$0xf]
      %v302 = vld [vmem:[%s1 + $0xb4] sm:$0xf]
      %v303 = vld [vmem:[%s1 + $0xb8] sm:$0xf]
      %v304 = vld [vmem:[%s1 + $0xbc] sm:$0xf]
      %v305 = vld [vmem:[%s1 + $0xc0] sm:$0xf]
      %v306 = vld [vmem:[%s1 + $0xc4] sm:$0xf]
      %v307 = vld [vmem:[%s1 + $0xc8] sm:$0xf]
      %v308 = vld [vmem:[%s1 + $0xcc] sm:$0xf]
      %v309 = vld [vmem:[%s1 + $0xd0] sm:$0xf]
      %v310 = vld [vmem:[%s1 + $0xd4] sm:$0xf]
      %v327 = vunpack.c.l.b16 %v241
      %v328 = vunpack.c.h.b16 %v241
      %v329 = vunpack.c.l.b16 %v242
      %v330 = vunpack.c.h.b16 %v242
      %v331 = vunpack.c.l.b16 %v243
      %v332 = vunpack.c.h.b16 %v243
      %v333 = vunpack.c.l.b16 %v244
      %v334 = vunpack.c.h.b16 %v244
      %v335 = vunpack.c.l.b16 %v245
      %v336 = vunpack.c.h.b16 %v245
      %v337 = vunpack.c.l.b16 %v246
      %v338 = vunpack.c.h.b16 %v246
      %v339 = vunpack.c.l.b16 %v247
      %v340 = vunpack.c.h.b16 %v247
      %v341 = vunpack.c.l.b16 %v248
      %v342 = vunpack.c.h.b16 %v248
      %v343 = vunpack.c.l.b16 %v249
      %v344 = vunpack.c.h.b16 %v249
      %v345 = vunpack.c.l.b16 %v250
      %v346 = vunpack.c.h.b16 %v250
      %v347 = vunpack.c.l.b16 %v251
      %v348 = vunpack.c.h.b16 %v251
      %v349 = vunpack.c.l.b16 %v252
      %v350 = vunpack.c.h.b16 %v252
      %v351 = vunpack.c.l.b16 %v253
      %v352 = vunpack.c.h.b16 %v253
      %v353 = vunpack.c.l.b16 %v254
      %v354 = vunpack.c.h.b16 %v254
      %v355 = vunpack.c.l.b16 %v255
      %v356 = vunpack.c.h.b16 %v255
      %v357 = vunpack.c.l.b16 %v256
      %v358 = vunpack.c.h.b16 %v256
      %v359 = vpack.c.b16 %v331, %v327
      %v360 = vpack.c.b16 %v332, %v328
      %v361 = vpack.c.b16 %v333, %v329
      %v362 = vpack.c.b16 %v334, %v330
      %v363 = vpack.c.b16 %v339, %v335
      %v364 = vpack.c.b16 %v340, %v336
      %v365 = vpack.c.b16 %v341, %v337
      %v366 = vpack.c.b16 %v342, %v338
      %v367 = vpack.c.b16 %v347, %v343
      %v368 = vpack.c.b16 %v348, %v344
      %v369 = vpack.c.b16 %v349, %v345
      %v370 = vpack.c.b16 %v350, %v346
      %v371 = vpack.c.b16 %v355, %v351
      %v372 = vpack.c.b16 %v356, %v352
      %v373 = vpack.c.b16 %v357, %v353
      %v374 = vpack.c.b16 %v358, %v354
      %v441 = vunpack.c.l.b16 %v257
      %v442 = vunpack.c.l.b16 %v258
      %v443 = vunpack.c.l.b16 %v259
      %v444 = vunpack.c.l.b16 %v260
      %v445 = vunpack.c.l.b16 %v261
      %v446 = vunpack.c.l.b16 %v262
      %v447 = vunpack.c.l.b16 %v263
      %v448 = vunpack.c.l.b16 %v264
      %v449 = vunpack.c.l.b16 %v265
      %v450 = vunpack.c.l.b16 %v266
      %v451 = vunpack.c.l.b16 %v267
      %v452 = vunpack.c.l.b16 %v268
      %v453 = vunpack.c.l.b16 %v269
      %v454 = vunpack.c.l.b16 %v270
      %v455 = vunpack.c.l.b16 %v271
      %v456 = vunpack.c.l.b16 %v272
      %v457 = vunpack.c.l.b16 %v273
      %v458 = vunpack.c.l.b16 %v274
      %v459 = vunpack.c.l.b16 %v275
      %v460 = vunpack.c.l.b16 %v276
      %v461 = vunpack.c.l.b16 %v277
      %v462 = vunpack.c.l.b16 %v278
      %v463 = vunpack.c.l.b16 %v279
      %v464 = vunpack.c.l.b16 %v280
      %v465 = vunpack.c.l.b16 %v281
      %v466 = vunpack.c.l.b16 %v282
      %v467 = vunpack.c.l.b16 %v283
      %v468 = vunpack.c.l.b16 %v284
      %v469 = vunpack.c.l.b16 %v285
      %v470 = vunpack.c.l.b16 %v286
      %v471 = vunpack.c.l.b16 %v287
      %v472 = vunpack.c.l.b16 %v288
      %v473 = vunpack.c.l.b16 %v289
      %v474 = vunpack.c.l.b16 %v290
      %v475 = vunpack.c.l.b16 %v291
      %v476 = vunpack.c.l.b16 %v292
      %v477 = vunpack.c.l.b16 %v293
      %v478 = vunpack.c.l.b16 %v294
      %v479 = vunpack.c.l.b16 %v295
      %v480 = vunpack.c.l.b16 %v296
      %v481 = vunpack.c.l.b16 %v297
      %v482 = vunpack.c.l.b16 %v298
      %v483 = vunpack.c.l.b16 %v299
      %v484 = vunpack.c.l.b16 %v300
      %v485 = vunpack.c.l.b16 %v301
      %v486 = vunpack.c.l.b16 %v302
      %v487 = vunpack.c.l.b16 %v303
      %v488 = vunpack.c.l.b16 %v304
      %v489 = vunpack.c.l.b16 %v305
      %v490 = vunpack.c.l.b16 %v306
      %v491 = vunpack.c.l.b16 %v307
      %v492 = vunpack.c.l.b16 %v308
      %v493 = vunpack.c.l.b16 %v309
      %v494 = vunpack.c.l.b16 %v310
      %v495 = vpack.c.b16 %v442, %v441
      %v496 = vpack.c.b16 %v444, %v443
      %v497 = vpack.c.b16 %v446, %v445
      %v498 = vpack.c.b16 %v448, %v447
      %v499 = vpack.c.b16 %v450, %v449
      %v500 = vpack.c.b16 %v452, %v451
      %v501 = vpack.c.b16 %v454, %v453
      %v502 = vpack.c.b16 %v456, %v455
      %v503 = vpack.c.b16 %v458, %v457
      %v504 = vpack.c.b16 %v460, %v459
      %v505 = vpack.c.b16 %v462, %v461
      %v506 = vpack.c.b16 %v464, %v463
      %v507 = vpack.c.b16 %v466, %v465
      %v508 = vpack.c.b16 %v468, %v467
      %v509 = vpack.c.b16 %v470, %v469
      %v510 = vpack.c.b16 %v472, %v471
      %v511 = vpack.c.b16 %v474, %v473
      %v512 = vpack.c.b16 %v476, %v475
      %v513 = vpack.c.b16 %v478, %v477
      %v514 = vpack.c.b16 %v480, %v479
      %v515 = vpack.c.b16 %v482, %v481
      %v516 = vpack.c.b16 %v484, %v483
      %v517 = vpack.c.b16 %v486, %v485
      %v518 = vpack.c.b16 %v488, %v487
      %v519 = vpack.c.b16 %v490, %v489
      %v520 = vpack.c.b16 %v492, %v491
      %v521 = vpack.c.b16 %v494, %v493
      %vm549 = vcmask 392192
      %v551 = vsel %vm549, %v362, 0
      %v554 = vsel %vm549, %v366, 0
      %v557 = vsel %vm549, %v370, 0
      %v560 = vsel %vm549, %v374, 0
      %562 = vmatprep.subr.bf16.mxu0 0
      %563 = vmatpush1.bf16.msra.mxu0 %v495
      %564 = vmatprep.subr.bf16.mxu0 0
      %565 = vmatpush1.bf16.msra.mxu0 %v496
      %566 = vmatprep.subr.bf16.mxu0 0
      %567 = vmatpush1.bf16.msra.mxu0 %v497
      %568 = vmatprep.subr.bf16.mxu0 0
      %569 = vmatpush1.bf16.msra.mxu0 %v498
      %570 = vmatprep.subr.bf16.mxu0 0
      %571 = vmatpush1.bf16.msra.mxu0 %v499
      %572 = vmatprep.subr.bf16.mxu0 0
      %573 = vmatpush1.bf16.msra.mxu0 %v500
      %574 = vmatprep.subr.bf16.mxu0 0
      %575 = vmatpush1.bf16.msra.mxu0 %v501
      %576 = vmatprep.subr.bf16.mxu0 0
      %577 = vmatpush1.bf16.msra.mxu0 %v502
      %578 = vmatprep.subr.bf16.mxu0 0
      %579 = vmatpush1.bf16.msra.mxu0 %v503
      %580 = vmatprep.subr.bf16.mxu0 0
      %581 = vmatpush1.bf16.msra.mxu0 %v504
      %582 = vmatprep.subr.bf16.mxu0 0
      %583 = vmatpush1.bf16.msra.mxu0 %v505
      %584 = vmatprep.subr.bf16.mxu0 0
      %585 = vmatpush1.bf16.msra.mxu0 %v506
      %586 = vmatprep.subr.bf16.mxu0 0
      %587 = vmatpush1.bf16.msra.mxu0 %v507
      %588 = vmatprep.subr.bf16.mxu0 0
      %589 = vmatpush1.bf16.msra.mxu0 %v508
      %590 = vmatprep.subr.bf16.mxu0 0
      %591 = vmatpush1.bf16.msra.mxu0 %v509
      %592 = vmatprep.subr.bf16.mxu0 0
      %593 = vmatpush1.bf16.msra.mxu0 %v510
      %594 = vmatprep.mubr.bf16.mxu0 %v360
      %595 = vmatmul.mubr.bf16.gmra.mrb[0].mxu0 %v359
      %v596 = vpop.f32.mrb[0].mxu0
      %v597 = vadd.f32 0.0, %v596
      %v598 = vpop.f32.mrb[0].mxu0
      %v599 = vpop.f32.mrb[0].mxu0
      %v600 = vadd.f32 0.0, %v599
      %v601 = vpop.f32.mrb[0].mxu0
      %602 = vmatprep.mubr.bf16.mxu0 %v364
      %603 = vmatmul.mubr.bf16.gmra.mrb[0].mxu0 %v363
      %v604 = vpop.f32.mrb[0].mxu0
      %v605 = vadd.f32 0.0, %v604
      %v606 = vpop.f32.mrb[0].mxu0
      %v607 = vpop.f32.mrb[0].mxu0
      %v608 = vadd.f32 0.0, %v607
      %v609 = vpop.f32.mrb[0].mxu0
      %610 = vmatprep.mubr.bf16.mxu0 %v368
      %611 = vmatmul.mubr.bf16.gmra.mrb[0].mxu0 %v367
      %v612 = vpop.f32.mrb[0].mxu0
      %v613 = vadd.f32 0.0, %v612
      %v614 = vpop.f32.mrb[0].mxu0
      %v615 = vpop.f32.mrb[0].mxu0
      %v616 = vadd.f32 0.0, %v615
      %v617 = vpop.f32.mrb[0].mxu0
      %618 = vmatprep.mubr.bf16.mxu0 %v372
      %619 = vmatmul.mubr.bf16.gmra.mrb[0].mxu0 %v371
      %v620 = vpop.f32.mrb[0].mxu0
      %v621 = vadd.f32 0.0, %v620
      %v622 = vpop.f32.mrb[0].mxu0
      %v623 = vpop.f32.mrb[0].mxu0
      %v624 = vadd.f32 0.0, %v623
      %v625 = vpop.f32.mrb[0].mxu0
      %626 = vdwg.mxu0
      %627 = vmatprep.subr.bf16.mxu0 0
      %628 = vmatpush1.bf16.msra.mxu0 %v511
      %629 = vmatprep.subr.bf16.mxu0 0
      %630 = vmatpush1.bf16.msra.mxu0 %v512
      %631 = vmatprep.subr.bf16.mxu0 0
      %632 = vmatpush1.bf16.msra.mxu0 %v513
      %633 = vmatprep.subr.bf16.mxu0 0
      %634 = vmatpush1.bf16.msra.mxu0 %v514
      %635 = vmatprep.subr.bf16.mxu0 0
      %636 = vmatpush1.bf16.msra.mxu0 %v515
      %637 = vmatprep.subr.bf16.mxu0 0
      %638 = vmatpush1.bf16.msra.mxu0 %v516
      %639 = vmatprep.subr.bf16.mxu0 0
      %640 = vmatpush1.bf16.msra.mxu0 %v517
      %641 = vmatprep.subr.bf16.mxu0 0
      %642 = vmatpush1.bf16.msra.mxu0 %v518
      %643 = vmatprep.subr.bf16.mxu0 0
      %644 = vmatpush1.bf16.msra.mxu0 %v519
      %645 = vmatprep.subr.bf16.mxu0 0
      %646 = vmatpush1.bf16.msra.mxu0 %v520
      %647 = vmatprep.subr.bf16.mxu0 0
      %648 = vmatpush1.bf16.msra.mxu0 %v521
      %649 = vmatprep.subr.bf16.mxu0 0
      %650 = vmatpush1.bf16.msra.mxu0 0
      %651 = vmatprep.subr.bf16.mxu0 0
      %652 = vmatpush1.bf16.msra.mxu0 0
      %653 = vmatprep.subr.bf16.mxu0 0
      %654 = vmatpush1.bf16.msra.mxu0 0
      %655 = vmatprep.subr.bf16.mxu0 0
      %656 = vmatpush1.bf16.msra.mxu0 0
      %657 = vmatprep.subr.bf16.mxu0 0
      %658 = vmatpush1.bf16.msra.mxu0 0
      %659 = vmatprep.mubr.bf16.mxu0 %v551
      %660 = vmatmul.mubr.bf16.gmra.mrb[0].mxu0 %v361
      %v661 = vpop.f32.mrb[0].mxu0
      %v662 = vadd.f32 %v597, %v661
      %v663 = vpop.f32.mrb[0].mxu0
      %v664 = vpop.f32.mrb[0].mxu0
      %v665 = vadd.f32 %v600, %v664
      %v666 = vpop.f32.mrb[0].mxu0
      %667 = vmatprep.mubr.bf16.mxu0 %v554
      %668 = vmatmul.mubr.bf16.gmra.mrb[0].mxu0 %v365
      %v669 = vpop.f32.mrb[0].mxu0
      %v670 = vadd.f32 %v605, %v669
      %v671 = vpop.f32.mrb[0].mxu0
      %v672 = vpop.f32.mrb[0].mxu0
      %v673 = vadd.f32 %v608, %v672
      %v674 = vpop.f32.mrb[0].mxu0
      %675 = vmatprep.mubr.bf16.mxu0 %v557
      %676 = vmatmul.mubr.bf16.gmra.mrb[0].mxu0 %v369
      %v677 = vpop.f32.mrb[0].mxu0
      %v678 = vadd.f32 %v613, %v677
      %v679 = vpop.f32.mrb[0].mxu0
      %v680 = vpop.f32.mrb[0].mxu0
      %v681 = vadd.f32 %v616, %v680
      %v682 = vpop.f32.mrb[0].mxu0
      %683 = vmatprep.mubr.bf16.mxu0 %v560
      %684 = vmatmul.mubr.bf16.gmra.mrb[0].mxu0 %v373
      %v685 = vpop.f32.mrb[0].mxu0
      %v686 = vadd.f32 %v621, %v685
      %v687 = vpop.f32.mrb[0].mxu0
      %v688 = vpop.f32.mrb[0].mxu0
      %v689 = vadd.f32 %v624, %v688
      %v690 = vpop.f32.mrb[0].mxu0
      %691 = vdwg.mxu0
      %v692 = vld [vmem:[%s2] sm:$0x1]
      %v694 = vlaneseq
      %v695 = vshrl.u32 %v694, 7
      %v696 = vsub.s32 0, %v695
      %v697 = vrot.slane %v692, %v696
      %v699 = vmul.f32 %v662, %v697
      %v700 = vmul.f32 %v665, %v697
      %v701 = vmul.f32 %v670, %v697
      %v702 = vmul.f32 %v673, %v697
      %v703 = vmul.f32 %v678, %v697
      %v704 = vmul.f32 %v681, %v697
      %v705 = vmul.f32 %v686, %v697
      %v706 = vmul.f32 %v689, %v697
      %v707 = vld [vmem:[%s3] sm:$0x1]
      %v709 = vlaneseq
      %v710 = vshrl.u32 %v709, 7
      %v711 = vsub.s32 0, %v710
      %v712 = vrot.slane %v707, %v711
      %v714 = vadd.f32 %v699, %v712
      %v715 = vadd.f32 %v700, %v712
      %v716 = vadd.f32 %v701, %v712
      %v717 = vadd.f32 %v702, %v712
      %v718 = vadd.f32 %v703, %v712
      %v719 = vadd.f32 %v704, %v712
      %v720 = vadd.f32 %v705, %v712
      %v721 = vadd.f32 %v706, %v712
      %vm722 = vcmp.ge.f32.partialorder %v714, 0.0
      %vm723 = vcmp.ge.f32.partialorder %v715, 0.0
      %vm724 = vcmp.ge.f32.partialorder %v716, 0.0
      %vm725 = vcmp.ge.f32.partialorder %v717, 0.0
      %vm726 = vcmp.ge.f32.partialorder %v718, 0.0
      %vm727 = vcmp.ge.f32.partialorder %v719, 0.0
      %vm728 = vcmp.ge.f32.partialorder %v720, 0.0
      %vm729 = vcmp.ge.f32.partialorder %v721, 0.0
      %v730 = vmul.f32 %v714, 0.2
      %v731 = vmul.f32 %v715, 0.2
      %v732 = vmul.f32 %v716, 0.2
      %v733 = vmul.f32 %v717, 0.2
      %v734 = vmul.f32 %v718, 0.2
      %v735 = vmul.f32 %v719, 0.2
      %v736 = vmul.f32 %v720, 0.2
      %v737 = vmul.f32 %v721, 0.2
      %v738 = vsel %vm722, %v714, %v730
      %v739 = vsel %vm723, %v715, %v731
      %v740 = vsel %vm724, %v716, %v732
      %v741 = vsel %vm725, %v717, %v733
      %v742 = vsel %vm726, %v718, %v734
      %v743 = vsel %vm727, %v719, %v735
      %v744 = vsel %vm728, %v720, %v736
      %v745 = vsel %vm729, %v721, %v737
      %v746 = vpack.c.bf16 %v739, %v738
      %v747 = vpack.c.bf16 %v741, %v740
      %v748 = vpack.c.bf16 %v743, %v742
      %v749 = vpack.c.bf16 %v745, %v744
      %v754 = vunpack.c.l.b16 %v746
      %v755 = vunpack.c.h.b16 %v746
      %v756 = vunpack.c.l.b16 %v747
      %v757 = vunpack.c.h.b16 %v747
      %v758 = vunpack.c.l.b16 %v748
      %v759 = vunpack.c.h.b16 %v748
      %v760 = vunpack.c.l.b16 %v749
      %v761 = vunpack.c.h.b16 %v749
      %v762 = vpack.c.b16 %v754, %v754
      %v763 = vpack.c.b16 %v755, %v755
      %v764 = vpack.c.b16 %v756, %v756
      %v765 = vpack.c.b16 %v757, %v757
      %v766 = vpack.c.b16 %v758, %v758
      %v767 = vpack.c.b16 %v759, %v759
      %v768 = vpack.c.b16 %v760, %v760
      %v769 = vpack.c.b16 %v761, %v761
      %vm778 = vcmask 125952
      %779 = vst.msk [vmem:[%s238] sm:$0xf] %vm778, %v762
      %780 = vst.msk [vmem:[%s238 + $0x4] sm:$0xf] %vm778, %v763
      %781 = vst.msk [vmem:[%s238 + $0x8] sm:$0xf] %vm778, %v764
      %782 = vst.msk [vmem:[%s238 + $0xc] sm:$0xf] %vm778, %v765
      %783 = vst.msk [vmem:[%s238 + $0x10] sm:$0xf] %vm778, %v766
      %784 = vst.msk [vmem:[%s238 + $0x14] sm:$0xf] %vm778, %v767
      %785 = vst.msk [vmem:[%s238 + $0x18] sm:$0xf] %vm778, %v768
      %786 = vst.msk [vmem:[%s238 + $0x1c] sm:$0xf] %vm778, %v769
      %s787 = smul.u32 8, %s20
      %p788 = scmp.lt.s32.totalorder %s19, 1
      %s789 = scalar_select %p788, %s19, 1
      %p790 = scmp.lt.s32.totalorder %s787, 7
      %s791 = scalar_select %p790, %s787, 7
      %s792 = smul.addr %s789, 8
      %s793 = sadd.s32 %s791, %s792
      %s794 = smul.addr %s793, 4
      %s795 = scalar_lea.vmem %s4, %s794
      // Predicated region
      $region37: #{waveunet_forward.18} parent=35 // pred_check
        %p796 = pneg %p138
      $region38: #{waveunet_forward.18} parent=35 // pred_check_branch
        %798 = sbr.rel (%p796) target = $region40
      $region39: #{waveunet_forward.18} parent=35 // pred_region
        %s799 = smul.u32 8, %s20
      $region40: #{waveunet_forward.18} parent=35 // pred_fallthru
        _
    $region36: #{waveunet_forward.18} parent=5 // pred_fallthru
      _
    %p800 = scmp.le.s32.totalorder 2, %s10
    // Predicated region
    $region41: #{waveunet_forward.18} parent=5 // pred_check
      %p801 = pneg %p800
    $region42: #{waveunet_forward.18} parent=5 // pred_check_branch
      %803 = sbr.rel (%p801) target = $region44
    $region43: #{waveunet_forward.18} parent=5 // pred_region
      %s804 = ssub.s32 %s10, 2
      // Predicated region
      $region45: #{waveunet_forward.18} parent=43 // pred_check
        %p805 = pneg %p144
      $region46: #{waveunet_forward.18} parent=43 // pred_check_branch
        %807 = sbr.rel (%p805) target = $region48
      $region47: #{waveunet_forward.18} parent=43 // pred_region
        %s808 = smul.u32 8, %s22
        %p809 = scmp.lt.s32.totalorder %s21, 1
        %s810 = scalar_select %p809, %s21, 1
        %p811 = scmp.lt.s32.totalorder %s808, 7
        %s812 = scalar_select %p811, %s808, 7
        %s813 = smul.addr %s810, 8
        %s814 = sadd.s32 %s812, %s813
        %s815 = smul.addr %s814, 4
        %s816 = scalar_lea.vmem %s4, %s815
      $region48: #{waveunet_forward.18} parent=43 // pred_fallthru
        _
    $region44: #{waveunet_forward.18} parent=5 // pred_fallthru
      _
  $region6: #{waveunet_forward.18} parent=0 // loop_footer
    %s14 = sadd.s32 1, %s10
  $region7: #{waveunet_forward.18} parent=0 // loop_footer_branch
    %9 = sbr.rel target = $region3
  $region8: #{waveunet_forward.18} parent=0 // loop_exit
    _

</llo_original>
